<compile_context>
chip_gen: v6e
topology: v6e:2x2x1
jax: 0.10.0
libtpu: 0.0.40
codegen_flags: <defaults>
</compile_context>

<pallas_src>
import functools
import math

import jax
import jax.numpy as jnp
from jax import lax
from jax.experimental import pallas as pl
from jax.experimental.pallas import tpu as pltpu


# ----------------------------------------------------------------------------
# In-kernel helpers
# ----------------------------------------------------------------------------
def _eye(n, dtype=jnp.float32):
    return (lax.broadcasted_iota(jnp.int32, (n, n), 0)
            == lax.broadcasted_iota(jnp.int32, (n, n), 1)).astype(dtype)


def _gj_inverse(A, eye2d):
    """Batched, fully-unrolled Gauss-Jordan inverse over the last two dims.

    A: (..., n, n) f32, SPD (I + scale * X X^T) -> no pivoting needed.
    All matrices of a layer are passed in ONE call (stacked on leading dims)
    so there is a single n-step dependent chain; pivot rows / pivot elements
    are static slices; one EUP approx reciprocal + Newton refinement per step;
    a single fused rank-1 update (column with pivot entry replaced by
    pivot-1) performs both elimination and pivot-row normalization.
    """
    n = A.shape[-1]
    L = A
    R = jnp.broadcast_to(eye2d, A.shape)
    for i in range(n):
        piv_row_l = L[..., i:i + 1, :]                       # (..., 1, n)
        piv_row_r = R[..., i:i + 1, :]
        p = piv_row_l[..., i:i + 1]                          # (..., 1, 1)
        r0 = pl.reciprocal(p, approx=True)                   # EUP slot
        inv_piv = r0 * (2.0 - p * r0)                        # Newton -> ~f32
        nrow_l = piv_row_l * inv_piv
        nrow_r = piv_row_r * inv_piv
        # column i with its pivot entry replaced by (pivot - 1):
        #   row j != i :  row_j - L[j,i]    * nrow   (elimination)
        #   row j == i :  row_i - (piv - 1) * nrow = nrow (normalization)
        adj_col = L[..., :, i:i + 1] - eye2d[:, i:i + 1]     # (..., n, 1)
        R = R - adj_col * nrow_r
        if i + 1 < n:                        # L never read after last step
            L = L - adj_col * nrow_l
    return R


# ----------------------------------------------------------------------------
# Fused forward kernel
# ----------------------------------------------------------------------------
def _mcrnet_kernel(aug_ref, w2d_ref, add_ref, lnw_ref, lnb_ref, proj_ref,
                   hlnw_ref, hlnb_ref, hw_ref, hb_ref, o_ref, *,
                   batch, seq, num_layers, num_subspaces,
                   alpha, beta, c1, c2, ln_eps):
    B, N, K = batch, seq, num_subspaces
    D = w2d_ref.shape[1]
    P = D // K
    f32 = jnp.float32

    # ---- tokenizer: patch-embedding GEMM (the Conv2d). Register rows of
    # `aug` are zero and their additive term carries the register values,
    # patch rows carry the conv bias -> no concat needed anywhere.
    x2d = (jnp.dot(aug_ref[...], w2d_ref[...], preferred_element_type=f32)
           + add_ref[...])                                   # (B*N, D)
    x = x2d.reshape(B, N, D)

    eye_n = _eye(N)
    eye_p = eye_n if P == N else _eye(P)

    # ---- PreNorm(DeltaRLayer) stack, fully unrolled; x never leaves VMEM ----
    for l in range(num_layers):
        g = lnw_ref[l:l + 1, :]                              # (1, D)
        bb = lnb_ref[l:l + 1, :]
        Proj = proj_ref[l]                                   # (D, D), row e=(k,p)

        mu = jnp.mean(x, axis=-1, keepdims=True)
        var = jnp.mean((x - mu) ** 2, axis=-1, keepdims=True)
        y = (x - mu) * lax.rsqrt(var + ln_eps) * g + bb      # (B, N, D)

        # token gram (expansion) + ALL subspace projections in two D-wide
        # matmuls; projector stays un-batched.
        cov = jnp.einsum('bnd,bmd->bnm', y, y,
                         preferred_element_type=f32)         # (B, N, N)
        proj_all = jnp.einsum('bnd,ed->bne', y, Proj,
                              preferred_element_type=f32)    # (B, N, D)
        proj_t = jnp.swapaxes(proj_all, 1, 2)                # (B, D, N)

        # Stack the expansion matrix and the K compression matrices and invert
        # them with ONE batched Gauss-Jordan call (single dependent chain).
        mats = [alpha * cov + eye_n]
        for k in range(K):
            pt_k = proj_t[:, k * P:(k + 1) * P, :]           # (B, P, N)
            pcov = jnp.einsum('bpn,bqn->bpq', pt_k, pt_k,
                              preferred_element_type=f32)    # (B, P, P)
            mats.append(beta * pcov + eye_p)

        if P == N:
            inv_all = _gj_inverse(jnp.stack(mats, axis=0), eye_n)  # (1+K,B,n,n)
            S = inv_all[0]                                   # (B, N, N)
            Sts = [inv_all[1 + k] for k in range(K)]         # each (B, P, P)
        else:
            S = _gj_inverse(mats[0], eye_n)
            inv_c = _gj_inverse(jnp.stack(mats[1:], axis=0), eye_p)
            Sts = [inv_c[k] for k in range(K)]

        # expansion term (S symmetric -> S @ y)
        exp_t = jnp.einsum('bnm,bmd->bnd', S, y,
                           preferred_element_type=f32)       # (B, N, D)

        # compression term: per-k shrink, then ONE (B,N,K*P)@(D,D) lift.
        w_parts = []
        for k in range(K):
            ps_k = proj_all[:, :, k * P:(k + 1) * P]         # (B, N, P)
            w_parts.append(jnp.einsum('bnp,bpq->bnq', ps_k, Sts[k],
                                      preferred_element_type=f32))
        w = jnp.concatenate(w_parts, axis=-1)                # (B, N, D)
        comp = jnp.einsum('bne,ed->bnd', w, Proj,
                          preferred_element_type=f32)        # (B, N, D)

        # constants folded: c1 = step*alpha*(D+N), c2 = step*beta*(P+N)
        x = y + c1 * exp_t - c2 * comp

    # ---- classifier head on token 0 (first register): LayerNorm + Linear ----
    cls = x[:, 0, :]                                         # (B, D)
    mu = jnp.mean(cls, axis=-1, keepdims=True)
    var = jnp.mean((cls - mu) ** 2, axis=-1, keepdims=True)
    cls_n = (cls - mu) * lax.rsqrt(var + ln_eps) * hlnw_ref[...] + hlnb_ref[...]
    o_ref[...] = (jnp.dot(cls_n, hw_ref[...], preferred_element_type=f32)
                  + hb_ref[...])


# ----------------------------------------------------------------------------
# Wrapper: one fused pallas_call for the whole forward pass
# ----------------------------------------------------------------------------
def _full_spec(shape):
    nd = len(shape)
    return pl.BlockSpec(shape, lambda i, _nd=nd: (0,) * _nd)


def mcrnet_forward(x, params, cfg):
    B, C, H, W = x.shape
    ph, pw = cfg["patch_h"], cfg["patch_w"]
    D = cfg["embedding_dim"]
    K = cfg["num_subspaces"]
    R = cfg["num_registers"]
    L = cfg["num_layers"]
    Cc = cfg["num_classes"]
    Hp, Wp = H // ph, W // pw
    npatch = Hp * Wp
    N = npatch + R
    P = D // K
    Kd = C * ph * pw

    qe = cfg["quantization_error"]
    step = cfg["step_size"]
    alpha = D / N / qe ** 2
    beta = P / N / qe ** 2
    c1 = step * alpha * (D + N)
    c2 = step * beta * (P + N)

    # --- trace-time glue (tiny; fused by XLA, runs once before the kernel) ---
    patches = (x.reshape(B, C, Hp, ph, Wp, pw)
                 .transpose(0, 2, 4, 1, 3, 5)
                 .reshape(B, npatch, Kd))
    # GEMM input: zero rows for register tokens, flattened patches otherwise.
    aug = jnp.concatenate(
        [jnp.zeros((B, R, Kd), jnp.float32), patches], axis=1).reshape(B * N, Kd)
    # GEMM additive term: register values for register rows, conv bias otherwise.
    regs = jnp.broadcast_to(params["registers"], (B, R, D))
    brows = jnp.broadcast_to(params["conv_b"][None, None, :], (B, npatch, D))
    add = jnp.concatenate([regs, brows], axis=1).reshape(B * N, D)
    w2d = params["conv_w"].reshape(D, Kd).T                   # ((c,u,v), d)

    ln_w = jnp.stack([lp["ln_w"] for lp in params["layers"]])            # (L, D)
    ln_b = jnp.stack([lp["ln_b"] for lp in params["layers"]])            # (L, D)
    # projectors of each layer stacked as ONE (D, D) matrix, row e = (k, p)
    projs = jnp.stack([lp["projectors"].reshape(K * P, D)
                       for lp in params["layers"]])                      # (L, D, D)

    kernel = functools.partial(
        _mcrnet_kernel, batch=B, seq=N, num_layers=L, num_subspaces=K,
        alpha=alpha, beta=beta, c1=c1, c2=c2, ln_eps=1e-5)

    return pl.pallas_call(
        kernel,
        out_shape=jax.ShapeDtypeStruct((B, Cc), jnp.float32),
        grid=(1,),
        in_specs=[_full_spec((B * N, Kd)), _full_spec((Kd, D)),
                  _full_spec((B * N, D)),
                  _full_spec((L, D)), _full_spec((L, D)),
                  _full_spec((L, D, D)),
                  _full_spec((1, D)), _full_spec((1, D)),
                  _full_spec((D, Cc)), _full_spec((1, Cc))],
        out_specs=_full_spec((B, Cc)),
        compiler_params=pltpu.CompilerParams(
            dimension_semantics=("arbitrary",)),
    )(aug, w2d, add, ln_w, ln_b, projs,
      params["post_ln_w"][None, :], params["post_ln_b"][None, :],
      params["post_w"], params["post_b"][None, :])


# ----------------------------------------------------------------------------
# Deterministic parameter init (synthetic; mirrors module shapes)
# ----------------------------------------------------------------------------
def init_params(key, cfg):
    D = cfg["embedding_dim"]
    C = cfg["input_c"]
    ph, pw = cfg["patch_h"], cfg["patch_w"]
    R = cfg["num_registers"]
    K = cfg["num_subspaces"]
    P = D // K
    keys = jax.random.split(key, 6 + cfg["num_layers"])

    conv_w = jax.random.normal(keys[0], (D, C, ph, pw), jnp.float32) \
        * (1.0 / math.sqrt(C * ph * pw))
    conv_b = jax.random.normal(keys[1], (D,), jnp.float32) * 0.01
    registers = jax.random.normal(keys[2], (1, R, D), jnp.float32) / math.sqrt(D)

    layers = []
    for li in range(cfg["num_layers"]):
        m = jax.random.normal(keys[6 + li], (D, D), jnp.float32)
        subspaces, _ = jnp.linalg.qr(m)          # orthogonal init (init.orthogonal_)
        # rearrange 'd (k p) -> k p d'
        projectors = subspaces.T.reshape(K, P, D)
        layers.append({"ln_w": jnp.ones((D,), jnp.float32),
                       "ln_b": jnp.zeros((D,), jnp.float32),
                       "projectors": projectors})

    post_w = jax.random.normal(keys[3], (D, cfg["num_classes"]),
                               jnp.float32) / math.sqrt(D)
    post_b = jnp.zeros((cfg["num_classes"],), jnp.float32)
    return {"conv_w": conv_w, "conv_b": conv_b, "registers": registers,
            "layers": layers,
            "post_ln_w": jnp.ones((D,), jnp.float32),
            "post_ln_b": jnp.zeros((D,), jnp.float32),
            "post_w": post_w, "post_b": post_b}


if __name__ == "__main__":
    # NOTE: the reference module reads a global `embedding_dim`; we choose 32.
    cfg = dict(input_h=16, input_w=16, input_c=4, patch_h=8, patch_w=8,
               embedding_dim=32, num_classes=10, num_subspaces=4,
               num_registers=4, num_layers=2, step_size=0.1,
               quantization_error=0.1)
    # seq_length = (16/8)*(16/8) + 4 = 8 tokens, D=32, subspace_dim=8

    key = jax.random.PRNGKey(0)
    pk, xk = jax.random.split(key)
    params = init_params(pk, cfg)
    x = jax.random.normal(
        xk, (2, cfg["input_c"], cfg["input_h"], cfg["input_w"]), jnp.float32)

    fwd = jax.jit(lambda xx, pp: mcrnet_forward(xx, pp, cfg))
    out = fwd(x, params)
    out = jax.block_until_ready(out)
    assert out.shape == (2, cfg["num_classes"]), out.shape
    assert bool(jnp.all(jnp.isfinite(out)))
    print("KERNEL_OK")
</pallas_src>

<mosaic_0001>
module attributes {stable_mosaic.version = 11 : i64} {
  func.func @_mcrnet_kernel(%arg0: i32, %arg1: memref<16x256xf32, #tpu.memory_space<vmem>>, %arg2: memref<256x32xf32, #tpu.memory_space<vmem>>, %arg3: memref<16x32xf32, #tpu.memory_space<vmem>>, %arg4: memref<2x32xf32, #tpu.memory_space<vmem>>, %arg5: memref<2x32xf32, #tpu.memory_space<vmem>>, %arg6: memref<2x32x32xf32, #tpu.memory_space<vmem>>, %arg7: memref<1x32xf32, #tpu.memory_space<vmem>>, %arg8: memref<1x32xf32, #tpu.memory_space<vmem>>, %arg9: memref<32x10xf32, #tpu.memory_space<vmem>>, %arg10: memref<1x10xf32, #tpu.memory_space<vmem>>, %arg11: memref<2x10xf32, #tpu.memory_space<vmem>>) attributes {dimension_semantics = [#tpu.dimension_semantics<arbitrary>], iteration_bounds = array<i64: 1>, scalar_prefetch = 0 : i64, scratch_operands = 0 : i64, tpu.core_type = #tpu.core_type<tc>, window_params = [{pipeline_mode = #tpu.pipeline_mode<synchronous>, transform_indices = @transform_0, window_bounds = array<i64: 16, 256>}, {pipeline_mode = #tpu.pipeline_mode<synchronous>, transform_indices = @transform_1, window_bounds = array<i64: 256, 32>}, {pipeline_mode = #tpu.pipeline_mode<synchronous>, transform_indices = @transform_2, window_bounds = array<i64: 16, 32>}, {pipeline_mode = #tpu.pipeline_mode<synchronous>, transform_indices = @transform_3, window_bounds = array<i64: 2, 32>}, {pipeline_mode = #tpu.pipeline_mode<synchronous>, transform_indices = @transform_4, window_bounds = array<i64: 2, 32>}, {pipeline_mode = #tpu.pipeline_mode<synchronous>, transform_indices = @transform_5, window_bounds = array<i64: 2, 32, 32>}, {pipeline_mode = #tpu.pipeline_mode<synchronous>, transform_indices = @transform_6, window_bounds = array<i64: 1, 32>}, {pipeline_mode = #tpu.pipeline_mode<synchronous>, transform_indices = @transform_7, window_bounds = array<i64: 1, 32>}, {pipeline_mode = #tpu.pipeline_mode<synchronous>, transform_indices = @transform_8, window_bounds = array<i64: 32, 10>}, {pipeline_mode = #tpu.pipeline_mode<synchronous>, transform_indices = @transform_9, window_bounds = array<i64: 1, 10>}, {pipeline_mode = #tpu.pipeline_mode<synchronous>, transform_indices = @transform_10, window_bounds = array<i64: 2, 10>}]} {
    %c0 = arith.constant 0 : index
    %c0_0 = arith.constant 0 : index
    %0 = vector.load %arg1[%c0, %c0_0] : memref<16x256xf32, #tpu.memory_space<vmem>>, vector<16x256xf32>
    %c0_1 = arith.constant 0 : index
    %c0_2 = arith.constant 0 : index
    %1 = vector.load %arg2[%c0_1, %c0_2] : memref<256x32xf32, #tpu.memory_space<vmem>>, vector<256x32xf32>
    %cst = arith.constant dense<0.000000e+00> : vector<16x32xf32>
    %2 = tpu.matmul %0, %1, %cst {dimension_numbers = #tpu.dot_dimension_numbers<[1], [0], [0], [1], [0, 0, 1, 1], [], []>} : vector<16x256xf32>, vector<256x32xf32>, vector<16x32xf32> -> vector<16x32xf32>
    %c0_3 = arith.constant 0 : index
    %c0_4 = arith.constant 0 : index
    %3 = vector.load %arg3[%c0_3, %c0_4] : memref<16x32xf32, #tpu.memory_space<vmem>>, vector<16x32xf32>
    %4 = arith.addf %2, %3 : vector<16x32xf32>
    %5 = vector.shape_cast %4 : vector<16x32xf32> to vector<2x8x32xf32>
    %6 = tpu.iota {dimensions = array<i32: 0>} : vector<8x8xi32>
    %7 = tpu.iota {dimensions = array<i32: 1>} : vector<8x8xi32>
    %8 = arith.cmpi eq, %6, %7 : vector<8x8xi32>
    %9 = arith.extui %8 : vector<8x8xi1> to vector<8x8xi32>
    %10 = arith.sitofp %9 : vector<8x8xi32> to vector<8x8xf32>
    %c0_5 = arith.constant 0 : index
    %c0_6 = arith.constant 0 : index
    %11 = vector.load %arg4[%c0_5, %c0_6] : memref<2x32xf32, #tpu.memory_space<vmem>>, vector<1x32xf32>
    %c0_7 = arith.constant 0 : index
    %c0_8 = arith.constant 0 : index
    %12 = vector.load %arg5[%c0_7, %c0_8] : memref<2x32xf32, #tpu.memory_space<vmem>>, vector<1x32xf32>
    %c0_9 = arith.constant 0 : index
    %c0_10 = arith.constant 0 : index
    %c0_11 = arith.constant 0 : index
    %13 = vector.load %arg6[%c0_9, %c0_10, %c0_11] : memref<2x32x32xf32, #tpu.memory_space<vmem>>, vector<1x32x32xf32>
    %14 = vector.shape_cast %13 : vector<1x32x32xf32> to vector<32x32xf32>
    %cst_12 = arith.constant dense<0.000000e+00> : vector<2x8xf32>
    %15 = vector.multi_reduction <add>, %5, %cst_12 [2] : vector<2x8x32xf32> to vector<2x8xf32>
    %16 = vector.shape_cast %15 : vector<2x8xf32> to vector<2x8x1xf32>
    %cst_13 = arith.constant 3.200000e+01 : f32
    %17 = vector.broadcast %cst_13 : f32 to vector<2x8x1xf32>
    %18 = arith.divf %16, %17 : vector<2x8x1xf32>
    %19 = vector.broadcast %18 : vector<2x8x1xf32> to vector<2x8x32xf32>
    %20 = arith.subf %5, %19 : vector<2x8x32xf32>
    %21 = arith.mulf %20, %20 : vector<2x8x32xf32>
    %cst_14 = arith.constant dense<0.000000e+00> : vector<2x8xf32>
    %22 = vector.multi_reduction <add>, %21, %cst_14 [2] : vector<2x8x32xf32> to vector<2x8xf32>
    %23 = vector.shape_cast %22 : vector<2x8xf32> to vector<2x8x1xf32>
    %cst_15 = arith.constant 3.200000e+01 : f32
    %24 = vector.broadcast %cst_15 : f32 to vector<2x8x1xf32>
    %25 = arith.divf %23, %24 : vector<2x8x1xf32>
    %26 = vector.broadcast %18 : vector<2x8x1xf32> to vector<2x8x32xf32>
    %27 = arith.subf %5, %26 : vector<2x8x32xf32>
    %cst_16 = arith.constant 9.99999974E-6 : f32
    %28 = vector.broadcast %cst_16 : f32 to vector<2x8x1xf32>
    %29 = arith.addf %25, %28 : vector<2x8x1xf32>
    %30 = math.rsqrt %29 : vector<2x8x1xf32>
    %31 = vector.broadcast %30 : vector<2x8x1xf32> to vector<2x8x32xf32>
    %32 = arith.mulf %27, %31 : vector<2x8x32xf32>
    %33 = vector.shape_cast %11 : vector<1x32xf32> to vector<1x1x32xf32>
    %34 = vector.broadcast %33 : vector<1x1x32xf32> to vector<2x8x32xf32>
    %35 = arith.mulf %32, %34 : vector<2x8x32xf32>
    %36 = vector.shape_cast %12 : vector<1x32xf32> to vector<1x1x32xf32>
    %37 = vector.broadcast %36 : vector<1x1x32xf32> to vector<2x8x32xf32>
    %38 = arith.addf %35, %37 : vector<2x8x32xf32>
    "tpu.trace_start"() <{level = 10 : i32, message = "bnd,bmd->bnm"}> : () -> ()
    %cst_17 = arith.constant dense<0.000000e+00> : vector<2x8x8xf32>
    %39 = tpu.matmul %38, %38, %cst_17 {dimension_numbers = #tpu.dot_dimension_numbers<[2], [2], [1], [1], [0, 0, 0, 1, 1, 1], [0], [0]>} : vector<2x8x32xf32>, vector<2x8x32xf32>, vector<2x8x8xf32> -> vector<2x8x8xf32>
    "tpu.trace_stop"() : () -> ()
    "tpu.trace_start"() <{level = 10 : i32, message = "bnd,ed->bne"}> : () -> ()
    %cst_18 = arith.constant dense<0.000000e+00> : vector<2x8x32xf32>
    %40 = tpu.matmul %38, %14, %cst_18 {dimension_numbers = #tpu.dot_dimension_numbers<[2], [1], [0, 1], [0], [0, 0, 0, 1, 1, 0], [], []>} : vector<2x8x32xf32>, vector<32x32xf32>, vector<2x8x32xf32> -> vector<2x8x32xf32>
    "tpu.trace_stop"() : () -> ()
    %41 = tpu.transpose %40, [0, 2, 1] : vector<2x8x32xf32> -> vector<2x32x8xf32>
    %cst_19 = arith.constant 4.000000e+02 : f32
    %42 = vector.broadcast %cst_19 : f32 to vector<2x8x8xf32>
    %43 = arith.mulf %42, %39 : vector<2x8x8xf32>
    %44 = vector.shape_cast %10 : vector<8x8xf32> to vector<1x8x8xf32>
    %45 = vector.broadcast %44 : vector<1x8x8xf32> to vector<2x8x8xf32>
    %46 = arith.addf %43, %45 : vector<2x8x8xf32>
    %47 = vector.extract_strided_slice %41 {offsets = [0, 0, 0], sizes = [2, 8, 8], strides = [1, 1, 1]} : vector<2x32x8xf32> to vector<2x8x8xf32>
    "tpu.trace_start"() <{level = 10 : i32, message = "bpn,bqn->bpq"}> : () -> ()
    %cst_20 = arith.constant dense<0.000000e+00> : vector<2x8x8xf32>
    %48 = tpu.matmul %47, %47, %cst_20 {dimension_numbers = #tpu.dot_dimension_numbers<[2], [2], [1], [1], [0, 0, 0, 1, 1, 1], [0], [0]>} : vector<2x8x8xf32>, vector<2x8x8xf32>, vector<2x8x8xf32> -> vector<2x8x8xf32>
    "tpu.trace_stop"() : () -> ()
    %cst_21 = arith.constant 1.000000e+02 : f32
    %49 = vector.broadcast %cst_21 : f32 to vector<2x8x8xf32>
    %50 = arith.mulf %49, %48 : vector<2x8x8xf32>
    %51 = vector.shape_cast %10 : vector<8x8xf32> to vector<1x8x8xf32>
    %52 = vector.broadcast %51 : vector<1x8x8xf32> to vector<2x8x8xf32>
    %53 = arith.addf %50, %52 : vector<2x8x8xf32>
    %54 = vector.extract_strided_slice %41 {offsets = [0, 8, 0], sizes = [2, 8, 8], strides = [1, 1, 1]} : vector<2x32x8xf32> to vector<2x8x8xf32>
    "tpu.trace_start"() <{level = 10 : i32, message = "bpn,bqn->bpq"}> : () -> ()
    %cst_22 = arith.constant dense<0.000000e+00> : vector<2x8x8xf32>
    %55 = tpu.matmul %54, %54, %cst_22 {dimension_numbers = #tpu.dot_dimension_numbers<[2], [2], [1], [1], [0, 0, 0, 1, 1, 1], [0], [0]>} : vector<2x8x8xf32>, vector<2x8x8xf32>, vector<2x8x8xf32> -> vector<2x8x8xf32>
    "tpu.trace_stop"() : () -> ()
    %cst_23 = arith.constant 1.000000e+02 : f32
    %56 = vector.broadcast %cst_23 : f32 to vector<2x8x8xf32>
    %57 = arith.mulf %56, %55 : vector<2x8x8xf32>
    %58 = vector.shape_cast %10 : vector<8x8xf32> to vector<1x8x8xf32>
    %59 = vector.broadcast %58 : vector<1x8x8xf32> to vector<2x8x8xf32>
    %60 = arith.addf %57, %59 : vector<2x8x8xf32>
    %61 = vector.extract_strided_slice %41 {offsets = [0, 16, 0], sizes = [2, 8, 8], strides = [1, 1, 1]} : vector<2x32x8xf32> to vector<2x8x8xf32>
    "tpu.trace_start"() <{level = 10 : i32, message = "bpn,bqn->bpq"}> : () -> ()
    %cst_24 = arith.constant dense<0.000000e+00> : vector<2x8x8xf32>
    %62 = tpu.matmul %61, %61, %cst_24 {dimension_numbers = #tpu.dot_dimension_numbers<[2], [2], [1], [1], [0, 0, 0, 1, 1, 1], [0], [0]>} : vector<2x8x8xf32>, vector<2x8x8xf32>, vector<2x8x8xf32> -> vector<2x8x8xf32>
    "tpu.trace_stop"() : () -> ()
    %cst_25 = arith.constant 1.000000e+02 : f32
    %63 = vector.broadcast %cst_25 : f32 to vector<2x8x8xf32>
    %64 = arith.mulf %63, %62 : vector<2x8x8xf32>
    %65 = vector.shape_cast %10 : vector<8x8xf32> to vector<1x8x8xf32>
    %66 = vector.broadcast %65 : vector<1x8x8xf32> to vector<2x8x8xf32>
    %67 = arith.addf %64, %66 : vector<2x8x8xf32>
    %68 = vector.extract_strided_slice %41 {offsets = [0, 24, 0], sizes = [2, 8, 8], strides = [1, 1, 1]} : vector<2x32x8xf32> to vector<2x8x8xf32>
    "tpu.trace_start"() <{level = 10 : i32, message = "bpn,bqn->bpq"}> : () -> ()
    %cst_26 = arith.constant dense<0.000000e+00> : vector<2x8x8xf32>
    %69 = tpu.matmul %68, %68, %cst_26 {dimension_numbers = #tpu.dot_dimension_numbers<[2], [2], [1], [1], [0, 0, 0, 1, 1, 1], [0], [0]>} : vector<2x8x8xf32>, vector<2x8x8xf32>, vector<2x8x8xf32> -> vector<2x8x8xf32>
    "tpu.trace_stop"() : () -> ()
    %cst_27 = arith.constant 1.000000e+02 : f32
    %70 = vector.broadcast %cst_27 : f32 to vector<2x8x8xf32>
    %71 = arith.mulf %70, %69 : vector<2x8x8xf32>
    %72 = vector.shape_cast %10 : vector<8x8xf32> to vector<1x8x8xf32>
    %73 = vector.broadcast %72 : vector<1x8x8xf32> to vector<2x8x8xf32>
    %74 = arith.addf %71, %73 : vector<2x8x8xf32>
    %75 = vector.shape_cast %46 : vector<2x8x8xf32> to vector<1x2x8x8xf32>
    %76 = vector.shape_cast %53 : vector<2x8x8xf32> to vector<1x2x8x8xf32>
    %77 = vector.shape_cast %60 : vector<2x8x8xf32> to vector<1x2x8x8xf32>
    %78 = vector.shape_cast %67 : vector<2x8x8xf32> to vector<1x2x8x8xf32>
    %79 = vector.shape_cast %74 : vector<2x8x8xf32> to vector<1x2x8x8xf32>
    %80 = tpu.concatenate %75, %76, %77, %78, %79 in 0 : vector<1x2x8x8xf32>, vector<1x2x8x8xf32>, vector<1x2x8x8xf32>, vector<1x2x8x8xf32>, vector<1x2x8x8xf32> -> vector<5x2x8x8xf32>
    %81 = vector.shape_cast %10 : vector<8x8xf32> to vector<1x1x8x8xf32>
    %82 = vector.broadcast %81 : vector<1x1x8x8xf32> to vector<5x2x8x8xf32>
    %83 = vector.extract_strided_slice %80 {offsets = [0, 0, 0, 0], sizes = [5, 2, 1, 8], strides = [1, 1, 1, 1]} : vector<5x2x8x8xf32> to vector<5x2x1x8xf32>
    %84 = vector.extract_strided_slice %82 {offsets = [0, 0, 0, 0], sizes = [5, 2, 1, 8], strides = [1, 1, 1, 1]} : vector<5x2x8x8xf32> to vector<5x2x1x8xf32>
    %85 = vector.extract_strided_slice %83 {offsets = [0, 0, 0, 0], sizes = [5, 2, 1, 1], strides = [1, 1, 1, 1]} : vector<5x2x1x8xf32> to vector<5x2x1x1xf32>
    %86 = tpu.reciprocal %85 {approx = true} : vector<5x2x1x1xf32> -> vector<5x2x1x1xf32>
    %87 = arith.mulf %85, %86 : vector<5x2x1x1xf32>
    %cst_28 = arith.constant 2.000000e+00 : f32
    %88 = vector.broadcast %cst_28 : f32 to vector<5x2x1x1xf32>
    %89 = arith.subf %88, %87 : vector<5x2x1x1xf32>
    %90 = arith.mulf %86, %89 : vector<5x2x1x1xf32>
    %91 = vector.broadcast %90 : vector<5x2x1x1xf32> to vector<5x2x1x8xf32>
    %92 = arith.mulf %83, %91 : vector<5x2x1x8xf32>
    %93 = vector.broadcast %90 : vector<5x2x1x1xf32> to vector<5x2x1x8xf32>
    %94 = arith.mulf %84, %93 : vector<5x2x1x8xf32>
    %95 = vector.extract_strided_slice %80 {offsets = [0, 0, 0, 0], sizes = [5, 2, 8, 1], strides = [1, 1, 1, 1]} : vector<5x2x8x8xf32> to vector<5x2x8x1xf32>
    %96 = vector.extract_strided_slice %10 {offsets = [0, 0], sizes = [8, 1], strides = [1, 1]} : vector<8x8xf32> to vector<8x1xf32>
    %97 = vector.shape_cast %96 : vector<8x1xf32> to vector<1x1x8x1xf32>
    %98 = vector.broadcast %97 : vector<1x1x8x1xf32> to vector<5x2x8x1xf32>
    %99 = arith.subf %95, %98 : vector<5x2x8x1xf32>
    %100 = vector.broadcast %99 : vector<5x2x8x1xf32> to vector<5x2x8x8xf32>
    %101 = vector.broadcast %94 : vector<5x2x1x8xf32> to vector<5x2x8x8xf32>
    %102 = arith.mulf %100, %101 : vector<5x2x8x8xf32>
    %103 = arith.subf %82, %102 : vector<5x2x8x8xf32>
    %104 = vector.broadcast %99 : vector<5x2x8x1xf32> to vector<5x2x8x8xf32>
    %105 = vector.broadcast %92 : vector<5x2x1x8xf32> to vector<5x2x8x8xf32>
    %106 = arith.mulf %104, %105 : vector<5x2x8x8xf32>
    %107 = arith.subf %80, %106 : vector<5x2x8x8xf32>
    %108 = vector.extract_strided_slice %107 {offsets = [0, 0, 1, 0], sizes = [5, 2, 1, 8], strides = [1, 1, 1, 1]} : vector<5x2x8x8xf32> to vector<5x2x1x8xf32>
    %109 = vector.extract_strided_slice %103 {offsets = [0, 0, 1, 0], sizes = [5, 2, 1, 8], strides = [1, 1, 1, 1]} : vector<5x2x8x8xf32> to vector<5x2x1x8xf32>
    %110 = vector.extract_strided_slice %108 {offsets = [0, 0, 0, 1], sizes = [5, 2, 1, 1], strides = [1, 1, 1, 1]} : vector<5x2x1x8xf32> to vector<5x2x1x1xf32>
    %111 = tpu.reciprocal %110 {approx = true} : vector<5x2x1x1xf32> -> vector<5x2x1x1xf32>
    %112 = arith.mulf %110, %111 : vector<5x2x1x1xf32>
    %cst_29 = arith.constant 2.000000e+00 : f32
    %113 = vector.broadcast %cst_29 : f32 to vector<5x2x1x1xf32>
    %114 = arith.subf %113, %112 : vector<5x2x1x1xf32>
    %115 = arith.mulf %111, %114 : vector<5x2x1x1xf32>
    %116 = vector.broadcast %115 : vector<5x2x1x1xf32> to vector<5x2x1x8xf32>
    %117 = arith.mulf %108, %116 : vector<5x2x1x8xf32>
    %118 = vector.broadcast %115 : vector<5x2x1x1xf32> to vector<5x2x1x8xf32>
    %119 = arith.mulf %109, %118 : vector<5x2x1x8xf32>
    %120 = vector.extract_strided_slice %107 {offsets = [0, 0, 0, 1], sizes = [5, 2, 8, 1], strides = [1, 1, 1, 1]} : vector<5x2x8x8xf32> to vector<5x2x8x1xf32>
    %121 = vector.extract_strided_slice %10 {offsets = [0, 1], sizes = [8, 1], strides = [1, 1]} : vector<8x8xf32> to vector<8x1xf32>
    %122 = vector.shape_cast %121 : vector<8x1xf32> to vector<1x1x8x1xf32>
    %123 = vector.broadcast %122 : vector<1x1x8x1xf32> to vector<5x2x8x1xf32>
    %124 = arith.subf %120, %123 : vector<5x2x8x1xf32>
    %125 = vector.broadcast %124 : vector<5x2x8x1xf32> to vector<5x2x8x8xf32>
    %126 = vector.broadcast %119 : vector<5x2x1x8xf32> to vector<5x2x8x8xf32>
    %127 = arith.mulf %125, %126 : vector<5x2x8x8xf32>
    %128 = arith.subf %103, %127 : vector<5x2x8x8xf32>
    %129 = vector.broadcast %124 : vector<5x2x8x1xf32> to vector<5x2x8x8xf32>
    %130 = vector.broadcast %117 : vector<5x2x1x8xf32> to vector<5x2x8x8xf32>
    %131 = arith.mulf %129, %130 : vector<5x2x8x8xf32>
    %132 = arith.subf %107, %131 : vector<5x2x8x8xf32>
    %133 = vector.extract_strided_slice %132 {offsets = [0, 0, 2, 0], sizes = [5, 2, 1, 8], strides = [1, 1, 1, 1]} : vector<5x2x8x8xf32> to vector<5x2x1x8xf32>
    %134 = vector.extract_strided_slice %128 {offsets = [0, 0, 2, 0], sizes = [5, 2, 1, 8], strides = [1, 1, 1, 1]} : vector<5x2x8x8xf32> to vector<5x2x1x8xf32>
    %135 = vector.extract_strided_slice %133 {offsets = [0, 0, 0, 2], sizes = [5, 2, 1, 1], strides = [1, 1, 1, 1]} : vector<5x2x1x8xf32> to vector<5x2x1x1xf32>
    %136 = tpu.reciprocal %135 {approx = true} : vector<5x2x1x1xf32> -> vector<5x2x1x1xf32>
    %137 = arith.mulf %135, %136 : vector<5x2x1x1xf32>
    %cst_30 = arith.constant 2.000000e+00 : f32
    %138 = vector.broadcast %cst_30 : f32 to vector<5x2x1x1xf32>
    %139 = arith.subf %138, %137 : vector<5x2x1x1xf32>
    %140 = arith.mulf %136, %139 : vector<5x2x1x1xf32>
    %141 = vector.broadcast %140 : vector<5x2x1x1xf32> to vector<5x2x1x8xf32>
    %142 = arith.mulf %133, %141 : vector<5x2x1x8xf32>
    %143 = vector.broadcast %140 : vector<5x2x1x1xf32> to vector<5x2x1x8xf32>
    %144 = arith.mulf %134, %143 : vector<5x2x1x8xf32>
    %145 = vector.extract_strided_slice %132 {offsets = [0, 0, 0, 2], sizes = [5, 2, 8, 1], strides = [1, 1, 1, 1]} : vector<5x2x8x8xf32> to vector<5x2x8x1xf32>
    %146 = vector.extract_strided_slice %10 {offsets = [0, 2], sizes = [8, 1], strides = [1, 1]} : vector<8x8xf32> to vector<8x1xf32>
    %147 = vector.shape_cast %146 : vector<8x1xf32> to vector<1x1x8x1xf32>
    %148 = vector.broadcast %147 : vector<1x1x8x1xf32> to vector<5x2x8x1xf32>
    %149 = arith.subf %145, %148 : vector<5x2x8x1xf32>
    %150 = vector.broadcast %149 : vector<5x2x8x1xf32> to vector<5x2x8x8xf32>
    %151 = vector.broadcast %144 : vector<5x2x1x8xf32> to vector<5x2x8x8xf32>
    %152 = arith.mulf %150, %151 : vector<5x2x8x8xf32>
    %153 = arith.subf %128, %152 : vector<5x2x8x8xf32>
    %154 = vector.broadcast %149 : vector<5x2x8x1xf32> to vector<5x2x8x8xf32>
    %155 = vector.broadcast %142 : vector<5x2x1x8xf32> to vector<5x2x8x8xf32>
    %156 = arith.mulf %154, %155 : vector<5x2x8x8xf32>
    %157 = arith.subf %132, %156 : vector<5x2x8x8xf32>
    %158 = vector.extract_strided_slice %157 {offsets = [0, 0, 3, 0], sizes = [5, 2, 1, 8], strides = [1, 1, 1, 1]} : vector<5x2x8x8xf32> to vector<5x2x1x8xf32>
    %159 = vector.extract_strided_slice %153 {offsets = [0, 0, 3, 0], sizes = [5, 2, 1, 8], strides = [1, 1, 1, 1]} : vector<5x2x8x8xf32> to vector<5x2x1x8xf32>
    %160 = vector.extract_strided_slice %158 {offsets = [0, 0, 0, 3], sizes = [5, 2, 1, 1], strides = [1, 1, 1, 1]} : vector<5x2x1x8xf32> to vector<5x2x1x1xf32>
    %161 = tpu.reciprocal %160 {approx = true} : vector<5x2x1x1xf32> -> vector<5x2x1x1xf32>
    %162 = arith.mulf %160, %161 : vector<5x2x1x1xf32>
    %cst_31 = arith.constant 2.000000e+00 : f32
    %163 = vector.broadcast %cst_31 : f32 to vector<5x2x1x1xf32>
    %164 = arith.subf %163, %162 : vector<5x2x1x1xf32>
    %165 = arith.mulf %161, %164 : vector<5x2x1x1xf32>
    %166 = vector.broadcast %165 : vector<5x2x1x1xf32> to vector<5x2x1x8xf32>
    %167 = arith.mulf %158, %166 : vector<5x2x1x8xf32>
    %168 = vector.broadcast %165 : vector<5x2x1x1xf32> to vector<5x2x1x8xf32>
    %169 = arith.mulf %159, %168 : vector<5x2x1x8xf32>
    %170 = vector.extract_strided_slice %157 {offsets = [0, 0, 0, 3], sizes = [5, 2, 8, 1], strides = [1, 1, 1, 1]} : vector<5x2x8x8xf32> to vector<5x2x8x1xf32>
    %171 = vector.extract_strided_slice %10 {offsets = [0, 3], sizes = [8, 1], strides = [1, 1]} : vector<8x8xf32> to vector<8x1xf32>
    %172 = vector.shape_cast %171 : vector<8x1xf32> to vector<1x1x8x1xf32>
    %173 = vector.broadcast %172 : vector<1x1x8x1xf32> to vector<5x2x8x1xf32>
    %174 = arith.subf %170, %173 : vector<5x2x8x1xf32>
    %175 = vector.broadcast %174 : vector<5x2x8x1xf32> to vector<5x2x8x8xf32>
    %176 = vector.broadcast %169 : vector<5x2x1x8xf32> to vector<5x2x8x8xf32>
    %177 = arith.mulf %175, %176 : vector<5x2x8x8xf32>
    %178 = arith.subf %153, %177 : vector<5x2x8x8xf32>
    %179 = vector.broadcast %174 : vector<5x2x8x1xf32> to vector<5x2x8x8xf32>
    %180 = vector.broadcast %167 : vector<5x2x1x8xf32> to vector<5x2x8x8xf32>
    %181 = arith.mulf %179, %180 : vector<5x2x8x8xf32>
    %182 = arith.subf %157, %181 : vector<5x2x8x8xf32>
    %183 = vector.extract_strided_slice %182 {offsets = [0, 0, 4, 0], sizes = [5, 2, 1, 8], strides = [1, 1, 1, 1]} : vector<5x2x8x8xf32> to vector<5x2x1x8xf32>
    %184 = vector.extract_strided_slice %178 {offsets = [0, 0, 4, 0], sizes = [5, 2, 1, 8], strides = [1, 1, 1, 1]} : vector<5x2x8x8xf32> to vector<5x2x1x8xf32>
    %185 = vector.extract_strided_slice %183 {offsets = [0, 0, 0, 4], sizes = [5, 2, 1, 1], strides = [1, 1, 1, 1]} : vector<5x2x1x8xf32> to vector<5x2x1x1xf32>
    %186 = tpu.reciprocal %185 {approx = true} : vector<5x2x1x1xf32> -> vector<5x2x1x1xf32>
    %187 = arith.mulf %185, %186 : vector<5x2x1x1xf32>
    %cst_32 = arith.constant 2.000000e+00 : f32
    %188 = vector.broadcast %cst_32 : f32 to vector<5x2x1x1xf32>
    %189 = arith.subf %188, %187 : vector<5x2x1x1xf32>
    %190 = arith.mulf %186, %189 : vector<5x2x1x1xf32>
    %191 = vector.broadcast %190 : vector<5x2x1x1xf32> to vector<5x2x1x8xf32>
    %192 = arith.mulf %183, %191 : vector<5x2x1x8xf32>
    %193 = vector.broadcast %190 : vector<5x2x1x1xf32> to vector<5x2x1x8xf32>
    %194 = arith.mulf %184, %193 : vector<5x2x1x8xf32>
    %195 = vector.extract_strided_slice %182 {offsets = [0, 0, 0, 4], sizes = [5, 2, 8, 1], strides = [1, 1, 1, 1]} : vector<5x2x8x8xf32> to vector<5x2x8x1xf32>
    %196 = vector.extract_strided_slice %10 {offsets = [0, 4], sizes = [8, 1], strides = [1, 1]} : vector<8x8xf32> to vector<8x1xf32>
    %197 = vector.shape_cast %196 : vector<8x1xf32> to vector<1x1x8x1xf32>
    %198 = vector.broadcast %197 : vector<1x1x8x1xf32> to vector<5x2x8x1xf32>
    %199 = arith.subf %195, %198 : vector<5x2x8x1xf32>
    %200 = vector.broadcast %199 : vector<5x2x8x1xf32> to vector<5x2x8x8xf32>
    %201 = vector.broadcast %194 : vector<5x2x1x8xf32> to vector<5x2x8x8xf32>
    %202 = arith.mulf %200, %201 : vector<5x2x8x8xf32>
    %203 = arith.subf %178, %202 : vector<5x2x8x8xf32>
    %204 = vector.broadcast %199 : vector<5x2x8x1xf32> to vector<5x2x8x8xf32>
    %205 = vector.broadcast %192 : vector<5x2x1x8xf32> to vector<5x2x8x8xf32>
    %206 = arith.mulf %204, %205 : vector<5x2x8x8xf32>
    %207 = arith.subf %182, %206 : vector<5x2x8x8xf32>
    %208 = vector.extract_strided_slice %207 {offsets = [0, 0, 5, 0], sizes = [5, 2, 1, 8], strides = [1, 1, 1, 1]} : vector<5x2x8x8xf32> to vector<5x2x1x8xf32>
    %209 = vector.extract_strided_slice %203 {offsets = [0, 0, 5, 0], sizes = [5, 2, 1, 8], strides = [1, 1, 1, 1]} : vector<5x2x8x8xf32> to vector<5x2x1x8xf32>
    %210 = vector.extract_strided_slice %208 {offsets = [0, 0, 0, 5], sizes = [5, 2, 1, 1], strides = [1, 1, 1, 1]} : vector<5x2x1x8xf32> to vector<5x2x1x1xf32>
    %211 = tpu.reciprocal %210 {approx = true} : vector<5x2x1x1xf32> -> vector<5x2x1x1xf32>
    %212 = arith.mulf %210, %211 : vector<5x2x1x1xf32>
    %cst_33 = arith.constant 2.000000e+00 : f32
    %213 = vector.broadcast %cst_33 : f32 to vector<5x2x1x1xf32>
    %214 = arith.subf %213, %212 : vector<5x2x1x1xf32>
    %215 = arith.mulf %211, %214 : vector<5x2x1x1xf32>
    %216 = vector.broadcast %215 : vector<5x2x1x1xf32> to vector<5x2x1x8xf32>
    %217 = arith.mulf %208, %216 : vector<5x2x1x8xf32>
    %218 = vector.broadcast %215 : vector<5x2x1x1xf32> to vector<5x2x1x8xf32>
    %219 = arith.mulf %209, %218 : vector<5x2x1x8xf32>
    %220 = vector.extract_strided_slice %207 {offsets = [0, 0, 0, 5], sizes = [5, 2, 8, 1], strides = [1, 1, 1, 1]} : vector<5x2x8x8xf32> to vector<5x2x8x1xf32>
    %221 = vector.extract_strided_slice %10 {offsets = [0, 5], sizes = [8, 1], strides = [1, 1]} : vector<8x8xf32> to vector<8x1xf32>
    %222 = vector.shape_cast %221 : vector<8x1xf32> to vector<1x1x8x1xf32>
    %223 = vector.broadcast %222 : vector<1x1x8x1xf32> to vector<5x2x8x1xf32>
    %224 = arith.subf %220, %223 : vector<5x2x8x1xf32>
    %225 = vector.broadcast %224 : vector<5x2x8x1xf32> to vector<5x2x8x8xf32>
    %226 = vector.broadcast %219 : vector<5x2x1x8xf32> to vector<5x2x8x8xf32>
    %227 = arith.mulf %225, %226 : vector<5x2x8x8xf32>
    %228 = arith.subf %203, %227 : vector<5x2x8x8xf32>
    %229 = vector.broadcast %224 : vector<5x2x8x1xf32> to vector<5x2x8x8xf32>
    %230 = vector.broadcast %217 : vector<5x2x1x8xf32> to vector<5x2x8x8xf32>
    %231 = arith.mulf %229, %230 : vector<5x2x8x8xf32>
    %232 = arith.subf %207, %231 : vector<5x2x8x8xf32>
    %233 = vector.extract_strided_slice %232 {offsets = [0, 0, 6, 0], sizes = [5, 2, 1, 8], strides = [1, 1, 1, 1]} : vector<5x2x8x8xf32> to vector<5x2x1x8xf32>
    %234 = vector.extract_strided_slice %228 {offsets = [0, 0, 6, 0], sizes = [5, 2, 1, 8], strides = [1, 1, 1, 1]} : vector<5x2x8x8xf32> to vector<5x2x1x8xf32>
    %235 = vector.extract_strided_slice %233 {offsets = [0, 0, 0, 6], sizes = [5, 2, 1, 1], strides = [1, 1, 1, 1]} : vector<5x2x1x8xf32> to vector<5x2x1x1xf32>
    %236 = tpu.reciprocal %235 {approx = true} : vector<5x2x1x1xf32> -> vector<5x2x1x1xf32>
    %237 = arith.mulf %235, %236 : vector<5x2x1x1xf32>
    %cst_34 = arith.constant 2.000000e+00 : f32
    %238 = vector.broadcast %cst_34 : f32 to vector<5x2x1x1xf32>
    %239 = arith.subf %238, %237 : vector<5x2x1x1xf32>
    %240 = arith.mulf %236, %239 : vector<5x2x1x1xf32>
    %241 = vector.broadcast %240 : vector<5x2x1x1xf32> to vector<5x2x1x8xf32>
    %242 = arith.mulf %233, %241 : vector<5x2x1x8xf32>
    %243 = vector.broadcast %240 : vector<5x2x1x1xf32> to vector<5x2x1x8xf32>
    %244 = arith.mulf %234, %243 : vector<5x2x1x8xf32>
    %245 = vector.extract_strided_slice %232 {offsets = [0, 0, 0, 6], sizes = [5, 2, 8, 1], strides = [1, 1, 1, 1]} : vector<5x2x8x8xf32> to vector<5x2x8x1xf32>
    %246 = vector.extract_strided_slice %10 {offsets = [0, 6], sizes = [8, 1], strides = [1, 1]} : vector<8x8xf32> to vector<8x1xf32>
    %247 = vector.shape_cast %246 : vector<8x1xf32> to vector<1x1x8x1xf32>
    %248 = vector.broadcast %247 : vector<1x1x8x1xf32> to vector<5x2x8x1xf32>
    %249 = arith.subf %245, %248 : vector<5x2x8x1xf32>
    %250 = vector.broadcast %249 : vector<5x2x8x1xf32> to vector<5x2x8x8xf32>
    %251 = vector.broadcast %244 : vector<5x2x1x8xf32> to vector<5x2x8x8xf32>
    %252 = arith.mulf %250, %251 : vector<5x2x8x8xf32>
    %253 = arith.subf %228, %252 : vector<5x2x8x8xf32>
    %254 = vector.broadcast %249 : vector<5x2x8x1xf32> to vector<5x2x8x8xf32>
    %255 = vector.broadcast %242 : vector<5x2x1x8xf32> to vector<5x2x8x8xf32>
    %256 = arith.mulf %254, %255 : vector<5x2x8x8xf32>
    %257 = arith.subf %232, %256 : vector<5x2x8x8xf32>
    %258 = vector.extract_strided_slice %257 {offsets = [0, 0, 7, 0], sizes = [5, 2, 1, 8], strides = [1, 1, 1, 1]} : vector<5x2x8x8xf32> to vector<5x2x1x8xf32>
    %259 = vector.extract_strided_slice %253 {offsets = [0, 0, 7, 0], sizes = [5, 2, 1, 8], strides = [1, 1, 1, 1]} : vector<5x2x8x8xf32> to vector<5x2x1x8xf32>
    %260 = vector.extract_strided_slice %258 {offsets = [0, 0, 0, 7], sizes = [5, 2, 1, 1], strides = [1, 1, 1, 1]} : vector<5x2x1x8xf32> to vector<5x2x1x1xf32>
    %261 = tpu.reciprocal %260 {approx = true} : vector<5x2x1x1xf32> -> vector<5x2x1x1xf32>
    %262 = arith.mulf %260, %261 : vector<5x2x1x1xf32>
    %cst_35 = arith.constant 2.000000e+00 : f32
    %263 = vector.broadcast %cst_35 : f32 to vector<5x2x1x1xf32>
    %264 = arith.subf %263, %262 : vector<5x2x1x1xf32>
    %265 = arith.mulf %261, %264 : vector<5x2x1x1xf32>
    %266 = vector.broadcast %265 : vector<5x2x1x1xf32> to vector<5x2x1x8xf32>
    %267 = arith.mulf %259, %266 : vector<5x2x1x8xf32>
    %268 = vector.extract_strided_slice %257 {offsets = [0, 0, 0, 7], sizes = [5, 2, 8, 1], strides = [1, 1, 1, 1]} : vector<5x2x8x8xf32> to vector<5x2x8x1xf32>
    %269 = vector.extract_strided_slice %10 {offsets = [0, 7], sizes = [8, 1], strides = [1, 1]} : vector<8x8xf32> to vector<8x1xf32>
    %270 = vector.shape_cast %269 : vector<8x1xf32> to vector<1x1x8x1xf32>
    %271 = vector.broadcast %270 : vector<1x1x8x1xf32> to vector<5x2x8x1xf32>
    %272 = arith.subf %268, %271 : vector<5x2x8x1xf32>
    %273 = vector.broadcast %272 : vector<5x2x8x1xf32> to vector<5x2x8x8xf32>
    %274 = vector.broadcast %267 : vector<5x2x1x8xf32> to vector<5x2x8x8xf32>
    %275 = arith.mulf %273, %274 : vector<5x2x8x8xf32>
    %276 = arith.subf %253, %275 : vector<5x2x8x8xf32>
    %277 = vector.extract_strided_slice %276 {offsets = [0, 0, 0, 0], sizes = [1, 2, 8, 8], strides = [1, 1, 1, 1]} : vector<5x2x8x8xf32> to vector<1x2x8x8xf32>
    %278 = vector.shape_cast %277 : vector<1x2x8x8xf32> to vector<2x8x8xf32>
    %279 = vector.extract_strided_slice %276 {offsets = [1, 0, 0, 0], sizes = [1, 2, 8, 8], strides = [1, 1, 1, 1]} : vector<5x2x8x8xf32> to vector<1x2x8x8xf32>
    %280 = vector.shape_cast %279 : vector<1x2x8x8xf32> to vector<2x8x8xf32>
    %281 = vector.extract_strided_slice %276 {offsets = [2, 0, 0, 0], sizes = [1, 2, 8, 8], strides = [1, 1, 1, 1]} : vector<5x2x8x8xf32> to vector<1x2x8x8xf32>
    %282 = vector.shape_cast %281 : vector<1x2x8x8xf32> to vector<2x8x8xf32>
    %283 = vector.extract_strided_slice %276 {offsets = [3, 0, 0, 0], sizes = [1, 2, 8, 8], strides = [1, 1, 1, 1]} : vector<5x2x8x8xf32> to vector<1x2x8x8xf32>
    %284 = vector.shape_cast %283 : vector<1x2x8x8xf32> to vector<2x8x8xf32>
    %285 = vector.extract_strided_slice %276 {offsets = [4, 0, 0, 0], sizes = [1, 2, 8, 8], strides = [1, 1, 1, 1]} : vector<5x2x8x8xf32> to vector<1x2x8x8xf32>
    %286 = vector.shape_cast %285 : vector<1x2x8x8xf32> to vector<2x8x8xf32>
    "tpu.trace_start"() <{level = 10 : i32, message = "bnm,bmd->bnd"}> : () -> ()
    %cst_36 = arith.constant dense<0.000000e+00> : vector<2x8x32xf32>
    %287 = tpu.matmul %278, %38, %cst_36 {dimension_numbers = #tpu.dot_dimension_numbers<[2], [1], [1], [2], [0, 0, 0, 1, 1, 2], [0], [0]>} : vector<2x8x8xf32>, vector<2x8x32xf32>, vector<2x8x32xf32> -> vector<2x8x32xf32>
    "tpu.trace_stop"() : () -> ()
    %288 = vector.extract_strided_slice %40 {offsets = [0, 0, 0], sizes = [2, 8, 8], strides = [1, 1, 1]} : vector<2x8x32xf32> to vector<2x8x8xf32>
    "tpu.trace_start"() <{level = 10 : i32, message = "bnp,bpq->bnq"}> : () -> ()
    %cst_37 = arith.constant dense<0.000000e+00> : vector<2x8x8xf32>
    %289 = tpu.matmul %288, %280, %cst_37 {dimension_numbers = #tpu.dot_dimension_numbers<[2], [1], [1], [2], [0, 0, 0, 1, 1, 2], [0], [0]>} : vector<2x8x8xf32>, vector<2x8x8xf32>, vector<2x8x8xf32> -> vector<2x8x8xf32>
    "tpu.trace_stop"() : () -> ()
    %290 = vector.extract_strided_slice %40 {offsets = [0, 0, 8], sizes = [2, 8, 8], strides = [1, 1, 1]} : vector<2x8x32xf32> to vector<2x8x8xf32>
    "tpu.trace_start"() <{level = 10 : i32, message = "bnp,bpq->bnq"}> : () -> ()
    %cst_38 = arith.constant dense<0.000000e+00> : vector<2x8x8xf32>
    %291 = tpu.matmul %290, %282, %cst_38 {dimension_numbers = #tpu.dot_dimension_numbers<[2], [1], [1], [2], [0, 0, 0, 1, 1, 2], [0], [0]>} : vector<2x8x8xf32>, vector<2x8x8xf32>, vector<2x8x8xf32> -> vector<2x8x8xf32>
    "tpu.trace_stop"() : () -> ()
    %292 = vector.extract_strided_slice %40 {offsets = [0, 0, 16], sizes = [2, 8, 8], strides = [1, 1, 1]} : vector<2x8x32xf32> to vector<2x8x8xf32>
    "tpu.trace_start"() <{level = 10 : i32, message = "bnp,bpq->bnq"}> : () -> ()
    %cst_39 = arith.constant dense<0.000000e+00> : vector<2x8x8xf32>
    %293 = tpu.matmul %292, %284, %cst_39 {dimension_numbers = #tpu.dot_dimension_numbers<[2], [1], [1], [2], [0, 0, 0, 1, 1, 2], [0], [0]>} : vector<2x8x8xf32>, vector<2x8x8xf32>, vector<2x8x8xf32> -> vector<2x8x8xf32>
    "tpu.trace_stop"() : () -> ()
    %294 = vector.extract_strided_slice %40 {offsets = [0, 0, 24], sizes = [2, 8, 8], strides = [1, 1, 1]} : vector<2x8x32xf32> to vector<2x8x8xf32>
    "tpu.trace_start"() <{level = 10 : i32, message = "bnp,bpq->bnq"}> : () -> ()
    %cst_40 = arith.constant dense<0.000000e+00> : vector<2x8x8xf32>
    %295 = tpu.matmul %294, %286, %cst_40 {dimension_numbers = #tpu.dot_dimension_numbers<[2], [1], [1], [2], [0, 0, 0, 1, 1, 2], [0], [0]>} : vector<2x8x8xf32>, vector<2x8x8xf32>, vector<2x8x8xf32> -> vector<2x8x8xf32>
    "tpu.trace_stop"() : () -> ()
    %296 = tpu.concatenate %289, %291, %293, %295 in 2 : vector<2x8x8xf32>, vector<2x8x8xf32>, vector<2x8x8xf32>, vector<2x8x8xf32> -> vector<2x8x32xf32>
    "tpu.trace_start"() <{level = 10 : i32, message = "bne,ed->bnd"}> : () -> ()
    %cst_41 = arith.constant dense<0.000000e+00> : vector<2x8x32xf32>
    %297 = tpu.matmul %296, %14, %cst_41 {dimension_numbers = #tpu.dot_dimension_numbers<[2], [0], [0, 1], [1], [0, 0, 0, 1, 1, 1], [], []>} : vector<2x8x32xf32>, vector<32x32xf32>, vector<2x8x32xf32> -> vector<2x8x32xf32>
    "tpu.trace_stop"() : () -> ()
    %cst_42 = arith.constant 1.600000e+03 : f32
    %298 = vector.broadcast %cst_42 : f32 to vector<2x8x32xf32>
    %299 = arith.mulf %298, %287 : vector<2x8x32xf32>
    %300 = arith.addf %38, %299 : vector<2x8x32xf32>
    %cst_43 = arith.constant 1.600000e+02 : f32
    %301 = vector.broadcast %cst_43 : f32 to vector<2x8x32xf32>
    %302 = arith.mulf %301, %297 : vector<2x8x32xf32>
    %303 = arith.subf %300, %302 : vector<2x8x32xf32>
    %c1 = arith.constant 1 : index
    %c0_44 = arith.constant 0 : index
    %304 = vector.load %arg4[%c1, %c0_44] : memref<2x32xf32, #tpu.memory_space<vmem>>, vector<1x32xf32>
    %c1_45 = arith.constant 1 : index
    %c0_46 = arith.constant 0 : index
    %305 = vector.load %arg5[%c1_45, %c0_46] : memref<2x32xf32, #tpu.memory_space<vmem>>, vector<1x32xf32>
    %c1_47 = arith.constant 1 : index
    %c0_48 = arith.constant 0 : index
    %c0_49 = arith.constant 0 : index
    %306 = vector.load %arg6[%c1_47, %c0_48, %c0_49] : memref<2x32x32xf32, #tpu.memory_space<vmem>>, vector<1x32x32xf32>
    %307 = vector.shape_cast %306 : vector<1x32x32xf32> to vector<32x32xf32>
    %cst_50 = arith.constant dense<0.000000e+00> : vector<2x8xf32>
    %308 = vector.multi_reduction <add>, %303, %cst_50 [2] : vector<2x8x32xf32> to vector<2x8xf32>
    %309 = vector.shape_cast %308 : vector<2x8xf32> to vector<2x8x1xf32>
    %cst_51 = arith.constant 3.200000e+01 : f32
    %310 = vector.broadcast %cst_51 : f32 to vector<2x8x1xf32>
    %311 = arith.divf %309, %310 : vector<2x8x1xf32>
    %312 = vector.broadcast %311 : vector<2x8x1xf32> to vector<2x8x32xf32>
    %313 = arith.subf %303, %312 : vector<2x8x32xf32>
    %314 = arith.mulf %313, %313 : vector<2x8x32xf32>
    %cst_52 = arith.constant dense<0.000000e+00> : vector<2x8xf32>
    %315 = vector.multi_reduction <add>, %314, %cst_52 [2] : vector<2x8x32xf32> to vector<2x8xf32>
    %316 = vector.shape_cast %315 : vector<2x8xf32> to vector<2x8x1xf32>
    %cst_53 = arith.constant 3.200000e+01 : f32
    %317 = vector.broadcast %cst_53 : f32 to vector<2x8x1xf32>
    %318 = arith.divf %316, %317 : vector<2x8x1xf32>
    %319 = vector.broadcast %311 : vector<2x8x1xf32> to vector<2x8x32xf32>
    %320 = arith.subf %303, %319 : vector<2x8x32xf32>
    %cst_54 = arith.constant 9.99999974E-6 : f32
    %321 = vector.broadcast %cst_54 : f32 to vector<2x8x1xf32>
    %322 = arith.addf %318, %321 : vector<2x8x1xf32>
    %323 = math.rsqrt %322 : vector<2x8x1xf32>
    %324 = vector.broadcast %323 : vector<2x8x1xf32> to vector<2x8x32xf32>
    %325 = arith.mulf %320, %324 : vector<2x8x32xf32>
    %326 = vector.shape_cast %304 : vector<1x32xf32> to vector<1x1x32xf32>
    %327 = vector.broadcast %326 : vector<1x1x32xf32> to vector<2x8x32xf32>
    %328 = arith.mulf %325, %327 : vector<2x8x32xf32>
    %329 = vector.shape_cast %305 : vector<1x32xf32> to vector<1x1x32xf32>
    %330 = vector.broadcast %329 : vector<1x1x32xf32> to vector<2x8x32xf32>
    %331 = arith.addf %328, %330 : vector<2x8x32xf32>
    "tpu.trace_start"() <{level = 10 : i32, message = "bnd,bmd->bnm"}> : () -> ()
    %cst_55 = arith.constant dense<0.000000e+00> : vector<2x8x8xf32>
    %332 = tpu.matmul %331, %331, %cst_55 {dimension_numbers = #tpu.dot_dimension_numbers<[2], [2], [1], [1], [0, 0, 0, 1, 1, 1], [0], [0]>} : vector<2x8x32xf32>, vector<2x8x32xf32>, vector<2x8x8xf32> -> vector<2x8x8xf32>
    "tpu.trace_stop"() : () -> ()
    "tpu.trace_start"() <{level = 10 : i32, message = "bnd,ed->bne"}> : () -> ()
    %cst_56 = arith.constant dense<0.000000e+00> : vector<2x8x32xf32>
    %333 = tpu.matmul %331, %307, %cst_56 {dimension_numbers = #tpu.dot_dimension_numbers<[2], [1], [0, 1], [0], [0, 0, 0, 1, 1, 0], [], []>} : vector<2x8x32xf32>, vector<32x32xf32>, vector<2x8x32xf32> -> vector<2x8x32xf32>
    "tpu.trace_stop"() : () -> ()
    %334 = tpu.transpose %333, [0, 2, 1] : vector<2x8x32xf32> -> vector<2x32x8xf32>
    %cst_57 = arith.constant 4.000000e+02 : f32
    %335 = vector.broadcast %cst_57 : f32 to vector<2x8x8xf32>
    %336 = arith.mulf %335, %332 : vector<2x8x8xf32>
    %337 = vector.shape_cast %10 : vector<8x8xf32> to vector<1x8x8xf32>
    %338 = vector.broadcast %337 : vector<1x8x8xf32> to vector<2x8x8xf32>
    %339 = arith.addf %336, %338 : vector<2x8x8xf32>
    %340 = vector.extract_strided_slice %334 {offsets = [0, 0, 0], sizes = [2, 8, 8], strides = [1, 1, 1]} : vector<2x32x8xf32> to vector<2x8x8xf32>
    "tpu.trace_start"() <{level = 10 : i32, message = "bpn,bqn->bpq"}> : () -> ()
    %cst_58 = arith.constant dense<0.000000e+00> : vector<2x8x8xf32>
    %341 = tpu.matmul %340, %340, %cst_58 {dimension_numbers = #tpu.dot_dimension_numbers<[2], [2], [1], [1], [0, 0, 0, 1, 1, 1], [0], [0]>} : vector<2x8x8xf32>, vector<2x8x8xf32>, vector<2x8x8xf32> -> vector<2x8x8xf32>
    "tpu.trace_stop"() : () -> ()
    %cst_59 = arith.constant 1.000000e+02 : f32
    %342 = vector.broadcast %cst_59 : f32 to vector<2x8x8xf32>
    %343 = arith.mulf %342, %341 : vector<2x8x8xf32>
    %344 = vector.shape_cast %10 : vector<8x8xf32> to vector<1x8x8xf32>
    %345 = vector.broadcast %344 : vector<1x8x8xf32> to vector<2x8x8xf32>
    %346 = arith.addf %343, %345 : vector<2x8x8xf32>
    %347 = vector.extract_strided_slice %334 {offsets = [0, 8, 0], sizes = [2, 8, 8], strides = [1, 1, 1]} : vector<2x32x8xf32> to vector<2x8x8xf32>
    "tpu.trace_start"() <{level = 10 : i32, message = "bpn,bqn->bpq"}> : () -> ()
    %cst_60 = arith.constant dense<0.000000e+00> : vector<2x8x8xf32>
    %348 = tpu.matmul %347, %347, %cst_60 {dimension_numbers = #tpu.dot_dimension_numbers<[2], [2], [1], [1], [0, 0, 0, 1, 1, 1], [0], [0]>} : vector<2x8x8xf32>, vector<2x8x8xf32>, vector<2x8x8xf32> -> vector<2x8x8xf32>
    "tpu.trace_stop"() : () -> ()
    %cst_61 = arith.constant 1.000000e+02 : f32
    %349 = vector.broadcast %cst_61 : f32 to vector<2x8x8xf32>
    %350 = arith.mulf %349, %348 : vector<2x8x8xf32>
    %351 = vector.shape_cast %10 : vector<8x8xf32> to vector<1x8x8xf32>
    %352 = vector.broadcast %351 : vector<1x8x8xf32> to vector<2x8x8xf32>
    %353 = arith.addf %350, %352 : vector<2x8x8xf32>
    %354 = vector.extract_strided_slice %334 {offsets = [0, 16, 0], sizes = [2, 8, 8], strides = [1, 1, 1]} : vector<2x32x8xf32> to vector<2x8x8xf32>
    "tpu.trace_start"() <{level = 10 : i32, message = "bpn,bqn->bpq"}> : () -> ()
    %cst_62 = arith.constant dense<0.000000e+00> : vector<2x8x8xf32>
    %355 = tpu.matmul %354, %354, %cst_62 {dimension_numbers = #tpu.dot_dimension_numbers<[2], [2], [1], [1], [0, 0, 0, 1, 1, 1], [0], [0]>} : vector<2x8x8xf32>, vector<2x8x8xf32>, vector<2x8x8xf32> -> vector<2x8x8xf32>
    "tpu.trace_stop"() : () -> ()
    %cst_63 = arith.constant 1.000000e+02 : f32
    %356 = vector.broadcast %cst_63 : f32 to vector<2x8x8xf32>
    %357 = arith.mulf %356, %355 : vector<2x8x8xf32>
    %358 = vector.shape_cast %10 : vector<8x8xf32> to vector<1x8x8xf32>
    %359 = vector.broadcast %358 : vector<1x8x8xf32> to vector<2x8x8xf32>
    %360 = arith.addf %357, %359 : vector<2x8x8xf32>
    %361 = vector.extract_strided_slice %334 {offsets = [0, 24, 0], sizes = [2, 8, 8], strides = [1, 1, 1]} : vector<2x32x8xf32> to vector<2x8x8xf32>
    "tpu.trace_start"() <{level = 10 : i32, message = "bpn,bqn->bpq"}> : () -> ()
    %cst_64 = arith.constant dense<0.000000e+00> : vector<2x8x8xf32>
    %362 = tpu.matmul %361, %361, %cst_64 {dimension_numbers = #tpu.dot_dimension_numbers<[2], [2], [1], [1], [0, 0, 0, 1, 1, 1], [0], [0]>} : vector<2x8x8xf32>, vector<2x8x8xf32>, vector<2x8x8xf32> -> vector<2x8x8xf32>
    "tpu.trace_stop"() : () -> ()
    %cst_65 = arith.constant 1.000000e+02 : f32
    %363 = vector.broadcast %cst_65 : f32 to vector<2x8x8xf32>
    %364 = arith.mulf %363, %362 : vector<2x8x8xf32>
    %365 = vector.shape_cast %10 : vector<8x8xf32> to vector<1x8x8xf32>
    %366 = vector.broadcast %365 : vector<1x8x8xf32> to vector<2x8x8xf32>
    %367 = arith.addf %364, %366 : vector<2x8x8xf32>
    %368 = vector.shape_cast %339 : vector<2x8x8xf32> to vector<1x2x8x8xf32>
    %369 = vector.shape_cast %346 : vector<2x8x8xf32> to vector<1x2x8x8xf32>
    %370 = vector.shape_cast %353 : vector<2x8x8xf32> to vector<1x2x8x8xf32>
    %371 = vector.shape_cast %360 : vector<2x8x8xf32> to vector<1x2x8x8xf32>
    %372 = vector.shape_cast %367 : vector<2x8x8xf32> to vector<1x2x8x8xf32>
    %373 = tpu.concatenate %368, %369, %370, %371, %372 in 0 : vector<1x2x8x8xf32>, vector<1x2x8x8xf32>, vector<1x2x8x8xf32>, vector<1x2x8x8xf32>, vector<1x2x8x8xf32> -> vector<5x2x8x8xf32>
    %374 = vector.shape_cast %10 : vector<8x8xf32> to vector<1x1x8x8xf32>
    %375 = vector.broadcast %374 : vector<1x1x8x8xf32> to vector<5x2x8x8xf32>
    %376 = vector.extract_strided_slice %373 {offsets = [0, 0, 0, 0], sizes = [5, 2, 1, 8], strides = [1, 1, 1, 1]} : vector<5x2x8x8xf32> to vector<5x2x1x8xf32>
    %377 = vector.extract_strided_slice %375 {offsets = [0, 0, 0, 0], sizes = [5, 2, 1, 8], strides = [1, 1, 1, 1]} : vector<5x2x8x8xf32> to vector<5x2x1x8xf32>
    %378 = vector.extract_strided_slice %376 {offsets = [0, 0, 0, 0], sizes = [5, 2, 1, 1], strides = [1, 1, 1, 1]} : vector<5x2x1x8xf32> to vector<5x2x1x1xf32>
    %379 = tpu.reciprocal %378 {approx = true} : vector<5x2x1x1xf32> -> vector<5x2x1x1xf32>
    %380 = arith.mulf %378, %379 : vector<5x2x1x1xf32>
    %cst_66 = arith.constant 2.000000e+00 : f32
    %381 = vector.broadcast %cst_66 : f32 to vector<5x2x1x1xf32>
    %382 = arith.subf %381, %380 : vector<5x2x1x1xf32>
    %383 = arith.mulf %379, %382 : vector<5x2x1x1xf32>
    %384 = vector.broadcast %383 : vector<5x2x1x1xf32> to vector<5x2x1x8xf32>
    %385 = arith.mulf %376, %384 : vector<5x2x1x8xf32>
    %386 = vector.broadcast %383 : vector<5x2x1x1xf32> to vector<5x2x1x8xf32>
    %387 = arith.mulf %377, %386 : vector<5x2x1x8xf32>
    %388 = vector.extract_strided_slice %373 {offsets = [0, 0, 0, 0], sizes = [5, 2, 8, 1], strides = [1, 1, 1, 1]} : vector<5x2x8x8xf32> to vector<5x2x8x1xf32>
    %389 = vector.extract_strided_slice %10 {offsets = [0, 0], sizes = [8, 1], strides = [1, 1]} : vector<8x8xf32> to vector<8x1xf32>
    %390 = vector.shape_cast %389 : vector<8x1xf32> to vector<1x1x8x1xf32>
    %391 = vector.broadcast %390 : vector<1x1x8x1xf32> to vector<5x2x8x1xf32>
    %392 = arith.subf %388, %391 : vector<5x2x8x1xf32>
    %393 = vector.broadcast %392 : vector<5x2x8x1xf32> to vector<5x2x8x8xf32>
    %394 = vector.broadcast %387 : vector<5x2x1x8xf32> to vector<5x2x8x8xf32>
    %395 = arith.mulf %393, %394 : vector<5x2x8x8xf32>
    %396 = arith.subf %375, %395 : vector<5x2x8x8xf32>
    %397 = vector.broadcast %392 : vector<5x2x8x1xf32> to vector<5x2x8x8xf32>
    %398 = vector.broadcast %385 : vector<5x2x1x8xf32> to vector<5x2x8x8xf32>
    %399 = arith.mulf %397, %398 : vector<5x2x8x8xf32>
    %400 = arith.subf %373, %399 : vector<5x2x8x8xf32>
    %401 = vector.extract_strided_slice %400 {offsets = [0, 0, 1, 0], sizes = [5, 2, 1, 8], strides = [1, 1, 1, 1]} : vector<5x2x8x8xf32> to vector<5x2x1x8xf32>
    %402 = vector.extract_strided_slice %396 {offsets = [0, 0, 1, 0], sizes = [5, 2, 1, 8], strides = [1, 1, 1, 1]} : vector<5x2x8x8xf32> to vector<5x2x1x8xf32>
    %403 = vector.extract_strided_slice %401 {offsets = [0, 0, 0, 1], sizes = [5, 2, 1, 1], strides = [1, 1, 1, 1]} : vector<5x2x1x8xf32> to vector<5x2x1x1xf32>
    %404 = tpu.reciprocal %403 {approx = true} : vector<5x2x1x1xf32> -> vector<5x2x1x1xf32>
    %405 = arith.mulf %403, %404 : vector<5x2x1x1xf32>
    %cst_67 = arith.constant 2.000000e+00 : f32
    %406 = vector.broadcast %cst_67 : f32 to vector<5x2x1x1xf32>
    %407 = arith.subf %406, %405 : vector<5x2x1x1xf32>
    %408 = arith.mulf %404, %407 : vector<5x2x1x1xf32>
    %409 = vector.broadcast %408 : vector<5x2x1x1xf32> to vector<5x2x1x8xf32>
    %410 = arith.mulf %401, %409 : vector<5x2x1x8xf32>
    %411 = vector.broadcast %408 : vector<5x2x1x1xf32> to vector<5x2x1x8xf32>
    %412 = arith.mulf %402, %411 : vector<5x2x1x8xf32>
    %413 = vector.extract_strided_slice %400 {offsets = [0, 0, 0, 1], sizes = [5, 2, 8, 1], strides = [1, 1, 1, 1]} : vector<5x2x8x8xf32> to vector<5x2x8x1xf32>
    %414 = vector.extract_strided_slice %10 {offsets = [0, 1], sizes = [8, 1], strides = [1, 1]} : vector<8x8xf32> to vector<8x1xf32>
    %415 = vector.shape_cast %414 : vector<8x1xf32> to vector<1x1x8x1xf32>
    %416 = vector.broadcast %415 : vector<1x1x8x1xf32> to vector<5x2x8x1xf32>
    %417 = arith.subf %413, %416 : vector<5x2x8x1xf32>
    %418 = vector.broadcast %417 : vector<5x2x8x1xf32> to vector<5x2x8x8xf32>
    %419 = vector.broadcast %412 : vector<5x2x1x8xf32> to vector<5x2x8x8xf32>
    %420 = arith.mulf %418, %419 : vector<5x2x8x8xf32>
    %421 = arith.subf %396, %420 : vector<5x2x8x8xf32>
    %422 = vector.broadcast %417 : vector<5x2x8x1xf32> to vector<5x2x8x8xf32>
    %423 = vector.broadcast %410 : vector<5x2x1x8xf32> to vector<5x2x8x8xf32>
    %424 = arith.mulf %422, %423 : vector<5x2x8x8xf32>
    %425 = arith.subf %400, %424 : vector<5x2x8x8xf32>
    %426 = vector.extract_strided_slice %425 {offsets = [0, 0, 2, 0], sizes = [5, 2, 1, 8], strides = [1, 1, 1, 1]} : vector<5x2x8x8xf32> to vector<5x2x1x8xf32>
    %427 = vector.extract_strided_slice %421 {offsets = [0, 0, 2, 0], sizes = [5, 2, 1, 8], strides = [1, 1, 1, 1]} : vector<5x2x8x8xf32> to vector<5x2x1x8xf32>
    %428 = vector.extract_strided_slice %426 {offsets = [0, 0, 0, 2], sizes = [5, 2, 1, 1], strides = [1, 1, 1, 1]} : vector<5x2x1x8xf32> to vector<5x2x1x1xf32>
    %429 = tpu.reciprocal %428 {approx = true} : vector<5x2x1x1xf32> -> vector<5x2x1x1xf32>
    %430 = arith.mulf %428, %429 : vector<5x2x1x1xf32>
    %cst_68 = arith.constant 2.000000e+00 : f32
    %431 = vector.broadcast %cst_68 : f32 to vector<5x2x1x1xf32>
    %432 = arith.subf %431, %430 : vector<5x2x1x1xf32>
    %433 = arith.mulf %429, %432 : vector<5x2x1x1xf32>
    %434 = vector.broadcast %433 : vector<5x2x1x1xf32> to vector<5x2x1x8xf32>
    %435 = arith.mulf %426, %434 : vector<5x2x1x8xf32>
    %436 = vector.broadcast %433 : vector<5x2x1x1xf32> to vector<5x2x1x8xf32>
    %437 = arith.mulf %427, %436 : vector<5x2x1x8xf32>
    %438 = vector.extract_strided_slice %425 {offsets = [0, 0, 0, 2], sizes = [5, 2, 8, 1], strides = [1, 1, 1, 1]} : vector<5x2x8x8xf32> to vector<5x2x8x1xf32>
    %439 = vector.extract_strided_slice %10 {offsets = [0, 2], sizes = [8, 1], strides = [1, 1]} : vector<8x8xf32> to vector<8x1xf32>
    %440 = vector.shape_cast %439 : vector<8x1xf32> to vector<1x1x8x1xf32>
    %441 = vector.broadcast %440 : vector<1x1x8x1xf32> to vector<5x2x8x1xf32>
    %442 = arith.subf %438, %441 : vector<5x2x8x1xf32>
    %443 = vector.broadcast %442 : vector<5x2x8x1xf32> to vector<5x2x8x8xf32>
    %444 = vector.broadcast %437 : vector<5x2x1x8xf32> to vector<5x2x8x8xf32>
    %445 = arith.mulf %443, %444 : vector<5x2x8x8xf32>
    %446 = arith.subf %421, %445 : vector<5x2x8x8xf32>
    %447 = vector.broadcast %442 : vector<5x2x8x1xf32> to vector<5x2x8x8xf32>
    %448 = vector.broadcast %435 : vector<5x2x1x8xf32> to vector<5x2x8x8xf32>
    %449 = arith.mulf %447, %448 : vector<5x2x8x8xf32>
    %450 = arith.subf %425, %449 : vector<5x2x8x8xf32>
    %451 = vector.extract_strided_slice %450 {offsets = [0, 0, 3, 0], sizes = [5, 2, 1, 8], strides = [1, 1, 1, 1]} : vector<5x2x8x8xf32> to vector<5x2x1x8xf32>
    %452 = vector.extract_strided_slice %446 {offsets = [0, 0, 3, 0], sizes = [5, 2, 1, 8], strides = [1, 1, 1, 1]} : vector<5x2x8x8xf32> to vector<5x2x1x8xf32>
    %453 = vector.extract_strided_slice %451 {offsets = [0, 0, 0, 3], sizes = [5, 2, 1, 1], strides = [1, 1, 1, 1]} : vector<5x2x1x8xf32> to vector<5x2x1x1xf32>
    %454 = tpu.reciprocal %453 {approx = true} : vector<5x2x1x1xf32> -> vector<5x2x1x1xf32>
    %455 = arith.mulf %453, %454 : vector<5x2x1x1xf32>
    %cst_69 = arith.constant 2.000000e+00 : f32
    %456 = vector.broadcast %cst_69 : f32 to vector<5x2x1x1xf32>
    %457 = arith.subf %456, %455 : vector<5x2x1x1xf32>
    %458 = arith.mulf %454, %457 : vector<5x2x1x1xf32>
    %459 = vector.broadcast %458 : vector<5x2x1x1xf32> to vector<5x2x1x8xf32>
    %460 = arith.mulf %451, %459 : vector<5x2x1x8xf32>
    %461 = vector.broadcast %458 : vector<5x2x1x1xf32> to vector<5x2x1x8xf32>
    %462 = arith.mulf %452, %461 : vector<5x2x1x8xf32>
    %463 = vector.extract_strided_slice %450 {offsets = [0, 0, 0, 3], sizes = [5, 2, 8, 1], strides = [1, 1, 1, 1]} : vector<5x2x8x8xf32> to vector<5x2x8x1xf32>
    %464 = vector.extract_strided_slice %10 {offsets = [0, 3], sizes = [8, 1], strides = [1, 1]} : vector<8x8xf32> to vector<8x1xf32>
    %465 = vector.shape_cast %464 : vector<8x1xf32> to vector<1x1x8x1xf32>
    %466 = vector.broadcast %465 : vector<1x1x8x1xf32> to vector<5x2x8x1xf32>
    %467 = arith.subf %463, %466 : vector<5x2x8x1xf32>
    %468 = vector.broadcast %467 : vector<5x2x8x1xf32> to vector<5x2x8x8xf32>
    %469 = vector.broadcast %462 : vector<5x2x1x8xf32> to vector<5x2x8x8xf32>
    %470 = arith.mulf %468, %469 : vector<5x2x8x8xf32>
    %471 = arith.subf %446, %470 : vector<5x2x8x8xf32>
    %472 = vector.broadcast %467 : vector<5x2x8x1xf32> to vector<5x2x8x8xf32>
    %473 = vector.broadcast %460 : vector<5x2x1x8xf32> to vector<5x2x8x8xf32>
    %474 = arith.mulf %472, %473 : vector<5x2x8x8xf32>
    %475 = arith.subf %450, %474 : vector<5x2x8x8xf32>
    %476 = vector.extract_strided_slice %475 {offsets = [0, 0, 4, 0], sizes = [5, 2, 1, 8], strides = [1, 1, 1, 1]} : vector<5x2x8x8xf32> to vector<5x2x1x8xf32>
    %477 = vector.extract_strided_slice %471 {offsets = [0, 0, 4, 0], sizes = [5, 2, 1, 8], strides = [1, 1, 1, 1]} : vector<5x2x8x8xf32> to vector<5x2x1x8xf32>
    %478 = vector.extract_strided_slice %476 {offsets = [0, 0, 0, 4], sizes = [5, 2, 1, 1], strides = [1, 1, 1, 1]} : vector<5x2x1x8xf32> to vector<5x2x1x1xf32>
    %479 = tpu.reciprocal %478 {approx = true} : vector<5x2x1x1xf32> -> vector<5x2x1x1xf32>
    %480 = arith.mulf %478, %479 : vector<5x2x1x1xf32>
    %cst_70 = arith.constant 2.000000e+00 : f32
    %481 = vector.broadcast %cst_70 : f32 to vector<5x2x1x1xf32>
    %482 = arith.subf %481, %480 : vector<5x2x1x1xf32>
    %483 = arith.mulf %479, %482 : vector<5x2x1x1xf32>
    %484 = vector.broadcast %483 : vector<5x2x1x1xf32> to vector<5x2x1x8xf32>
    %485 = arith.mulf %476, %484 : vector<5x2x1x8xf32>
    %486 = vector.broadcast %483 : vector<5x2x1x1xf32> to vector<5x2x1x8xf32>
    %487 = arith.mulf %477, %486 : vector<5x2x1x8xf32>
    %488 = vector.extract_strided_slice %475 {offsets = [0, 0, 0, 4], sizes = [5, 2, 8, 1], strides = [1, 1, 1, 1]} : vector<5x2x8x8xf32> to vector<5x2x8x1xf32>
    %489 = vector.extract_strided_slice %10 {offsets = [0, 4], sizes = [8, 1], strides = [1, 1]} : vector<8x8xf32> to vector<8x1xf32>
    %490 = vector.shape_cast %489 : vector<8x1xf32> to vector<1x1x8x1xf32>
    %491 = vector.broadcast %490 : vector<1x1x8x1xf32> to vector<5x2x8x1xf32>
    %492 = arith.subf %488, %491 : vector<5x2x8x1xf32>
    %493 = vector.broadcast %492 : vector<5x2x8x1xf32> to vector<5x2x8x8xf32>
    %494 = vector.broadcast %487 : vector<5x2x1x8xf32> to vector<5x2x8x8xf32>
    %495 = arith.mulf %493, %494 : vector<5x2x8x8xf32>
    %496 = arith.subf %471, %495 : vector<5x2x8x8xf32>
    %497 = vector.broadcast %492 : vector<5x2x8x1xf32> to vector<5x2x8x8xf32>
    %498 = vector.broadcast %485 : vector<5x2x1x8xf32> to vector<5x2x8x8xf32>
    %499 = arith.mulf %497, %498 : vector<5x2x8x8xf32>
    %500 = arith.subf %475, %499 : vector<5x2x8x8xf32>
    %501 = vector.extract_strided_slice %500 {offsets = [0, 0, 5, 0], sizes = [5, 2, 1, 8], strides = [1, 1, 1, 1]} : vector<5x2x8x8xf32> to vector<5x2x1x8xf32>
    %502 = vector.extract_strided_slice %496 {offsets = [0, 0, 5, 0], sizes = [5, 2, 1, 8], strides = [1, 1, 1, 1]} : vector<5x2x8x8xf32> to vector<5x2x1x8xf32>
    %503 = vector.extract_strided_slice %501 {offsets = [0, 0, 0, 5], sizes = [5, 2, 1, 1], strides = [1, 1, 1, 1]} : vector<5x2x1x8xf32> to vector<5x2x1x1xf32>
    %504 = tpu.reciprocal %503 {approx = true} : vector<5x2x1x1xf32> -> vector<5x2x1x1xf32>
    %505 = arith.mulf %503, %504 : vector<5x2x1x1xf32>
    %cst_71 = arith.constant 2.000000e+00 : f32
    %506 = vector.broadcast %cst_71 : f32 to vector<5x2x1x1xf32>
    %507 = arith.subf %506, %505 : vector<5x2x1x1xf32>
    %508 = arith.mulf %504, %507 : vector<5x2x1x1xf32>
    %509 = vector.broadcast %508 : vector<5x2x1x1xf32> to vector<5x2x1x8xf32>
    %510 = arith.mulf %501, %509 : vector<5x2x1x8xf32>
    %511 = vector.broadcast %508 : vector<5x2x1x1xf32> to vector<5x2x1x8xf32>
    %512 = arith.mulf %502, %511 : vector<5x2x1x8xf32>
    %513 = vector.extract_strided_slice %500 {offsets = [0, 0, 0, 5], sizes = [5, 2, 8, 1], strides = [1, 1, 1, 1]} : vector<5x2x8x8xf32> to vector<5x2x8x1xf32>
    %514 = vector.extract_strided_slice %10 {offsets = [0, 5], sizes = [8, 1], strides = [1, 1]} : vector<8x8xf32> to vector<8x1xf32>
    %515 = vector.shape_cast %514 : vector<8x1xf32> to vector<1x1x8x1xf32>
    %516 = vector.broadcast %515 : vector<1x1x8x1xf32> to vector<5x2x8x1xf32>
    %517 = arith.subf %513, %516 : vector<5x2x8x1xf32>
    %518 = vector.broadcast %517 : vector<5x2x8x1xf32> to vector<5x2x8x8xf32>
    %519 = vector.broadcast %512 : vector<5x2x1x8xf32> to vector<5x2x8x8xf32>
    %520 = arith.mulf %518, %519 : vector<5x2x8x8xf32>
    %521 = arith.subf %496, %520 : vector<5x2x8x8xf32>
    %522 = vector.broadcast %517 : vector<5x2x8x1xf32> to vector<5x2x8x8xf32>
    %523 = vector.broadcast %510 : vector<5x2x1x8xf32> to vector<5x2x8x8xf32>
    %524 = arith.mulf %522, %523 : vector<5x2x8x8xf32>
    %525 = arith.subf %500, %524 : vector<5x2x8x8xf32>
    %526 = vector.extract_strided_slice %525 {offsets = [0, 0, 6, 0], sizes = [5, 2, 1, 8], strides = [1, 1, 1, 1]} : vector<5x2x8x8xf32> to vector<5x2x1x8xf32>
    %527 = vector.extract_strided_slice %521 {offsets = [0, 0, 6, 0], sizes = [5, 2, 1, 8], strides = [1, 1, 1, 1]} : vector<5x2x8x8xf32> to vector<5x2x1x8xf32>
    %528 = vector.extract_strided_slice %526 {offsets = [0, 0, 0, 6], sizes = [5, 2, 1, 1], strides = [1, 1, 1, 1]} : vector<5x2x1x8xf32> to vector<5x2x1x1xf32>
    %529 = tpu.reciprocal %528 {approx = true} : vector<5x2x1x1xf32> -> vector<5x2x1x1xf32>
    %530 = arith.mulf %528, %529 : vector<5x2x1x1xf32>
    %cst_72 = arith.constant 2.000000e+00 : f32
    %531 = vector.broadcast %cst_72 : f32 to vector<5x2x1x1xf32>
    %532 = arith.subf %531, %530 : vector<5x2x1x1xf32>
    %533 = arith.mulf %529, %532 : vector<5x2x1x1xf32>
    %534 = vector.broadcast %533 : vector<5x2x1x1xf32> to vector<5x2x1x8xf32>
    %535 = arith.mulf %526, %534 : vector<5x2x1x8xf32>
    %536 = vector.broadcast %533 : vector<5x2x1x1xf32> to vector<5x2x1x8xf32>
    %537 = arith.mulf %527, %536 : vector<5x2x1x8xf32>
    %538 = vector.extract_strided_slice %525 {offsets = [0, 0, 0, 6], sizes = [5, 2, 8, 1], strides = [1, 1, 1, 1]} : vector<5x2x8x8xf32> to vector<5x2x8x1xf32>
    %539 = vector.extract_strided_slice %10 {offsets = [0, 6], sizes = [8, 1], strides = [1, 1]} : vector<8x8xf32> to vector<8x1xf32>
    %540 = vector.shape_cast %539 : vector<8x1xf32> to vector<1x1x8x1xf32>
    %541 = vector.broadcast %540 : vector<1x1x8x1xf32> to vector<5x2x8x1xf32>
    %542 = arith.subf %538, %541 : vector<5x2x8x1xf32>
    %543 = vector.broadcast %542 : vector<5x2x8x1xf32> to vector<5x2x8x8xf32>
    %544 = vector.broadcast %537 : vector<5x2x1x8xf32> to vector<5x2x8x8xf32>
    %545 = arith.mulf %543, %544 : vector<5x2x8x8xf32>
    %546 = arith.subf %521, %545 : vector<5x2x8x8xf32>
    %547 = vector.broadcast %542 : vector<5x2x8x1xf32> to vector<5x2x8x8xf32>
    %548 = vector.broadcast %535 : vector<5x2x1x8xf32> to vector<5x2x8x8xf32>
    %549 = arith.mulf %547, %548 : vector<5x2x8x8xf32>
    %550 = arith.subf %525, %549 : vector<5x2x8x8xf32>
    %551 = vector.extract_strided_slice %550 {offsets = [0, 0, 7, 0], sizes = [5, 2, 1, 8], strides = [1, 1, 1, 1]} : vector<5x2x8x8xf32> to vector<5x2x1x8xf32>
    %552 = vector.extract_strided_slice %546 {offsets = [0, 0, 7, 0], sizes = [5, 2, 1, 8], strides = [1, 1, 1, 1]} : vector<5x2x8x8xf32> to vector<5x2x1x8xf32>
    %553 = vector.extract_strided_slice %551 {offsets = [0, 0, 0, 7], sizes = [5, 2, 1, 1], strides = [1, 1, 1, 1]} : vector<5x2x1x8xf32> to vector<5x2x1x1xf32>
    %554 = tpu.reciprocal %553 {approx = true} : vector<5x2x1x1xf32> -> vector<5x2x1x1xf32>
    %555 = arith.mulf %553, %554 : vector<5x2x1x1xf32>
    %cst_73 = arith.constant 2.000000e+00 : f32
    %556 = vector.broadcast %cst_73 : f32 to vector<5x2x1x1xf32>
    %557 = arith.subf %556, %555 : vector<5x2x1x1xf32>
    %558 = arith.mulf %554, %557 : vector<5x2x1x1xf32>
    %559 = vector.broadcast %558 : vector<5x2x1x1xf32> to vector<5x2x1x8xf32>
    %560 = arith.mulf %552, %559 : vector<5x2x1x8xf32>
    %561 = vector.extract_strided_slice %550 {offsets = [0, 0, 0, 7], sizes = [5, 2, 8, 1], strides = [1, 1, 1, 1]} : vector<5x2x8x8xf32> to vector<5x2x8x1xf32>
    %562 = vector.extract_strided_slice %10 {offsets = [0, 7], sizes = [8, 1], strides = [1, 1]} : vector<8x8xf32> to vector<8x1xf32>
    %563 = vector.shape_cast %562 : vector<8x1xf32> to vector<1x1x8x1xf32>
    %564 = vector.broadcast %563 : vector<1x1x8x1xf32> to vector<5x2x8x1xf32>
    %565 = arith.subf %561, %564 : vector<5x2x8x1xf32>
    %566 = vector.broadcast %565 : vector<5x2x8x1xf32> to vector<5x2x8x8xf32>
    %567 = vector.broadcast %560 : vector<5x2x1x8xf32> to vector<5x2x8x8xf32>
    %568 = arith.mulf %566, %567 : vector<5x2x8x8xf32>
    %569 = arith.subf %546, %568 : vector<5x2x8x8xf32>
    %570 = vector.extract_strided_slice %569 {offsets = [0, 0, 0, 0], sizes = [1, 2, 8, 8], strides = [1, 1, 1, 1]} : vector<5x2x8x8xf32> to vector<1x2x8x8xf32>
    %571 = vector.shape_cast %570 : vector<1x2x8x8xf32> to vector<2x8x8xf32>
    %572 = vector.extract_strided_slice %569 {offsets = [1, 0, 0, 0], sizes = [1, 2, 8, 8], strides = [1, 1, 1, 1]} : vector<5x2x8x8xf32> to vector<1x2x8x8xf32>
    %573 = vector.shape_cast %572 : vector<1x2x8x8xf32> to vector<2x8x8xf32>
    %574 = vector.extract_strided_slice %569 {offsets = [2, 0, 0, 0], sizes = [1, 2, 8, 8], strides = [1, 1, 1, 1]} : vector<5x2x8x8xf32> to vector<1x2x8x8xf32>
    %575 = vector.shape_cast %574 : vector<1x2x8x8xf32> to vector<2x8x8xf32>
    %576 = vector.extract_strided_slice %569 {offsets = [3, 0, 0, 0], sizes = [1, 2, 8, 8], strides = [1, 1, 1, 1]} : vector<5x2x8x8xf32> to vector<1x2x8x8xf32>
    %577 = vector.shape_cast %576 : vector<1x2x8x8xf32> to vector<2x8x8xf32>
    %578 = vector.extract_strided_slice %569 {offsets = [4, 0, 0, 0], sizes = [1, 2, 8, 8], strides = [1, 1, 1, 1]} : vector<5x2x8x8xf32> to vector<1x2x8x8xf32>
    %579 = vector.shape_cast %578 : vector<1x2x8x8xf32> to vector<2x8x8xf32>
    "tpu.trace_start"() <{level = 10 : i32, message = "bnm,bmd->bnd"}> : () -> ()
    %cst_74 = arith.constant dense<0.000000e+00> : vector<2x8x32xf32>
    %580 = tpu.matmul %571, %331, %cst_74 {dimension_numbers = #tpu.dot_dimension_numbers<[2], [1], [1], [2], [0, 0, 0, 1, 1, 2], [0], [0]>} : vector<2x8x8xf32>, vector<2x8x32xf32>, vector<2x8x32xf32> -> vector<2x8x32xf32>
    "tpu.trace_stop"() : () -> ()
    %581 = vector.extract_strided_slice %333 {offsets = [0, 0, 0], sizes = [2, 8, 8], strides = [1, 1, 1]} : vector<2x8x32xf32> to vector<2x8x8xf32>
    "tpu.trace_start"() <{level = 10 : i32, message = "bnp,bpq->bnq"}> : () -> ()
    %cst_75 = arith.constant dense<0.000000e+00> : vector<2x8x8xf32>
    %582 = tpu.matmul %581, %573, %cst_75 {dimension_numbers = #tpu.dot_dimension_numbers<[2], [1], [1], [2], [0, 0, 0, 1, 1, 2], [0], [0]>} : vector<2x8x8xf32>, vector<2x8x8xf32>, vector<2x8x8xf32> -> vector<2x8x8xf32>
    "tpu.trace_stop"() : () -> ()
    %583 = vector.extract_strided_slice %333 {offsets = [0, 0, 8], sizes = [2, 8, 8], strides = [1, 1, 1]} : vector<2x8x32xf32> to vector<2x8x8xf32>
    "tpu.trace_start"() <{level = 10 : i32, message = "bnp,bpq->bnq"}> : () -> ()
    %cst_76 = arith.constant dense<0.000000e+00> : vector<2x8x8xf32>
    %584 = tpu.matmul %583, %575, %cst_76 {dimension_numbers = #tpu.dot_dimension_numbers<[2], [1], [1], [2], [0, 0, 0, 1, 1, 2], [0], [0]>} : vector<2x8x8xf32>, vector<2x8x8xf32>, vector<2x8x8xf32> -> vector<2x8x8xf32>
    "tpu.trace_stop"() : () -> ()
    %585 = vector.extract_strided_slice %333 {offsets = [0, 0, 16], sizes = [2, 8, 8], strides = [1, 1, 1]} : vector<2x8x32xf32> to vector<2x8x8xf32>
    "tpu.trace_start"() <{level = 10 : i32, message = "bnp,bpq->bnq"}> : () -> ()
    %cst_77 = arith.constant dense<0.000000e+00> : vector<2x8x8xf32>
    %586 = tpu.matmul %585, %577, %cst_77 {dimension_numbers = #tpu.dot_dimension_numbers<[2], [1], [1], [2], [0, 0, 0, 1, 1, 2], [0], [0]>} : vector<2x8x8xf32>, vector<2x8x8xf32>, vector<2x8x8xf32> -> vector<2x8x8xf32>
    "tpu.trace_stop"() : () -> ()
    %587 = vector.extract_strided_slice %333 {offsets = [0, 0, 24], sizes = [2, 8, 8], strides = [1, 1, 1]} : vector<2x8x32xf32> to vector<2x8x8xf32>
    "tpu.trace_start"() <{level = 10 : i32, message = "bnp,bpq->bnq"}> : () -> ()
    %cst_78 = arith.constant dense<0.000000e+00> : vector<2x8x8xf32>
    %588 = tpu.matmul %587, %579, %cst_78 {dimension_numbers = #tpu.dot_dimension_numbers<[2], [1], [1], [2], [0, 0, 0, 1, 1, 2], [0], [0]>} : vector<2x8x8xf32>, vector<2x8x8xf32>, vector<2x8x8xf32> -> vector<2x8x8xf32>
    "tpu.trace_stop"() : () -> ()
    %589 = tpu.concatenate %582, %584, %586, %588 in 2 : vector<2x8x8xf32>, vector<2x8x8xf32>, vector<2x8x8xf32>, vector<2x8x8xf32> -> vector<2x8x32xf32>
    "tpu.trace_start"() <{level = 10 : i32, message = "bne,ed->bnd"}> : () -> ()
    %cst_79 = arith.constant dense<0.000000e+00> : vector<2x8x32xf32>
    %590 = tpu.matmul %589, %307, %cst_79 {dimension_numbers = #tpu.dot_dimension_numbers<[2], [0], [0, 1], [1], [0, 0, 0, 1, 1, 1], [], []>} : vector<2x8x32xf32>, vector<32x32xf32>, vector<2x8x32xf32> -> vector<2x8x32xf32>
    "tpu.trace_stop"() : () -> ()
    %cst_80 = arith.constant 1.600000e+03 : f32
    %591 = vector.broadcast %cst_80 : f32 to vector<2x8x32xf32>
    %592 = arith.mulf %591, %580 : vector<2x8x32xf32>
    %593 = arith.addf %331, %592 : vector<2x8x32xf32>
    %cst_81 = arith.constant 1.600000e+02 : f32
    %594 = vector.broadcast %cst_81 : f32 to vector<2x8x32xf32>
    %595 = arith.mulf %594, %590 : vector<2x8x32xf32>
    %596 = arith.subf %593, %595 : vector<2x8x32xf32>
    %597 = vector.extract_strided_slice %596 {offsets = [0, 0, 0], sizes = [2, 1, 32], strides = [1, 1, 1]} : vector<2x8x32xf32> to vector<2x1x32xf32>
    %598 = vector.shape_cast %597 : vector<2x1x32xf32> to vector<2x32xf32>
    %cst_82 = arith.constant dense<0.000000e+00> : vector<2xf32>
    %599 = vector.multi_reduction <add>, %598, %cst_82 [1] : vector<2x32xf32> to vector<2xf32>
    %600 = vector.shape_cast %599 : vector<2xf32> to vector<2x1xf32>
    %cst_83 = arith.constant 3.200000e+01 : f32
    %601 = vector.broadcast %cst_83 : f32 to vector<2x1xf32>
    %602 = arith.divf %600, %601 : vector<2x1xf32>
    %603 = vector.broadcast %602 : vector<2x1xf32> to vector<2x32xf32>
    %604 = arith.subf %598, %603 : vector<2x32xf32>
    %605 = arith.mulf %604, %604 : vector<2x32xf32>
    %cst_84 = arith.constant dense<0.000000e+00> : vector<2xf32>
    %606 = vector.multi_reduction <add>, %605, %cst_84 [1] : vector<2x32xf32> to vector<2xf32>
    %607 = vector.shape_cast %606 : vector<2xf32> to vector<2x1xf32>
    %cst_85 = arith.constant 3.200000e+01 : f32
    %608 = vector.broadcast %cst_85 : f32 to vector<2x1xf32>
    %609 = arith.divf %607, %608 : vector<2x1xf32>
    %610 = vector.broadcast %602 : vector<2x1xf32> to vector<2x32xf32>
    %611 = arith.subf %598, %610 : vector<2x32xf32>
    %cst_86 = arith.constant 9.99999974E-6 : f32
    %612 = vector.broadcast %cst_86 : f32 to vector<2x1xf32>
    %613 = arith.addf %609, %612 : vector<2x1xf32>
    %614 = math.rsqrt %613 : vector<2x1xf32>
    %615 = vector.broadcast %614 : vector<2x1xf32> to vector<2x32xf32>
    %616 = arith.mulf %611, %615 : vector<2x32xf32>
    %c0_87 = arith.constant 0 : index
    %c0_88 = arith.constant 0 : index
    %617 = vector.load %arg7[%c0_87, %c0_88] : memref<1x32xf32, #tpu.memory_space<vmem>>, vector<1x32xf32>
    %618 = vector.broadcast %617 : vector<1x32xf32> to vector<2x32xf32>
    %619 = arith.mulf %616, %618 : vector<2x32xf32>
    %c0_89 = arith.constant 0 : index
    %c0_90 = arith.constant 0 : index
    %620 = vector.load %arg8[%c0_89, %c0_90] : memref<1x32xf32, #tpu.memory_space<vmem>>, vector<1x32xf32>
    %621 = vector.broadcast %620 : vector<1x32xf32> to vector<2x32xf32>
    %622 = arith.addf %619, %621 : vector<2x32xf32>
    %c0_91 = arith.constant 0 : index
    %c0_92 = arith.constant 0 : index
    %623 = vector.load %arg9[%c0_91, %c0_92] : memref<32x10xf32, #tpu.memory_space<vmem>>, vector<32x10xf32>
    %cst_93 = arith.constant dense<0.000000e+00> : vector<2x10xf32>
    %624 = tpu.matmul %622, %623, %cst_93 {dimension_numbers = #tpu.dot_dimension_numbers<[1], [0], [0], [1], [0, 0, 1, 1], [], []>} : vector<2x32xf32>, vector<32x10xf32>, vector<2x10xf32> -> vector<2x10xf32>
    %c0_94 = arith.constant 0 : index
    %c0_95 = arith.constant 0 : index
    %625 = vector.load %arg10[%c0_94, %c0_95] : memref<1x10xf32, #tpu.memory_space<vmem>>, vector<1x10xf32>
    %626 = vector.broadcast %625 : vector<1x10xf32> to vector<2x10xf32>
    %627 = arith.addf %624, %626 : vector<2x10xf32>
    %c0_96 = arith.constant 0 : index
    %c0_97 = arith.constant 0 : index
    %628 = vector.load %arg11[%c0_96, %c0_97] : memref<2x10xf32, #tpu.memory_space<vmem>>, vector<2x10xf32>
    tpu.vector_store %arg11[%c0_96, %c0_97], %627 {strides = array<i32>} : memref<2x10xf32, #tpu.memory_space<vmem>>, vector<2x10xf32>,
    return
  }
  func.func @transform_0(%arg0: i32) -> (i32, i32) {
    %c0_i32 = arith.constant 0 : i32
    %c0_i32_0 = arith.constant 0 : i32
    %c0_i32_1 = arith.constant 0 : i32
    return %c0_i32, %c0_i32_0 : i32, i32
  }
  func.func @transform_1(%arg0: i32) -> (i32, i32) {
    %c0_i32 = arith.constant 0 : i32
    %c0_i32_0 = arith.constant 0 : i32
    %c0_i32_1 = arith.constant 0 : i32
    return %c0_i32, %c0_i32_0 : i32, i32
  }
  func.func @transform_2(%arg0: i32) -> (i32, i32) {
    %c0_i32 = arith.constant 0 : i32
    %c0_i32_0 = arith.constant 0 : i32
    %c0_i32_1 = arith.constant 0 : i32
    return %c0_i32, %c0_i32_0 : i32, i32
  }
  func.func @transform_3(%arg0: i32) -> (i32, i32) {
    %c0_i32 = arith.constant 0 : i32
    %c0_i32_0 = arith.constant 0 : i32
    %c0_i32_1 = arith.constant 0 : i32
    return %c0_i32, %c0_i32_0 : i32, i32
  }
  func.func @transform_4(%arg0: i32) -> (i32, i32) {
    %c0_i32 = arith.constant 0 : i32
    %c0_i32_0 = arith.constant 0 : i32
    %c0_i32_1 = arith.constant 0 : i32
    return %c0_i32, %c0_i32_0 : i32, i32
  }
  func.func @transform_5(%arg0: i32) -> (i32, i32, i32) {
    %c0_i32 = arith.constant 0 : i32
    %c0_i32_0 = arith.constant 0 : i32
    %c0_i32_1 = arith.constant 0 : i32
    %c0_i32_2 = arith.constant 0 : i32
    return %c0_i32, %c0_i32_0, %c0_i32_1 : i32, i32, i32
  }
  func.func @transform_6(%arg0: i32) -> (i32, i32) {
    %c0_i32 = arith.constant 0 : i32
    %c0_i32_0 = arith.constant 0 : i32
    %c0_i32_1 = arith.constant 0 : i32
    return %c0_i32, %c0_i32_0 : i32, i32
  }
  func.func @transform_7(%arg0: i32) -> (i32, i32) {
    %c0_i32 = arith.constant 0 : i32
    %c0_i32_0 = arith.constant 0 : i32
    %c0_i32_1 = arith.constant 0 : i32
    return %c0_i32, %c0_i32_0 : i32, i32
  }
  func.func @transform_8(%arg0: i32) -> (i32, i32) {
    %c0_i32 = arith.constant 0 : i32
    %c0_i32_0 = arith.constant 0 : i32
    %c0_i32_1 = arith.constant 0 : i32
    return %c0_i32, %c0_i32_0 : i32, i32
  }
  func.func @transform_9(%arg0: i32) -> (i32, i32) {
    %c0_i32 = arith.constant 0 : i32
    %c0_i32_0 = arith.constant 0 : i32
    %c0_i32_1 = arith.constant 0 : i32
    return %c0_i32, %c0_i32_0 : i32, i32
  }
  func.func @transform_10(%arg0: i32) -> (i32, i32) {
    %c0_i32 = arith.constant 0 : i32
    %c0_i32_0 = arith.constant 0 : i32
    %c0_i32_1 = arith.constant 0 : i32
    return %c0_i32, %c0_i32_0 : i32, i32
  }
}

</mosaic_0001>

<llo_original>
// kernel: _lambda_.1
$region0: #{_lambda_.1}
  #allocation0 [shape = 'u32[]', space=smem, size = 0x4, offset = 0x4, fixed_abs, tag = 'smem constant byte address 0x4 - core index']
  #allocation1 [shape = 'u32[144,128]{1,0:T(1,128)}', space=vmem, size = 0x12000, scoped, tag = 'internal scratch']
  %s0 = inlined_call_operand.vmem [shape: f32[16,256], index: 0, kind: input, shape index: {}]
  %s1 = inlined_call_operand.vmem [shape: f32[256,32], index: 1, kind: input, shape index: {}]
  %s2 = inlined_call_operand.vmem [shape: f32[16,32], index: 2, kind: input, shape index: {}]
  %s3 = inlined_call_operand.vmem [shape: f32[2,32], index: 3, kind: input, shape index: {}]
  %s4 = inlined_call_operand.vmem [shape: f32[2,32], index: 4, kind: input, shape index: {}]
  %s5 = inlined_call_operand.vmem [shape: f32[2,32,32], index: 5, kind: input, shape index: {}]
  %s6 = inlined_call_operand.vmem [shape: f32[1,32], index: 6, kind: input, shape index: {}]
  %s7 = inlined_call_operand.vmem [shape: f32[1,32], index: 7, kind: input, shape index: {}]
  %s8 = inlined_call_operand.vmem [shape: f32[32,10], index: 8, kind: input, shape index: {}]
  %s9 = inlined_call_operand.vmem [shape: f32[1,10], index: 9, kind: input, shape index: {}]
  %s10 = inlined_call_operand.hbm [shape: f32[2,10], index: 10, kind: output, shape index: {}]
  %s11 = sld [smem:[#allocation0]]
  $region50: #{_lambda_.1} parent=0
    _
  %s13 = ssub.s32 1, %s11
  %s14 = scalar_select 0, %s13, %s11
  $region1: #{_lambda_.1} parent=0
    #allocation2 [shape = 'u8[1024]{0}', space=vmem, size = 0x400, scoped, tag = 'output window, operand 0, single buffered']
    #allocation3 [shape = 's32[1]{0}', space=sflag, size = 0x4, scoped, tag = 'scoped memory for _lambda_.1']
    %15 = vsyncpa [#allocation3], 0
    // Predicated region
    $region2: #{_lambda_.1} parent=1 // pred_check
      _
    $region3: #{_lambda_.1} parent=1 // pred_check_branch
      %17 = sbr.rel (0) target = $region5
    $region4: #{_lambda_.1} parent=1 // pred_region
      _
    $region5: #{_lambda_.1} parent=1 // pred_fallthru
      _
    // Predicated region
    $region6: #{_lambda_.1} parent=1 // pred_check
      _
    $region7: #{_lambda_.1} parent=1 // pred_check_branch
      %19 = sbr.rel (0) target = $region9
    $region8: #{_lambda_.1} parent=1 // pred_region
      _
    $region9: #{_lambda_.1} parent=1 // pred_fallthru
      _
    // Predicated region
    $region10: #{_lambda_.1} parent=1 // pred_check
      _
    $region11: #{_lambda_.1} parent=1 // pred_check_branch
      %21 = sbr.rel (0) target = $region13
    $region12: #{_lambda_.1} parent=1 // pred_region
      _
    $region13: #{_lambda_.1} parent=1 // pred_fallthru
      _
    // Predicated region
    $region14: #{_lambda_.1} parent=1 // pred_check
      _
    $region15: #{_lambda_.1} parent=1 // pred_check_branch
      %23 = sbr.rel (0) target = $region17
    $region16: #{_lambda_.1} parent=1 // pred_region
      _
    $region17: #{_lambda_.1} parent=1 // pred_fallthru
      _
    // Predicated region
    $region18: #{_lambda_.1} parent=1 // pred_check
      _
    $region19: #{_lambda_.1} parent=1 // pred_check_branch
      %25 = sbr.rel (0) target = $region21
    $region20: #{_lambda_.1} parent=1 // pred_region
      _
    $region21: #{_lambda_.1} parent=1 // pred_fallthru
      _
    // Predicated region
    $region22: #{_lambda_.1} parent=1 // pred_check
      _
    $region23: #{_lambda_.1} parent=1 // pred_check_branch
      %27 = sbr.rel (0) target = $region25
    $region24: #{_lambda_.1} parent=1 // pred_region
      _
    $region25: #{_lambda_.1} parent=1 // pred_fallthru
      _
    // Predicated region
    $region26: #{_lambda_.1} parent=1 // pred_check
      _
    $region27: #{_lambda_.1} parent=1 // pred_check_branch
      %29 = sbr.rel (0) target = $region29
    $region28: #{_lambda_.1} parent=1 // pred_region
      _
    $region29: #{_lambda_.1} parent=1 // pred_fallthru
      _
    // Predicated region
    $region30: #{_lambda_.1} parent=1 // pred_check
      _
    $region31: #{_lambda_.1} parent=1 // pred_check_branch
      %31 = sbr.rel (0) target = $region33
    $region32: #{_lambda_.1} parent=1 // pred_region
      _
    $region33: #{_lambda_.1} parent=1 // pred_fallthru
      _
    // Predicated region
    $region34: #{_lambda_.1} parent=1 // pred_check
      _
    $region35: #{_lambda_.1} parent=1 // pred_check_branch
      %33 = sbr.rel (0) target = $region37
    $region36: #{_lambda_.1} parent=1 // pred_region
      _
    $region37: #{_lambda_.1} parent=1 // pred_fallthru
      _
    // Predicated region
    $region38: #{_lambda_.1} parent=1 // pred_check
      _
    $region39: #{_lambda_.1} parent=1 // pred_check_branch
      %35 = sbr.rel (0) target = $region41
    $region40: #{_lambda_.1} parent=1 // pred_region
      _
    $region41: #{_lambda_.1} parent=1 // pred_fallthru
      _
    %v36 = vld [vmem:[%s0] sm:$0xff]
    %v37 = vld [vmem:[%s0 + $0x8] sm:$0xff]
    %v38 = vld [vmem:[%s0 + $0x10] sm:$0xff]
    %v39 = vld [vmem:[%s0 + $0x18] sm:$0xff]
    %v40 = vld [vmem:[%s1] sm:$0xff]
    %v41 = vld [vmem:[%s1 + $0x8] sm:$0xff]
    %v42 = vld [vmem:[%s1 + $0x10] sm:$0xff]
    %v43 = vld [vmem:[%s1 + $0x18] sm:$0xff]
    %v44 = vld [vmem:[%s1 + $0x20] sm:$0xff]
    %v45 = vld [vmem:[%s1 + $0x28] sm:$0xff]
    %v46 = vld [vmem:[%s1 + $0x30] sm:$0xff]
    %v47 = vld [vmem:[%s1 + $0x38] sm:$0xff]
    %v48 = vld [vmem:[%s1 + $0x40] sm:$0xff]
    %v49 = vld [vmem:[%s1 + $0x48] sm:$0xff]
    %v50 = vld [vmem:[%s1 + $0x50] sm:$0xff]
    %v51 = vld [vmem:[%s1 + $0x58] sm:$0xff]
    %v52 = vld [vmem:[%s1 + $0x60] sm:$0xff]
    %v53 = vld [vmem:[%s1 + $0x68] sm:$0xff]
    %v54 = vld [vmem:[%s1 + $0x70] sm:$0xff]
    %v55 = vld [vmem:[%s1 + $0x78] sm:$0xff]
    %v56 = vld [vmem:[%s1 + $0x80] sm:$0xff]
    %v57 = vld [vmem:[%s1 + $0x88] sm:$0xff]
    %v58 = vld [vmem:[%s1 + $0x90] sm:$0xff]
    %v59 = vld [vmem:[%s1 + $0x98] sm:$0xff]
    %v60 = vld [vmem:[%s1 + $0xa0] sm:$0xff]
    %v61 = vld [vmem:[%s1 + $0xa8] sm:$0xff]
    %v62 = vld [vmem:[%s1 + $0xb0] sm:$0xff]
    %v63 = vld [vmem:[%s1 + $0xb8] sm:$0xff]
    %v64 = vld [vmem:[%s1 + $0xc0] sm:$0xff]
    %v65 = vld [vmem:[%s1 + $0xc8] sm:$0xff]
    %v66 = vld [vmem:[%s1 + $0xd0] sm:$0xff]
    %v67 = vld [vmem:[%s1 + $0xd8] sm:$0xff]
    %v68 = vld [vmem:[%s1 + $0xe0] sm:$0xff]
    %v69 = vld [vmem:[%s1 + $0xe8] sm:$0xff]
    %v70 = vld [vmem:[%s1 + $0xf0] sm:$0xff]
    %v71 = vld [vmem:[%s1 + $0xf8] sm:$0xff]
    %v72 = vld [vmem:[%s2] sm:$0xff]
    %v73 = vld [vmem:[%s2 + $0x8] sm:$0xff]
    %74 = vmatprep.subr.mxu0 0.0
    %75 = vmatpush1.msra.mxu0 %v55
    %76 = vmatprep.subr.mxu0 0.0
    %77 = vmatpush1.msra.mxu0 %v54
    %78 = vmatprep.subr.mxu0 0.0
    %79 = vmatpush1.msra.mxu0 %v53
    %80 = vmatprep.subr.mxu0 0.0
    %81 = vmatpush1.msra.mxu0 %v52
    %82 = vmatprep.subr.mxu0 0.0
    %83 = vmatpush1.msra.mxu0 %v51
    %84 = vmatprep.subr.mxu0 0.0
    %85 = vmatpush1.msra.mxu0 %v50
    %86 = vmatprep.subr.mxu0 0.0
    %87 = vmatpush1.msra.mxu0 %v49
    %88 = vmatprep.subr.mxu0 0.0
    %89 = vmatpush1.msra.mxu0 %v48
    %90 = vmatprep.subr.mxu0 0.0
    %91 = vmatpush1.msra.mxu0 %v47
    %92 = vmatprep.subr.mxu0 0.0
    %93 = vmatpush1.msra.mxu0 %v46
    %94 = vmatprep.subr.mxu0 0.0
    %95 = vmatpush1.msra.mxu0 %v45
    %96 = vmatprep.subr.mxu0 0.0
    %97 = vmatpush1.msra.mxu0 %v44
    %98 = vmatprep.subr.mxu0 0.0
    %99 = vmatpush1.msra.mxu0 %v43
    %100 = vmatprep.subr.mxu0 0.0
    %101 = vmatpush1.msra.mxu0 %v42
    %102 = vmatprep.subr.mxu0 0.0
    %103 = vmatpush1.msra.mxu0 %v41
    %104 = vmatprep.subr.mxu0 0.0
    %105 = vmatpush1.msra.mxu0 %v40
    %106 = vmatprep.subr.mxu0 0.0
    %107 = vmatpush2.msra.mxu0 %v71
    %108 = vmatprep.subr.mxu0 0.0
    %109 = vmatpush2.msra.mxu0 %v70
    %110 = vmatprep.subr.mxu0 0.0
    %111 = vmatpush2.msra.mxu0 %v69
    %112 = vmatprep.subr.mxu0 0.0
    %113 = vmatpush2.msra.mxu0 %v68
    %114 = vmatprep.subr.mxu0 0.0
    %115 = vmatpush2.msra.mxu0 %v67
    %116 = vmatprep.subr.mxu0 0.0
    %117 = vmatpush2.msra.mxu0 %v66
    %118 = vmatprep.subr.mxu0 0.0
    %119 = vmatpush2.msra.mxu0 %v65
    %120 = vmatprep.subr.mxu0 0.0
    %121 = vmatpush2.msra.mxu0 %v64
    %122 = vmatprep.subr.mxu0 0.0
    %123 = vmatpush2.msra.mxu0 %v63
    %124 = vmatprep.subr.mxu0 0.0
    %125 = vmatpush2.msra.mxu0 %v62
    %126 = vmatprep.subr.mxu0 0.0
    %127 = vmatpush2.msra.mxu0 %v61
    %128 = vmatprep.subr.mxu0 0.0
    %129 = vmatpush2.msra.mxu0 %v60
    %130 = vmatprep.subr.mxu0 0.0
    %131 = vmatpush2.msra.mxu0 %v59
    %132 = vmatprep.subr.mxu0 0.0
    %133 = vmatpush2.msra.mxu0 %v58
    %134 = vmatprep.subr.mxu0 0.0
    %135 = vmatpush2.msra.mxu0 %v57
    %136 = vmatprep.subr.mxu0 0.0
    %137 = vmatpush2.msra.mxu0 %v56
    %138 = vmatprep.mubr.f32.mxu0 %v37
    %139 = vmatmul.mubr.f32.gmra.mxu0 %v36
    %v140 = vpop.f32.mrf.mxu0
    %v141 = vadd.f32 %v72, %v140
    %v142 = vpop.f32.mrf.mxu0
    %143 = vmatprep.mubr.f32.mxu0 %v39
    %144 = vmatmul.mubr.f32.gmra.mxu0 %v38
    %v145 = vpop.f32.mrf.mxu0
    %v146 = vadd.f32 %v73, %v145
    %v147 = vpop.f32.mrf.mxu0
    %148 = vdwg.mxu0
    %v149 = vlaneseq
    %v150 = vshrl.u32 %v149, 7
    %v151 = vlaneseq
    %v152 = vand.u32 %v151, 127
    %vm153 = vcmp.eq.s32.totalorder %v150, %v152
    %v154 = vsel %vm153, 1, 0
    %v155 = vcvt.s32.f32 %v154
    %v156 = vld [vmem:[%s3] sm:$0x1]
    %v157 = vld [vmem:[%s4] sm:$0x1]
    %v158 = vld [vmem:[%s5] sm:$0xff]
    %v159 = vld [vmem:[%s5 + $0x8] sm:$0xff]
    %v160 = vld [vmem:[%s5 + $0x10] sm:$0xff]
    %v161 = vld [vmem:[%s5 + $0x18] sm:$0xff]
    %vm162 = vcmask 261120
    %v163 = vsel %vm162, %v141, 0.0
    %164 = vadd.xlane.f32.xlu0 %v163
    %v165 = vpop.xlane.xlu0 %164
    %v166 = vsel %vm162, %v146, 0.0
    %167 = vadd.xlane.f32.xlu0 %v166
    %v168 = vpop.xlane.xlu0 %167
    %v169 = vrcp.pop 32.0
    %v170 = vmul.f32 %v165, %v169
    %v171 = vmul.f32 %v168, %v169
    %v172 = vsub.f32 %v141, %v170
    %v173 = vsub.f32 %v146, %v171
    %v174 = vmul.f32 %v172, %v172
    %v175 = vmul.f32 %v173, %v173
    %v176 = vsel %vm162, %v174, 0.0
    %177 = vadd.xlane.f32.xlu0 %v176
    %v178 = vpop.xlane.xlu0 %177
    %v179 = vsel %vm162, %v175, 0.0
    %180 = vadd.xlane.f32.xlu0 %v179
    %v181 = vpop.xlane.xlu0 %180
    %v182 = vmul.f32 %v178, %v169
    %v183 = vmul.f32 %v181, %v169
    %v184 = vadd.f32 %v182, 1e-05
    %v185 = vadd.f32 %v183, 1e-05
    %v186 = vrsqrt.pop %v184
    %v187 = vrsqrt.pop %v185
    %v188 = vmul.f32 %v172, %v186
    %v189 = vmul.f32 %v173, %v187
    %v190 = vlaneseq
    %v191 = vshrl.u32 %v190, 7
    %v192 = vsub.s32 0, %v191
    %v193 = vrot.slane %v156, %v192
    %v194 = vmul.f32 %v188, %v193
    %v195 = vmul.f32 %v189, %v193
    %v196 = vlaneseq
    %v197 = vshrl.u32 %v196, 7
    %v198 = vsub.s32 0, %v197
    %v199 = vrot.slane %v157, %v198
    %v200 = vadd.f32 %v194, %v199
    %v201 = vadd.f32 %v195, %v199
    %v203 = vsel %vm162, %v200, 0
    %205 = vmatprep.subr.mxu0 0.0
    %206 = vmatpush1.xpose.msra.mxu0 0.0
    %207 = vmatprep.subr.mxu0 0.0
    %208 = vmatpush1.xpose.msra.mxu0 0.0
    %209 = vmatprep.subr.mxu0 0.0
    %210 = vmatpush1.xpose.msra.mxu0 0.0
    %211 = vmatprep.subr.mxu0 0.0
    %212 = vmatpush1.xpose.msra.mxu0 0.0
    %213 = vmatprep.subr.mxu0 0.0
    %214 = vmatpush1.xpose.msra.mxu0 0.0
    %215 = vmatprep.subr.mxu0 0.0
    %216 = vmatpush1.xpose.msra.mxu0 0.0
    %217 = vmatprep.subr.mxu0 0.0
    %218 = vmatpush1.xpose.msra.mxu0 0.0
    %219 = vmatprep.subr.mxu0 0.0
    %220 = vmatpush1.xpose.msra.mxu0 0.0
    %221 = vmatprep.subr.mxu0 0.0
    %222 = vmatpush1.xpose.msra.mxu0 0.0
    %223 = vmatprep.subr.mxu0 0.0
    %224 = vmatpush1.xpose.msra.mxu0 0.0
    %225 = vmatprep.subr.mxu0 0.0
    %226 = vmatpush1.xpose.msra.mxu0 0.0
    %227 = vmatprep.subr.mxu0 0.0
    %228 = vmatpush1.xpose.msra.mxu0 0.0
    %229 = vmatprep.subr.mxu0 0.0
    %230 = vmatpush1.xpose.msra.mxu0 0.0
    %231 = vmatprep.subr.mxu0 0.0
    %232 = vmatpush1.xpose.msra.mxu0 0.0
    %233 = vmatprep.subr.mxu0 0.0
    %234 = vmatpush1.xpose.msra.mxu0 0.0
    %235 = vmatprep.subr.mxu0 0.0
    %236 = vmatpush1.xpose.msra.mxu0 %v203
    %237 = vmatprep.subr.mxu0 0.0
    %238 = vmatpush2.xpose.msra.mxu0 0.0
    %239 = vmatprep.subr.mxu0 0.0
    %240 = vmatpush2.xpose.msra.mxu0 0.0
    %241 = vmatprep.subr.mxu0 0.0
    %242 = vmatpush2.xpose.msra.mxu0 0.0
    %243 = vmatprep.subr.mxu0 0.0
    %244 = vmatpush2.xpose.msra.mxu0 0.0
    %245 = vmatprep.subr.mxu0 0.0
    %246 = vmatpush2.xpose.msra.mxu0 0.0
    %247 = vmatprep.subr.mxu0 0.0
    %248 = vmatpush2.xpose.msra.mxu0 0.0
    %249 = vmatprep.subr.mxu0 0.0
    %250 = vmatpush2.xpose.msra.mxu0 0.0
    %251 = vmatprep.subr.mxu0 0.0
    %252 = vmatpush2.xpose.msra.mxu0 0.0
    %253 = vmatprep.subr.mxu0 0.0
    %254 = vmatpush2.xpose.msra.mxu0 0.0
    %255 = vmatprep.subr.mxu0 0.0
    %256 = vmatpush2.xpose.msra.mxu0 0.0
    %257 = vmatprep.subr.mxu0 0.0
    %258 = vmatpush2.xpose.msra.mxu0 0.0
    %259 = vmatprep.subr.mxu0 0.0
    %260 = vmatpush2.xpose.msra.mxu0 0.0
    %261 = vmatprep.subr.mxu0 0.0
    %262 = vmatpush2.xpose.msra.mxu0 0.0
    %263 = vmatprep.subr.mxu0 0.0
    %264 = vmatpush2.xpose.msra.mxu0 0.0
    %265 = vmatprep.subr.mxu0 0.0
    %266 = vmatpush2.xpose.msra.mxu0 0.0
    %267 = vmatprep.subr.mxu0 0.0
    %268 = vmatpush2.xpose.msra.mxu0 0.0
    %269 = vmatprep.mubr.f32.mxu0 0.0
    %270 = vmatmul.mubr.f32.gmra.mxu0 %v203
    %v271 = vpop.f32.mrf.mxu0
    %v272 = vadd.f32 0.0, %v271
    %v273 = vpop.f32.mrf.mxu0
    %274 = vdwg.mxu0
    %v276 = vsel %vm162, %v201, 0
    %278 = vmatprep.subr.mxu0 0.0
    %279 = vmatpush1.xpose.msra.mxu0 0.0
    %280 = vmatprep.subr.mxu0 0.0
    %281 = vmatpush1.xpose.msra.mxu0 0.0
    %282 = vmatprep.subr.mxu0 0.0
    %283 = vmatpush1.xpose.msra.mxu0 0.0
    %284 = vmatprep.subr.mxu0 0.0
    %285 = vmatpush1.xpose.msra.mxu0 0.0
    %286 = vmatprep.subr.mxu0 0.0
    %287 = vmatpush1.xpose.msra.mxu0 0.0
    %288 = vmatprep.subr.mxu0 0.0
    %289 = vmatpush1.xpose.msra.mxu0 0.0
    %290 = vmatprep.subr.mxu0 0.0
    %291 = vmatpush1.xpose.msra.mxu0 0.0
    %292 = vmatprep.subr.mxu0 0.0
    %293 = vmatpush1.xpose.msra.mxu0 0.0
    %294 = vmatprep.subr.mxu0 0.0
    %295 = vmatpush1.xpose.msra.mxu0 0.0
    %296 = vmatprep.subr.mxu0 0.0
    %297 = vmatpush1.xpose.msra.mxu0 0.0
    %298 = vmatprep.subr.mxu0 0.0
    %299 = vmatpush1.xpose.msra.mxu0 0.0
    %300 = vmatprep.subr.mxu0 0.0
    %301 = vmatpush1.xpose.msra.mxu0 0.0
    %302 = vmatprep.subr.mxu0 0.0
    %303 = vmatpush1.xpose.msra.mxu0 0.0
    %304 = vmatprep.subr.mxu0 0.0
    %305 = vmatpush1.xpose.msra.mxu0 0.0
    %306 = vmatprep.subr.mxu0 0.0
    %307 = vmatpush1.xpose.msra.mxu0 0.0
    %308 = vmatprep.subr.mxu0 0.0
    %309 = vmatpush1.xpose.msra.mxu0 %v276
    %310 = vmatprep.subr.mxu0 0.0
    %311 = vmatpush2.xpose.msra.mxu0 0.0
    %312 = vmatprep.subr.mxu0 0.0
    %313 = vmatpush2.xpose.msra.mxu0 0.0
    %314 = vmatprep.subr.mxu0 0.0
    %315 = vmatpush2.xpose.msra.mxu0 0.0
    %316 = vmatprep.subr.mxu0 0.0
    %317 = vmatpush2.xpose.msra.mxu0 0.0
    %318 = vmatprep.subr.mxu0 0.0
    %319 = vmatpush2.xpose.msra.mxu0 0.0
    %320 = vmatprep.subr.mxu0 0.0
    %321 = vmatpush2.xpose.msra.mxu0 0.0
    %322 = vmatprep.subr.mxu0 0.0
    %323 = vmatpush2.xpose.msra.mxu0 0.0
    %324 = vmatprep.subr.mxu0 0.0
    %325 = vmatpush2.xpose.msra.mxu0 0.0
    %326 = vmatprep.subr.mxu0 0.0
    %327 = vmatpush2.xpose.msra.mxu0 0.0
    %328 = vmatprep.subr.mxu0 0.0
    %329 = vmatpush2.xpose.msra.mxu0 0.0
    %330 = vmatprep.subr.mxu0 0.0
    %331 = vmatpush2.xpose.msra.mxu0 0.0
    %332 = vmatprep.subr.mxu0 0.0
    %333 = vmatpush2.xpose.msra.mxu0 0.0
    %334 = vmatprep.subr.mxu0 0.0
    %335 = vmatpush2.xpose.msra.mxu0 0.0
    %336 = vmatprep.subr.mxu0 0.0
    %337 = vmatpush2.xpose.msra.mxu0 0.0
    %338 = vmatprep.subr.mxu0 0.0
    %339 = vmatpush2.xpose.msra.mxu0 0.0
    %340 = vmatprep.subr.mxu0 0.0
    %341 = vmatpush2.xpose.msra.mxu0 0.0
    %342 = vmatprep.mubr.f32.mxu0 0.0
    %343 = vmatmul.mubr.f32.gmra.mxu0 %v276
    %v344 = vpop.f32.mrf.mxu0
    %v345 = vadd.f32 0.0, %v344
    %v346 = vpop.f32.mrf.mxu0
    %347 = vdwg.mxu0
    %v349 = vsel %vm162, %v158, 0
    %v352 = vsel %vm162, %v159, 0
    %v355 = vsel %vm162, %v160, 0
    %v358 = vsel %vm162, %v161, 0
    %360 = vmatprep.subr.mxu0 0.0
    %361 = vmatpush1.xpose.msra.mxu0 0.0
    %362 = vmatprep.subr.mxu0 0.0
    %363 = vmatpush1.xpose.msra.mxu0 0.0
    %364 = vmatprep.subr.mxu0 0.0
    %365 = vmatpush1.xpose.msra.mxu0 0.0
    %366 = vmatprep.subr.mxu0 0.0
    %367 = vmatpush1.xpose.msra.mxu0 0.0
    %368 = vmatprep.subr.mxu0 0.0
    %369 = vmatpush1.xpose.msra.mxu0 0.0
    %370 = vmatprep.subr.mxu0 0.0
    %371 = vmatpush1.xpose.msra.mxu0 0.0
    %372 = vmatprep.subr.mxu0 0.0
    %373 = vmatpush1.xpose.msra.mxu0 0.0
    %374 = vmatprep.subr.mxu0 0.0
    %375 = vmatpush1.xpose.msra.mxu0 0.0
    %376 = vmatprep.subr.mxu0 0.0
    %377 = vmatpush1.xpose.msra.mxu0 0.0
    %378 = vmatprep.subr.mxu0 0.0
    %379 = vmatpush1.xpose.msra.mxu0 0.0
    %380 = vmatprep.subr.mxu0 0.0
    %381 = vmatpush1.xpose.msra.mxu0 0.0
    %382 = vmatprep.subr.mxu0 0.0
    %383 = vmatpush1.xpose.msra.mxu0 0.0
    %384 = vmatprep.subr.mxu0 0.0
    %385 = vmatpush1.xpose.msra.mxu0 %v358
    %386 = vmatprep.subr.mxu0 0.0
    %387 = vmatpush1.xpose.msra.mxu0 %v355
    %388 = vmatprep.subr.mxu0 0.0
    %389 = vmatpush1.xpose.msra.mxu0 %v352
    %390 = vmatprep.subr.mxu0 0.0
    %391 = vmatpush1.xpose.msra.mxu0 %v349
    %392 = vmatprep.subr.mxu0 0.0
    %393 = vmatpush2.xpose.msra.mxu0 0.0
    %394 = vmatprep.subr.mxu0 0.0
    %395 = vmatpush2.xpose.msra.mxu0 0.0
    %396 = vmatprep.subr.mxu0 0.0
    %397 = vmatpush2.xpose.msra.mxu0 0.0
    %398 = vmatprep.subr.mxu0 0.0
    %399 = vmatpush2.xpose.msra.mxu0 0.0
    %400 = vmatprep.subr.mxu0 0.0
    %401 = vmatpush2.xpose.msra.mxu0 0.0
    %402 = vmatprep.subr.mxu0 0.0
    %403 = vmatpush2.xpose.msra.mxu0 0.0
    %404 = vmatprep.subr.mxu0 0.0
    %405 = vmatpush2.xpose.msra.mxu0 0.0
    %406 = vmatprep.subr.mxu0 0.0
    %407 = vmatpush2.xpose.msra.mxu0 0.0
    %408 = vmatprep.subr.mxu0 0.0
    %409 = vmatpush2.xpose.msra.mxu0 0.0
    %410 = vmatprep.subr.mxu0 0.0
    %411 = vmatpush2.xpose.msra.mxu0 0.0
    %412 = vmatprep.subr.mxu0 0.0
    %413 = vmatpush2.xpose.msra.mxu0 0.0
    %414 = vmatprep.subr.mxu0 0.0
    %415 = vmatpush2.xpose.msra.mxu0 0.0
    %416 = vmatprep.subr.mxu0 0.0
    %417 = vmatpush2.xpose.msra.mxu0 0.0
    %418 = vmatprep.subr.mxu0 0.0
    %419 = vmatpush2.xpose.msra.mxu0 0.0
    %420 = vmatprep.subr.mxu0 0.0
    %421 = vmatpush2.xpose.msra.mxu0 0.0
    %422 = vmatprep.subr.mxu0 0.0
    %423 = vmatpush2.xpose.msra.mxu0 0.0
    %424 = vmatprep.mubr.f32.mxu0 0.0
    %425 = vmatmul.mubr.f32.gmra.mxu0 %v203
    %v426 = vpop.f32.mrf.mxu0
    %v427 = vadd.f32 0.0, %v426
    %v428 = vpop.f32.mrf.mxu0
    %429 = vmatprep.mubr.f32.mxu0 0.0
    %430 = vmatmul.mubr.f32.gmra.mxu0 %v276
    %v431 = vpop.f32.mrf.mxu0
    %v432 = vadd.f32 0.0, %v431
    %v433 = vpop.f32.mrf.mxu0
    %434 = vdwg.mxu0
    %435 = vxpose.xlu0.b32.start [1/16] %v427, 128
    %436 = vxpose.xlu0.b32.cont [2/16] 0.0, 128
    %437 = vxpose.xlu0.b32.cont [3/16] 0.0, 128
    %438 = vxpose.xlu0.b32.cont [4/16] 0.0, 128
    %439 = vxpose.xlu0.b32.cont [5/16] 0.0, 128
    %440 = vxpose.xlu0.b32.cont [6/16] 0.0, 128
    %441 = vxpose.xlu0.b32.cont [7/16] 0.0, 128
    %442 = vxpose.xlu0.b32.cont [8/16] 0.0, 128
    %443 = vxpose.xlu0.b32.cont [9/16] 0.0, 128
    %444 = vxpose.xlu0.b32.cont [10/16] 0.0, 128
    %445 = vxpose.xlu0.b32.cont [11/16] 0.0, 128
    %446 = vxpose.xlu0.b32.cont [12/16] 0.0, 128
    %447 = vxpose.xlu0.b32.cont [13/16] 0.0, 128
    %448 = vxpose.xlu0.b32.cont [14/16] 0.0, 128
    %449 = vxpose.xlu0.b32.cont [15/16] 0.0, 128
    %450 = vxpose.xlu0.b32.end [16/16] 0.0, 128
    %v451 = vpop.trf.xlu0
    %v452 = vpop.trf.xlu0
    %v453 = vpop.trf.xlu0
    %v454 = vpop.trf.xlu0
    %v455 = vpop.trf.xlu0
    %v456 = vpop.trf.xlu0
    %v457 = vpop.trf.xlu0
    %v458 = vpop.trf.xlu0
    %v459 = vpop.trf.xlu0
    %v460 = vpop.trf.xlu0
    %v461 = vpop.trf.xlu0
    %v462 = vpop.trf.xlu0
    %v463 = vpop.trf.xlu0
    %v464 = vpop.trf.xlu0
    %v465 = vpop.trf.xlu0
    %v466 = vpop.trf.xlu0
    %467 = vxpose.xlu0.b32.start [1/16] %v432, 128
    %468 = vxpose.xlu0.b32.cont [2/16] 0.0, 128
    %469 = vxpose.xlu0.b32.cont [3/16] 0.0, 128
    %470 = vxpose.xlu0.b32.cont [4/16] 0.0, 128
    %471 = vxpose.xlu0.b32.cont [5/16] 0.0, 128
    %472 = vxpose.xlu0.b32.cont [6/16] 0.0, 128
    %473 = vxpose.xlu0.b32.cont [7/16] 0.0, 128
    %474 = vxpose.xlu0.b32.cont [8/16] 0.0, 128
    %475 = vxpose.xlu0.b32.cont [9/16] 0.0, 128
    %476 = vxpose.xlu0.b32.cont [10/16] 0.0, 128
    %477 = vxpose.xlu0.b32.cont [11/16] 0.0, 128
    %478 = vxpose.xlu0.b32.cont [12/16] 0.0, 128
    %479 = vxpose.xlu0.b32.cont [13/16] 0.0, 128
    %480 = vxpose.xlu0.b32.cont [14/16] 0.0, 128
    %481 = vxpose.xlu0.b32.cont [15/16] 0.0, 128
    %482 = vxpose.xlu0.b32.end [16/16] 0.0, 128
    %v483 = vpop.trf.xlu0
    %v484 = vpop.trf.xlu0
    %v485 = vpop.trf.xlu0
    %v486 = vpop.trf.xlu0
    %v487 = vpop.trf.xlu0
    %v488 = vpop.trf.xlu0
    %v489 = vpop.trf.xlu0
    %v490 = vpop.trf.xlu0
    %v491 = vpop.trf.xlu0
    %v492 = vpop.trf.xlu0
    %v493 = vpop.trf.xlu0
    %v494 = vpop.trf.xlu0
    %v495 = vpop.trf.xlu0
    %v496 = vpop.trf.xlu0
    %v497 = vpop.trf.xlu0
    %v498 = vpop.trf.xlu0
    %v499 = vmul.f32 %v272, 400.0
    %v500 = vmul.f32 %v345, 400.0
    %v501 = vadd.f32 %v499, %v155
    %v502 = vadd.f32 %v500, %v155
    %vm503 = vcmask 64512
    %v505 = vsel %vm503, %v451, 0
    %507 = vmatprep.subr.mxu0 0.0
    %508 = vmatpush1.xpose.msra.mxu0 0.0
    %509 = vmatprep.subr.mxu0 0.0
    %510 = vmatpush1.xpose.msra.mxu0 0.0
    %511 = vmatprep.subr.mxu0 0.0
    %512 = vmatpush1.xpose.msra.mxu0 0.0
    %513 = vmatprep.subr.mxu0 0.0
    %514 = vmatpush1.xpose.msra.mxu0 0.0
    %515 = vmatprep.subr.mxu0 0.0
    %516 = vmatpush1.xpose.msra.mxu0 0.0
    %517 = vmatprep.subr.mxu0 0.0
    %518 = vmatpush1.xpose.msra.mxu0 0.0
    %519 = vmatprep.subr.mxu0 0.0
    %520 = vmatpush1.xpose.msra.mxu0 0.0
    %521 = vmatprep.subr.mxu0 0.0
    %522 = vmatpush1.xpose.msra.mxu0 0.0
    %523 = vmatprep.subr.mxu0 0.0
    %524 = vmatpush1.xpose.msra.mxu0 0.0
    %525 = vmatprep.subr.mxu0 0.0
    %526 = vmatpush1.xpose.msra.mxu0 0.0
    %527 = vmatprep.subr.mxu0 0.0
    %528 = vmatpush1.xpose.msra.mxu0 0.0
    %529 = vmatprep.subr.mxu0 0.0
    %530 = vmatpush1.xpose.msra.mxu0 0.0
    %531 = vmatprep.subr.mxu0 0.0
    %532 = vmatpush1.xpose.msra.mxu0 0.0
    %533 = vmatprep.subr.mxu0 0.0
    %534 = vmatpush1.xpose.msra.mxu0 0.0
    %535 = vmatprep.subr.mxu0 0.0
    %536 = vmatpush1.xpose.msra.mxu0 0.0
    %537 = vmatprep.subr.mxu0 0.0
    %538 = vmatpush1.xpose.msra.mxu0 %v505
    %539 = vmatprep.subr.mxu0 0.0
    %540 = vmatpush2.xpose.msra.mxu0 0.0
    %541 = vmatprep.subr.mxu0 0.0
    %542 = vmatpush2.xpose.msra.mxu0 0.0
    %543 = vmatprep.subr.mxu0 0.0
    %544 = vmatpush2.xpose.msra.mxu0 0.0
    %545 = vmatprep.subr.mxu0 0.0
    %546 = vmatpush2.xpose.msra.mxu0 0.0
    %547 = vmatprep.subr.mxu0 0.0
    %548 = vmatpush2.xpose.msra.mxu0 0.0
    %549 = vmatprep.subr.mxu0 0.0
    %550 = vmatpush2.xpose.msra.mxu0 0.0
    %551 = vmatprep.subr.mxu0 0.0
    %552 = vmatpush2.xpose.msra.mxu0 0.0
    %553 = vmatprep.subr.mxu0 0.0
    %554 = vmatpush2.xpose.msra.mxu0 0.0
    %555 = vmatprep.subr.mxu0 0.0
    %556 = vmatpush2.xpose.msra.mxu0 0.0
    %557 = vmatprep.subr.mxu0 0.0
    %558 = vmatpush2.xpose.msra.mxu0 0.0
    %559 = vmatprep.subr.mxu0 0.0
    %560 = vmatpush2.xpose.msra.mxu0 0.0
    %561 = vmatprep.subr.mxu0 0.0
    %562 = vmatpush2.xpose.msra.mxu0 0.0
    %563 = vmatprep.subr.mxu0 0.0
    %564 = vmatpush2.xpose.msra.mxu0 0.0
    %565 = vmatprep.subr.mxu0 0.0
    %566 = vmatpush2.xpose.msra.mxu0 0.0
    %567 = vmatprep.subr.mxu0 0.0
    %568 = vmatpush2.xpose.msra.mxu0 0.0
    %569 = vmatprep.subr.mxu0 0.0
    %570 = vmatpush2.xpose.msra.mxu0 0.0
    %571 = vmatprep.mubr.f32.mxu0 0.0
    %572 = vmatmul.mubr.f32.gmra.mxu0 %v505
    %v573 = vpop.f32.mrf.mxu0
    %v574 = vadd.f32 0.0, %v573
    %v575 = vpop.f32.mrf.mxu0
    %576 = vdwg.mxu0
    %v578 = vsel %vm503, %v483, 0
    %580 = vmatprep.subr.mxu0 0.0
    %581 = vmatpush1.xpose.msra.mxu0 0.0
    %582 = vmatprep.subr.mxu0 0.0
    %583 = vmatpush1.xpose.msra.mxu0 0.0
    %584 = vmatprep.subr.mxu0 0.0
    %585 = vmatpush1.xpose.msra.mxu0 0.0
    %586 = vmatprep.subr.mxu0 0.0
    %587 = vmatpush1.xpose.msra.mxu0 0.0
    %588 = vmatprep.subr.mxu0 0.0
    %589 = vmatpush1.xpose.msra.mxu0 0.0
    %590 = vmatprep.subr.mxu0 0.0
    %591 = vmatpush1.xpose.msra.mxu0 0.0
    %592 = vmatprep.subr.mxu0 0.0
    %593 = vmatpush1.xpose.msra.mxu0 0.0
    %594 = vmatprep.subr.mxu0 0.0
    %595 = vmatpush1.xpose.msra.mxu0 0.0
    %596 = vmatprep.subr.mxu0 0.0
    %597 = vmatpush1.xpose.msra.mxu0 0.0
    %598 = vmatprep.subr.mxu0 0.0
    %599 = vmatpush1.xpose.msra.mxu0 0.0
    %600 = vmatprep.subr.mxu0 0.0
    %601 = vmatpush1.xpose.msra.mxu0 0.0
    %602 = vmatprep.subr.mxu0 0.0
    %603 = vmatpush1.xpose.msra.mxu0 0.0
    %604 = vmatprep.subr.mxu0 0.0
    %605 = vmatpush1.xpose.msra.mxu0 0.0
    %606 = vmatprep.subr.mxu0 0.0
    %607 = vmatpush1.xpose.msra.mxu0 0.0
    %608 = vmatprep.subr.mxu0 0.0
    %609 = vmatpush1.xpose.msra.mxu0 0.0
    %610 = vmatprep.subr.mxu0 0.0
    %611 = vmatpush1.xpose.msra.mxu0 %v578
    %612 = vmatprep.subr.mxu0 0.0
    %613 = vmatpush2.xpose.msra.mxu0 0.0
    %614 = vmatprep.subr.mxu0 0.0
    %615 = vmatpush2.xpose.msra.mxu0 0.0
    %616 = vmatprep.subr.mxu0 0.0
    %617 = vmatpush2.xpose.msra.mxu0 0.0
    %618 = vmatprep.subr.mxu0 0.0
    %619 = vmatpush2.xpose.msra.mxu0 0.0
    %620 = vmatprep.subr.mxu0 0.0
    %621 = vmatpush2.xpose.msra.mxu0 0.0
    %622 = vmatprep.subr.mxu0 0.0
    %623 = vmatpush2.xpose.msra.mxu0 0.0
    %624 = vmatprep.subr.mxu0 0.0
    %625 = vmatpush2.xpose.msra.mxu0 0.0
    %626 = vmatprep.subr.mxu0 0.0
    %627 = vmatpush2.xpose.msra.mxu0 0.0
    %628 = vmatprep.subr.mxu0 0.0
    %629 = vmatpush2.xpose.msra.mxu0 0.0
    %630 = vmatprep.subr.mxu0 0.0
    %631 = vmatpush2.xpose.msra.mxu0 0.0
    %632 = vmatprep.subr.mxu0 0.0
    %633 = vmatpush2.xpose.msra.mxu0 0.0
    %634 = vmatprep.subr.mxu0 0.0
    %635 = vmatpush2.xpose.msra.mxu0 0.0
    %636 = vmatprep.subr.mxu0 0.0
    %637 = vmatpush2.xpose.msra.mxu0 0.0
    %638 = vmatprep.subr.mxu0 0.0
    %639 = vmatpush2.xpose.msra.mxu0 0.0
    %640 = vmatprep.subr.mxu0 0.0
    %641 = vmatpush2.xpose.msra.mxu0 0.0
    %642 = vmatprep.subr.mxu0 0.0
    %643 = vmatpush2.xpose.msra.mxu0 0.0
    %644 = vmatprep.mubr.f32.mxu0 0.0
    %645 = vmatmul.mubr.f32.gmra.mxu0 %v578
    %v646 = vpop.f32.mrf.mxu0
    %v647 = vadd.f32 0.0, %v646
    %v648 = vpop.f32.mrf.mxu0
    %649 = vdwg.mxu0
    %v650 = vmul.f32 %v574, 100.0
    %v651 = vmul.f32 %v647, 100.0
    %v652 = vadd.f32 %v650, %v155
    %v653 = vadd.f32 %v651, %v155
    %v655 = vsel %vm503, %v452, 0
    %657 = vmatprep.subr.mxu0 0.0
    %658 = vmatpush1.xpose.msra.mxu0 0.0
    %659 = vmatprep.subr.mxu0 0.0
    %660 = vmatpush1.xpose.msra.mxu0 0.0
    %661 = vmatprep.subr.mxu0 0.0
    %662 = vmatpush1.xpose.msra.mxu0 0.0
    %663 = vmatprep.subr.mxu0 0.0
    %664 = vmatpush1.xpose.msra.mxu0 0.0
    %665 = vmatprep.subr.mxu0 0.0
    %666 = vmatpush1.xpose.msra.mxu0 0.0
    %667 = vmatprep.subr.mxu0 0.0
    %668 = vmatpush1.xpose.msra.mxu0 0.0
    %669 = vmatprep.subr.mxu0 0.0
    %670 = vmatpush1.xpose.msra.mxu0 0.0
    %671 = vmatprep.subr.mxu0 0.0
    %672 = vmatpush1.xpose.msra.mxu0 0.0
    %673 = vmatprep.subr.mxu0 0.0
    %674 = vmatpush1.xpose.msra.mxu0 0.0
    %675 = vmatprep.subr.mxu0 0.0
    %676 = vmatpush1.xpose.msra.mxu0 0.0
    %677 = vmatprep.subr.mxu0 0.0
    %678 = vmatpush1.xpose.msra.mxu0 0.0
    %679 = vmatprep.subr.mxu0 0.0
    %680 = vmatpush1.xpose.msra.mxu0 0.0
    %681 = vmatprep.subr.mxu0 0.0
    %682 = vmatpush1.xpose.msra.mxu0 0.0
    %683 = vmatprep.subr.mxu0 0.0
    %684 = vmatpush1.xpose.msra.mxu0 0.0
    %685 = vmatprep.subr.mxu0 0.0
    %686 = vmatpush1.xpose.msra.mxu0 0.0
    %687 = vmatprep.subr.mxu0 0.0
    %688 = vmatpush1.xpose.msra.mxu0 %v655
    %689 = vmatprep.subr.mxu0 0.0
    %690 = vmatpush2.xpose.msra.mxu0 0.0
    %691 = vmatprep.subr.mxu0 0.0
    %692 = vmatpush2.xpose.msra.mxu0 0.0
    %693 = vmatprep.subr.mxu0 0.0
    %694 = vmatpush2.xpose.msra.mxu0 0.0
    %695 = vmatprep.subr.mxu0 0.0
    %696 = vmatpush2.xpose.msra.mxu0 0.0
    %697 = vmatprep.subr.mxu0 0.0
    %698 = vmatpush2.xpose.msra.mxu0 0.0
    %699 = vmatprep.subr.mxu0 0.0
    %700 = vmatpush2.xpose.msra.mxu0 0.0
    %701 = vmatprep.subr.mxu0 0.0
    %702 = vmatpush2.xpose.msra.mxu0 0.0
    %703 = vmatprep.subr.mxu0 0.0
    %704 = vmatpush2.xpose.msra.mxu0 0.0
    %705 = vmatprep.subr.mxu0 0.0
    %706 = vmatpush2.xpose.msra.mxu0 0.0
    %707 = vmatprep.subr.mxu0 0.0
    %708 = vmatpush2.xpose.msra.mxu0 0.0
    %709 = vmatprep.subr.mxu0 0.0
    %710 = vmatpush2.xpose.msra.mxu0 0.0
    %711 = vmatprep.subr.mxu0 0.0
    %712 = vmatpush2.xpose.msra.mxu0 0.0
    %713 = vmatprep.subr.mxu0 0.0
    %714 = vmatpush2.xpose.msra.mxu0 0.0
    %715 = vmatprep.subr.mxu0 0.0
    %716 = vmatpush2.xpose.msra.mxu0 0.0
    %717 = vmatprep.subr.mxu0 0.0
    %718 = vmatpush2.xpose.msra.mxu0 0.0
    %719 = vmatprep.subr.mxu0 0.0
    %720 = vmatpush2.xpose.msra.mxu0 0.0
    %721 = vmatprep.mubr.f32.mxu0 0.0
    %722 = vmatmul.mubr.f32.gmra.mxu0 %v655
    %v723 = vpop.f32.mrf.mxu0
    %v724 = vadd.f32 0.0, %v723
    %v725 = vpop.f32.mrf.mxu0
    %726 = vdwg.mxu0
    %v728 = vsel %vm503, %v484, 0
    %730 = vmatprep.subr.mxu0 0.0
    %731 = vmatpush1.xpose.msra.mxu0 0.0
    %732 = vmatprep.subr.mxu0 0.0
    %733 = vmatpush1.xpose.msra.mxu0 0.0
    %734 = vmatprep.subr.mxu0 0.0
    %735 = vmatpush1.xpose.msra.mxu0 0.0
    %736 = vmatprep.subr.mxu0 0.0
    %737 = vmatpush1.xpose.msra.mxu0 0.0
    %738 = vmatprep.subr.mxu0 0.0
    %739 = vmatpush1.xpose.msra.mxu0 0.0
    %740 = vmatprep.subr.mxu0 0.0
    %741 = vmatpush1.xpose.msra.mxu0 0.0
    %742 = vmatprep.subr.mxu0 0.0
    %743 = vmatpush1.xpose.msra.mxu0 0.0
    %744 = vmatprep.subr.mxu0 0.0
    %745 = vmatpush1.xpose.msra.mxu0 0.0
    %746 = vmatprep.subr.mxu0 0.0
    %747 = vmatpush1.xpose.msra.mxu0 0.0
    %748 = vmatprep.subr.mxu0 0.0
    %749 = vmatpush1.xpose.msra.mxu0 0.0
    %750 = vmatprep.subr.mxu0 0.0
    %751 = vmatpush1.xpose.msra.mxu0 0.0
    %752 = vmatprep.subr.mxu0 0.0
    %753 = vmatpush1.xpose.msra.mxu0 0.0
    %754 = vmatprep.subr.mxu0 0.0
    %755 = vmatpush1.xpose.msra.mxu0 0.0
    %756 = vmatprep.subr.mxu0 0.0
    %757 = vmatpush1.xpose.msra.mxu0 0.0
    %758 = vmatprep.subr.mxu0 0.0
    %759 = vmatpush1.xpose.msra.mxu0 0.0
    %760 = vmatprep.subr.mxu0 0.0
    %761 = vmatpush1.xpose.msra.mxu0 %v728
    %762 = vmatprep.subr.mxu0 0.0
    %763 = vmatpush2.xpose.msra.mxu0 0.0
    %764 = vmatprep.subr.mxu0 0.0
    %765 = vmatpush2.xpose.msra.mxu0 0.0
    %766 = vmatprep.subr.mxu0 0.0
    %767 = vmatpush2.xpose.msra.mxu0 0.0
    %768 = vmatprep.subr.mxu0 0.0
    %769 = vmatpush2.xpose.msra.mxu0 0.0
    %770 = vmatprep.subr.mxu0 0.0
    %771 = vmatpush2.xpose.msra.mxu0 0.0
    %772 = vmatprep.subr.mxu0 0.0
    %773 = vmatpush2.xpose.msra.mxu0 0.0
    %774 = vmatprep.subr.mxu0 0.0
    %775 = vmatpush2.xpose.msra.mxu0 0.0
    %776 = vmatprep.subr.mxu0 0.0
    %777 = vmatpush2.xpose.msra.mxu0 0.0
    %778 = vmatprep.subr.mxu0 0.0
    %779 = vmatpush2.xpose.msra.mxu0 0.0
    %780 = vmatprep.subr.mxu0 0.0
    %781 = vmatpush2.xpose.msra.mxu0 0.0
    %782 = vmatprep.subr.mxu0 0.0
    %783 = vmatpush2.xpose.msra.mxu0 0.0
    %784 = vmatprep.subr.mxu0 0.0
    %785 = vmatpush2.xpose.msra.mxu0 0.0
    %786 = vmatprep.subr.mxu0 0.0
    %787 = vmatpush2.xpose.msra.mxu0 0.0
    %788 = vmatprep.subr.mxu0 0.0
    %789 = vmatpush2.xpose.msra.mxu0 0.0
    %790 = vmatprep.subr.mxu0 0.0
    %791 = vmatpush2.xpose.msra.mxu0 0.0
    %792 = vmatprep.subr.mxu0 0.0
    %793 = vmatpush2.xpose.msra.mxu0 0.0
    %794 = vmatprep.mubr.f32.mxu0 0.0
    %795 = vmatmul.mubr.f32.gmra.mxu0 %v728
    %v796 = vpop.f32.mrf.mxu0
    %v797 = vadd.f32 0.0, %v796
    %v798 = vpop.f32.mrf.mxu0
    %799 = vdwg.mxu0
    %v800 = vmul.f32 %v724, 100.0
    %v801 = vmul.f32 %v797, 100.0
    %v802 = vadd.f32 %v800, %v155
    %v803 = vadd.f32 %v801, %v155
    %v805 = vsel %vm503, %v453, 0
    %807 = vmatprep.subr.mxu0 0.0
    %808 = vmatpush1.xpose.msra.mxu0 0.0
    %809 = vmatprep.subr.mxu0 0.0
    %810 = vmatpush1.xpose.msra.mxu0 0.0
    %811 = vmatprep.subr.mxu0 0.0
    %812 = vmatpush1.xpose.msra.mxu0 0.0
    %813 = vmatprep.subr.mxu0 0.0
    %814 = vmatpush1.xpose.msra.mxu0 0.0
    %815 = vmatprep.subr.mxu0 0.0
    %816 = vmatpush1.xpose.msra.mxu0 0.0
    %817 = vmatprep.subr.mxu0 0.0
    %818 = vmatpush1.xpose.msra.mxu0 0.0
    %819 = vmatprep.subr.mxu0 0.0
    %820 = vmatpush1.xpose.msra.mxu0 0.0
    %821 = vmatprep.subr.mxu0 0.0
    %822 = vmatpush1.xpose.msra.mxu0 0.0
    %823 = vmatprep.subr.mxu0 0.0
    %824 = vmatpush1.xpose.msra.mxu0 0.0
    %825 = vmatprep.subr.mxu0 0.0
    %826 = vmatpush1.xpose.msra.mxu0 0.0
    %827 = vmatprep.subr.mxu0 0.0
    %828 = vmatpush1.xpose.msra.mxu0 0.0
    %829 = vmatprep.subr.mxu0 0.0
    %830 = vmatpush1.xpose.msra.mxu0 0.0
    %831 = vmatprep.subr.mxu0 0.0
    %832 = vmatpush1.xpose.msra.mxu0 0.0
    %833 = vmatprep.subr.mxu0 0.0
    %834 = vmatpush1.xpose.msra.mxu0 0.0
    %835 = vmatprep.subr.mxu0 0.0
    %836 = vmatpush1.xpose.msra.mxu0 0.0
    %837 = vmatprep.subr.mxu0 0.0
    %838 = vmatpush1.xpose.msra.mxu0 %v805
    %839 = vmatprep.subr.mxu0 0.0
    %840 = vmatpush2.xpose.msra.mxu0 0.0
    %841 = vmatprep.subr.mxu0 0.0
    %842 = vmatpush2.xpose.msra.mxu0 0.0
    %843 = vmatprep.subr.mxu0 0.0
    %844 = vmatpush2.xpose.msra.mxu0 0.0
    %845 = vmatprep.subr.mxu0 0.0
    %846 = vmatpush2.xpose.msra.mxu0 0.0
    %847 = vmatprep.subr.mxu0 0.0
    %848 = vmatpush2.xpose.msra.mxu0 0.0
    %849 = vmatprep.subr.mxu0 0.0
    %850 = vmatpush2.xpose.msra.mxu0 0.0
    %851 = vmatprep.subr.mxu0 0.0
    %852 = vmatpush2.xpose.msra.mxu0 0.0
    %853 = vmatprep.subr.mxu0 0.0
    %854 = vmatpush2.xpose.msra.mxu0 0.0
    %855 = vmatprep.subr.mxu0 0.0
    %856 = vmatpush2.xpose.msra.mxu0 0.0
    %857 = vmatprep.subr.mxu0 0.0
    %858 = vmatpush2.xpose.msra.mxu0 0.0
    %859 = vmatprep.subr.mxu0 0.0
    %860 = vmatpush2.xpose.msra.mxu0 0.0
    %861 = vmatprep.subr.mxu0 0.0
    %862 = vmatpush2.xpose.msra.mxu0 0.0
    %863 = vmatprep.subr.mxu0 0.0
    %864 = vmatpush2.xpose.msra.mxu0 0.0
    %865 = vmatprep.subr.mxu0 0.0
    %866 = vmatpush2.xpose.msra.mxu0 0.0
    %867 = vmatprep.subr.mxu0 0.0
    %868 = vmatpush2.xpose.msra.mxu0 0.0
    %869 = vmatprep.subr.mxu0 0.0
    %870 = vmatpush2.xpose.msra.mxu0 0.0
    %871 = vmatprep.mubr.f32.mxu0 0.0
    %872 = vmatmul.mubr.f32.gmra.mxu0 %v805
    %v873 = vpop.f32.mrf.mxu0
    %v874 = vadd.f32 0.0, %v873
    %v875 = vpop.f32.mrf.mxu0
    %876 = vdwg.mxu0
    %v878 = vsel %vm503, %v485, 0
    %880 = vmatprep.subr.mxu0 0.0
    %881 = vmatpush1.xpose.msra.mxu0 0.0
    %882 = vmatprep.subr.mxu0 0.0
    %883 = vmatpush1.xpose.msra.mxu0 0.0
    %884 = vmatprep.subr.mxu0 0.0
    %885 = vmatpush1.xpose.msra.mxu0 0.0
    %886 = vmatprep.subr.mxu0 0.0
    %887 = vmatpush1.xpose.msra.mxu0 0.0
    %888 = vmatprep.subr.mxu0 0.0
    %889 = vmatpush1.xpose.msra.mxu0 0.0
    %890 = vmatprep.subr.mxu0 0.0
    %891 = vmatpush1.xpose.msra.mxu0 0.0
    %892 = vmatprep.subr.mxu0 0.0
    %893 = vmatpush1.xpose.msra.mxu0 0.0
    %894 = vmatprep.subr.mxu0 0.0
    %895 = vmatpush1.xpose.msra.mxu0 0.0
    %896 = vmatprep.subr.mxu0 0.0
    %897 = vmatpush1.xpose.msra.mxu0 0.0
    %898 = vmatprep.subr.mxu0 0.0
    %899 = vmatpush1.xpose.msra.mxu0 0.0
    %900 = vmatprep.subr.mxu0 0.0
    %901 = vmatpush1.xpose.msra.mxu0 0.0
    %902 = vmatprep.subr.mxu0 0.0
    %903 = vmatpush1.xpose.msra.mxu0 0.0
    %904 = vmatprep.subr.mxu0 0.0
    %905 = vmatpush1.xpose.msra.mxu0 0.0
    %906 = vmatprep.subr.mxu0 0.0
    %907 = vmatpush1.xpose.msra.mxu0 0.0
    %908 = vmatprep.subr.mxu0 0.0
    %909 = vmatpush1.xpose.msra.mxu0 0.0
    %910 = vmatprep.subr.mxu0 0.0
    %911 = vmatpush1.xpose.msra.mxu0 %v878
    %912 = vmatprep.subr.mxu0 0.0
    %913 = vmatpush2.xpose.msra.mxu0 0.0
    %914 = vmatprep.subr.mxu0 0.0
    %915 = vmatpush2.xpose.msra.mxu0 0.0
    %916 = vmatprep.subr.mxu0 0.0
    %917 = vmatpush2.xpose.msra.mxu0 0.0
    %918 = vmatprep.subr.mxu0 0.0
    %919 = vmatpush2.xpose.msra.mxu0 0.0
    %920 = vmatprep.subr.mxu0 0.0
    %921 = vmatpush2.xpose.msra.mxu0 0.0
    %922 = vmatprep.subr.mxu0 0.0
    %923 = vmatpush2.xpose.msra.mxu0 0.0
    %924 = vmatprep.subr.mxu0 0.0
    %925 = vmatpush2.xpose.msra.mxu0 0.0
    %926 = vmatprep.subr.mxu0 0.0
    %927 = vmatpush2.xpose.msra.mxu0 0.0
    %928 = vmatprep.subr.mxu0 0.0
    %929 = vmatpush2.xpose.msra.mxu0 0.0
    %930 = vmatprep.subr.mxu0 0.0
    %931 = vmatpush2.xpose.msra.mxu0 0.0
    %932 = vmatprep.subr.mxu0 0.0
    %933 = vmatpush2.xpose.msra.mxu0 0.0
    %934 = vmatprep.subr.mxu0 0.0
    %935 = vmatpush2.xpose.msra.mxu0 0.0
    %936 = vmatprep.subr.mxu0 0.0
    %937 = vmatpush2.xpose.msra.mxu0 0.0
    %938 = vmatprep.subr.mxu0 0.0
    %939 = vmatpush2.xpose.msra.mxu0 0.0
    %940 = vmatprep.subr.mxu0 0.0
    %941 = vmatpush2.xpose.msra.mxu0 0.0
    %942 = vmatprep.subr.mxu0 0.0
    %943 = vmatpush2.xpose.msra.mxu0 0.0
    %944 = vmatprep.mubr.f32.mxu0 0.0
    %945 = vmatmul.mubr.f32.gmra.mxu0 %v878
    %v946 = vpop.f32.mrf.mxu0
    %v947 = vadd.f32 0.0, %v946
    %v948 = vpop.f32.mrf.mxu0
    %949 = vdwg.mxu0
    %v950 = vmul.f32 %v874, 100.0
    %v951 = vmul.f32 %v947, 100.0
    %v952 = vadd.f32 %v950, %v155
    %v953 = vadd.f32 %v951, %v155
    %v955 = vsel %vm503, %v454, 0
    %957 = vmatprep.subr.mxu0 0.0
    %958 = vmatpush1.xpose.msra.mxu0 0.0
    %959 = vmatprep.subr.mxu0 0.0
    %960 = vmatpush1.xpose.msra.mxu0 0.0
    %961 = vmatprep.subr.mxu0 0.0
    %962 = vmatpush1.xpose.msra.mxu0 0.0
    %963 = vmatprep.subr.mxu0 0.0
    %964 = vmatpush1.xpose.msra.mxu0 0.0
    %965 = vmatprep.subr.mxu0 0.0
    %966 = vmatpush1.xpose.msra.mxu0 0.0
    %967 = vmatprep.subr.mxu0 0.0
    %968 = vmatpush1.xpose.msra.mxu0 0.0
    %969 = vmatprep.subr.mxu0 0.0
    %970 = vmatpush1.xpose.msra.mxu0 0.0
    %971 = vmatprep.subr.mxu0 0.0
    %972 = vmatpush1.xpose.msra.mxu0 0.0
    %973 = vmatprep.subr.mxu0 0.0
    %974 = vmatpush1.xpose.msra.mxu0 0.0
    %975 = vmatprep.subr.mxu0 0.0
    %976 = vmatpush1.xpose.msra.mxu0 0.0
    %977 = vmatprep.subr.mxu0 0.0
    %978 = vmatpush1.xpose.msra.mxu0 0.0
    %979 = vmatprep.subr.mxu0 0.0
    %980 = vmatpush1.xpose.msra.mxu0 0.0
    %981 = vmatprep.subr.mxu0 0.0
    %982 = vmatpush1.xpose.msra.mxu0 0.0
    %983 = vmatprep.subr.mxu0 0.0
    %984 = vmatpush1.xpose.msra.mxu0 0.0
    %985 = vmatprep.subr.mxu0 0.0
    %986 = vmatpush1.xpose.msra.mxu0 0.0
    %987 = vmatprep.subr.mxu0 0.0
    %988 = vmatpush1.xpose.msra.mxu0 %v955
    %989 = vmatprep.subr.mxu0 0.0
    %990 = vmatpush2.xpose.msra.mxu0 0.0
    %991 = vmatprep.subr.mxu0 0.0
    %992 = vmatpush2.xpose.msra.mxu0 0.0
    %993 = vmatprep.subr.mxu0 0.0
    %994 = vmatpush2.xpose.msra.mxu0 0.0
    %995 = vmatprep.subr.mxu0 0.0
    %996 = vmatpush2.xpose.msra.mxu0 0.0
    %997 = vmatprep.subr.mxu0 0.0
    %998 = vmatpush2.xpose.msra.mxu0 0.0
    %999 = vmatprep.subr.mxu0 0.0
    %1000 = vmatpush2.xpose.msra.mxu0 0.0
    %1001 = vmatprep.subr.mxu0 0.0
    %1002 = vmatpush2.xpose.msra.mxu0 0.0
    %1003 = vmatprep.subr.mxu0 0.0
    %1004 = vmatpush2.xpose.msra.mxu0 0.0
    %1005 = vmatprep.subr.mxu0 0.0
    %1006 = vmatpush2.xpose.msra.mxu0 0.0
    %1007 = vmatprep.subr.mxu0 0.0
    %1008 = vmatpush2.xpose.msra.mxu0 0.0
    %1009 = vmatprep.subr.mxu0 0.0
    %1010 = vmatpush2.xpose.msra.mxu0 0.0
    %1011 = vmatprep.subr.mxu0 0.0
    %1012 = vmatpush2.xpose.msra.mxu0 0.0
    %1013 = vmatprep.subr.mxu0 0.0
    %1014 = vmatpush2.xpose.msra.mxu0 0.0
    %1015 = vmatprep.subr.mxu0 0.0
    %1016 = vmatpush2.xpose.msra.mxu0 0.0
    %1017 = vmatprep.subr.mxu0 0.0
    %1018 = vmatpush2.xpose.msra.mxu0 0.0
    %1019 = vmatprep.subr.mxu0 0.0
    %1020 = vmatpush2.xpose.msra.mxu0 0.0
    %1021 = vmatprep.mubr.f32.mxu0 0.0
    %1022 = vmatmul.mubr.f32.gmra.mxu0 %v955
    %v1023 = vpop.f32.mrf.mxu0
    %v1024 = vadd.f32 0.0, %v1023
    %v1025 = vpop.f32.mrf.mxu0
    %1026 = vdwg.mxu0
    %v1028 = vsel %vm503, %v486, 0
    %1030 = vmatprep.subr.mxu0 0.0
    %1031 = vmatpush1.xpose.msra.mxu0 0.0
    %1032 = vmatprep.subr.mxu0 0.0
    %1033 = vmatpush1.xpose.msra.mxu0 0.0
    %1034 = vmatprep.subr.mxu0 0.0
    %1035 = vmatpush1.xpose.msra.mxu0 0.0
    %1036 = vmatprep.subr.mxu0 0.0
    %1037 = vmatpush1.xpose.msra.mxu0 0.0
    %1038 = vmatprep.subr.mxu0 0.0
    %1039 = vmatpush1.xpose.msra.mxu0 0.0
    %1040 = vmatprep.subr.mxu0 0.0
    %1041 = vmatpush1.xpose.msra.mxu0 0.0
    %1042 = vmatprep.subr.mxu0 0.0
    %1043 = vmatpush1.xpose.msra.mxu0 0.0
    %1044 = vmatprep.subr.mxu0 0.0
    %1045 = vmatpush1.xpose.msra.mxu0 0.0
    %1046 = vmatprep.subr.mxu0 0.0
    %1047 = vmatpush1.xpose.msra.mxu0 0.0
    %1048 = vmatprep.subr.mxu0 0.0
    %1049 = vmatpush1.xpose.msra.mxu0 0.0
    %1050 = vmatprep.subr.mxu0 0.0
    %1051 = vmatpush1.xpose.msra.mxu0 0.0
    %1052 = vmatprep.subr.mxu0 0.0
    %1053 = vmatpush1.xpose.msra.mxu0 0.0
    %1054 = vmatprep.subr.mxu0 0.0
    %1055 = vmatpush1.xpose.msra.mxu0 0.0
    %1056 = vmatprep.subr.mxu0 0.0
    %1057 = vmatpush1.xpose.msra.mxu0 0.0
    %1058 = vmatprep.subr.mxu0 0.0
    %1059 = vmatpush1.xpose.msra.mxu0 0.0
    %1060 = vmatprep.subr.mxu0 0.0
    %1061 = vmatpush1.xpose.msra.mxu0 %v1028
    %1062 = vmatprep.subr.mxu0 0.0
    %1063 = vmatpush2.xpose.msra.mxu0 0.0
    %1064 = vmatprep.subr.mxu0 0.0
    %1065 = vmatpush2.xpose.msra.mxu0 0.0
    %1066 = vmatprep.subr.mxu0 0.0
    %1067 = vmatpush2.xpose.msra.mxu0 0.0
    %1068 = vmatprep.subr.mxu0 0.0
    %1069 = vmatpush2.xpose.msra.mxu0 0.0
    %1070 = vmatprep.subr.mxu0 0.0
    %1071 = vmatpush2.xpose.msra.mxu0 0.0
    %1072 = vmatprep.subr.mxu0 0.0
    %1073 = vmatpush2.xpose.msra.mxu0 0.0
    %1074 = vmatprep.subr.mxu0 0.0
    %1075 = vmatpush2.xpose.msra.mxu0 0.0
    %1076 = vmatprep.subr.mxu0 0.0
    %1077 = vmatpush2.xpose.msra.mxu0 0.0
    %1078 = vmatprep.subr.mxu0 0.0
    %1079 = vmatpush2.xpose.msra.mxu0 0.0
    %1080 = vmatprep.subr.mxu0 0.0
    %1081 = vmatpush2.xpose.msra.mxu0 0.0
    %1082 = vmatprep.subr.mxu0 0.0
    %1083 = vmatpush2.xpose.msra.mxu0 0.0
    %1084 = vmatprep.subr.mxu0 0.0
    %1085 = vmatpush2.xpose.msra.mxu0 0.0
    %1086 = vmatprep.subr.mxu0 0.0
    %1087 = vmatpush2.xpose.msra.mxu0 0.0
    %1088 = vmatprep.subr.mxu0 0.0
    %1089 = vmatpush2.xpose.msra.mxu0 0.0
    %1090 = vmatprep.subr.mxu0 0.0
    %1091 = vmatpush2.xpose.msra.mxu0 0.0
    %1092 = vmatprep.subr.mxu0 0.0
    %1093 = vmatpush2.xpose.msra.mxu0 0.0
    %1094 = vmatprep.mubr.f32.mxu0 0.0
    %1095 = vmatmul.mubr.f32.gmra.mxu0 %v1028
    %v1096 = vpop.f32.mrf.mxu0
    %v1097 = vadd.f32 0.0, %v1096
    %v1098 = vpop.f32.mrf.mxu0
    %1099 = vdwg.mxu0
    %v1100 = vmul.f32 %v1024, 100.0
    %v1101 = vmul.f32 %v1097, 100.0
    %v1102 = vadd.f32 %v1100, %v155
    %v1103 = vadd.f32 %v1101, %v155
    %v1104 = vrcp.pop %v501
    %v1105 = vrcp.pop %v502
    %v1106 = vrcp.pop %v652
    %v1107 = vrcp.pop %v653
    %v1108 = vrcp.pop %v802
    %v1109 = vrcp.pop %v803
    %v1110 = vrcp.pop %v952
    %v1111 = vrcp.pop %v953
    %v1112 = vrcp.pop %v1102
    %v1113 = vrcp.pop %v1103
    %v1114 = vmul.f32 %v501, %v1104
    %v1115 = vmul.f32 %v502, %v1105
    %v1116 = vmul.f32 %v652, %v1106
    %v1117 = vmul.f32 %v653, %v1107
    %v1118 = vmul.f32 %v802, %v1108
    %v1119 = vmul.f32 %v803, %v1109
    %v1120 = vmul.f32 %v952, %v1110
    %v1121 = vmul.f32 %v953, %v1111
    %v1122 = vmul.f32 %v1102, %v1112
    %v1123 = vmul.f32 %v1103, %v1113
    %v1124 = vsub.f32 2.0, %v1114
    %v1125 = vsub.f32 2.0, %v1115
    %v1126 = vsub.f32 2.0, %v1116
    %v1127 = vsub.f32 2.0, %v1117
    %v1128 = vsub.f32 2.0, %v1118
    %v1129 = vsub.f32 2.0, %v1119
    %v1130 = vsub.f32 2.0, %v1120
    %v1131 = vsub.f32 2.0, %v1121
    %v1132 = vsub.f32 2.0, %v1122
    %v1133 = vsub.f32 2.0, %v1123
    %v1134 = vmul.f32 %v1104, %v1124
    %v1135 = vmul.f32 %v1105, %v1125
    %v1136 = vmul.f32 %v1106, %v1126
    %v1137 = vmul.f32 %v1107, %v1127
    %v1138 = vmul.f32 %v1108, %v1128
    %v1139 = vmul.f32 %v1109, %v1129
    %v1140 = vmul.f32 %v1110, %v1130
    %v1141 = vmul.f32 %v1111, %v1131
    %v1142 = vmul.f32 %v1112, %v1132
    %v1143 = vmul.f32 %v1113, %v1133
    %1145 = vset.pattern.permute.xlu0 0
    %1146 = vperm.xlu0 %1145, %v1134
    %v1147 = vpop.permute.xlu0 %1146
    %1150 = vset.pattern.permute.xlu0 0
    %1151 = vperm.xlu0 %1150, %v1135
    %v1152 = vpop.permute.xlu0 %1151
    %1155 = vset.pattern.permute.xlu0 0
    %1156 = vperm.xlu0 %1155, %v1136
    %v1157 = vpop.permute.xlu0 %1156
    %1160 = vset.pattern.permute.xlu0 0
    %1161 = vperm.xlu0 %1160, %v1137
    %v1162 = vpop.permute.xlu0 %1161
    %1165 = vset.pattern.permute.xlu0 0
    %1166 = vperm.xlu0 %1165, %v1138
    %v1167 = vpop.permute.xlu0 %1166
    %1170 = vset.pattern.permute.xlu0 0
    %1171 = vperm.xlu0 %1170, %v1139
    %v1172 = vpop.permute.xlu0 %1171
    %1175 = vset.pattern.permute.xlu0 0
    %1176 = vperm.xlu0 %1175, %v1140
    %v1177 = vpop.permute.xlu0 %1176
    %1180 = vset.pattern.permute.xlu0 0
    %1181 = vperm.xlu0 %1180, %v1141
    %v1182 = vpop.permute.xlu0 %1181
    %1185 = vset.pattern.permute.xlu0 0
    %1186 = vperm.xlu0 %1185, %v1142
    %v1187 = vpop.permute.xlu0 %1186
    %1190 = vset.pattern.permute.xlu0 0
    %1191 = vperm.xlu0 %1190, %v1143
    %v1192 = vpop.permute.xlu0 %1191
    %v1194 = vmul.f32 %v501, %v1147
    %v1195 = vmul.f32 %v502, %v1152
    %v1196 = vmul.f32 %v652, %v1157
    %v1197 = vmul.f32 %v653, %v1162
    %v1198 = vmul.f32 %v802, %v1167
    %v1199 = vmul.f32 %v803, %v1172
    %v1200 = vmul.f32 %v952, %v1177
    %v1201 = vmul.f32 %v953, %v1182
    %v1202 = vmul.f32 %v1102, %v1187
    %v1203 = vmul.f32 %v1103, %v1192
    %v1204 = vmul.f32 %v155, %v1147
    %v1205 = vmul.f32 %v155, %v1152
    %v1206 = vmul.f32 %v155, %v1157
    %v1207 = vmul.f32 %v155, %v1162
    %v1208 = vmul.f32 %v155, %v1167
    %v1209 = vmul.f32 %v155, %v1172
    %v1210 = vmul.f32 %v155, %v1177
    %v1211 = vmul.f32 %v155, %v1182
    %v1212 = vmul.f32 %v155, %v1187
    %v1213 = vmul.f32 %v155, %v1192
    %v1214 = vsub.f32 %v501, %v155
    %v1215 = vsub.f32 %v502, %v155
    %v1216 = vsub.f32 %v652, %v155
    %v1217 = vsub.f32 %v653, %v155
    %v1218 = vsub.f32 %v802, %v155
    %v1219 = vsub.f32 %v803, %v155
    %v1220 = vsub.f32 %v952, %v155
    %v1221 = vsub.f32 %v953, %v155
    %v1222 = vsub.f32 %v1102, %v155
    %v1223 = vsub.f32 %v1103, %v155
    %1225 = vset.pattern.permute.xlu0 0
    %1226 = vperm.xlu0 %1225, %v1214
    %v1227 = vpop.permute.xlu0 %1226
    %1230 = vset.pattern.permute.xlu0 0
    %1231 = vperm.xlu0 %1230, %v1215
    %v1232 = vpop.permute.xlu0 %1231
    %1235 = vset.pattern.permute.xlu0 0
    %1236 = vperm.xlu0 %1235, %v1216
    %v1237 = vpop.permute.xlu0 %1236
    %1240 = vset.pattern.permute.xlu0 0
    %1241 = vperm.xlu0 %1240, %v1217
    %v1242 = vpop.permute.xlu0 %1241
    %1245 = vset.pattern.permute.xlu0 0
    %1246 = vperm.xlu0 %1245, %v1218
    %v1247 = vpop.permute.xlu0 %1246
    %1250 = vset.pattern.permute.xlu0 0
    %1251 = vperm.xlu0 %1250, %v1219
    %v1252 = vpop.permute.xlu0 %1251
    %1255 = vset.pattern.permute.xlu0 0
    %1256 = vperm.xlu0 %1255, %v1220
    %v1257 = vpop.permute.xlu0 %1256
    %1260 = vset.pattern.permute.xlu0 0
    %1261 = vperm.xlu0 %1260, %v1221
    %v1262 = vpop.permute.xlu0 %1261
    %1265 = vset.pattern.permute.xlu0 0
    %1266 = vperm.xlu0 %1265, %v1222
    %v1267 = vpop.permute.xlu0 %1266
    %1270 = vset.pattern.permute.xlu0 0
    %1271 = vperm.xlu0 %1270, %v1223
    %v1272 = vpop.permute.xlu0 %1271
    %v1274 = vlaneseq
    %v1275 = vshrl.u32 %v1274, 7
    %v1276 = vsub.s32 0, %v1275
    %v1277 = vrot.slane %v1204, %v1276
    %v1278 = vlaneseq
    %v1279 = vshrl.u32 %v1278, 7
    %v1280 = vsub.s32 0, %v1279
    %v1281 = vrot.slane %v1205, %v1280
    %v1282 = vlaneseq
    %v1283 = vshrl.u32 %v1282, 7
    %v1284 = vsub.s32 0, %v1283
    %v1285 = vrot.slane %v1206, %v1284
    %v1286 = vlaneseq
    %v1287 = vshrl.u32 %v1286, 7
    %v1288 = vsub.s32 0, %v1287
    %v1289 = vrot.slane %v1207, %v1288
    %v1290 = vlaneseq
    %v1291 = vshrl.u32 %v1290, 7
    %v1292 = vsub.s32 0, %v1291
    %v1293 = vrot.slane %v1208, %v1292
    %v1294 = vlaneseq
    %v1295 = vshrl.u32 %v1294, 7
    %v1296 = vsub.s32 0, %v1295
    %v1297 = vrot.slane %v1209, %v1296
    %v1298 = vlaneseq
    %v1299 = vshrl.u32 %v1298, 7
    %v1300 = vsub.s32 0, %v1299
    %v1301 = vrot.slane %v1210, %v1300
    %v1302 = vlaneseq
    %v1303 = vshrl.u32 %v1302, 7
    %v1304 = vsub.s32 0, %v1303
    %v1305 = vrot.slane %v1211, %v1304
    %v1306 = vlaneseq
    %v1307 = vshrl.u32 %v1306, 7
    %v1308 = vsub.s32 0, %v1307
    %v1309 = vrot.slane %v1212, %v1308
    %v1310 = vlaneseq
    %v1311 = vshrl.u32 %v1310, 7
    %v1312 = vsub.s32 0, %v1311
    %v1313 = vrot.slane %v1213, %v1312
    %v1314 = vmul.f32 %v1227, %v1277
    %v1315 = vmul.f32 %v1232, %v1281
    %v1316 = vmul.f32 %v1237, %v1285
    %v1317 = vmul.f32 %v1242, %v1289
    %v1318 = vmul.f32 %v1247, %v1293
    %v1319 = vmul.f32 %v1252, %v1297
    %v1320 = vmul.f32 %v1257, %v1301
    %v1321 = vmul.f32 %v1262, %v1305
    %v1322 = vmul.f32 %v1267, %v1309
    %v1323 = vmul.f32 %v1272, %v1313
    %v1324 = vsub.f32 %v155, %v1314
    %v1325 = vsub.f32 %v155, %v1315
    %v1326 = vsub.f32 %v155, %v1316
    %v1327 = vsub.f32 %v155, %v1317
    %v1328 = vsub.f32 %v155, %v1318
    %v1329 = vsub.f32 %v155, %v1319
    %v1330 = vsub.f32 %v155, %v1320
    %v1331 = vsub.f32 %v155, %v1321
    %v1332 = vsub.f32 %v155, %v1322
    %v1333 = vsub.f32 %v155, %v1323
    %v1334 = vlaneseq
    %v1335 = vshrl.u32 %v1334, 7
    %v1336 = vsub.s32 0, %v1335
    %v1337 = vrot.slane %v1194, %v1336
    %v1338 = vlaneseq
    %v1339 = vshrl.u32 %v1338, 7
    %v1340 = vsub.s32 0, %v1339
    %v1341 = vrot.slane %v1195, %v1340
    %v1342 = vlaneseq
    %v1343 = vshrl.u32 %v1342, 7
    %v1344 = vsub.s32 0, %v1343
    %v1345 = vrot.slane %v1196, %v1344
    %v1346 = vlaneseq
    %v1347 = vshrl.u32 %v1346, 7
    %v1348 = vsub.s32 0, %v1347
    %v1349 = vrot.slane %v1197, %v1348
    %v1350 = vlaneseq
    %v1351 = vshrl.u32 %v1350, 7
    %v1352 = vsub.s32 0, %v1351
    %v1353 = vrot.slane %v1198, %v1352
    %v1354 = vlaneseq
    %v1355 = vshrl.u32 %v1354, 7
    %v1356 = vsub.s32 0, %v1355
    %v1357 = vrot.slane %v1199, %v1356
    %v1358 = vlaneseq
    %v1359 = vshrl.u32 %v1358, 7
    %v1360 = vsub.s32 0, %v1359
    %v1361 = vrot.slane %v1200, %v1360
    %v1362 = vlaneseq
    %v1363 = vshrl.u32 %v1362, 7
    %v1364 = vsub.s32 0, %v1363
    %v1365 = vrot.slane %v1201, %v1364
    %v1366 = vlaneseq
    %v1367 = vshrl.u32 %v1366, 7
    %v1368 = vsub.s32 0, %v1367
    %v1369 = vrot.slane %v1202, %v1368
    %v1370 = vlaneseq
    %v1371 = vshrl.u32 %v1370, 7
    %v1372 = vsub.s32 0, %v1371
    %v1373 = vrot.slane %v1203, %v1372
    %v1374 = vmul.f32 %v1227, %v1337
    %v1375 = vmul.f32 %v1232, %v1341
    %v1376 = vmul.f32 %v1237, %v1345
    %v1377 = vmul.f32 %v1242, %v1349
    %v1378 = vmul.f32 %v1247, %v1353
    %v1379 = vmul.f32 %v1252, %v1357
    %v1380 = vmul.f32 %v1257, %v1361
    %v1381 = vmul.f32 %v1262, %v1365
    %v1382 = vmul.f32 %v1267, %v1369
    %v1383 = vmul.f32 %v1272, %v1373
    %v1384 = vsub.f32 %v501, %v1374
    %v1385 = vsub.f32 %v502, %v1375
    %v1386 = vsub.f32 %v652, %v1376
    %v1387 = vsub.f32 %v653, %v1377
    %v1388 = vsub.f32 %v802, %v1378
    %v1389 = vsub.f32 %v803, %v1379
    %v1390 = vsub.f32 %v952, %v1380
    %v1391 = vsub.f32 %v953, %v1381
    %v1392 = vsub.f32 %v1102, %v1382
    %v1393 = vsub.f32 %v1103, %v1383
    %v1394 = vrcp.pop %v1384
    %v1395 = vrcp.pop %v1385
    %v1396 = vrcp.pop %v1386
    %v1397 = vrcp.pop %v1387
    %v1398 = vrcp.pop %v1388
    %v1399 = vrcp.pop %v1389
    %v1400 = vrcp.pop %v1390
    %v1401 = vrcp.pop %v1391
    %v1402 = vrcp.pop %v1392
    %v1403 = vrcp.pop %v1393
    %v1404 = vmul.f32 %v1384, %v1394
    %v1405 = vmul.f32 %v1385, %v1395
    %v1406 = vmul.f32 %v1386, %v1396
    %v1407 = vmul.f32 %v1387, %v1397
    %v1408 = vmul.f32 %v1388, %v1398
    %v1409 = vmul.f32 %v1389, %v1399
    %v1410 = vmul.f32 %v1390, %v1400
    %v1411 = vmul.f32 %v1391, %v1401
    %v1412 = vmul.f32 %v1392, %v1402
    %v1413 = vmul.f32 %v1393, %v1403
    %v1414 = vsub.f32 2.0, %v1404
    %v1415 = vsub.f32 2.0, %v1405
    %v1416 = vsub.f32 2.0, %v1406
    %v1417 = vsub.f32 2.0, %v1407
    %v1418 = vsub.f32 2.0, %v1408
    %v1419 = vsub.f32 2.0, %v1409
    %v1420 = vsub.f32 2.0, %v1410
    %v1421 = vsub.f32 2.0, %v1411
    %v1422 = vsub.f32 2.0, %v1412
    %v1423 = vsub.f32 2.0, %v1413
    %v1424 = vmul.f32 %v1394, %v1414
    %v1425 = vmul.f32 %v1395, %v1415
    %v1426 = vmul.f32 %v1396, %v1416
    %v1427 = vmul.f32 %v1397, %v1417
    %v1428 = vmul.f32 %v1398, %v1418
    %v1429 = vmul.f32 %v1399, %v1419
    %v1430 = vmul.f32 %v1400, %v1420
    %v1431 = vmul.f32 %v1401, %v1421
    %v1432 = vmul.f32 %v1402, %v1422
    %v1433 = vmul.f32 %v1403, %v1423
    %1435 = vset.pattern.permute.xlu0 1
    %1436 = vperm.xlu0 %1435, %v1424
    %v1437 = vpop.permute.xlu0 %1436
    %1440 = vset.pattern.permute.xlu0 1
    %1441 = vperm.xlu0 %1440, %v1425
    %v1442 = vpop.permute.xlu0 %1441
    %1445 = vset.pattern.permute.xlu0 1
    %1446 = vperm.xlu0 %1445, %v1426
    %v1447 = vpop.permute.xlu0 %1446
    %1450 = vset.pattern.permute.xlu0 1
    %1451 = vperm.xlu0 %1450, %v1427
    %v1452 = vpop.permute.xlu0 %1451
    %1455 = vset.pattern.permute.xlu0 1
    %1456 = vperm.xlu0 %1455, %v1428
    %v1457 = vpop.permute.xlu0 %1456
    %1460 = vset.pattern.permute.xlu0 1
    %1461 = vperm.xlu0 %1460, %v1429
    %v1462 = vpop.permute.xlu0 %1461
    %1465 = vset.pattern.permute.xlu0 1
    %1466 = vperm.xlu0 %1465, %v1430
    %v1467 = vpop.permute.xlu0 %1466
    %1470 = vset.pattern.permute.xlu0 1
    %1471 = vperm.xlu0 %1470, %v1431
    %v1472 = vpop.permute.xlu0 %1471
    %1475 = vset.pattern.permute.xlu0 1
    %1476 = vperm.xlu0 %1475, %v1432
    %v1477 = vpop.permute.xlu0 %1476
    %1480 = vset.pattern.permute.xlu0 1
    %1481 = vperm.xlu0 %1480, %v1433
    %v1482 = vpop.permute.xlu0 %1481
    %v1484 = vmul.f32 %v1384, %v1437
    %v1485 = vmul.f32 %v1385, %v1442
    %v1486 = vmul.f32 %v1386, %v1447
    %v1487 = vmul.f32 %v1387, %v1452
    %v1488 = vmul.f32 %v1388, %v1457
    %v1489 = vmul.f32 %v1389, %v1462
    %v1490 = vmul.f32 %v1390, %v1467
    %v1491 = vmul.f32 %v1391, %v1472
    %v1492 = vmul.f32 %v1392, %v1477
    %v1493 = vmul.f32 %v1393, %v1482
    %v1494 = vmul.f32 %v1324, %v1437
    %v1495 = vmul.f32 %v1325, %v1442
    %v1496 = vmul.f32 %v1326, %v1447
    %v1497 = vmul.f32 %v1327, %v1452
    %v1498 = vmul.f32 %v1328, %v1457
    %v1499 = vmul.f32 %v1329, %v1462
    %v1500 = vmul.f32 %v1330, %v1467
    %v1501 = vmul.f32 %v1331, %v1472
    %v1502 = vmul.f32 %v1332, %v1477
    %v1503 = vmul.f32 %v1333, %v1482
    %v1504 = vsub.f32 %v1384, %v155
    %v1505 = vsub.f32 %v1385, %v155
    %v1506 = vsub.f32 %v1386, %v155
    %v1507 = vsub.f32 %v1387, %v155
    %v1508 = vsub.f32 %v1388, %v155
    %v1509 = vsub.f32 %v1389, %v155
    %v1510 = vsub.f32 %v1390, %v155
    %v1511 = vsub.f32 %v1391, %v155
    %v1512 = vsub.f32 %v1392, %v155
    %v1513 = vsub.f32 %v1393, %v155
    %1515 = vset.pattern.permute.xlu0 1
    %1516 = vperm.xlu0 %1515, %v1504
    %v1517 = vpop.permute.xlu0 %1516
    %1520 = vset.pattern.permute.xlu0 1
    %1521 = vperm.xlu0 %1520, %v1505
    %v1522 = vpop.permute.xlu0 %1521
    %1525 = vset.pattern.permute.xlu0 1
    %1526 = vperm.xlu0 %1525, %v1506
    %v1527 = vpop.permute.xlu0 %1526
    %1530 = vset.pattern.permute.xlu0 1
    %1531 = vperm.xlu0 %1530, %v1507
    %v1532 = vpop.permute.xlu0 %1531
    %1535 = vset.pattern.permute.xlu0 1
    %1536 = vperm.xlu0 %1535, %v1508
    %v1537 = vpop.permute.xlu0 %1536
    %1540 = vset.pattern.permute.xlu0 1
    %1541 = vperm.xlu0 %1540, %v1509
    %v1542 = vpop.permute.xlu0 %1541
    %1545 = vset.pattern.permute.xlu0 1
    %1546 = vperm.xlu0 %1545, %v1510
    %v1547 = vpop.permute.xlu0 %1546
    %1550 = vset.pattern.permute.xlu0 1
    %1551 = vperm.xlu0 %1550, %v1511
    %v1552 = vpop.permute.xlu0 %1551
    %1555 = vset.pattern.permute.xlu0 1
    %1556 = vperm.xlu0 %1555, %v1512
    %v1557 = vpop.permute.xlu0 %1556
    %1560 = vset.pattern.permute.xlu0 1
    %1561 = vperm.xlu0 %1560, %v1513
    %v1562 = vpop.permute.xlu0 %1561
    %v1564 = vlaneseq
    %v1565 = vshrl.u32 %v1564, 7
    %v1566 = vsub.s32 1, %v1565
    %v1567 = vrot.slane %v1494, %v1566
    %v1568 = vlaneseq
    %v1569 = vshrl.u32 %v1568, 7
    %v1570 = vsub.s32 1, %v1569
    %v1571 = vrot.slane %v1495, %v1570
    %v1572 = vlaneseq
    %v1573 = vshrl.u32 %v1572, 7
    %v1574 = vsub.s32 1, %v1573
    %v1575 = vrot.slane %v1496, %v1574
    %v1576 = vlaneseq
    %v1577 = vshrl.u32 %v1576, 7
    %v1578 = vsub.s32 1, %v1577
    %v1579 = vrot.slane %v1497, %v1578
    %v1580 = vlaneseq
    %v1581 = vshrl.u32 %v1580, 7
    %v1582 = vsub.s32 1, %v1581
    %v1583 = vrot.slane %v1498, %v1582
    %v1584 = vlaneseq
    %v1585 = vshrl.u32 %v1584, 7
    %v1586 = vsub.s32 1, %v1585
    %v1587 = vrot.slane %v1499, %v1586
    %v1588 = vlaneseq
    %v1589 = vshrl.u32 %v1588, 7
    %v1590 = vsub.s32 1, %v1589
    %v1591 = vrot.slane %v1500, %v1590
    %v1592 = vlaneseq
    %v1593 = vshrl.u32 %v1592, 7
    %v1594 = vsub.s32 1, %v1593
    %v1595 = vrot.slane %v1501, %v1594
    %v1596 = vlaneseq
    %v1597 = vshrl.u32 %v1596, 7
    %v1598 = vsub.s32 1, %v1597
    %v1599 = vrot.slane %v1502, %v1598
    %v1600 = vlaneseq
    %v1601 = vshrl.u32 %v1600, 7
    %v1602 = vsub.s32 1, %v1601
    %v1603 = vrot.slane %v1503, %v1602
    %v1604 = vmul.f32 %v1517, %v1567
    %v1605 = vmul.f32 %v1522, %v1571
    %v1606 = vmul.f32 %v1527, %v1575
    %v1607 = vmul.f32 %v1532, %v1579
    %v1608 = vmul.f32 %v1537, %v1583
    %v1609 = vmul.f32 %v1542, %v1587
    %v1610 = vmul.f32 %v1547, %v1591
    %v1611 = vmul.f32 %v1552, %v1595
    %v1612 = vmul.f32 %v1557, %v1599
    %v1613 = vmul.f32 %v1562, %v1603
    %v1614 = vsub.f32 %v1324, %v1604
    %v1615 = vsub.f32 %v1325, %v1605
    %v1616 = vsub.f32 %v1326, %v1606
    %v1617 = vsub.f32 %v1327, %v1607
    %v1618 = vsub.f32 %v1328, %v1608
    %v1619 = vsub.f32 %v1329, %v1609
    %v1620 = vsub.f32 %v1330, %v1610
    %v1621 = vsub.f32 %v1331, %v1611
    %v1622 = vsub.f32 %v1332, %v1612
    %v1623 = vsub.f32 %v1333, %v1613
    %v1624 = vlaneseq
    %v1625 = vshrl.u32 %v1624, 7
    %v1626 = vsub.s32 1, %v1625
    %v1627 = vrot.slane %v1484, %v1626
    %v1628 = vlaneseq
    %v1629 = vshrl.u32 %v1628, 7
    %v1630 = vsub.s32 1, %v1629
    %v1631 = vrot.slane %v1485, %v1630
    %v1632 = vlaneseq
    %v1633 = vshrl.u32 %v1632, 7
    %v1634 = vsub.s32 1, %v1633
    %v1635 = vrot.slane %v1486, %v1634
    %v1636 = vlaneseq
    %v1637 = vshrl.u32 %v1636, 7
    %v1638 = vsub.s32 1, %v1637
    %v1639 = vrot.slane %v1487, %v1638
    %v1640 = vlaneseq
    %v1641 = vshrl.u32 %v1640, 7
    %v1642 = vsub.s32 1, %v1641
    %v1643 = vrot.slane %v1488, %v1642
    %v1644 = vlaneseq
    %v1645 = vshrl.u32 %v1644, 7
    %v1646 = vsub.s32 1, %v1645
    %v1647 = vrot.slane %v1489, %v1646
    %v1648 = vlaneseq
    %v1649 = vshrl.u32 %v1648, 7
    %v1650 = vsub.s32 1, %v1649
    %v1651 = vrot.slane %v1490, %v1650
    %v1652 = vlaneseq
    %v1653 = vshrl.u32 %v1652, 7
    %v1654 = vsub.s32 1, %v1653
    %v1655 = vrot.slane %v1491, %v1654
    %v1656 = vlaneseq
    %v1657 = vshrl.u32 %v1656, 7
    %v1658 = vsub.s32 1, %v1657
    %v1659 = vrot.slane %v1492, %v1658
    %v1660 = vlaneseq
    %v1661 = vshrl.u32 %v1660, 7
    %v1662 = vsub.s32 1, %v1661
    %v1663 = vrot.slane %v1493, %v1662
    %v1664 = vmul.f32 %v1517, %v1627
    %v1665 = vmul.f32 %v1522, %v1631
    %v1666 = vmul.f32 %v1527, %v1635
    %v1667 = vmul.f32 %v1532, %v1639
    %v1668 = vmul.f32 %v1537, %v1643
    %v1669 = vmul.f32 %v1542, %v1647
    %v1670 = vmul.f32 %v1547, %v1651
    %v1671 = vmul.f32 %v1552, %v1655
    %v1672 = vmul.f32 %v1557, %v1659
    %v1673 = vmul.f32 %v1562, %v1663
    %v1674 = vsub.f32 %v1384, %v1664
    %v1675 = vsub.f32 %v1385, %v1665
    %v1676 = vsub.f32 %v1386, %v1666
    %v1677 = vsub.f32 %v1387, %v1667
    %v1678 = vsub.f32 %v1388, %v1668
    %v1679 = vsub.f32 %v1389, %v1669
    %v1680 = vsub.f32 %v1390, %v1670
    %v1681 = vsub.f32 %v1391, %v1671
    %v1682 = vsub.f32 %v1392, %v1672
    %v1683 = vsub.f32 %v1393, %v1673
    %v1684 = vrcp.pop %v1674
    %v1685 = vrcp.pop %v1675
    %v1686 = vrcp.pop %v1676
    %v1687 = vrcp.pop %v1677
    %v1688 = vrcp.pop %v1678
    %v1689 = vrcp.pop %v1679
    %v1690 = vrcp.pop %v1680
    %v1691 = vrcp.pop %v1681
    %v1692 = vrcp.pop %v1682
    %v1693 = vrcp.pop %v1683
    %v1694 = vmul.f32 %v1674, %v1684
    %v1695 = vmul.f32 %v1675, %v1685
    %v1696 = vmul.f32 %v1676, %v1686
    %v1697 = vmul.f32 %v1677, %v1687
    %v1698 = vmul.f32 %v1678, %v1688
    %v1699 = vmul.f32 %v1679, %v1689
    %v1700 = vmul.f32 %v1680, %v1690
    %v1701 = vmul.f32 %v1681, %v1691
    %v1702 = vmul.f32 %v1682, %v1692
    %v1703 = vmul.f32 %v1683, %v1693
    %v1704 = vsub.f32 2.0, %v1694
    %v1705 = vsub.f32 2.0, %v1695
    %v1706 = vsub.f32 2.0, %v1696
    %v1707 = vsub.f32 2.0, %v1697
    %v1708 = vsub.f32 2.0, %v1698
    %v1709 = vsub.f32 2.0, %v1699
    %v1710 = vsub.f32 2.0, %v1700
    %v1711 = vsub.f32 2.0, %v1701
    %v1712 = vsub.f32 2.0, %v1702
    %v1713 = vsub.f32 2.0, %v1703
    %v1714 = vmul.f32 %v1684, %v1704
    %v1715 = vmul.f32 %v1685, %v1705
    %v1716 = vmul.f32 %v1686, %v1706
    %v1717 = vmul.f32 %v1687, %v1707
    %v1718 = vmul.f32 %v1688, %v1708
    %v1719 = vmul.f32 %v1689, %v1709
    %v1720 = vmul.f32 %v1690, %v1710
    %v1721 = vmul.f32 %v1691, %v1711
    %v1722 = vmul.f32 %v1692, %v1712
    %v1723 = vmul.f32 %v1693, %v1713
    %1725 = vset.pattern.permute.xlu0 2
    %1726 = vperm.xlu0 %1725, %v1714
    %v1727 = vpop.permute.xlu0 %1726
    %1730 = vset.pattern.permute.xlu0 2
    %1731 = vperm.xlu0 %1730, %v1715
    %v1732 = vpop.permute.xlu0 %1731
    %1735 = vset.pattern.permute.xlu0 2
    %1736 = vperm.xlu0 %1735, %v1716
    %v1737 = vpop.permute.xlu0 %1736
    %1740 = vset.pattern.permute.xlu0 2
    %1741 = vperm.xlu0 %1740, %v1717
    %v1742 = vpop.permute.xlu0 %1741
    %1745 = vset.pattern.permute.xlu0 2
    %1746 = vperm.xlu0 %1745, %v1718
    %v1747 = vpop.permute.xlu0 %1746
    %1750 = vset.pattern.permute.xlu0 2
    %1751 = vperm.xlu0 %1750, %v1719
    %v1752 = vpop.permute.xlu0 %1751
    %1755 = vset.pattern.permute.xlu0 2
    %1756 = vperm.xlu0 %1755, %v1720
    %v1757 = vpop.permute.xlu0 %1756
    %1760 = vset.pattern.permute.xlu0 2
    %1761 = vperm.xlu0 %1760, %v1721
    %v1762 = vpop.permute.xlu0 %1761
    %1765 = vset.pattern.permute.xlu0 2
    %1766 = vperm.xlu0 %1765, %v1722
    %v1767 = vpop.permute.xlu0 %1766
    %1770 = vset.pattern.permute.xlu0 2
    %1771 = vperm.xlu0 %1770, %v1723
    %v1772 = vpop.permute.xlu0 %1771
    %v1774 = vmul.f32 %v1674, %v1727
    %v1775 = vmul.f32 %v1675, %v1732
    %v1776 = vmul.f32 %v1676, %v1737
    %v1777 = vmul.f32 %v1677, %v1742
    %v1778 = vmul.f32 %v1678, %v1747
    %v1779 = vmul.f32 %v1679, %v1752
    %v1780 = vmul.f32 %v1680, %v1757
    %v1781 = vmul.f32 %v1681, %v1762
    %v1782 = vmul.f32 %v1682, %v1767
    %v1783 = vmul.f32 %v1683, %v1772
    %v1784 = vmul.f32 %v1614, %v1727
    %v1785 = vmul.f32 %v1615, %v1732
    %v1786 = vmul.f32 %v1616, %v1737
    %v1787 = vmul.f32 %v1617, %v1742
    %v1788 = vmul.f32 %v1618, %v1747
    %v1789 = vmul.f32 %v1619, %v1752
    %v1790 = vmul.f32 %v1620, %v1757
    %v1791 = vmul.f32 %v1621, %v1762
    %v1792 = vmul.f32 %v1622, %v1767
    %v1793 = vmul.f32 %v1623, %v1772
    %v1794 = vsub.f32 %v1674, %v155
    %v1795 = vsub.f32 %v1675, %v155
    %v1796 = vsub.f32 %v1676, %v155
    %v1797 = vsub.f32 %v1677, %v155
    %v1798 = vsub.f32 %v1678, %v155
    %v1799 = vsub.f32 %v1679, %v155
    %v1800 = vsub.f32 %v1680, %v155
    %v1801 = vsub.f32 %v1681, %v155
    %v1802 = vsub.f32 %v1682, %v155
    %v1803 = vsub.f32 %v1683, %v155
    %1805 = vset.pattern.permute.xlu0 2
    %1806 = vperm.xlu0 %1805, %v1794
    %v1807 = vpop.permute.xlu0 %1806
    %1810 = vset.pattern.permute.xlu0 2
    %1811 = vperm.xlu0 %1810, %v1795
    %v1812 = vpop.permute.xlu0 %1811
    %1815 = vset.pattern.permute.xlu0 2
    %1816 = vperm.xlu0 %1815, %v1796
    %v1817 = vpop.permute.xlu0 %1816
    %1820 = vset.pattern.permute.xlu0 2
    %1821 = vperm.xlu0 %1820, %v1797
    %v1822 = vpop.permute.xlu0 %1821
    %1825 = vset.pattern.permute.xlu0 2
    %1826 = vperm.xlu0 %1825, %v1798
    %v1827 = vpop.permute.xlu0 %1826
    %1830 = vset.pattern.permute.xlu0 2
    %1831 = vperm.xlu0 %1830, %v1799
    %v1832 = vpop.permute.xlu0 %1831
    %1835 = vset.pattern.permute.xlu0 2
    %1836 = vperm.xlu0 %1835, %v1800
    %v1837 = vpop.permute.xlu0 %1836
    %1840 = vset.pattern.permute.xlu0 2
    %1841 = vperm.xlu0 %1840, %v1801
    %v1842 = vpop.permute.xlu0 %1841
    %1845 = vset.pattern.permute.xlu0 2
    %1846 = vperm.xlu0 %1845, %v1802
    %v1847 = vpop.permute.xlu0 %1846
    %1850 = vset.pattern.permute.xlu0 2
    %1851 = vperm.xlu0 %1850, %v1803
    %v1852 = vpop.permute.xlu0 %1851
    %v1854 = vlaneseq
    %v1855 = vshrl.u32 %v1854, 7
    %v1856 = vsub.s32 2, %v1855
    %v1857 = vrot.slane %v1784, %v1856
    %v1858 = vlaneseq
    %v1859 = vshrl.u32 %v1858, 7
    %v1860 = vsub.s32 2, %v1859
    %v1861 = vrot.slane %v1785, %v1860
    %v1862 = vlaneseq
    %v1863 = vshrl.u32 %v1862, 7
    %v1864 = vsub.s32 2, %v1863
    %v1865 = vrot.slane %v1786, %v1864
    %v1866 = vlaneseq
    %v1867 = vshrl.u32 %v1866, 7
    %v1868 = vsub.s32 2, %v1867
    %v1869 = vrot.slane %v1787, %v1868
    %v1870 = vlaneseq
    %v1871 = vshrl.u32 %v1870, 7
    %v1872 = vsub.s32 2, %v1871
    %v1873 = vrot.slane %v1788, %v1872
    %v1874 = vlaneseq
    %v1875 = vshrl.u32 %v1874, 7
    %v1876 = vsub.s32 2, %v1875
    %v1877 = vrot.slane %v1789, %v1876
    %v1878 = vlaneseq
    %v1879 = vshrl.u32 %v1878, 7
    %v1880 = vsub.s32 2, %v1879
    %v1881 = vrot.slane %v1790, %v1880
    %v1882 = vlaneseq
    %v1883 = vshrl.u32 %v1882, 7
    %v1884 = vsub.s32 2, %v1883
    %v1885 = vrot.slane %v1791, %v1884
    %v1886 = vlaneseq
    %v1887 = vshrl.u32 %v1886, 7
    %v1888 = vsub.s32 2, %v1887
    %v1889 = vrot.slane %v1792, %v1888
    %v1890 = vlaneseq
    %v1891 = vshrl.u32 %v1890, 7
    %v1892 = vsub.s32 2, %v1891
    %v1893 = vrot.slane %v1793, %v1892
    %v1894 = vmul.f32 %v1807, %v1857
    %v1895 = vmul.f32 %v1812, %v1861
    %v1896 = vmul.f32 %v1817, %v1865
    %v1897 = vmul.f32 %v1822, %v1869
    %v1898 = vmul.f32 %v1827, %v1873
    %v1899 = vmul.f32 %v1832, %v1877
    %v1900 = vmul.f32 %v1837, %v1881
    %v1901 = vmul.f32 %v1842, %v1885
    %v1902 = vmul.f32 %v1847, %v1889
    %v1903 = vmul.f32 %v1852, %v1893
    %v1904 = vsub.f32 %v1614, %v1894
    %v1905 = vsub.f32 %v1615, %v1895
    %v1906 = vsub.f32 %v1616, %v1896
    %v1907 = vsub.f32 %v1617, %v1897
    %v1908 = vsub.f32 %v1618, %v1898
    %v1909 = vsub.f32 %v1619, %v1899
    %v1910 = vsub.f32 %v1620, %v1900
    %v1911 = vsub.f32 %v1621, %v1901
    %v1912 = vsub.f32 %v1622, %v1902
    %v1913 = vsub.f32 %v1623, %v1903
    %v1914 = vlaneseq
    %v1915 = vshrl.u32 %v1914, 7
    %v1916 = vsub.s32 2, %v1915
    %v1917 = vrot.slane %v1774, %v1916
    %v1918 = vlaneseq
    %v1919 = vshrl.u32 %v1918, 7
    %v1920 = vsub.s32 2, %v1919
    %v1921 = vrot.slane %v1775, %v1920
    %v1922 = vlaneseq
    %v1923 = vshrl.u32 %v1922, 7
    %v1924 = vsub.s32 2, %v1923
    %v1925 = vrot.slane %v1776, %v1924
    %v1926 = vlaneseq
    %v1927 = vshrl.u32 %v1926, 7
    %v1928 = vsub.s32 2, %v1927
    %v1929 = vrot.slane %v1777, %v1928
    %v1930 = vlaneseq
    %v1931 = vshrl.u32 %v1930, 7
    %v1932 = vsub.s32 2, %v1931
    %v1933 = vrot.slane %v1778, %v1932
    %v1934 = vlaneseq
    %v1935 = vshrl.u32 %v1934, 7
    %v1936 = vsub.s32 2, %v1935
    %v1937 = vrot.slane %v1779, %v1936
    %v1938 = vlaneseq
    %v1939 = vshrl.u32 %v1938, 7
    %v1940 = vsub.s32 2, %v1939
    %v1941 = vrot.slane %v1780, %v1940
    %v1942 = vlaneseq
    %v1943 = vshrl.u32 %v1942, 7
    %v1944 = vsub.s32 2, %v1943
    %v1945 = vrot.slane %v1781, %v1944
    %v1946 = vlaneseq
    %v1947 = vshrl.u32 %v1946, 7
    %v1948 = vsub.s32 2, %v1947
    %v1949 = vrot.slane %v1782, %v1948
    %v1950 = vlaneseq
    %v1951 = vshrl.u32 %v1950, 7
    %v1952 = vsub.s32 2, %v1951
    %v1953 = vrot.slane %v1783, %v1952
    %v1954 = vmul.f32 %v1807, %v1917
    %v1955 = vmul.f32 %v1812, %v1921
    %v1956 = vmul.f32 %v1817, %v1925
    %v1957 = vmul.f32 %v1822, %v1929
    %v1958 = vmul.f32 %v1827, %v1933
    %v1959 = vmul.f32 %v1832, %v1937
    %v1960 = vmul.f32 %v1837, %v1941
    %v1961 = vmul.f32 %v1842, %v1945
    %v1962 = vmul.f32 %v1847, %v1949
    %v1963 = vmul.f32 %v1852, %v1953
    %v1964 = vsub.f32 %v1674, %v1954
    %v1965 = vsub.f32 %v1675, %v1955
    %v1966 = vsub.f32 %v1676, %v1956
    %v1967 = vsub.f32 %v1677, %v1957
    %v1968 = vsub.f32 %v1678, %v1958
    %v1969 = vsub.f32 %v1679, %v1959
    %v1970 = vsub.f32 %v1680, %v1960
    %v1971 = vsub.f32 %v1681, %v1961
    %v1972 = vsub.f32 %v1682, %v1962
    %v1973 = vsub.f32 %v1683, %v1963
    %v1974 = vrcp.pop %v1964
    %v1975 = vrcp.pop %v1965
    %v1976 = vrcp.pop %v1966
    %v1977 = vrcp.pop %v1967
    %v1978 = vrcp.pop %v1968
    %v1979 = vrcp.pop %v1969
    %v1980 = vrcp.pop %v1970
    %v1981 = vrcp.pop %v1971
    %v1982 = vrcp.pop %v1972
    %v1983 = vrcp.pop %v1973
    %v1984 = vmul.f32 %v1964, %v1974
    %v1985 = vmul.f32 %v1965, %v1975
    %v1986 = vmul.f32 %v1966, %v1976
    %v1987 = vmul.f32 %v1967, %v1977
    %v1988 = vmul.f32 %v1968, %v1978
    %v1989 = vmul.f32 %v1969, %v1979
    %v1990 = vmul.f32 %v1970, %v1980
    %v1991 = vmul.f32 %v1971, %v1981
    %v1992 = vmul.f32 %v1972, %v1982
    %v1993 = vmul.f32 %v1973, %v1983
    %v1994 = vsub.f32 2.0, %v1984
    %v1995 = vsub.f32 2.0, %v1985
    %v1996 = vsub.f32 2.0, %v1986
    %v1997 = vsub.f32 2.0, %v1987
    %v1998 = vsub.f32 2.0, %v1988
    %v1999 = vsub.f32 2.0, %v1989
    %v2000 = vsub.f32 2.0, %v1990
    %v2001 = vsub.f32 2.0, %v1991
    %v2002 = vsub.f32 2.0, %v1992
    %v2003 = vsub.f32 2.0, %v1993
    %v2004 = vmul.f32 %v1974, %v1994
    %v2005 = vmul.f32 %v1975, %v1995
    %v2006 = vmul.f32 %v1976, %v1996
    %v2007 = vmul.f32 %v1977, %v1997
    %v2008 = vmul.f32 %v1978, %v1998
    %v2009 = vmul.f32 %v1979, %v1999
    %v2010 = vmul.f32 %v1980, %v2000
    %v2011 = vmul.f32 %v1981, %v2001
    %v2012 = vmul.f32 %v1982, %v2002
    %v2013 = vmul.f32 %v1983, %v2003
    %2015 = vset.pattern.permute.xlu0 3
    %2016 = vperm.xlu0 %2015, %v2004
    %v2017 = vpop.permute.xlu0 %2016
    %2020 = vset.pattern.permute.xlu0 3
    %2021 = vperm.xlu0 %2020, %v2005
    %v2022 = vpop.permute.xlu0 %2021
    %2025 = vset.pattern.permute.xlu0 3
    %2026 = vperm.xlu0 %2025, %v2006
    %v2027 = vpop.permute.xlu0 %2026
    %2030 = vset.pattern.permute.xlu0 3
    %2031 = vperm.xlu0 %2030, %v2007
    %v2032 = vpop.permute.xlu0 %2031
    %2035 = vset.pattern.permute.xlu0 3
    %2036 = vperm.xlu0 %2035, %v2008
    %v2037 = vpop.permute.xlu0 %2036
    %2040 = vset.pattern.permute.xlu0 3
    %2041 = vperm.xlu0 %2040, %v2009
    %v2042 = vpop.permute.xlu0 %2041
    %2045 = vset.pattern.permute.xlu0 3
    %2046 = vperm.xlu0 %2045, %v2010
    %v2047 = vpop.permute.xlu0 %2046
    %2050 = vset.pattern.permute.xlu0 3
    %2051 = vperm.xlu0 %2050, %v2011
    %v2052 = vpop.permute.xlu0 %2051
    %2055 = vset.pattern.permute.xlu0 3
    %2056 = vperm.xlu0 %2055, %v2012
    %v2057 = vpop.permute.xlu0 %2056
    %2060 = vset.pattern.permute.xlu0 3
    %2061 = vperm.xlu0 %2060, %v2013
    %v2062 = vpop.permute.xlu0 %2061
    %v2064 = vmul.f32 %v1964, %v2017
    %v2065 = vmul.f32 %v1965, %v2022
    %v2066 = vmul.f32 %v1966, %v2027
    %v2067 = vmul.f32 %v1967, %v2032
    %v2068 = vmul.f32 %v1968, %v2037
    %v2069 = vmul.f32 %v1969, %v2042
    %v2070 = vmul.f32 %v1970, %v2047
    %v2071 = vmul.f32 %v1971, %v2052
    %v2072 = vmul.f32 %v1972, %v2057
    %v2073 = vmul.f32 %v1973, %v2062
    %v2074 = vmul.f32 %v1904, %v2017
    %v2075 = vmul.f32 %v1905, %v2022
    %v2076 = vmul.f32 %v1906, %v2027
    %v2077 = vmul.f32 %v1907, %v2032
    %v2078 = vmul.f32 %v1908, %v2037
    %v2079 = vmul.f32 %v1909, %v2042
    %v2080 = vmul.f32 %v1910, %v2047
    %v2081 = vmul.f32 %v1911, %v2052
    %v2082 = vmul.f32 %v1912, %v2057
    %v2083 = vmul.f32 %v1913, %v2062
    %v2084 = vsub.f32 %v1964, %v155
    %v2085 = vsub.f32 %v1965, %v155
    %v2086 = vsub.f32 %v1966, %v155
    %v2087 = vsub.f32 %v1967, %v155
    %v2088 = vsub.f32 %v1968, %v155
    %v2089 = vsub.f32 %v1969, %v155
    %v2090 = vsub.f32 %v1970, %v155
    %v2091 = vsub.f32 %v1971, %v155
    %v2092 = vsub.f32 %v1972, %v155
    %v2093 = vsub.f32 %v1973, %v155
    %2095 = vset.pattern.permute.xlu0 3
    %2096 = vperm.xlu0 %2095, %v2084
    %v2097 = vpop.permute.xlu0 %2096
    %2100 = vset.pattern.permute.xlu0 3
    %2101 = vperm.xlu0 %2100, %v2085
    %v2102 = vpop.permute.xlu0 %2101
    %2105 = vset.pattern.permute.xlu0 3
    %2106 = vperm.xlu0 %2105, %v2086
    %v2107 = vpop.permute.xlu0 %2106
    %2110 = vset.pattern.permute.xlu0 3
    %2111 = vperm.xlu0 %2110, %v2087
    %v2112 = vpop.permute.xlu0 %2111
    %2115 = vset.pattern.permute.xlu0 3
    %2116 = vperm.xlu0 %2115, %v2088
    %v2117 = vpop.permute.xlu0 %2116
    %2120 = vset.pattern.permute.xlu0 3
    %2121 = vperm.xlu0 %2120, %v2089
    %v2122 = vpop.permute.xlu0 %2121
    %2125 = vset.pattern.permute.xlu0 3
    %2126 = vperm.xlu0 %2125, %v2090
    %v2127 = vpop.permute.xlu0 %2126
    %2130 = vset.pattern.permute.xlu0 3
    %2131 = vperm.xlu0 %2130, %v2091
    %v2132 = vpop.permute.xlu0 %2131
    %2135 = vset.pattern.permute.xlu0 3
    %2136 = vperm.xlu0 %2135, %v2092
    %v2137 = vpop.permute.xlu0 %2136
    %2140 = vset.pattern.permute.xlu0 3
    %2141 = vperm.xlu0 %2140, %v2093
    %v2142 = vpop.permute.xlu0 %2141
    %v2144 = vlaneseq
    %v2145 = vshrl.u32 %v2144, 7
    %v2146 = vsub.s32 3, %v2145
    %v2147 = vrot.slane %v2074, %v2146
    %v2148 = vlaneseq
    %v2149 = vshrl.u32 %v2148, 7
    %v2150 = vsub.s32 3, %v2149
    %v2151 = vrot.slane %v2075, %v2150
    %v2152 = vlaneseq
    %v2153 = vshrl.u32 %v2152, 7
    %v2154 = vsub.s32 3, %v2153
    %v2155 = vrot.slane %v2076, %v2154
    %v2156 = vlaneseq
    %v2157 = vshrl.u32 %v2156, 7
    %v2158 = vsub.s32 3, %v2157
    %v2159 = vrot.slane %v2077, %v2158
    %v2160 = vlaneseq
    %v2161 = vshrl.u32 %v2160, 7
    %v2162 = vsub.s32 3, %v2161
    %v2163 = vrot.slane %v2078, %v2162
    %v2164 = vlaneseq
    %v2165 = vshrl.u32 %v2164, 7
    %v2166 = vsub.s32 3, %v2165
    %v2167 = vrot.slane %v2079, %v2166
    %v2168 = vlaneseq
    %v2169 = vshrl.u32 %v2168, 7
    %v2170 = vsub.s32 3, %v2169
    %v2171 = vrot.slane %v2080, %v2170
    %v2172 = vlaneseq
    %v2173 = vshrl.u32 %v2172, 7
    %v2174 = vsub.s32 3, %v2173
    %v2175 = vrot.slane %v2081, %v2174
    %v2176 = vlaneseq
    %v2177 = vshrl.u32 %v2176, 7
    %v2178 = vsub.s32 3, %v2177
    %v2179 = vrot.slane %v2082, %v2178
    %v2180 = vlaneseq
    %v2181 = vshrl.u32 %v2180, 7
    %v2182 = vsub.s32 3, %v2181
    %v2183 = vrot.slane %v2083, %v2182
    %v2184 = vmul.f32 %v2097, %v2147
    %v2185 = vmul.f32 %v2102, %v2151
    %v2186 = vmul.f32 %v2107, %v2155
    %v2187 = vmul.f32 %v2112, %v2159
    %v2188 = vmul.f32 %v2117, %v2163
    %v2189 = vmul.f32 %v2122, %v2167
    %v2190 = vmul.f32 %v2127, %v2171
    %v2191 = vmul.f32 %v2132, %v2175
    %v2192 = vmul.f32 %v2137, %v2179
    %v2193 = vmul.f32 %v2142, %v2183
    %v2194 = vsub.f32 %v1904, %v2184
    %v2195 = vsub.f32 %v1905, %v2185
    %v2196 = vsub.f32 %v1906, %v2186
    %v2197 = vsub.f32 %v1907, %v2187
    %v2198 = vsub.f32 %v1908, %v2188
    %v2199 = vsub.f32 %v1909, %v2189
    %v2200 = vsub.f32 %v1910, %v2190
    %v2201 = vsub.f32 %v1911, %v2191
    %v2202 = vsub.f32 %v1912, %v2192
    %v2203 = vsub.f32 %v1913, %v2193
    %v2204 = vlaneseq
    %v2205 = vshrl.u32 %v2204, 7
    %v2206 = vsub.s32 3, %v2205
    %v2207 = vrot.slane %v2064, %v2206
    %v2208 = vlaneseq
    %v2209 = vshrl.u32 %v2208, 7
    %v2210 = vsub.s32 3, %v2209
    %v2211 = vrot.slane %v2065, %v2210
    %v2212 = vlaneseq
    %v2213 = vshrl.u32 %v2212, 7
    %v2214 = vsub.s32 3, %v2213
    %v2215 = vrot.slane %v2066, %v2214
    %v2216 = vlaneseq
    %v2217 = vshrl.u32 %v2216, 7
    %v2218 = vsub.s32 3, %v2217
    %v2219 = vrot.slane %v2067, %v2218
    %v2220 = vlaneseq
    %v2221 = vshrl.u32 %v2220, 7
    %v2222 = vsub.s32 3, %v2221
    %v2223 = vrot.slane %v2068, %v2222
    %v2224 = vlaneseq
    %v2225 = vshrl.u32 %v2224, 7
    %v2226 = vsub.s32 3, %v2225
    %v2227 = vrot.slane %v2069, %v2226
    %v2228 = vlaneseq
    %v2229 = vshrl.u32 %v2228, 7
    %v2230 = vsub.s32 3, %v2229
    %v2231 = vrot.slane %v2070, %v2230
    %v2232 = vlaneseq
    %v2233 = vshrl.u32 %v2232, 7
    %v2234 = vsub.s32 3, %v2233
    %v2235 = vrot.slane %v2071, %v2234
    %v2236 = vlaneseq
    %v2237 = vshrl.u32 %v2236, 7
    %v2238 = vsub.s32 3, %v2237
    %v2239 = vrot.slane %v2072, %v2238
    %v2240 = vlaneseq
    %v2241 = vshrl.u32 %v2240, 7
    %v2242 = vsub.s32 3, %v2241
    %v2243 = vrot.slane %v2073, %v2242
    %v2244 = vmul.f32 %v2097, %v2207
    %v2245 = vmul.f32 %v2102, %v2211
    %v2246 = vmul.f32 %v2107, %v2215
    %v2247 = vmul.f32 %v2112, %v2219
    %v2248 = vmul.f32 %v2117, %v2223
    %v2249 = vmul.f32 %v2122, %v2227
    %v2250 = vmul.f32 %v2127, %v2231
    %v2251 = vmul.f32 %v2132, %v2235
    %v2252 = vmul.f32 %v2137, %v2239
    %v2253 = vmul.f32 %v2142, %v2243
    %v2254 = vsub.f32 %v1964, %v2244
    %v2255 = vsub.f32 %v1965, %v2245
    %v2256 = vsub.f32 %v1966, %v2246
    %v2257 = vsub.f32 %v1967, %v2247
    %v2258 = vsub.f32 %v1968, %v2248
    %v2259 = vsub.f32 %v1969, %v2249
    %v2260 = vsub.f32 %v1970, %v2250
    %v2261 = vsub.f32 %v1971, %v2251
    %v2262 = vsub.f32 %v1972, %v2252
    %v2263 = vsub.f32 %v1973, %v2253
    %v2264 = vrcp.pop %v2254
    %v2265 = vrcp.pop %v2255
    %v2266 = vrcp.pop %v2256
    %v2267 = vrcp.pop %v2257
    %v2268 = vrcp.pop %v2258
    %v2269 = vrcp.pop %v2259
    %v2270 = vrcp.pop %v2260
    %v2271 = vrcp.pop %v2261
    %v2272 = vrcp.pop %v2262
    %v2273 = vrcp.pop %v2263
    %v2274 = vmul.f32 %v2254, %v2264
    %v2275 = vmul.f32 %v2255, %v2265
    %v2276 = vmul.f32 %v2256, %v2266
    %v2277 = vmul.f32 %v2257, %v2267
    %v2278 = vmul.f32 %v2258, %v2268
    %v2279 = vmul.f32 %v2259, %v2269
    %v2280 = vmul.f32 %v2260, %v2270
    %v2281 = vmul.f32 %v2261, %v2271
    %v2282 = vmul.f32 %v2262, %v2272
    %v2283 = vmul.f32 %v2263, %v2273
    %v2284 = vsub.f32 2.0, %v2274
    %v2285 = vsub.f32 2.0, %v2275
    %v2286 = vsub.f32 2.0, %v2276
    %v2287 = vsub.f32 2.0, %v2277
    %v2288 = vsub.f32 2.0, %v2278
    %v2289 = vsub.f32 2.0, %v2279
    %v2290 = vsub.f32 2.0, %v2280
    %v2291 = vsub.f32 2.0, %v2281
    %v2292 = vsub.f32 2.0, %v2282
    %v2293 = vsub.f32 2.0, %v2283
    %v2294 = vmul.f32 %v2264, %v2284
    %v2295 = vmul.f32 %v2265, %v2285
    %v2296 = vmul.f32 %v2266, %v2286
    %v2297 = vmul.f32 %v2267, %v2287
    %v2298 = vmul.f32 %v2268, %v2288
    %v2299 = vmul.f32 %v2269, %v2289
    %v2300 = vmul.f32 %v2270, %v2290
    %v2301 = vmul.f32 %v2271, %v2291
    %v2302 = vmul.f32 %v2272, %v2292
    %v2303 = vmul.f32 %v2273, %v2293
    %2305 = vset.pattern.permute.xlu0 4
    %2306 = vperm.xlu0 %2305, %v2294
    %v2307 = vpop.permute.xlu0 %2306
    %2310 = vset.pattern.permute.xlu0 4
    %2311 = vperm.xlu0 %2310, %v2295
    %v2312 = vpop.permute.xlu0 %2311
    %2315 = vset.pattern.permute.xlu0 4
    %2316 = vperm.xlu0 %2315, %v2296
    %v2317 = vpop.permute.xlu0 %2316
    %2320 = vset.pattern.permute.xlu0 4
    %2321 = vperm.xlu0 %2320, %v2297
    %v2322 = vpop.permute.xlu0 %2321
    %2325 = vset.pattern.permute.xlu0 4
    %2326 = vperm.xlu0 %2325, %v2298
    %v2327 = vpop.permute.xlu0 %2326
    %2330 = vset.pattern.permute.xlu0 4
    %2331 = vperm.xlu0 %2330, %v2299
    %v2332 = vpop.permute.xlu0 %2331
    %2335 = vset.pattern.permute.xlu0 4
    %2336 = vperm.xlu0 %2335, %v2300
    %v2337 = vpop.permute.xlu0 %2336
    %2340 = vset.pattern.permute.xlu0 4
    %2341 = vperm.xlu0 %2340, %v2301
    %v2342 = vpop.permute.xlu0 %2341
    %2345 = vset.pattern.permute.xlu0 4
    %2346 = vperm.xlu0 %2345, %v2302
    %v2347 = vpop.permute.xlu0 %2346
    %2350 = vset.pattern.permute.xlu0 4
    %2351 = vperm.xlu0 %2350, %v2303
    %v2352 = vpop.permute.xlu0 %2351
    %v2354 = vmul.f32 %v2254, %v2307
    %v2355 = vmul.f32 %v2255, %v2312
    %v2356 = vmul.f32 %v2256, %v2317
    %v2357 = vmul.f32 %v2257, %v2322
    %v2358 = vmul.f32 %v2258, %v2327
    %v2359 = vmul.f32 %v2259, %v2332
    %v2360 = vmul.f32 %v2260, %v2337
    %v2361 = vmul.f32 %v2261, %v2342
    %v2362 = vmul.f32 %v2262, %v2347
    %v2363 = vmul.f32 %v2263, %v2352
    %v2364 = vmul.f32 %v2194, %v2307
    %v2365 = vmul.f32 %v2195, %v2312
    %v2366 = vmul.f32 %v2196, %v2317
    %v2367 = vmul.f32 %v2197, %v2322
    %v2368 = vmul.f32 %v2198, %v2327
    %v2369 = vmul.f32 %v2199, %v2332
    %v2370 = vmul.f32 %v2200, %v2337
    %v2371 = vmul.f32 %v2201, %v2342
    %v2372 = vmul.f32 %v2202, %v2347
    %v2373 = vmul.f32 %v2203, %v2352
    %v2374 = vsub.f32 %v2254, %v155
    %v2375 = vsub.f32 %v2255, %v155
    %v2376 = vsub.f32 %v2256, %v155
    %v2377 = vsub.f32 %v2257, %v155
    %v2378 = vsub.f32 %v2258, %v155
    %v2379 = vsub.f32 %v2259, %v155
    %v2380 = vsub.f32 %v2260, %v155
    %v2381 = vsub.f32 %v2261, %v155
    %v2382 = vsub.f32 %v2262, %v155
    %v2383 = vsub.f32 %v2263, %v155
    %2385 = vset.pattern.permute.xlu0 4
    %2386 = vperm.xlu0 %2385, %v2374
    %v2387 = vpop.permute.xlu0 %2386
    %2390 = vset.pattern.permute.xlu0 4
    %2391 = vperm.xlu0 %2390, %v2375
    %v2392 = vpop.permute.xlu0 %2391
    %2395 = vset.pattern.permute.xlu0 4
    %2396 = vperm.xlu0 %2395, %v2376
    %v2397 = vpop.permute.xlu0 %2396
    %2400 = vset.pattern.permute.xlu0 4
    %2401 = vperm.xlu0 %2400, %v2377
    %v2402 = vpop.permute.xlu0 %2401
    %2405 = vset.pattern.permute.xlu0 4
    %2406 = vperm.xlu0 %2405, %v2378
    %v2407 = vpop.permute.xlu0 %2406
    %2410 = vset.pattern.permute.xlu0 4
    %2411 = vperm.xlu0 %2410, %v2379
    %v2412 = vpop.permute.xlu0 %2411
    %2415 = vset.pattern.permute.xlu0 4
    %2416 = vperm.xlu0 %2415, %v2380
    %v2417 = vpop.permute.xlu0 %2416
    %2420 = vset.pattern.permute.xlu0 4
    %2421 = vperm.xlu0 %2420, %v2381
    %v2422 = vpop.permute.xlu0 %2421
    %2425 = vset.pattern.permute.xlu0 4
    %2426 = vperm.xlu0 %2425, %v2382
    %v2427 = vpop.permute.xlu0 %2426
    %2430 = vset.pattern.permute.xlu0 4
    %2431 = vperm.xlu0 %2430, %v2383
    %v2432 = vpop.permute.xlu0 %2431
    %v2434 = vlaneseq
    %v2435 = vshrl.u32 %v2434, 7
    %v2436 = vsub.s32 4, %v2435
    %v2437 = vrot.slane %v2364, %v2436
    %v2438 = vlaneseq
    %v2439 = vshrl.u32 %v2438, 7
    %v2440 = vsub.s32 4, %v2439
    %v2441 = vrot.slane %v2365, %v2440
    %v2442 = vlaneseq
    %v2443 = vshrl.u32 %v2442, 7
    %v2444 = vsub.s32 4, %v2443
    %v2445 = vrot.slane %v2366, %v2444
    %v2446 = vlaneseq
    %v2447 = vshrl.u32 %v2446, 7
    %v2448 = vsub.s32 4, %v2447
    %v2449 = vrot.slane %v2367, %v2448
    %v2450 = vlaneseq
    %v2451 = vshrl.u32 %v2450, 7
    %v2452 = vsub.s32 4, %v2451
    %v2453 = vrot.slane %v2368, %v2452
    %v2454 = vlaneseq
    %v2455 = vshrl.u32 %v2454, 7
    %v2456 = vsub.s32 4, %v2455
    %v2457 = vrot.slane %v2369, %v2456
    %v2458 = vlaneseq
    %v2459 = vshrl.u32 %v2458, 7
    %v2460 = vsub.s32 4, %v2459
    %v2461 = vrot.slane %v2370, %v2460
    %v2462 = vlaneseq
    %v2463 = vshrl.u32 %v2462, 7
    %v2464 = vsub.s32 4, %v2463
    %v2465 = vrot.slane %v2371, %v2464
    %v2466 = vlaneseq
    %v2467 = vshrl.u32 %v2466, 7
    %v2468 = vsub.s32 4, %v2467
    %v2469 = vrot.slane %v2372, %v2468
    %v2470 = vlaneseq
    %v2471 = vshrl.u32 %v2470, 7
    %v2472 = vsub.s32 4, %v2471
    %v2473 = vrot.slane %v2373, %v2472
    %v2474 = vmul.f32 %v2387, %v2437
    %v2475 = vmul.f32 %v2392, %v2441
    %v2476 = vmul.f32 %v2397, %v2445
    %v2477 = vmul.f32 %v2402, %v2449
    %v2478 = vmul.f32 %v2407, %v2453
    %v2479 = vmul.f32 %v2412, %v2457
    %v2480 = vmul.f32 %v2417, %v2461
    %v2481 = vmul.f32 %v2422, %v2465
    %v2482 = vmul.f32 %v2427, %v2469
    %v2483 = vmul.f32 %v2432, %v2473
    %v2484 = vsub.f32 %v2194, %v2474
    %v2485 = vsub.f32 %v2195, %v2475
    %v2486 = vsub.f32 %v2196, %v2476
    %v2487 = vsub.f32 %v2197, %v2477
    %v2488 = vsub.f32 %v2198, %v2478
    %v2489 = vsub.f32 %v2199, %v2479
    %v2490 = vsub.f32 %v2200, %v2480
    %v2491 = vsub.f32 %v2201, %v2481
    %v2492 = vsub.f32 %v2202, %v2482
    %v2493 = vsub.f32 %v2203, %v2483
    %v2494 = vlaneseq
    %v2495 = vshrl.u32 %v2494, 7
    %v2496 = vsub.s32 4, %v2495
    %v2497 = vrot.slane %v2354, %v2496
    %v2498 = vlaneseq
    %v2499 = vshrl.u32 %v2498, 7
    %v2500 = vsub.s32 4, %v2499
    %v2501 = vrot.slane %v2355, %v2500
    %v2502 = vlaneseq
    %v2503 = vshrl.u32 %v2502, 7
    %v2504 = vsub.s32 4, %v2503
    %v2505 = vrot.slane %v2356, %v2504
    %v2506 = vlaneseq
    %v2507 = vshrl.u32 %v2506, 7
    %v2508 = vsub.s32 4, %v2507
    %v2509 = vrot.slane %v2357, %v2508
    %v2510 = vlaneseq
    %v2511 = vshrl.u32 %v2510, 7
    %v2512 = vsub.s32 4, %v2511
    %v2513 = vrot.slane %v2358, %v2512
    %v2514 = vlaneseq
    %v2515 = vshrl.u32 %v2514, 7
    %v2516 = vsub.s32 4, %v2515
    %v2517 = vrot.slane %v2359, %v2516
    %v2518 = vlaneseq
    %v2519 = vshrl.u32 %v2518, 7
    %v2520 = vsub.s32 4, %v2519
    %v2521 = vrot.slane %v2360, %v2520
    %v2522 = vlaneseq
    %v2523 = vshrl.u32 %v2522, 7
    %v2524 = vsub.s32 4, %v2523
    %v2525 = vrot.slane %v2361, %v2524
    %v2526 = vlaneseq
    %v2527 = vshrl.u32 %v2526, 7
    %v2528 = vsub.s32 4, %v2527
    %v2529 = vrot.slane %v2362, %v2528
    %v2530 = vlaneseq
    %v2531 = vshrl.u32 %v2530, 7
    %v2532 = vsub.s32 4, %v2531
    %v2533 = vrot.slane %v2363, %v2532
    %v2534 = vmul.f32 %v2387, %v2497
    %v2535 = vmul.f32 %v2392, %v2501
    %v2536 = vmul.f32 %v2397, %v2505
    %v2537 = vmul.f32 %v2402, %v2509
    %v2538 = vmul.f32 %v2407, %v2513
    %v2539 = vmul.f32 %v2412, %v2517
    %v2540 = vmul.f32 %v2417, %v2521
    %v2541 = vmul.f32 %v2422, %v2525
    %v2542 = vmul.f32 %v2427, %v2529
    %v2543 = vmul.f32 %v2432, %v2533
    %v2544 = vsub.f32 %v2254, %v2534
    %v2545 = vsub.f32 %v2255, %v2535
    %v2546 = vsub.f32 %v2256, %v2536
    %v2547 = vsub.f32 %v2257, %v2537
    %v2548 = vsub.f32 %v2258, %v2538
    %v2549 = vsub.f32 %v2259, %v2539
    %v2550 = vsub.f32 %v2260, %v2540
    %v2551 = vsub.f32 %v2261, %v2541
    %v2552 = vsub.f32 %v2262, %v2542
    %v2553 = vsub.f32 %v2263, %v2543
    %v2554 = vrcp.pop %v2544
    %v2555 = vrcp.pop %v2545
    %v2556 = vrcp.pop %v2546
    %v2557 = vrcp.pop %v2547
    %v2558 = vrcp.pop %v2548
    %v2559 = vrcp.pop %v2549
    %v2560 = vrcp.pop %v2550
    %v2561 = vrcp.pop %v2551
    %v2562 = vrcp.pop %v2552
    %v2563 = vrcp.pop %v2553
    %v2564 = vmul.f32 %v2544, %v2554
    %v2565 = vmul.f32 %v2545, %v2555
    %v2566 = vmul.f32 %v2546, %v2556
    %v2567 = vmul.f32 %v2547, %v2557
    %v2568 = vmul.f32 %v2548, %v2558
    %v2569 = vmul.f32 %v2549, %v2559
    %v2570 = vmul.f32 %v2550, %v2560
    %v2571 = vmul.f32 %v2551, %v2561
    %v2572 = vmul.f32 %v2552, %v2562
    %v2573 = vmul.f32 %v2553, %v2563
    %v2574 = vsub.f32 2.0, %v2564
    %v2575 = vsub.f32 2.0, %v2565
    %v2576 = vsub.f32 2.0, %v2566
    %v2577 = vsub.f32 2.0, %v2567
    %v2578 = vsub.f32 2.0, %v2568
    %v2579 = vsub.f32 2.0, %v2569
    %v2580 = vsub.f32 2.0, %v2570
    %v2581 = vsub.f32 2.0, %v2571
    %v2582 = vsub.f32 2.0, %v2572
    %v2583 = vsub.f32 2.0, %v2573
    %v2584 = vmul.f32 %v2554, %v2574
    %v2585 = vmul.f32 %v2555, %v2575
    %v2586 = vmul.f32 %v2556, %v2576
    %v2587 = vmul.f32 %v2557, %v2577
    %v2588 = vmul.f32 %v2558, %v2578
    %v2589 = vmul.f32 %v2559, %v2579
    %v2590 = vmul.f32 %v2560, %v2580
    %v2591 = vmul.f32 %v2561, %v2581
    %v2592 = vmul.f32 %v2562, %v2582
    %v2593 = vmul.f32 %v2563, %v2583
    %2595 = vset.pattern.permute.xlu0 5
    %2596 = vperm.xlu0 %2595, %v2584
    %v2597 = vpop.permute.xlu0 %2596
    %2600 = vset.pattern.permute.xlu0 5
    %2601 = vperm.xlu0 %2600, %v2585
    %v2602 = vpop.permute.xlu0 %2601
    %2605 = vset.pattern.permute.xlu0 5
    %2606 = vperm.xlu0 %2605, %v2586
    %v2607 = vpop.permute.xlu0 %2606
    %2610 = vset.pattern.permute.xlu0 5
    %2611 = vperm.xlu0 %2610, %v2587
    %v2612 = vpop.permute.xlu0 %2611
    %2615 = vset.pattern.permute.xlu0 5
    %2616 = vperm.xlu0 %2615, %v2588
    %v2617 = vpop.permute.xlu0 %2616
    %2620 = vset.pattern.permute.xlu0 5
    %2621 = vperm.xlu0 %2620, %v2589
    %v2622 = vpop.permute.xlu0 %2621
    %2625 = vset.pattern.permute.xlu0 5
    %2626 = vperm.xlu0 %2625, %v2590
    %v2627 = vpop.permute.xlu0 %2626
    %2630 = vset.pattern.permute.xlu0 5
    %2631 = vperm.xlu0 %2630, %v2591
    %v2632 = vpop.permute.xlu0 %2631
    %2635 = vset.pattern.permute.xlu0 5
    %2636 = vperm.xlu0 %2635, %v2592
    %v2637 = vpop.permute.xlu0 %2636
    %2640 = vset.pattern.permute.xlu0 5
    %2641 = vperm.xlu0 %2640, %v2593
    %v2642 = vpop.permute.xlu0 %2641
    %v2644 = vmul.f32 %v2544, %v2597
    %v2645 = vmul.f32 %v2545, %v2602
    %v2646 = vmul.f32 %v2546, %v2607
    %v2647 = vmul.f32 %v2547, %v2612
    %v2648 = vmul.f32 %v2548, %v2617
    %v2649 = vmul.f32 %v2549, %v2622
    %v2650 = vmul.f32 %v2550, %v2627
    %v2651 = vmul.f32 %v2551, %v2632
    %v2652 = vmul.f32 %v2552, %v2637
    %v2653 = vmul.f32 %v2553, %v2642
    %v2654 = vmul.f32 %v2484, %v2597
    %v2655 = vmul.f32 %v2485, %v2602
    %v2656 = vmul.f32 %v2486, %v2607
    %v2657 = vmul.f32 %v2487, %v2612
    %v2658 = vmul.f32 %v2488, %v2617
    %v2659 = vmul.f32 %v2489, %v2622
    %v2660 = vmul.f32 %v2490, %v2627
    %v2661 = vmul.f32 %v2491, %v2632
    %v2662 = vmul.f32 %v2492, %v2637
    %v2663 = vmul.f32 %v2493, %v2642
    %v2664 = vsub.f32 %v2544, %v155
    %v2665 = vsub.f32 %v2545, %v155
    %v2666 = vsub.f32 %v2546, %v155
    %v2667 = vsub.f32 %v2547, %v155
    %v2668 = vsub.f32 %v2548, %v155
    %v2669 = vsub.f32 %v2549, %v155
    %v2670 = vsub.f32 %v2550, %v155
    %v2671 = vsub.f32 %v2551, %v155
    %v2672 = vsub.f32 %v2552, %v155
    %v2673 = vsub.f32 %v2553, %v155
    %2675 = vset.pattern.permute.xlu0 5
    %2676 = vperm.xlu0 %2675, %v2664
    %v2677 = vpop.permute.xlu0 %2676
    %2680 = vset.pattern.permute.xlu0 5
    %2681 = vperm.xlu0 %2680, %v2665
    %v2682 = vpop.permute.xlu0 %2681
    %2685 = vset.pattern.permute.xlu0 5
    %2686 = vperm.xlu0 %2685, %v2666
    %v2687 = vpop.permute.xlu0 %2686
    %2690 = vset.pattern.permute.xlu0 5
    %2691 = vperm.xlu0 %2690, %v2667
    %v2692 = vpop.permute.xlu0 %2691
    %2695 = vset.pattern.permute.xlu0 5
    %2696 = vperm.xlu0 %2695, %v2668
    %v2697 = vpop.permute.xlu0 %2696
    %2700 = vset.pattern.permute.xlu0 5
    %2701 = vperm.xlu0 %2700, %v2669
    %v2702 = vpop.permute.xlu0 %2701
    %2705 = vset.pattern.permute.xlu0 5
    %2706 = vperm.xlu0 %2705, %v2670
    %v2707 = vpop.permute.xlu0 %2706
    %2710 = vset.pattern.permute.xlu0 5
    %2711 = vperm.xlu0 %2710, %v2671
    %v2712 = vpop.permute.xlu0 %2711
    %2715 = vset.pattern.permute.xlu0 5
    %2716 = vperm.xlu0 %2715, %v2672
    %v2717 = vpop.permute.xlu0 %2716
    %2720 = vset.pattern.permute.xlu0 5
    %2721 = vperm.xlu0 %2720, %v2673
    %v2722 = vpop.permute.xlu0 %2721
    %v2724 = vlaneseq
    %v2725 = vshrl.u32 %v2724, 7
    %v2726 = vsub.s32 5, %v2725
    %v2727 = vrot.slane %v2654, %v2726
    %v2728 = vlaneseq
    %v2729 = vshrl.u32 %v2728, 7
    %v2730 = vsub.s32 5, %v2729
    %v2731 = vrot.slane %v2655, %v2730
    %v2732 = vlaneseq
    %v2733 = vshrl.u32 %v2732, 7
    %v2734 = vsub.s32 5, %v2733
    %v2735 = vrot.slane %v2656, %v2734
    %v2736 = vlaneseq
    %v2737 = vshrl.u32 %v2736, 7
    %v2738 = vsub.s32 5, %v2737
    %v2739 = vrot.slane %v2657, %v2738
    %v2740 = vlaneseq
    %v2741 = vshrl.u32 %v2740, 7
    %v2742 = vsub.s32 5, %v2741
    %v2743 = vrot.slane %v2658, %v2742
    %v2744 = vlaneseq
    %v2745 = vshrl.u32 %v2744, 7
    %v2746 = vsub.s32 5, %v2745
    %v2747 = vrot.slane %v2659, %v2746
    %v2748 = vlaneseq
    %v2749 = vshrl.u32 %v2748, 7
    %v2750 = vsub.s32 5, %v2749
    %v2751 = vrot.slane %v2660, %v2750
    %v2752 = vlaneseq
    %v2753 = vshrl.u32 %v2752, 7
    %v2754 = vsub.s32 5, %v2753
    %v2755 = vrot.slane %v2661, %v2754
    %v2756 = vlaneseq
    %v2757 = vshrl.u32 %v2756, 7
    %v2758 = vsub.s32 5, %v2757
    %v2759 = vrot.slane %v2662, %v2758
    %v2760 = vlaneseq
    %v2761 = vshrl.u32 %v2760, 7
    %v2762 = vsub.s32 5, %v2761
    %v2763 = vrot.slane %v2663, %v2762
    %v2764 = vmul.f32 %v2677, %v2727
    %v2765 = vmul.f32 %v2682, %v2731
    %v2766 = vmul.f32 %v2687, %v2735
    %v2767 = vmul.f32 %v2692, %v2739
    %v2768 = vmul.f32 %v2697, %v2743
    %v2769 = vmul.f32 %v2702, %v2747
    %v2770 = vmul.f32 %v2707, %v2751
    %v2771 = vmul.f32 %v2712, %v2755
    %v2772 = vmul.f32 %v2717, %v2759
    %v2773 = vmul.f32 %v2722, %v2763
    %v2774 = vsub.f32 %v2484, %v2764
    %v2775 = vsub.f32 %v2485, %v2765
    %v2776 = vsub.f32 %v2486, %v2766
    %v2777 = vsub.f32 %v2487, %v2767
    %v2778 = vsub.f32 %v2488, %v2768
    %v2779 = vsub.f32 %v2489, %v2769
    %v2780 = vsub.f32 %v2490, %v2770
    %v2781 = vsub.f32 %v2491, %v2771
    %v2782 = vsub.f32 %v2492, %v2772
    %v2783 = vsub.f32 %v2493, %v2773
    %v2784 = vlaneseq
    %v2785 = vshrl.u32 %v2784, 7
    %v2786 = vsub.s32 5, %v2785
    %v2787 = vrot.slane %v2644, %v2786
    %v2788 = vlaneseq
    %v2789 = vshrl.u32 %v2788, 7
    %v2790 = vsub.s32 5, %v2789
    %v2791 = vrot.slane %v2645, %v2790
    %v2792 = vlaneseq
    %v2793 = vshrl.u32 %v2792, 7
    %v2794 = vsub.s32 5, %v2793
    %v2795 = vrot.slane %v2646, %v2794
    %v2796 = vlaneseq
    %v2797 = vshrl.u32 %v2796, 7
    %v2798 = vsub.s32 5, %v2797
    %v2799 = vrot.slane %v2647, %v2798
    %v2800 = vlaneseq
    %v2801 = vshrl.u32 %v2800, 7
    %v2802 = vsub.s32 5, %v2801
    %v2803 = vrot.slane %v2648, %v2802
    %v2804 = vlaneseq
    %v2805 = vshrl.u32 %v2804, 7
    %v2806 = vsub.s32 5, %v2805
    %v2807 = vrot.slane %v2649, %v2806
    %v2808 = vlaneseq
    %v2809 = vshrl.u32 %v2808, 7
    %v2810 = vsub.s32 5, %v2809
    %v2811 = vrot.slane %v2650, %v2810
    %v2812 = vlaneseq
    %v2813 = vshrl.u32 %v2812, 7
    %v2814 = vsub.s32 5, %v2813
    %v2815 = vrot.slane %v2651, %v2814
    %v2816 = vlaneseq
    %v2817 = vshrl.u32 %v2816, 7
    %v2818 = vsub.s32 5, %v2817
    %v2819 = vrot.slane %v2652, %v2818
    %v2820 = vlaneseq
    %v2821 = vshrl.u32 %v2820, 7
    %v2822 = vsub.s32 5, %v2821
    %v2823 = vrot.slane %v2653, %v2822
    %v2824 = vmul.f32 %v2677, %v2787
    %v2825 = vmul.f32 %v2682, %v2791
    %v2826 = vmul.f32 %v2687, %v2795
    %v2827 = vmul.f32 %v2692, %v2799
    %v2828 = vmul.f32 %v2697, %v2803
    %v2829 = vmul.f32 %v2702, %v2807
    %v2830 = vmul.f32 %v2707, %v2811
    %v2831 = vmul.f32 %v2712, %v2815
    %v2832 = vmul.f32 %v2717, %v2819
    %v2833 = vmul.f32 %v2722, %v2823
    %v2834 = vsub.f32 %v2544, %v2824
    %v2835 = vsub.f32 %v2545, %v2825
    %v2836 = vsub.f32 %v2546, %v2826
    %v2837 = vsub.f32 %v2547, %v2827
    %v2838 = vsub.f32 %v2548, %v2828
    %v2839 = vsub.f32 %v2549, %v2829
    %v2840 = vsub.f32 %v2550, %v2830
    %v2841 = vsub.f32 %v2551, %v2831
    %v2842 = vsub.f32 %v2552, %v2832
    %v2843 = vsub.f32 %v2553, %v2833
    %v2844 = vrcp.pop %v2834
    %v2845 = vrcp.pop %v2835
    %v2846 = vrcp.pop %v2836
    %v2847 = vrcp.pop %v2837
    %v2848 = vrcp.pop %v2838
    %v2849 = vrcp.pop %v2839
    %v2850 = vrcp.pop %v2840
    %v2851 = vrcp.pop %v2841
    %v2852 = vrcp.pop %v2842
    %v2853 = vrcp.pop %v2843
    %v2854 = vmul.f32 %v2834, %v2844
    %v2855 = vmul.f32 %v2835, %v2845
    %v2856 = vmul.f32 %v2836, %v2846
    %v2857 = vmul.f32 %v2837, %v2847
    %v2858 = vmul.f32 %v2838, %v2848
    %v2859 = vmul.f32 %v2839, %v2849
    %v2860 = vmul.f32 %v2840, %v2850
    %v2861 = vmul.f32 %v2841, %v2851
    %v2862 = vmul.f32 %v2842, %v2852
    %v2863 = vmul.f32 %v2843, %v2853
    %v2864 = vsub.f32 2.0, %v2854
    %v2865 = vsub.f32 2.0, %v2855
    %v2866 = vsub.f32 2.0, %v2856
    %v2867 = vsub.f32 2.0, %v2857
    %v2868 = vsub.f32 2.0, %v2858
    %v2869 = vsub.f32 2.0, %v2859
    %v2870 = vsub.f32 2.0, %v2860
    %v2871 = vsub.f32 2.0, %v2861
    %v2872 = vsub.f32 2.0, %v2862
    %v2873 = vsub.f32 2.0, %v2863
    %v2874 = vmul.f32 %v2844, %v2864
    %v2875 = vmul.f32 %v2845, %v2865
    %v2876 = vmul.f32 %v2846, %v2866
    %v2877 = vmul.f32 %v2847, %v2867
    %v2878 = vmul.f32 %v2848, %v2868
    %v2879 = vmul.f32 %v2849, %v2869
    %v2880 = vmul.f32 %v2850, %v2870
    %v2881 = vmul.f32 %v2851, %v2871
    %v2882 = vmul.f32 %v2852, %v2872
    %v2883 = vmul.f32 %v2853, %v2873
    %2885 = vset.pattern.permute.xlu0 6
    %2886 = vperm.xlu0 %2885, %v2874
    %v2887 = vpop.permute.xlu0 %2886
    %2890 = vset.pattern.permute.xlu0 6
    %2891 = vperm.xlu0 %2890, %v2875
    %v2892 = vpop.permute.xlu0 %2891
    %2895 = vset.pattern.permute.xlu0 6
    %2896 = vperm.xlu0 %2895, %v2876
    %v2897 = vpop.permute.xlu0 %2896
    %2900 = vset.pattern.permute.xlu0 6
    %2901 = vperm.xlu0 %2900, %v2877
    %v2902 = vpop.permute.xlu0 %2901
    %2905 = vset.pattern.permute.xlu0 6
    %2906 = vperm.xlu0 %2905, %v2878
    %v2907 = vpop.permute.xlu0 %2906
    %2910 = vset.pattern.permute.xlu0 6
    %2911 = vperm.xlu0 %2910, %v2879
    %v2912 = vpop.permute.xlu0 %2911
    %2915 = vset.pattern.permute.xlu0 6
    %2916 = vperm.xlu0 %2915, %v2880
    %v2917 = vpop.permute.xlu0 %2916
    %2920 = vset.pattern.permute.xlu0 6
    %2921 = vperm.xlu0 %2920, %v2881
    %v2922 = vpop.permute.xlu0 %2921
    %2925 = vset.pattern.permute.xlu0 6
    %2926 = vperm.xlu0 %2925, %v2882
    %v2927 = vpop.permute.xlu0 %2926
    %2930 = vset.pattern.permute.xlu0 6
    %2931 = vperm.xlu0 %2930, %v2883
    %v2932 = vpop.permute.xlu0 %2931
    %v2934 = vmul.f32 %v2834, %v2887
    %v2935 = vmul.f32 %v2835, %v2892
    %v2936 = vmul.f32 %v2836, %v2897
    %v2937 = vmul.f32 %v2837, %v2902
    %v2938 = vmul.f32 %v2838, %v2907
    %v2939 = vmul.f32 %v2839, %v2912
    %v2940 = vmul.f32 %v2840, %v2917
    %v2941 = vmul.f32 %v2841, %v2922
    %v2942 = vmul.f32 %v2842, %v2927
    %v2943 = vmul.f32 %v2843, %v2932
    %v2944 = vmul.f32 %v2774, %v2887
    %v2945 = vmul.f32 %v2775, %v2892
    %v2946 = vmul.f32 %v2776, %v2897
    %v2947 = vmul.f32 %v2777, %v2902
    %v2948 = vmul.f32 %v2778, %v2907
    %v2949 = vmul.f32 %v2779, %v2912
    %v2950 = vmul.f32 %v2780, %v2917
    %v2951 = vmul.f32 %v2781, %v2922
    %v2952 = vmul.f32 %v2782, %v2927
    %v2953 = vmul.f32 %v2783, %v2932
    %v2954 = vsub.f32 %v2834, %v155
    %v2955 = vsub.f32 %v2835, %v155
    %v2956 = vsub.f32 %v2836, %v155
    %v2957 = vsub.f32 %v2837, %v155
    %v2958 = vsub.f32 %v2838, %v155
    %v2959 = vsub.f32 %v2839, %v155
    %v2960 = vsub.f32 %v2840, %v155
    %v2961 = vsub.f32 %v2841, %v155
    %v2962 = vsub.f32 %v2842, %v155
    %v2963 = vsub.f32 %v2843, %v155
    %2965 = vset.pattern.permute.xlu0 6
    %2966 = vperm.xlu0 %2965, %v2954
    %v2967 = vpop.permute.xlu0 %2966
    %2970 = vset.pattern.permute.xlu0 6
    %2971 = vperm.xlu0 %2970, %v2955
    %v2972 = vpop.permute.xlu0 %2971
    %2975 = vset.pattern.permute.xlu0 6
    %2976 = vperm.xlu0 %2975, %v2956
    %v2977 = vpop.permute.xlu0 %2976
    %2980 = vset.pattern.permute.xlu0 6
    %2981 = vperm.xlu0 %2980, %v2957
    %v2982 = vpop.permute.xlu0 %2981
    %2985 = vset.pattern.permute.xlu0 6
    %2986 = vperm.xlu0 %2985, %v2958
    %v2987 = vpop.permute.xlu0 %2986
    %2990 = vset.pattern.permute.xlu0 6
    %2991 = vperm.xlu0 %2990, %v2959
    %v2992 = vpop.permute.xlu0 %2991
    %2995 = vset.pattern.permute.xlu0 6
    %2996 = vperm.xlu0 %2995, %v2960
    %v2997 = vpop.permute.xlu0 %2996
    %3000 = vset.pattern.permute.xlu0 6
    %3001 = vperm.xlu0 %3000, %v2961
    %v3002 = vpop.permute.xlu0 %3001
    %3005 = vset.pattern.permute.xlu0 6
    %3006 = vperm.xlu0 %3005, %v2962
    %v3007 = vpop.permute.xlu0 %3006
    %3010 = vset.pattern.permute.xlu0 6
    %3011 = vperm.xlu0 %3010, %v2963
    %v3012 = vpop.permute.xlu0 %3011
    %v3014 = vlaneseq
    %v3015 = vshrl.u32 %v3014, 7
    %v3016 = vsub.s32 6, %v3015
    %v3017 = vrot.slane %v2944, %v3016
    %v3018 = vlaneseq
    %v3019 = vshrl.u32 %v3018, 7
    %v3020 = vsub.s32 6, %v3019
    %v3021 = vrot.slane %v2945, %v3020
    %v3022 = vlaneseq
    %v3023 = vshrl.u32 %v3022, 7
    %v3024 = vsub.s32 6, %v3023
    %v3025 = vrot.slane %v2946, %v3024
    %v3026 = vlaneseq
    %v3027 = vshrl.u32 %v3026, 7
    %v3028 = vsub.s32 6, %v3027
    %v3029 = vrot.slane %v2947, %v3028
    %v3030 = vlaneseq
    %v3031 = vshrl.u32 %v3030, 7
    %v3032 = vsub.s32 6, %v3031
    %v3033 = vrot.slane %v2948, %v3032
    %v3034 = vlaneseq
    %v3035 = vshrl.u32 %v3034, 7
    %v3036 = vsub.s32 6, %v3035
    %v3037 = vrot.slane %v2949, %v3036
    %v3038 = vlaneseq
    %v3039 = vshrl.u32 %v3038, 7
    %v3040 = vsub.s32 6, %v3039
    %v3041 = vrot.slane %v2950, %v3040
    %v3042 = vlaneseq
    %v3043 = vshrl.u32 %v3042, 7
    %v3044 = vsub.s32 6, %v3043
    %v3045 = vrot.slane %v2951, %v3044
    %v3046 = vlaneseq
    %v3047 = vshrl.u32 %v3046, 7
    %v3048 = vsub.s32 6, %v3047
    %v3049 = vrot.slane %v2952, %v3048
    %v3050 = vlaneseq
    %v3051 = vshrl.u32 %v3050, 7
    %v3052 = vsub.s32 6, %v3051
    %v3053 = vrot.slane %v2953, %v3052
    %v3054 = vmul.f32 %v2967, %v3017
    %v3055 = vmul.f32 %v2972, %v3021
    %v3056 = vmul.f32 %v2977, %v3025
    %v3057 = vmul.f32 %v2982, %v3029
    %v3058 = vmul.f32 %v2987, %v3033
    %v3059 = vmul.f32 %v2992, %v3037
    %v3060 = vmul.f32 %v2997, %v3041
    %v3061 = vmul.f32 %v3002, %v3045
    %v3062 = vmul.f32 %v3007, %v3049
    %v3063 = vmul.f32 %v3012, %v3053
    %v3064 = vsub.f32 %v2774, %v3054
    %v3065 = vsub.f32 %v2775, %v3055
    %v3066 = vsub.f32 %v2776, %v3056
    %v3067 = vsub.f32 %v2777, %v3057
    %v3068 = vsub.f32 %v2778, %v3058
    %v3069 = vsub.f32 %v2779, %v3059
    %v3070 = vsub.f32 %v2780, %v3060
    %v3071 = vsub.f32 %v2781, %v3061
    %v3072 = vsub.f32 %v2782, %v3062
    %v3073 = vsub.f32 %v2783, %v3063
    %v3074 = vlaneseq
    %v3075 = vshrl.u32 %v3074, 7
    %v3076 = vsub.s32 6, %v3075
    %v3077 = vrot.slane %v2934, %v3076
    %v3078 = vlaneseq
    %v3079 = vshrl.u32 %v3078, 7
    %v3080 = vsub.s32 6, %v3079
    %v3081 = vrot.slane %v2935, %v3080
    %v3082 = vlaneseq
    %v3083 = vshrl.u32 %v3082, 7
    %v3084 = vsub.s32 6, %v3083
    %v3085 = vrot.slane %v2936, %v3084
    %v3086 = vlaneseq
    %v3087 = vshrl.u32 %v3086, 7
    %v3088 = vsub.s32 6, %v3087
    %v3089 = vrot.slane %v2937, %v3088
    %v3090 = vlaneseq
    %v3091 = vshrl.u32 %v3090, 7
    %v3092 = vsub.s32 6, %v3091
    %v3093 = vrot.slane %v2938, %v3092
    %v3094 = vlaneseq
    %v3095 = vshrl.u32 %v3094, 7
    %v3096 = vsub.s32 6, %v3095
    %v3097 = vrot.slane %v2939, %v3096
    %v3098 = vlaneseq
    %v3099 = vshrl.u32 %v3098, 7
    %v3100 = vsub.s32 6, %v3099
    %v3101 = vrot.slane %v2940, %v3100
    %v3102 = vlaneseq
    %v3103 = vshrl.u32 %v3102, 7
    %v3104 = vsub.s32 6, %v3103
    %v3105 = vrot.slane %v2941, %v3104
    %v3106 = vlaneseq
    %v3107 = vshrl.u32 %v3106, 7
    %v3108 = vsub.s32 6, %v3107
    %v3109 = vrot.slane %v2942, %v3108
    %v3110 = vlaneseq
    %v3111 = vshrl.u32 %v3110, 7
    %v3112 = vsub.s32 6, %v3111
    %v3113 = vrot.slane %v2943, %v3112
    %v3114 = vmul.f32 %v2967, %v3077
    %v3115 = vmul.f32 %v2972, %v3081
    %v3116 = vmul.f32 %v2977, %v3085
    %v3117 = vmul.f32 %v2982, %v3089
    %v3118 = vmul.f32 %v2987, %v3093
    %v3119 = vmul.f32 %v2992, %v3097
    %v3120 = vmul.f32 %v2997, %v3101
    %v3121 = vmul.f32 %v3002, %v3105
    %v3122 = vmul.f32 %v3007, %v3109
    %v3123 = vmul.f32 %v3012, %v3113
    %v3124 = vsub.f32 %v2834, %v3114
    %v3125 = vsub.f32 %v2835, %v3115
    %v3126 = vsub.f32 %v2836, %v3116
    %v3127 = vsub.f32 %v2837, %v3117
    %v3128 = vsub.f32 %v2838, %v3118
    %v3129 = vsub.f32 %v2839, %v3119
    %v3130 = vsub.f32 %v2840, %v3120
    %v3131 = vsub.f32 %v2841, %v3121
    %v3132 = vsub.f32 %v2842, %v3122
    %v3133 = vsub.f32 %v2843, %v3123
    %v3134 = vrcp.pop %v3124
    %v3135 = vrcp.pop %v3125
    %v3136 = vrcp.pop %v3126
    %v3137 = vrcp.pop %v3127
    %v3138 = vrcp.pop %v3128
    %v3139 = vrcp.pop %v3129
    %v3140 = vrcp.pop %v3130
    %v3141 = vrcp.pop %v3131
    %v3142 = vrcp.pop %v3132
    %v3143 = vrcp.pop %v3133
    %v3144 = vmul.f32 %v3124, %v3134
    %v3145 = vmul.f32 %v3125, %v3135
    %v3146 = vmul.f32 %v3126, %v3136
    %v3147 = vmul.f32 %v3127, %v3137
    %v3148 = vmul.f32 %v3128, %v3138
    %v3149 = vmul.f32 %v3129, %v3139
    %v3150 = vmul.f32 %v3130, %v3140
    %v3151 = vmul.f32 %v3131, %v3141
    %v3152 = vmul.f32 %v3132, %v3142
    %v3153 = vmul.f32 %v3133, %v3143
    %v3154 = vsub.f32 2.0, %v3144
    %v3155 = vsub.f32 2.0, %v3145
    %v3156 = vsub.f32 2.0, %v3146
    %v3157 = vsub.f32 2.0, %v3147
    %v3158 = vsub.f32 2.0, %v3148
    %v3159 = vsub.f32 2.0, %v3149
    %v3160 = vsub.f32 2.0, %v3150
    %v3161 = vsub.f32 2.0, %v3151
    %v3162 = vsub.f32 2.0, %v3152
    %v3163 = vsub.f32 2.0, %v3153
    %v3164 = vmul.f32 %v3134, %v3154
    %v3165 = vmul.f32 %v3135, %v3155
    %v3166 = vmul.f32 %v3136, %v3156
    %v3167 = vmul.f32 %v3137, %v3157
    %v3168 = vmul.f32 %v3138, %v3158
    %v3169 = vmul.f32 %v3139, %v3159
    %v3170 = vmul.f32 %v3140, %v3160
    %v3171 = vmul.f32 %v3141, %v3161
    %v3172 = vmul.f32 %v3142, %v3162
    %v3173 = vmul.f32 %v3143, %v3163
    %3175 = vset.pattern.permute.xlu0 7
    %3176 = vperm.xlu0 %3175, %v3164
    %v3177 = vpop.permute.xlu0 %3176
    %3180 = vset.pattern.permute.xlu0 7
    %3181 = vperm.xlu0 %3180, %v3165
    %v3182 = vpop.permute.xlu0 %3181
    %3185 = vset.pattern.permute.xlu0 7
    %3186 = vperm.xlu0 %3185, %v3166
    %v3187 = vpop.permute.xlu0 %3186
    %3190 = vset.pattern.permute.xlu0 7
    %3191 = vperm.xlu0 %3190, %v3167
    %v3192 = vpop.permute.xlu0 %3191
    %3195 = vset.pattern.permute.xlu0 7
    %3196 = vperm.xlu0 %3195, %v3168
    %v3197 = vpop.permute.xlu0 %3196
    %3200 = vset.pattern.permute.xlu0 7
    %3201 = vperm.xlu0 %3200, %v3169
    %v3202 = vpop.permute.xlu0 %3201
    %3205 = vset.pattern.permute.xlu0 7
    %3206 = vperm.xlu0 %3205, %v3170
    %v3207 = vpop.permute.xlu0 %3206
    %3210 = vset.pattern.permute.xlu0 7
    %3211 = vperm.xlu0 %3210, %v3171
    %v3212 = vpop.permute.xlu0 %3211
    %3215 = vset.pattern.permute.xlu0 7
    %3216 = vperm.xlu0 %3215, %v3172
    %v3217 = vpop.permute.xlu0 %3216
    %3220 = vset.pattern.permute.xlu0 7
    %3221 = vperm.xlu0 %3220, %v3173
    %v3222 = vpop.permute.xlu0 %3221
    %v3224 = vmul.f32 %v3064, %v3177
    %v3225 = vmul.f32 %v3065, %v3182
    %v3226 = vmul.f32 %v3066, %v3187
    %v3227 = vmul.f32 %v3067, %v3192
    %v3228 = vmul.f32 %v3068, %v3197
    %v3229 = vmul.f32 %v3069, %v3202
    %v3230 = vmul.f32 %v3070, %v3207
    %v3231 = vmul.f32 %v3071, %v3212
    %v3232 = vmul.f32 %v3072, %v3217
    %v3233 = vmul.f32 %v3073, %v3222
    %v3234 = vsub.f32 %v3124, %v155
    %v3235 = vsub.f32 %v3125, %v155
    %v3236 = vsub.f32 %v3126, %v155
    %v3237 = vsub.f32 %v3127, %v155
    %v3238 = vsub.f32 %v3128, %v155
    %v3239 = vsub.f32 %v3129, %v155
    %v3240 = vsub.f32 %v3130, %v155
    %v3241 = vsub.f32 %v3131, %v155
    %v3242 = vsub.f32 %v3132, %v155
    %v3243 = vsub.f32 %v3133, %v155
    %3245 = vset.pattern.permute.xlu0 7
    %3246 = vperm.xlu0 %3245, %v3234
    %v3247 = vpop.permute.xlu0 %3246
    %3250 = vset.pattern.permute.xlu0 7
    %3251 = vperm.xlu0 %3250, %v3235
    %v3252 = vpop.permute.xlu0 %3251
    %3255 = vset.pattern.permute.xlu0 7
    %3256 = vperm.xlu0 %3255, %v3236
    %v3257 = vpop.permute.xlu0 %3256
    %3260 = vset.pattern.permute.xlu0 7
    %3261 = vperm.xlu0 %3260, %v3237
    %v3262 = vpop.permute.xlu0 %3261
    %3265 = vset.pattern.permute.xlu0 7
    %3266 = vperm.xlu0 %3265, %v3238
    %v3267 = vpop.permute.xlu0 %3266
    %3270 = vset.pattern.permute.xlu0 7
    %3271 = vperm.xlu0 %3270, %v3239
    %v3272 = vpop.permute.xlu0 %3271
    %3275 = vset.pattern.permute.xlu0 7
    %3276 = vperm.xlu0 %3275, %v3240
    %v3277 = vpop.permute.xlu0 %3276
    %3280 = vset.pattern.permute.xlu0 7
    %3281 = vperm.xlu0 %3280, %v3241
    %v3282 = vpop.permute.xlu0 %3281
    %3285 = vset.pattern.permute.xlu0 7
    %3286 = vperm.xlu0 %3285, %v3242
    %v3287 = vpop.permute.xlu0 %3286
    %3290 = vset.pattern.permute.xlu0 7
    %3291 = vperm.xlu0 %3290, %v3243
    %v3292 = vpop.permute.xlu0 %3291
    %v3294 = vlaneseq
    %v3295 = vshrl.u32 %v3294, 7
    %v3296 = vsub.s32 7, %v3295
    %v3297 = vrot.slane %v3224, %v3296
    %v3298 = vlaneseq
    %v3299 = vshrl.u32 %v3298, 7
    %v3300 = vsub.s32 7, %v3299
    %v3301 = vrot.slane %v3225, %v3300
    %v3302 = vlaneseq
    %v3303 = vshrl.u32 %v3302, 7
    %v3304 = vsub.s32 7, %v3303
    %v3305 = vrot.slane %v3226, %v3304
    %v3306 = vlaneseq
    %v3307 = vshrl.u32 %v3306, 7
    %v3308 = vsub.s32 7, %v3307
    %v3309 = vrot.slane %v3227, %v3308
    %v3310 = vlaneseq
    %v3311 = vshrl.u32 %v3310, 7
    %v3312 = vsub.s32 7, %v3311
    %v3313 = vrot.slane %v3228, %v3312
    %v3314 = vlaneseq
    %v3315 = vshrl.u32 %v3314, 7
    %v3316 = vsub.s32 7, %v3315
    %v3317 = vrot.slane %v3229, %v3316
    %v3318 = vlaneseq
    %v3319 = vshrl.u32 %v3318, 7
    %v3320 = vsub.s32 7, %v3319
    %v3321 = vrot.slane %v3230, %v3320
    %v3322 = vlaneseq
    %v3323 = vshrl.u32 %v3322, 7
    %v3324 = vsub.s32 7, %v3323
    %v3325 = vrot.slane %v3231, %v3324
    %v3326 = vlaneseq
    %v3327 = vshrl.u32 %v3326, 7
    %v3328 = vsub.s32 7, %v3327
    %v3329 = vrot.slane %v3232, %v3328
    %v3330 = vlaneseq
    %v3331 = vshrl.u32 %v3330, 7
    %v3332 = vsub.s32 7, %v3331
    %v3333 = vrot.slane %v3233, %v3332
    %v3334 = vmul.f32 %v3247, %v3297
    %v3335 = vmul.f32 %v3252, %v3301
    %v3336 = vmul.f32 %v3257, %v3305
    %v3337 = vmul.f32 %v3262, %v3309
    %v3338 = vmul.f32 %v3267, %v3313
    %v3339 = vmul.f32 %v3272, %v3317
    %v3340 = vmul.f32 %v3277, %v3321
    %v3341 = vmul.f32 %v3282, %v3325
    %v3342 = vmul.f32 %v3287, %v3329
    %v3343 = vmul.f32 %v3292, %v3333
    %v3344 = vsub.f32 %v3064, %v3334
    %v3345 = vsub.f32 %v3065, %v3335
    %v3346 = vsub.f32 %v3066, %v3336
    %v3347 = vsub.f32 %v3067, %v3337
    %v3348 = vsub.f32 %v3068, %v3338
    %v3349 = vsub.f32 %v3069, %v3339
    %v3350 = vsub.f32 %v3070, %v3340
    %v3351 = vsub.f32 %v3071, %v3341
    %v3352 = vsub.f32 %v3072, %v3342
    %v3353 = vsub.f32 %v3073, %v3343
    %v3355 = vsel %vm503, %v3344, 0
    %3357 = vmatprep.subr.mxu0 0.0
    %3358 = vmatpush1.msra.mxu0 0.0
    %3359 = vmatprep.subr.mxu0 0.0
    %3360 = vmatpush1.msra.mxu0 0.0
    %3361 = vmatprep.subr.mxu0 0.0
    %3362 = vmatpush1.msra.mxu0 0.0
    %3363 = vmatprep.subr.mxu0 0.0
    %3364 = vmatpush1.msra.mxu0 0.0
    %3365 = vmatprep.subr.mxu0 0.0
    %3366 = vmatpush1.msra.mxu0 0.0
    %3367 = vmatprep.subr.mxu0 0.0
    %3368 = vmatpush1.msra.mxu0 0.0
    %3369 = vmatprep.subr.mxu0 0.0
    %3370 = vmatpush1.msra.mxu0 0.0
    %3371 = vmatprep.subr.mxu0 0.0
    %3372 = vmatpush1.msra.mxu0 0.0
    %3373 = vmatprep.subr.mxu0 0.0
    %3374 = vmatpush1.msra.mxu0 0.0
    %3375 = vmatprep.subr.mxu0 0.0
    %3376 = vmatpush1.msra.mxu0 0.0
    %3377 = vmatprep.subr.mxu0 0.0
    %3378 = vmatpush1.msra.mxu0 0.0
    %3379 = vmatprep.subr.mxu0 0.0
    %3380 = vmatpush1.msra.mxu0 0.0
    %3381 = vmatprep.subr.mxu0 0.0
    %3382 = vmatpush1.msra.mxu0 0.0
    %3383 = vmatprep.subr.mxu0 0.0
    %3384 = vmatpush1.msra.mxu0 0.0
    %3385 = vmatprep.subr.mxu0 0.0
    %3386 = vmatpush1.msra.mxu0 0.0
    %3387 = vmatprep.subr.mxu0 0.0
    %3388 = vmatpush1.msra.mxu0 %v200
    %3389 = vmatprep.subr.mxu0 0.0
    %3390 = vmatpush2.msra.mxu0 0.0
    %3391 = vmatprep.subr.mxu0 0.0
    %3392 = vmatpush2.msra.mxu0 0.0
    %3393 = vmatprep.subr.mxu0 0.0
    %3394 = vmatpush2.msra.mxu0 0.0
    %3395 = vmatprep.subr.mxu0 0.0
    %3396 = vmatpush2.msra.mxu0 0.0
    %3397 = vmatprep.subr.mxu0 0.0
    %3398 = vmatpush2.msra.mxu0 0.0
    %3399 = vmatprep.subr.mxu0 0.0
    %3400 = vmatpush2.msra.mxu0 0.0
    %3401 = vmatprep.subr.mxu0 0.0
    %3402 = vmatpush2.msra.mxu0 0.0
    %3403 = vmatprep.subr.mxu0 0.0
    %3404 = vmatpush2.msra.mxu0 0.0
    %3405 = vmatprep.subr.mxu0 0.0
    %3406 = vmatpush2.msra.mxu0 0.0
    %3407 = vmatprep.subr.mxu0 0.0
    %3408 = vmatpush2.msra.mxu0 0.0
    %3409 = vmatprep.subr.mxu0 0.0
    %3410 = vmatpush2.msra.mxu0 0.0
    %3411 = vmatprep.subr.mxu0 0.0
    %3412 = vmatpush2.msra.mxu0 0.0
    %3413 = vmatprep.subr.mxu0 0.0
    %3414 = vmatpush2.msra.mxu0 0.0
    %3415 = vmatprep.subr.mxu0 0.0
    %3416 = vmatpush2.msra.mxu0 0.0
    %3417 = vmatprep.subr.mxu0 0.0
    %3418 = vmatpush2.msra.mxu0 0.0
    %3419 = vmatprep.subr.mxu0 0.0
    %3420 = vmatpush2.msra.mxu0 0.0
    %3421 = vmatprep.mubr.f32.mxu0 0.0
    %3422 = vmatmul.mubr.f32.gmra.mxu0 %v3355
    %v3423 = vpop.f32.mrf.mxu0
    %v3424 = vadd.f32 0.0, %v3423
    %v3425 = vpop.f32.mrf.mxu0
    %3426 = vdwg.mxu0
    %v3428 = vsel %vm503, %v3345, 0
    %3430 = vmatprep.subr.mxu0 0.0
    %3431 = vmatpush1.msra.mxu0 0.0
    %3432 = vmatprep.subr.mxu0 0.0
    %3433 = vmatpush1.msra.mxu0 0.0
    %3434 = vmatprep.subr.mxu0 0.0
    %3435 = vmatpush1.msra.mxu0 0.0
    %3436 = vmatprep.subr.mxu0 0.0
    %3437 = vmatpush1.msra.mxu0 0.0
    %3438 = vmatprep.subr.mxu0 0.0
    %3439 = vmatpush1.msra.mxu0 0.0
    %3440 = vmatprep.subr.mxu0 0.0
    %3441 = vmatpush1.msra.mxu0 0.0
    %3442 = vmatprep.subr.mxu0 0.0
    %3443 = vmatpush1.msra.mxu0 0.0
    %3444 = vmatprep.subr.mxu0 0.0
    %3445 = vmatpush1.msra.mxu0 0.0
    %3446 = vmatprep.subr.mxu0 0.0
    %3447 = vmatpush1.msra.mxu0 0.0
    %3448 = vmatprep.subr.mxu0 0.0
    %3449 = vmatpush1.msra.mxu0 0.0
    %3450 = vmatprep.subr.mxu0 0.0
    %3451 = vmatpush1.msra.mxu0 0.0
    %3452 = vmatprep.subr.mxu0 0.0
    %3453 = vmatpush1.msra.mxu0 0.0
    %3454 = vmatprep.subr.mxu0 0.0
    %3455 = vmatpush1.msra.mxu0 0.0
    %3456 = vmatprep.subr.mxu0 0.0
    %3457 = vmatpush1.msra.mxu0 0.0
    %3458 = vmatprep.subr.mxu0 0.0
    %3459 = vmatpush1.msra.mxu0 0.0
    %3460 = vmatprep.subr.mxu0 0.0
    %3461 = vmatpush1.msra.mxu0 %v201
    %3462 = vmatprep.subr.mxu0 0.0
    %3463 = vmatpush2.msra.mxu0 0.0
    %3464 = vmatprep.subr.mxu0 0.0
    %3465 = vmatpush2.msra.mxu0 0.0
    %3466 = vmatprep.subr.mxu0 0.0
    %3467 = vmatpush2.msra.mxu0 0.0
    %3468 = vmatprep.subr.mxu0 0.0
    %3469 = vmatpush2.msra.mxu0 0.0
    %3470 = vmatprep.subr.mxu0 0.0
    %3471 = vmatpush2.msra.mxu0 0.0
    %3472 = vmatprep.subr.mxu0 0.0
    %3473 = vmatpush2.msra.mxu0 0.0
    %3474 = vmatprep.subr.mxu0 0.0
    %3475 = vmatpush2.msra.mxu0 0.0
    %3476 = vmatprep.subr.mxu0 0.0
    %3477 = vmatpush2.msra.mxu0 0.0
    %3478 = vmatprep.subr.mxu0 0.0
    %3479 = vmatpush2.msra.mxu0 0.0
    %3480 = vmatprep.subr.mxu0 0.0
    %3481 = vmatpush2.msra.mxu0 0.0
    %3482 = vmatprep.subr.mxu0 0.0
    %3483 = vmatpush2.msra.mxu0 0.0
    %3484 = vmatprep.subr.mxu0 0.0
    %3485 = vmatpush2.msra.mxu0 0.0
    %3486 = vmatprep.subr.mxu0 0.0
    %3487 = vmatpush2.msra.mxu0 0.0
    %3488 = vmatprep.subr.mxu0 0.0
    %3489 = vmatpush2.msra.mxu0 0.0
    %3490 = vmatprep.subr.mxu0 0.0
    %3491 = vmatpush2.msra.mxu0 0.0
    %3492 = vmatprep.subr.mxu0 0.0
    %3493 = vmatpush2.msra.mxu0 0.0
    %3494 = vmatprep.mubr.f32.mxu0 0.0
    %3495 = vmatmul.mubr.f32.gmra.mxu0 %v3428
    %v3496 = vpop.f32.mrf.mxu0
    %v3497 = vadd.f32 0.0, %v3496
    %v3498 = vpop.f32.mrf.mxu0
    %3499 = vdwg.mxu0
    %v3501 = vsel %vm503, %v427, 0
    %3503 = vmatprep.subr.mxu0 0.0
    %3504 = vmatpush1.msra.mxu0 0.0
    %3505 = vmatprep.subr.mxu0 0.0
    %3506 = vmatpush1.msra.mxu0 0.0
    %3507 = vmatprep.subr.mxu0 0.0
    %3508 = vmatpush1.msra.mxu0 0.0
    %3509 = vmatprep.subr.mxu0 0.0
    %3510 = vmatpush1.msra.mxu0 0.0
    %3511 = vmatprep.subr.mxu0 0.0
    %3512 = vmatpush1.msra.mxu0 0.0
    %3513 = vmatprep.subr.mxu0 0.0
    %3514 = vmatpush1.msra.mxu0 0.0
    %3515 = vmatprep.subr.mxu0 0.0
    %3516 = vmatpush1.msra.mxu0 0.0
    %3517 = vmatprep.subr.mxu0 0.0
    %3518 = vmatpush1.msra.mxu0 0.0
    %3519 = vmatprep.subr.mxu0 0.0
    %3520 = vmatpush1.msra.mxu0 0.0
    %3521 = vmatprep.subr.mxu0 0.0
    %3522 = vmatpush1.msra.mxu0 0.0
    %3523 = vmatprep.subr.mxu0 0.0
    %3524 = vmatpush1.msra.mxu0 0.0
    %3525 = vmatprep.subr.mxu0 0.0
    %3526 = vmatpush1.msra.mxu0 0.0
    %3527 = vmatprep.subr.mxu0 0.0
    %3528 = vmatpush1.msra.mxu0 0.0
    %3529 = vmatprep.subr.mxu0 0.0
    %3530 = vmatpush1.msra.mxu0 0.0
    %3531 = vmatprep.subr.mxu0 0.0
    %3532 = vmatpush1.msra.mxu0 0.0
    %3533 = vmatprep.subr.mxu0 0.0
    %3534 = vmatpush1.msra.mxu0 %v3346
    %3535 = vmatprep.subr.mxu0 0.0
    %3536 = vmatpush2.msra.mxu0 0.0
    %3537 = vmatprep.subr.mxu0 0.0
    %3538 = vmatpush2.msra.mxu0 0.0
    %3539 = vmatprep.subr.mxu0 0.0
    %3540 = vmatpush2.msra.mxu0 0.0
    %3541 = vmatprep.subr.mxu0 0.0
    %3542 = vmatpush2.msra.mxu0 0.0
    %3543 = vmatprep.subr.mxu0 0.0
    %3544 = vmatpush2.msra.mxu0 0.0
    %3545 = vmatprep.subr.mxu0 0.0
    %3546 = vmatpush2.msra.mxu0 0.0
    %3547 = vmatprep.subr.mxu0 0.0
    %3548 = vmatpush2.msra.mxu0 0.0
    %3549 = vmatprep.subr.mxu0 0.0
    %3550 = vmatpush2.msra.mxu0 0.0
    %3551 = vmatprep.subr.mxu0 0.0
    %3552 = vmatpush2.msra.mxu0 0.0
    %3553 = vmatprep.subr.mxu0 0.0
    %3554 = vmatpush2.msra.mxu0 0.0
    %3555 = vmatprep.subr.mxu0 0.0
    %3556 = vmatpush2.msra.mxu0 0.0
    %3557 = vmatprep.subr.mxu0 0.0
    %3558 = vmatpush2.msra.mxu0 0.0
    %3559 = vmatprep.subr.mxu0 0.0
    %3560 = vmatpush2.msra.mxu0 0.0
    %3561 = vmatprep.subr.mxu0 0.0
    %3562 = vmatpush2.msra.mxu0 0.0
    %3563 = vmatprep.subr.mxu0 0.0
    %3564 = vmatpush2.msra.mxu0 0.0
    %3565 = vmatprep.subr.mxu0 0.0
    %3566 = vmatpush2.msra.mxu0 0.0
    %3567 = vmatprep.mubr.f32.mxu0 0.0
    %3568 = vmatmul.mubr.f32.gmra.mxu0 %v3501
    %v3569 = vpop.f32.mrf.mxu0
    %v3570 = vadd.f32 0.0, %v3569
    %v3571 = vpop.f32.mrf.mxu0
    %3572 = vdwg.mxu0
    %v3574 = vsel %vm503, %v432, 0
    %3576 = vmatprep.subr.mxu0 0.0
    %3577 = vmatpush1.msra.mxu0 0.0
    %3578 = vmatprep.subr.mxu0 0.0
    %3579 = vmatpush1.msra.mxu0 0.0
    %3580 = vmatprep.subr.mxu0 0.0
    %3581 = vmatpush1.msra.mxu0 0.0
    %3582 = vmatprep.subr.mxu0 0.0
    %3583 = vmatpush1.msra.mxu0 0.0
    %3584 = vmatprep.subr.mxu0 0.0
    %3585 = vmatpush1.msra.mxu0 0.0
    %3586 = vmatprep.subr.mxu0 0.0
    %3587 = vmatpush1.msra.mxu0 0.0
    %3588 = vmatprep.subr.mxu0 0.0
    %3589 = vmatpush1.msra.mxu0 0.0
    %3590 = vmatprep.subr.mxu0 0.0
    %3591 = vmatpush1.msra.mxu0 0.0
    %3592 = vmatprep.subr.mxu0 0.0
    %3593 = vmatpush1.msra.mxu0 0.0
    %3594 = vmatprep.subr.mxu0 0.0
    %3595 = vmatpush1.msra.mxu0 0.0
    %3596 = vmatprep.subr.mxu0 0.0
    %3597 = vmatpush1.msra.mxu0 0.0
    %3598 = vmatprep.subr.mxu0 0.0
    %3599 = vmatpush1.msra.mxu0 0.0
    %3600 = vmatprep.subr.mxu0 0.0
    %3601 = vmatpush1.msra.mxu0 0.0
    %3602 = vmatprep.subr.mxu0 0.0
    %3603 = vmatpush1.msra.mxu0 0.0
    %3604 = vmatprep.subr.mxu0 0.0
    %3605 = vmatpush1.msra.mxu0 0.0
    %3606 = vmatprep.subr.mxu0 0.0
    %3607 = vmatpush1.msra.mxu0 %v3347
    %3608 = vmatprep.subr.mxu0 0.0
    %3609 = vmatpush2.msra.mxu0 0.0
    %3610 = vmatprep.subr.mxu0 0.0
    %3611 = vmatpush2.msra.mxu0 0.0
    %3612 = vmatprep.subr.mxu0 0.0
    %3613 = vmatpush2.msra.mxu0 0.0
    %3614 = vmatprep.subr.mxu0 0.0
    %3615 = vmatpush2.msra.mxu0 0.0
    %3616 = vmatprep.subr.mxu0 0.0
    %3617 = vmatpush2.msra.mxu0 0.0
    %3618 = vmatprep.subr.mxu0 0.0
    %3619 = vmatpush2.msra.mxu0 0.0
    %3620 = vmatprep.subr.mxu0 0.0
    %3621 = vmatpush2.msra.mxu0 0.0
    %3622 = vmatprep.subr.mxu0 0.0
    %3623 = vmatpush2.msra.mxu0 0.0
    %3624 = vmatprep.subr.mxu0 0.0
    %3625 = vmatpush2.msra.mxu0 0.0
    %3626 = vmatprep.subr.mxu0 0.0
    %3627 = vmatpush2.msra.mxu0 0.0
    %3628 = vmatprep.subr.mxu0 0.0
    %3629 = vmatpush2.msra.mxu0 0.0
    %3630 = vmatprep.subr.mxu0 0.0
    %3631 = vmatpush2.msra.mxu0 0.0
    %3632 = vmatprep.subr.mxu0 0.0
    %3633 = vmatpush2.msra.mxu0 0.0
    %3634 = vmatprep.subr.mxu0 0.0
    %3635 = vmatpush2.msra.mxu0 0.0
    %3636 = vmatprep.subr.mxu0 0.0
    %3637 = vmatpush2.msra.mxu0 0.0
    %3638 = vmatprep.subr.mxu0 0.0
    %3639 = vmatpush2.msra.mxu0 0.0
    %3640 = vmatprep.mubr.f32.mxu0 0.0
    %3641 = vmatmul.mubr.f32.gmra.mxu0 %v3574
    %v3642 = vpop.f32.mrf.mxu0
    %v3643 = vadd.f32 0.0, %v3642
    %v3644 = vpop.f32.mrf.mxu0
    %3645 = vdwg.mxu0
    %3646 = vrot.lane.b32.xlu0 %v427, 120
    %v3647 = vpop.permute.xlu0 %3646
    %v3648 = vsel %vm503, %v3647, 0
    %3650 = vmatprep.subr.mxu0 0.0
    %3651 = vmatpush1.msra.mxu0 0.0
    %3652 = vmatprep.subr.mxu0 0.0
    %3653 = vmatpush1.msra.mxu0 0.0
    %3654 = vmatprep.subr.mxu0 0.0
    %3655 = vmatpush1.msra.mxu0 0.0
    %3656 = vmatprep.subr.mxu0 0.0
    %3657 = vmatpush1.msra.mxu0 0.0
    %3658 = vmatprep.subr.mxu0 0.0
    %3659 = vmatpush1.msra.mxu0 0.0
    %3660 = vmatprep.subr.mxu0 0.0
    %3661 = vmatpush1.msra.mxu0 0.0
    %3662 = vmatprep.subr.mxu0 0.0
    %3663 = vmatpush1.msra.mxu0 0.0
    %3664 = vmatprep.subr.mxu0 0.0
    %3665 = vmatpush1.msra.mxu0 0.0
    %3666 = vmatprep.subr.mxu0 0.0
    %3667 = vmatpush1.msra.mxu0 0.0
    %3668 = vmatprep.subr.mxu0 0.0
    %3669 = vmatpush1.msra.mxu0 0.0
    %3670 = vmatprep.subr.mxu0 0.0
    %3671 = vmatpush1.msra.mxu0 0.0
    %3672 = vmatprep.subr.mxu0 0.0
    %3673 = vmatpush1.msra.mxu0 0.0
    %3674 = vmatprep.subr.mxu0 0.0
    %3675 = vmatpush1.msra.mxu0 0.0
    %3676 = vmatprep.subr.mxu0 0.0
    %3677 = vmatpush1.msra.mxu0 0.0
    %3678 = vmatprep.subr.mxu0 0.0
    %3679 = vmatpush1.msra.mxu0 0.0
    %3680 = vmatprep.subr.mxu0 0.0
    %3681 = vmatpush1.msra.mxu0 %v3348
    %3682 = vmatprep.subr.mxu0 0.0
    %3683 = vmatpush2.msra.mxu0 0.0
    %3684 = vmatprep.subr.mxu0 0.0
    %3685 = vmatpush2.msra.mxu0 0.0
    %3686 = vmatprep.subr.mxu0 0.0
    %3687 = vmatpush2.msra.mxu0 0.0
    %3688 = vmatprep.subr.mxu0 0.0
    %3689 = vmatpush2.msra.mxu0 0.0
    %3690 = vmatprep.subr.mxu0 0.0
    %3691 = vmatpush2.msra.mxu0 0.0
    %3692 = vmatprep.subr.mxu0 0.0
    %3693 = vmatpush2.msra.mxu0 0.0
    %3694 = vmatprep.subr.mxu0 0.0
    %3695 = vmatpush2.msra.mxu0 0.0
    %3696 = vmatprep.subr.mxu0 0.0
    %3697 = vmatpush2.msra.mxu0 0.0
    %3698 = vmatprep.subr.mxu0 0.0
    %3699 = vmatpush2.msra.mxu0 0.0
    %3700 = vmatprep.subr.mxu0 0.0
    %3701 = vmatpush2.msra.mxu0 0.0
    %3702 = vmatprep.subr.mxu0 0.0
    %3703 = vmatpush2.msra.mxu0 0.0
    %3704 = vmatprep.subr.mxu0 0.0
    %3705 = vmatpush2.msra.mxu0 0.0
    %3706 = vmatprep.subr.mxu0 0.0
    %3707 = vmatpush2.msra.mxu0 0.0
    %3708 = vmatprep.subr.mxu0 0.0
    %3709 = vmatpush2.msra.mxu0 0.0
    %3710 = vmatprep.subr.mxu0 0.0
    %3711 = vmatpush2.msra.mxu0 0.0
    %3712 = vmatprep.subr.mxu0 0.0
    %3713 = vmatpush2.msra.mxu0 0.0
    %3714 = vmatprep.mubr.f32.mxu0 0.0
    %3715 = vmatmul.mubr.f32.gmra.mxu0 %v3648
    %v3716 = vpop.f32.mrf.mxu0
    %v3717 = vadd.f32 0.0, %v3716
    %v3718 = vpop.f32.mrf.mxu0
    %3719 = vdwg.mxu0
    %3720 = vrot.lane.b32.xlu0 %v432, 120
    %v3721 = vpop.permute.xlu0 %3720
    %v3722 = vsel %vm503, %v3721, 0
    %3724 = vmatprep.subr.mxu0 0.0
    %3725 = vmatpush1.msra.mxu0 0.0
    %3726 = vmatprep.subr.mxu0 0.0
    %3727 = vmatpush1.msra.mxu0 0.0
    %3728 = vmatprep.subr.mxu0 0.0
    %3729 = vmatpush1.msra.mxu0 0.0
    %3730 = vmatprep.subr.mxu0 0.0
    %3731 = vmatpush1.msra.mxu0 0.0
    %3732 = vmatprep.subr.mxu0 0.0
    %3733 = vmatpush1.msra.mxu0 0.0
    %3734 = vmatprep.subr.mxu0 0.0
    %3735 = vmatpush1.msra.mxu0 0.0
    %3736 = vmatprep.subr.mxu0 0.0
    %3737 = vmatpush1.msra.mxu0 0.0
    %3738 = vmatprep.subr.mxu0 0.0
    %3739 = vmatpush1.msra.mxu0 0.0
    %3740 = vmatprep.subr.mxu0 0.0
    %3741 = vmatpush1.msra.mxu0 0.0
    %3742 = vmatprep.subr.mxu0 0.0
    %3743 = vmatpush1.msra.mxu0 0.0
    %3744 = vmatprep.subr.mxu0 0.0
    %3745 = vmatpush1.msra.mxu0 0.0
    %3746 = vmatprep.subr.mxu0 0.0
    %3747 = vmatpush1.msra.mxu0 0.0
    %3748 = vmatprep.subr.mxu0 0.0
    %3749 = vmatpush1.msra.mxu0 0.0
    %3750 = vmatprep.subr.mxu0 0.0
    %3751 = vmatpush1.msra.mxu0 0.0
    %3752 = vmatprep.subr.mxu0 0.0
    %3753 = vmatpush1.msra.mxu0 0.0
    %3754 = vmatprep.subr.mxu0 0.0
    %3755 = vmatpush1.msra.mxu0 %v3349
    %3756 = vmatprep.subr.mxu0 0.0
    %3757 = vmatpush2.msra.mxu0 0.0
    %3758 = vmatprep.subr.mxu0 0.0
    %3759 = vmatpush2.msra.mxu0 0.0
    %3760 = vmatprep.subr.mxu0 0.0
    %3761 = vmatpush2.msra.mxu0 0.0
    %3762 = vmatprep.subr.mxu0 0.0
    %3763 = vmatpush2.msra.mxu0 0.0
    %3764 = vmatprep.subr.mxu0 0.0
    %3765 = vmatpush2.msra.mxu0 0.0
    %3766 = vmatprep.subr.mxu0 0.0
    %3767 = vmatpush2.msra.mxu0 0.0
    %3768 = vmatprep.subr.mxu0 0.0
    %3769 = vmatpush2.msra.mxu0 0.0
    %3770 = vmatprep.subr.mxu0 0.0
    %3771 = vmatpush2.msra.mxu0 0.0
    %3772 = vmatprep.subr.mxu0 0.0
    %3773 = vmatpush2.msra.mxu0 0.0
    %3774 = vmatprep.subr.mxu0 0.0
    %3775 = vmatpush2.msra.mxu0 0.0
    %3776 = vmatprep.subr.mxu0 0.0
    %3777 = vmatpush2.msra.mxu0 0.0
    %3778 = vmatprep.subr.mxu0 0.0
    %3779 = vmatpush2.msra.mxu0 0.0
    %3780 = vmatprep.subr.mxu0 0.0
    %3781 = vmatpush2.msra.mxu0 0.0
    %3782 = vmatprep.subr.mxu0 0.0
    %3783 = vmatpush2.msra.mxu0 0.0
    %3784 = vmatprep.subr.mxu0 0.0
    %3785 = vmatpush2.msra.mxu0 0.0
    %3786 = vmatprep.subr.mxu0 0.0
    %3787 = vmatpush2.msra.mxu0 0.0
    %3788 = vmatprep.mubr.f32.mxu0 0.0
    %3789 = vmatmul.mubr.f32.gmra.mxu0 %v3722
    %v3790 = vpop.f32.mrf.mxu0
    %v3791 = vadd.f32 0.0, %v3790
    %v3792 = vpop.f32.mrf.mxu0
    %3793 = vdwg.mxu0
    %3794 = vrot.lane.b32.xlu0 %v427, 112
    %v3795 = vpop.permute.xlu0 %3794
    %v3796 = vsel %vm503, %v3795, 0
    %3798 = vmatprep.subr.mxu0 0.0
    %3799 = vmatpush1.msra.mxu0 0.0
    %3800 = vmatprep.subr.mxu0 0.0
    %3801 = vmatpush1.msra.mxu0 0.0
    %3802 = vmatprep.subr.mxu0 0.0
    %3803 = vmatpush1.msra.mxu0 0.0
    %3804 = vmatprep.subr.mxu0 0.0
    %3805 = vmatpush1.msra.mxu0 0.0
    %3806 = vmatprep.subr.mxu0 0.0
    %3807 = vmatpush1.msra.mxu0 0.0
    %3808 = vmatprep.subr.mxu0 0.0
    %3809 = vmatpush1.msra.mxu0 0.0
    %3810 = vmatprep.subr.mxu0 0.0
    %3811 = vmatpush1.msra.mxu0 0.0
    %3812 = vmatprep.subr.mxu0 0.0
    %3813 = vmatpush1.msra.mxu0 0.0
    %3814 = vmatprep.subr.mxu0 0.0
    %3815 = vmatpush1.msra.mxu0 0.0
    %3816 = vmatprep.subr.mxu0 0.0
    %3817 = vmatpush1.msra.mxu0 0.0
    %3818 = vmatprep.subr.mxu0 0.0
    %3819 = vmatpush1.msra.mxu0 0.0
    %3820 = vmatprep.subr.mxu0 0.0
    %3821 = vmatpush1.msra.mxu0 0.0
    %3822 = vmatprep.subr.mxu0 0.0
    %3823 = vmatpush1.msra.mxu0 0.0
    %3824 = vmatprep.subr.mxu0 0.0
    %3825 = vmatpush1.msra.mxu0 0.0
    %3826 = vmatprep.subr.mxu0 0.0
    %3827 = vmatpush1.msra.mxu0 0.0
    %3828 = vmatprep.subr.mxu0 0.0
    %3829 = vmatpush1.msra.mxu0 %v3350
    %3830 = vmatprep.subr.mxu0 0.0
    %3831 = vmatpush2.msra.mxu0 0.0
    %3832 = vmatprep.subr.mxu0 0.0
    %3833 = vmatpush2.msra.mxu0 0.0
    %3834 = vmatprep.subr.mxu0 0.0
    %3835 = vmatpush2.msra.mxu0 0.0
    %3836 = vmatprep.subr.mxu0 0.0
    %3837 = vmatpush2.msra.mxu0 0.0
    %3838 = vmatprep.subr.mxu0 0.0
    %3839 = vmatpush2.msra.mxu0 0.0
    %3840 = vmatprep.subr.mxu0 0.0
    %3841 = vmatpush2.msra.mxu0 0.0
    %3842 = vmatprep.subr.mxu0 0.0
    %3843 = vmatpush2.msra.mxu0 0.0
    %3844 = vmatprep.subr.mxu0 0.0
    %3845 = vmatpush2.msra.mxu0 0.0
    %3846 = vmatprep.subr.mxu0 0.0
    %3847 = vmatpush2.msra.mxu0 0.0
    %3848 = vmatprep.subr.mxu0 0.0
    %3849 = vmatpush2.msra.mxu0 0.0
    %3850 = vmatprep.subr.mxu0 0.0
    %3851 = vmatpush2.msra.mxu0 0.0
    %3852 = vmatprep.subr.mxu0 0.0
    %3853 = vmatpush2.msra.mxu0 0.0
    %3854 = vmatprep.subr.mxu0 0.0
    %3855 = vmatpush2.msra.mxu0 0.0
    %3856 = vmatprep.subr.mxu0 0.0
    %3857 = vmatpush2.msra.mxu0 0.0
    %3858 = vmatprep.subr.mxu0 0.0
    %3859 = vmatpush2.msra.mxu0 0.0
    %3860 = vmatprep.subr.mxu0 0.0
    %3861 = vmatpush2.msra.mxu0 0.0
    %3862 = vmatprep.mubr.f32.mxu0 0.0
    %3863 = vmatmul.mubr.f32.gmra.mxu0 %v3796
    %v3864 = vpop.f32.mrf.mxu0
    %v3865 = vadd.f32 0.0, %v3864
    %v3866 = vpop.f32.mrf.mxu0
    %3867 = vdwg.mxu0
    %3868 = vrot.lane.b32.xlu0 %v432, 112
    %v3869 = vpop.permute.xlu0 %3868
    %v3870 = vsel %vm503, %v3869, 0
    %3872 = vmatprep.subr.mxu0 0.0
    %3873 = vmatpush1.msra.mxu0 0.0
    %3874 = vmatprep.subr.mxu0 0.0
    %3875 = vmatpush1.msra.mxu0 0.0
    %3876 = vmatprep.subr.mxu0 0.0
    %3877 = vmatpush1.msra.mxu0 0.0
    %3878 = vmatprep.subr.mxu0 0.0
    %3879 = vmatpush1.msra.mxu0 0.0
    %3880 = vmatprep.subr.mxu0 0.0
    %3881 = vmatpush1.msra.mxu0 0.0
    %3882 = vmatprep.subr.mxu0 0.0
    %3883 = vmatpush1.msra.mxu0 0.0
    %3884 = vmatprep.subr.mxu0 0.0
    %3885 = vmatpush1.msra.mxu0 0.0
    %3886 = vmatprep.subr.mxu0 0.0
    %3887 = vmatpush1.msra.mxu0 0.0
    %3888 = vmatprep.subr.mxu0 0.0
    %3889 = vmatpush1.msra.mxu0 0.0
    %3890 = vmatprep.subr.mxu0 0.0
    %3891 = vmatpush1.msra.mxu0 0.0
    %3892 = vmatprep.subr.mxu0 0.0
    %3893 = vmatpush1.msra.mxu0 0.0
    %3894 = vmatprep.subr.mxu0 0.0
    %3895 = vmatpush1.msra.mxu0 0.0
    %3896 = vmatprep.subr.mxu0 0.0
    %3897 = vmatpush1.msra.mxu0 0.0
    %3898 = vmatprep.subr.mxu0 0.0
    %3899 = vmatpush1.msra.mxu0 0.0
    %3900 = vmatprep.subr.mxu0 0.0
    %3901 = vmatpush1.msra.mxu0 0.0
    %3902 = vmatprep.subr.mxu0 0.0
    %3903 = vmatpush1.msra.mxu0 %v3351
    %3904 = vmatprep.subr.mxu0 0.0
    %3905 = vmatpush2.msra.mxu0 0.0
    %3906 = vmatprep.subr.mxu0 0.0
    %3907 = vmatpush2.msra.mxu0 0.0
    %3908 = vmatprep.subr.mxu0 0.0
    %3909 = vmatpush2.msra.mxu0 0.0
    %3910 = vmatprep.subr.mxu0 0.0
    %3911 = vmatpush2.msra.mxu0 0.0
    %3912 = vmatprep.subr.mxu0 0.0
    %3913 = vmatpush2.msra.mxu0 0.0
    %3914 = vmatprep.subr.mxu0 0.0
    %3915 = vmatpush2.msra.mxu0 0.0
    %3916 = vmatprep.subr.mxu0 0.0
    %3917 = vmatpush2.msra.mxu0 0.0
    %3918 = vmatprep.subr.mxu0 0.0
    %3919 = vmatpush2.msra.mxu0 0.0
    %3920 = vmatprep.subr.mxu0 0.0
    %3921 = vmatpush2.msra.mxu0 0.0
    %3922 = vmatprep.subr.mxu0 0.0
    %3923 = vmatpush2.msra.mxu0 0.0
    %3924 = vmatprep.subr.mxu0 0.0
    %3925 = vmatpush2.msra.mxu0 0.0
    %3926 = vmatprep.subr.mxu0 0.0
    %3927 = vmatpush2.msra.mxu0 0.0
    %3928 = vmatprep.subr.mxu0 0.0
    %3929 = vmatpush2.msra.mxu0 0.0
    %3930 = vmatprep.subr.mxu0 0.0
    %3931 = vmatpush2.msra.mxu0 0.0
    %3932 = vmatprep.subr.mxu0 0.0
    %3933 = vmatpush2.msra.mxu0 0.0
    %3934 = vmatprep.subr.mxu0 0.0
    %3935 = vmatpush2.msra.mxu0 0.0
    %3936 = vmatprep.mubr.f32.mxu0 0.0
    %3937 = vmatmul.mubr.f32.gmra.mxu0 %v3870
    %v3938 = vpop.f32.mrf.mxu0
    %v3939 = vadd.f32 0.0, %v3938
    %v3940 = vpop.f32.mrf.mxu0
    %3941 = vdwg.mxu0
    %3942 = vrot.lane.b32.xlu0 %v427, 104
    %v3943 = vpop.permute.xlu0 %3942
    %v3944 = vsel %vm503, %v3943, 0
    %3946 = vmatprep.subr.mxu0 0.0
    %3947 = vmatpush1.msra.mxu0 0.0
    %3948 = vmatprep.subr.mxu0 0.0
    %3949 = vmatpush1.msra.mxu0 0.0
    %3950 = vmatprep.subr.mxu0 0.0
    %3951 = vmatpush1.msra.mxu0 0.0
    %3952 = vmatprep.subr.mxu0 0.0
    %3953 = vmatpush1.msra.mxu0 0.0
    %3954 = vmatprep.subr.mxu0 0.0
    %3955 = vmatpush1.msra.mxu0 0.0
    %3956 = vmatprep.subr.mxu0 0.0
    %3957 = vmatpush1.msra.mxu0 0.0
    %3958 = vmatprep.subr.mxu0 0.0
    %3959 = vmatpush1.msra.mxu0 0.0
    %3960 = vmatprep.subr.mxu0 0.0
    %3961 = vmatpush1.msra.mxu0 0.0
    %3962 = vmatprep.subr.mxu0 0.0
    %3963 = vmatpush1.msra.mxu0 0.0
    %3964 = vmatprep.subr.mxu0 0.0
    %3965 = vmatpush1.msra.mxu0 0.0
    %3966 = vmatprep.subr.mxu0 0.0
    %3967 = vmatpush1.msra.mxu0 0.0
    %3968 = vmatprep.subr.mxu0 0.0
    %3969 = vmatpush1.msra.mxu0 0.0
    %3970 = vmatprep.subr.mxu0 0.0
    %3971 = vmatpush1.msra.mxu0 0.0
    %3972 = vmatprep.subr.mxu0 0.0
    %3973 = vmatpush1.msra.mxu0 0.0
    %3974 = vmatprep.subr.mxu0 0.0
    %3975 = vmatpush1.msra.mxu0 0.0
    %3976 = vmatprep.subr.mxu0 0.0
    %3977 = vmatpush1.msra.mxu0 %v3352
    %3978 = vmatprep.subr.mxu0 0.0
    %3979 = vmatpush2.msra.mxu0 0.0
    %3980 = vmatprep.subr.mxu0 0.0
    %3981 = vmatpush2.msra.mxu0 0.0
    %3982 = vmatprep.subr.mxu0 0.0
    %3983 = vmatpush2.msra.mxu0 0.0
    %3984 = vmatprep.subr.mxu0 0.0
    %3985 = vmatpush2.msra.mxu0 0.0
    %3986 = vmatprep.subr.mxu0 0.0
    %3987 = vmatpush2.msra.mxu0 0.0
    %3988 = vmatprep.subr.mxu0 0.0
    %3989 = vmatpush2.msra.mxu0 0.0
    %3990 = vmatprep.subr.mxu0 0.0
    %3991 = vmatpush2.msra.mxu0 0.0
    %3992 = vmatprep.subr.mxu0 0.0
    %3993 = vmatpush2.msra.mxu0 0.0
    %3994 = vmatprep.subr.mxu0 0.0
    %3995 = vmatpush2.msra.mxu0 0.0
    %3996 = vmatprep.subr.mxu0 0.0
    %3997 = vmatpush2.msra.mxu0 0.0
    %3998 = vmatprep.subr.mxu0 0.0
    %3999 = vmatpush2.msra.mxu0 0.0
    %4000 = vmatprep.subr.mxu0 0.0
    %4001 = vmatpush2.msra.mxu0 0.0
    %4002 = vmatprep.subr.mxu0 0.0
    %4003 = vmatpush2.msra.mxu0 0.0
    %4004 = vmatprep.subr.mxu0 0.0
    %4005 = vmatpush2.msra.mxu0 0.0
    %4006 = vmatprep.subr.mxu0 0.0
    %4007 = vmatpush2.msra.mxu0 0.0
    %4008 = vmatprep.subr.mxu0 0.0
    %4009 = vmatpush2.msra.mxu0 0.0
    %4010 = vmatprep.mubr.f32.mxu0 0.0
    %4011 = vmatmul.mubr.f32.gmra.mxu0 %v3944
    %v4012 = vpop.f32.mrf.mxu0
    %v4013 = vadd.f32 0.0, %v4012
    %v4014 = vpop.f32.mrf.mxu0
    %4015 = vdwg.mxu0
    %4016 = vrot.lane.b32.xlu0 %v432, 104
    %v4017 = vpop.permute.xlu0 %4016
    %v4018 = vsel %vm503, %v4017, 0
    %4020 = vmatprep.subr.mxu0 0.0
    %4021 = vmatpush1.msra.mxu0 0.0
    %4022 = vmatprep.subr.mxu0 0.0
    %4023 = vmatpush1.msra.mxu0 0.0
    %4024 = vmatprep.subr.mxu0 0.0
    %4025 = vmatpush1.msra.mxu0 0.0
    %4026 = vmatprep.subr.mxu0 0.0
    %4027 = vmatpush1.msra.mxu0 0.0
    %4028 = vmatprep.subr.mxu0 0.0
    %4029 = vmatpush1.msra.mxu0 0.0
    %4030 = vmatprep.subr.mxu0 0.0
    %4031 = vmatpush1.msra.mxu0 0.0
    %4032 = vmatprep.subr.mxu0 0.0
    %4033 = vmatpush1.msra.mxu0 0.0
    %4034 = vmatprep.subr.mxu0 0.0
    %4035 = vmatpush1.msra.mxu0 0.0
    %4036 = vmatprep.subr.mxu0 0.0
    %4037 = vmatpush1.msra.mxu0 0.0
    %4038 = vmatprep.subr.mxu0 0.0
    %4039 = vmatpush1.msra.mxu0 0.0
    %4040 = vmatprep.subr.mxu0 0.0
    %4041 = vmatpush1.msra.mxu0 0.0
    %4042 = vmatprep.subr.mxu0 0.0
    %4043 = vmatpush1.msra.mxu0 0.0
    %4044 = vmatprep.subr.mxu0 0.0
    %4045 = vmatpush1.msra.mxu0 0.0
    %4046 = vmatprep.subr.mxu0 0.0
    %4047 = vmatpush1.msra.mxu0 0.0
    %4048 = vmatprep.subr.mxu0 0.0
    %4049 = vmatpush1.msra.mxu0 0.0
    %4050 = vmatprep.subr.mxu0 0.0
    %4051 = vmatpush1.msra.mxu0 %v3353
    %4052 = vmatprep.subr.mxu0 0.0
    %4053 = vmatpush2.msra.mxu0 0.0
    %4054 = vmatprep.subr.mxu0 0.0
    %4055 = vmatpush2.msra.mxu0 0.0
    %4056 = vmatprep.subr.mxu0 0.0
    %4057 = vmatpush2.msra.mxu0 0.0
    %4058 = vmatprep.subr.mxu0 0.0
    %4059 = vmatpush2.msra.mxu0 0.0
    %4060 = vmatprep.subr.mxu0 0.0
    %4061 = vmatpush2.msra.mxu0 0.0
    %4062 = vmatprep.subr.mxu0 0.0
    %4063 = vmatpush2.msra.mxu0 0.0
    %4064 = vmatprep.subr.mxu0 0.0
    %4065 = vmatpush2.msra.mxu0 0.0
    %4066 = vmatprep.subr.mxu0 0.0
    %4067 = vmatpush2.msra.mxu0 0.0
    %4068 = vmatprep.subr.mxu0 0.0
    %4069 = vmatpush2.msra.mxu0 0.0
    %4070 = vmatprep.subr.mxu0 0.0
    %4071 = vmatpush2.msra.mxu0 0.0
    %4072 = vmatprep.subr.mxu0 0.0
    %4073 = vmatpush2.msra.mxu0 0.0
    %4074 = vmatprep.subr.mxu0 0.0
    %4075 = vmatpush2.msra.mxu0 0.0
    %4076 = vmatprep.subr.mxu0 0.0
    %4077 = vmatpush2.msra.mxu0 0.0
    %4078 = vmatprep.subr.mxu0 0.0
    %4079 = vmatpush2.msra.mxu0 0.0
    %4080 = vmatprep.subr.mxu0 0.0
    %4081 = vmatpush2.msra.mxu0 0.0
    %4082 = vmatprep.subr.mxu0 0.0
    %4083 = vmatpush2.msra.mxu0 0.0
    %4084 = vmatprep.mubr.f32.mxu0 0.0
    %4085 = vmatmul.mubr.f32.gmra.mxu0 %v4018
    %v4086 = vpop.f32.mrf.mxu0
    %v4087 = vadd.f32 0.0, %v4086
    %v4088 = vpop.f32.mrf.mxu0
    %4089 = vdwg.mxu0
    %4092 = vrot.lane.b32.xlu0 %v3717, 8
    %v4093 = vpop.permute.xlu0 %4092
    %4094 = vrot.lane.b32.xlu0 %v3791, 8
    %v4095 = vpop.permute.xlu0 %4094
    %4100 = vrot.lane.b32.xlu0 %v3865, 16
    %v4101 = vpop.permute.xlu0 %4100
    %4102 = vrot.lane.b32.xlu0 %v3939, 16
    %v4103 = vpop.permute.xlu0 %4102
    %4108 = vrot.lane.b32.xlu0 %v4013, 24
    %v4109 = vpop.permute.xlu0 %4108
    %4110 = vrot.lane.b32.xlu0 %v4087, 24
    %v4111 = vpop.permute.xlu0 %4110
    %v4114 = vsel %vm503, %v3570, %v4093
    %v4115 = vsel %vm503, %v3643, %v4095
    %vm4116 = vcmask 130048
    %v4117 = vsel %vm4116, %v4114, %v4101
    %v4118 = vsel %vm4116, %v4115, %v4103
    %vm4119 = vcmask 195584
    %v4120 = vsel %vm4119, %v4117, %v4109
    %v4121 = vsel %vm4119, %v4118, %v4111
    %v4123 = vsel %vm162, %v4120, 0
    %v4126 = vsel %vm162, %v4121, 0
    %4128 = vmatprep.subr.mxu0 0.0
    %4129 = vmatpush1.msra.mxu0 0.0
    %4130 = vmatprep.subr.mxu0 0.0
    %4131 = vmatpush1.msra.mxu0 0.0
    %4132 = vmatprep.subr.mxu0 0.0
    %4133 = vmatpush1.msra.mxu0 0.0
    %4134 = vmatprep.subr.mxu0 0.0
    %4135 = vmatpush1.msra.mxu0 0.0
    %4136 = vmatprep.subr.mxu0 0.0
    %4137 = vmatpush1.msra.mxu0 0.0
    %4138 = vmatprep.subr.mxu0 0.0
    %4139 = vmatpush1.msra.mxu0 0.0
    %4140 = vmatprep.subr.mxu0 0.0
    %4141 = vmatpush1.msra.mxu0 0.0
    %4142 = vmatprep.subr.mxu0 0.0
    %4143 = vmatpush1.msra.mxu0 0.0
    %4144 = vmatprep.subr.mxu0 0.0
    %4145 = vmatpush1.msra.mxu0 0.0
    %4146 = vmatprep.subr.mxu0 0.0
    %4147 = vmatpush1.msra.mxu0 0.0
    %4148 = vmatprep.subr.mxu0 0.0
    %4149 = vmatpush1.msra.mxu0 0.0
    %4150 = vmatprep.subr.mxu0 0.0
    %4151 = vmatpush1.msra.mxu0 0.0
    %4152 = vmatprep.subr.mxu0 0.0
    %4153 = vmatpush1.msra.mxu0 %v161
    %4154 = vmatprep.subr.mxu0 0.0
    %4155 = vmatpush1.msra.mxu0 %v160
    %4156 = vmatprep.subr.mxu0 0.0
    %4157 = vmatpush1.msra.mxu0 %v159
    %4158 = vmatprep.subr.mxu0 0.0
    %4159 = vmatpush1.msra.mxu0 %v158
    %4160 = vmatprep.subr.mxu0 0.0
    %4161 = vmatpush2.msra.mxu0 0.0
    %4162 = vmatprep.subr.mxu0 0.0
    %4163 = vmatpush2.msra.mxu0 0.0
    %4164 = vmatprep.subr.mxu0 0.0
    %4165 = vmatpush2.msra.mxu0 0.0
    %4166 = vmatprep.subr.mxu0 0.0
    %4167 = vmatpush2.msra.mxu0 0.0
    %4168 = vmatprep.subr.mxu0 0.0
    %4169 = vmatpush2.msra.mxu0 0.0
    %4170 = vmatprep.subr.mxu0 0.0
    %4171 = vmatpush2.msra.mxu0 0.0
    %4172 = vmatprep.subr.mxu0 0.0
    %4173 = vmatpush2.msra.mxu0 0.0
    %4174 = vmatprep.subr.mxu0 0.0
    %4175 = vmatpush2.msra.mxu0 0.0
    %4176 = vmatprep.subr.mxu0 0.0
    %4177 = vmatpush2.msra.mxu0 0.0
    %4178 = vmatprep.subr.mxu0 0.0
    %4179 = vmatpush2.msra.mxu0 0.0
    %4180 = vmatprep.subr.mxu0 0.0
    %4181 = vmatpush2.msra.mxu0 0.0
    %4182 = vmatprep.subr.mxu0 0.0
    %4183 = vmatpush2.msra.mxu0 0.0
    %4184 = vmatprep.subr.mxu0 0.0
    %4185 = vmatpush2.msra.mxu0 0.0
    %4186 = vmatprep.subr.mxu0 0.0
    %4187 = vmatpush2.msra.mxu0 0.0
    %4188 = vmatprep.subr.mxu0 0.0
    %4189 = vmatpush2.msra.mxu0 0.0
    %4190 = vmatprep.subr.mxu0 0.0
    %4191 = vmatpush2.msra.mxu0 0.0
    %4192 = vmatprep.mubr.f32.mxu0 0.0
    %4193 = vmatmul.mubr.f32.gmra.mxu0 %v4123
    %v4194 = vpop.f32.mrf.mxu0
    %v4195 = vadd.f32 0.0, %v4194
    %v4196 = vpop.f32.mrf.mxu0
    %4197 = vmatprep.mubr.f32.mxu0 0.0
    %4198 = vmatmul.mubr.f32.gmra.mxu0 %v4126
    %v4199 = vpop.f32.mrf.mxu0
    %v4200 = vadd.f32 0.0, %v4199
    %v4201 = vpop.f32.mrf.mxu0
    %4202 = vdwg.mxu0
    %v4203 = vmul.f32 %v3424, 1600.0
    %v4204 = vmul.f32 %v3497, 1600.0
    %v4205 = vadd.f32 %v200, %v4203
    %v4206 = vadd.f32 %v201, %v4204
    %v4207 = vmul.f32 %v4195, 160.0
    %v4208 = vmul.f32 %v4200, 160.0
    %v4209 = vsub.f32 %v4205, %v4207
    %v4210 = vsub.f32 %v4206, %v4208
    %v4211 = vld [vmem:[%s3 + $0x1] sm:$0x1]
    %v4212 = vld [vmem:[%s4 + $0x1] sm:$0x1]
    %s4213 = scalar_lea.vmem %s5, 32
    %v4214 = vld [vmem:[%s4213] sm:$0xff]
    %v4215 = vld [vmem:[%s4213 + $0x8] sm:$0xff]
    %v4216 = vld [vmem:[%s4213 + $0x10] sm:$0xff]
    %v4217 = vld [vmem:[%s4213 + $0x18] sm:$0xff]
    %v4218 = vsel %vm162, %v4209, 0.0
    %4219 = vadd.xlane.f32.xlu0 %v4218
    %v4220 = vpop.xlane.xlu0 %4219
    %v4221 = vsel %vm162, %v4210, 0.0
    %4222 = vadd.xlane.f32.xlu0 %v4221
    %v4223 = vpop.xlane.xlu0 %4222
    %v4224 = vmul.f32 %v4220, %v169
    %v4225 = vmul.f32 %v4223, %v169
    %v4226 = vsub.f32 %v4209, %v4224
    %v4227 = vsub.f32 %v4210, %v4225
    %v4228 = vmul.f32 %v4226, %v4226
    %v4229 = vmul.f32 %v4227, %v4227
    %v4230 = vsel %vm162, %v4228, 0.0
    %4231 = vadd.xlane.f32.xlu0 %v4230
    %v4232 = vpop.xlane.xlu0 %4231
    %v4233 = vsel %vm162, %v4229, 0.0
    %4234 = vadd.xlane.f32.xlu0 %v4233
    %v4235 = vpop.xlane.xlu0 %4234
    %v4236 = vmul.f32 %v4232, %v169
    %v4237 = vmul.f32 %v4235, %v169
    %v4238 = vadd.f32 %v4236, 1e-05
    %v4239 = vadd.f32 %v4237, 1e-05
    %v4240 = vrsqrt.pop %v4238
    %v4241 = vrsqrt.pop %v4239
    %v4242 = vmul.f32 %v4226, %v4240
    %v4243 = vmul.f32 %v4227, %v4241
    %v4244 = vlaneseq
    %v4245 = vshrl.u32 %v4244, 7
    %v4246 = vsub.s32 0, %v4245
    %v4247 = vrot.slane %v4211, %v4246
    %v4248 = vmul.f32 %v4242, %v4247
    %v4249 = vmul.f32 %v4243, %v4247
    %v4250 = vlaneseq
    %v4251 = vshrl.u32 %v4250, 7
    %v4252 = vsub.s32 0, %v4251
    %v4253 = vrot.slane %v4212, %v4252
    %v4254 = vadd.f32 %v4248, %v4253
    %v4255 = vadd.f32 %v4249, %v4253
    %v4257 = vsel %vm162, %v4254, 0
    %4259 = vmatprep.subr.mxu0 0.0
    %4260 = vmatpush1.xpose.msra.mxu0 0.0
    %4261 = vmatprep.subr.mxu0 0.0
    %4262 = vmatpush1.xpose.msra.mxu0 0.0
    %4263 = vmatprep.subr.mxu0 0.0
    %4264 = vmatpush1.xpose.msra.mxu0 0.0
    %4265 = vmatprep.subr.mxu0 0.0
    %4266 = vmatpush1.xpose.msra.mxu0 0.0
    %4267 = vmatprep.subr.mxu0 0.0
    %4268 = vmatpush1.xpose.msra.mxu0 0.0
    %4269 = vmatprep.subr.mxu0 0.0
    %4270 = vmatpush1.xpose.msra.mxu0 0.0
    %4271 = vmatprep.subr.mxu0 0.0
    %4272 = vmatpush1.xpose.msra.mxu0 0.0
    %4273 = vmatprep.subr.mxu0 0.0
    %4274 = vmatpush1.xpose.msra.mxu0 0.0
    %4275 = vmatprep.subr.mxu0 0.0
    %4276 = vmatpush1.xpose.msra.mxu0 0.0
    %4277 = vmatprep.subr.mxu0 0.0
    %4278 = vmatpush1.xpose.msra.mxu0 0.0
    %4279 = vmatprep.subr.mxu0 0.0
    %4280 = vmatpush1.xpose.msra.mxu0 0.0
    %4281 = vmatprep.subr.mxu0 0.0
    %4282 = vmatpush1.xpose.msra.mxu0 0.0
    %4283 = vmatprep.subr.mxu0 0.0
    %4284 = vmatpush1.xpose.msra.mxu0 0.0
    %4285 = vmatprep.subr.mxu0 0.0
    %4286 = vmatpush1.xpose.msra.mxu0 0.0
    %4287 = vmatprep.subr.mxu0 0.0
    %4288 = vmatpush1.xpose.msra.mxu0 0.0
    %4289 = vmatprep.subr.mxu0 0.0
    %4290 = vmatpush1.xpose.msra.mxu0 %v4257
    %4291 = vmatprep.subr.mxu0 0.0
    %4292 = vmatpush2.xpose.msra.mxu0 0.0
    %4293 = vmatprep.subr.mxu0 0.0
    %4294 = vmatpush2.xpose.msra.mxu0 0.0
    %4295 = vmatprep.subr.mxu0 0.0
    %4296 = vmatpush2.xpose.msra.mxu0 0.0
    %4297 = vmatprep.subr.mxu0 0.0
    %4298 = vmatpush2.xpose.msra.mxu0 0.0
    %4299 = vmatprep.subr.mxu0 0.0
    %4300 = vmatpush2.xpose.msra.mxu0 0.0
    %4301 = vmatprep.subr.mxu0 0.0
    %4302 = vmatpush2.xpose.msra.mxu0 0.0
    %4303 = vmatprep.subr.mxu0 0.0
    %4304 = vmatpush2.xpose.msra.mxu0 0.0
    %4305 = vmatprep.subr.mxu0 0.0
    %4306 = vmatpush2.xpose.msra.mxu0 0.0
    %4307 = vmatprep.subr.mxu0 0.0
    %4308 = vmatpush2.xpose.msra.mxu0 0.0
    %4309 = vmatprep.subr.mxu0 0.0
    %4310 = vmatpush2.xpose.msra.mxu0 0.0
    %4311 = vmatprep.subr.mxu0 0.0
    %4312 = vmatpush2.xpose.msra.mxu0 0.0
    %4313 = vmatprep.subr.mxu0 0.0
    %4314 = vmatpush2.xpose.msra.mxu0 0.0
    %4315 = vmatprep.subr.mxu0 0.0
    %4316 = vmatpush2.xpose.msra.mxu0 0.0
    %4317 = vmatprep.subr.mxu0 0.0
    %4318 = vmatpush2.xpose.msra.mxu0 0.0
    %4319 = vmatprep.subr.mxu0 0.0
    %4320 = vmatpush2.xpose.msra.mxu0 0.0
    %4321 = vmatprep.subr.mxu0 0.0
    %4322 = vmatpush2.xpose.msra.mxu0 0.0
    %4323 = vmatprep.mubr.f32.mxu0 0.0
    %4324 = vmatmul.mubr.f32.gmra.mxu0 %v4257
    %v4325 = vpop.f32.mrf.mxu0
    %v4326 = vadd.f32 0.0, %v4325
    %v4327 = vpop.f32.mrf.mxu0
    %4328 = vdwg.mxu0
    %v4330 = vsel %vm162, %v4255, 0
    %4332 = vmatprep.subr.mxu0 0.0
    %4333 = vmatpush1.xpose.msra.mxu0 0.0
    %4334 = vmatprep.subr.mxu0 0.0
    %4335 = vmatpush1.xpose.msra.mxu0 0.0
    %4336 = vmatprep.subr.mxu0 0.0
    %4337 = vmatpush1.xpose.msra.mxu0 0.0
    %4338 = vmatprep.subr.mxu0 0.0
    %4339 = vmatpush1.xpose.msra.mxu0 0.0
    %4340 = vmatprep.subr.mxu0 0.0
    %4341 = vmatpush1.xpose.msra.mxu0 0.0
    %4342 = vmatprep.subr.mxu0 0.0
    %4343 = vmatpush1.xpose.msra.mxu0 0.0
    %4344 = vmatprep.subr.mxu0 0.0
    %4345 = vmatpush1.xpose.msra.mxu0 0.0
    %4346 = vmatprep.subr.mxu0 0.0
    %4347 = vmatpush1.xpose.msra.mxu0 0.0
    %4348 = vmatprep.subr.mxu0 0.0
    %4349 = vmatpush1.xpose.msra.mxu0 0.0
    %4350 = vmatprep.subr.mxu0 0.0
    %4351 = vmatpush1.xpose.msra.mxu0 0.0
    %4352 = vmatprep.subr.mxu0 0.0
    %4353 = vmatpush1.xpose.msra.mxu0 0.0
    %4354 = vmatprep.subr.mxu0 0.0
    %4355 = vmatpush1.xpose.msra.mxu0 0.0
    %4356 = vmatprep.subr.mxu0 0.0
    %4357 = vmatpush1.xpose.msra.mxu0 0.0
    %4358 = vmatprep.subr.mxu0 0.0
    %4359 = vmatpush1.xpose.msra.mxu0 0.0
    %4360 = vmatprep.subr.mxu0 0.0
    %4361 = vmatpush1.xpose.msra.mxu0 0.0
    %4362 = vmatprep.subr.mxu0 0.0
    %4363 = vmatpush1.xpose.msra.mxu0 %v4330
    %4364 = vmatprep.subr.mxu0 0.0
    %4365 = vmatpush2.xpose.msra.mxu0 0.0
    %4366 = vmatprep.subr.mxu0 0.0
    %4367 = vmatpush2.xpose.msra.mxu0 0.0
    %4368 = vmatprep.subr.mxu0 0.0
    %4369 = vmatpush2.xpose.msra.mxu0 0.0
    %4370 = vmatprep.subr.mxu0 0.0
    %4371 = vmatpush2.xpose.msra.mxu0 0.0
    %4372 = vmatprep.subr.mxu0 0.0
    %4373 = vmatpush2.xpose.msra.mxu0 0.0
    %4374 = vmatprep.subr.mxu0 0.0
    %4375 = vmatpush2.xpose.msra.mxu0 0.0
    %4376 = vmatprep.subr.mxu0 0.0
    %4377 = vmatpush2.xpose.msra.mxu0 0.0
    %4378 = vmatprep.subr.mxu0 0.0
    %4379 = vmatpush2.xpose.msra.mxu0 0.0
    %4380 = vmatprep.subr.mxu0 0.0
    %4381 = vmatpush2.xpose.msra.mxu0 0.0
    %4382 = vmatprep.subr.mxu0 0.0
    %4383 = vmatpush2.xpose.msra.mxu0 0.0
    %4384 = vmatprep.subr.mxu0 0.0
    %4385 = vmatpush2.xpose.msra.mxu0 0.0
    %4386 = vmatprep.subr.mxu0 0.0
    %4387 = vmatpush2.xpose.msra.mxu0 0.0
    %4388 = vmatprep.subr.mxu0 0.0
    %4389 = vmatpush2.xpose.msra.mxu0 0.0
    %4390 = vmatprep.subr.mxu0 0.0
    %4391 = vmatpush2.xpose.msra.mxu0 0.0
    %4392 = vmatprep.subr.mxu0 0.0
    %4393 = vmatpush2.xpose.msra.mxu0 0.0
    %4394 = vmatprep.subr.mxu0 0.0
    %4395 = vmatpush2.xpose.msra.mxu0 0.0
    %4396 = vmatprep.mubr.f32.mxu0 0.0
    %4397 = vmatmul.mubr.f32.gmra.mxu0 %v4330
    %v4398 = vpop.f32.mrf.mxu0
    %v4399 = vadd.f32 0.0, %v4398
    %v4400 = vpop.f32.mrf.mxu0
    %4401 = vdwg.mxu0
    %v4403 = vsel %vm162, %v4214, 0
    %v4406 = vsel %vm162, %v4215, 0
    %v4409 = vsel %vm162, %v4216, 0
    %v4412 = vsel %vm162, %v4217, 0
    %4414 = vmatprep.subr.mxu0 0.0
    %4415 = vmatpush1.xpose.msra.mxu0 0.0
    %4416 = vmatprep.subr.mxu0 0.0
    %4417 = vmatpush1.xpose.msra.mxu0 0.0
    %4418 = vmatprep.subr.mxu0 0.0
    %4419 = vmatpush1.xpose.msra.mxu0 0.0
    %4420 = vmatprep.subr.mxu0 0.0
    %4421 = vmatpush1.xpose.msra.mxu0 0.0
    %4422 = vmatprep.subr.mxu0 0.0
    %4423 = vmatpush1.xpose.msra.mxu0 0.0
    %4424 = vmatprep.subr.mxu0 0.0
    %4425 = vmatpush1.xpose.msra.mxu0 0.0
    %4426 = vmatprep.subr.mxu0 0.0
    %4427 = vmatpush1.xpose.msra.mxu0 0.0
    %4428 = vmatprep.subr.mxu0 0.0
    %4429 = vmatpush1.xpose.msra.mxu0 0.0
    %4430 = vmatprep.subr.mxu0 0.0
    %4431 = vmatpush1.xpose.msra.mxu0 0.0
    %4432 = vmatprep.subr.mxu0 0.0
    %4433 = vmatpush1.xpose.msra.mxu0 0.0
    %4434 = vmatprep.subr.mxu0 0.0
    %4435 = vmatpush1.xpose.msra.mxu0 0.0
    %4436 = vmatprep.subr.mxu0 0.0
    %4437 = vmatpush1.xpose.msra.mxu0 0.0
    %4438 = vmatprep.subr.mxu0 0.0
    %4439 = vmatpush1.xpose.msra.mxu0 %v4412
    %4440 = vmatprep.subr.mxu0 0.0
    %4441 = vmatpush1.xpose.msra.mxu0 %v4409
    %4442 = vmatprep.subr.mxu0 0.0
    %4443 = vmatpush1.xpose.msra.mxu0 %v4406
    %4444 = vmatprep.subr.mxu0 0.0
    %4445 = vmatpush1.xpose.msra.mxu0 %v4403
    %4446 = vmatprep.subr.mxu0 0.0
    %4447 = vmatpush2.xpose.msra.mxu0 0.0
    %4448 = vmatprep.subr.mxu0 0.0
    %4449 = vmatpush2.xpose.msra.mxu0 0.0
    %4450 = vmatprep.subr.mxu0 0.0
    %4451 = vmatpush2.xpose.msra.mxu0 0.0
    %4452 = vmatprep.subr.mxu0 0.0
    %4453 = vmatpush2.xpose.msra.mxu0 0.0
    %4454 = vmatprep.subr.mxu0 0.0
    %4455 = vmatpush2.xpose.msra.mxu0 0.0
    %4456 = vmatprep.subr.mxu0 0.0
    %4457 = vmatpush2.xpose.msra.mxu0 0.0
    %4458 = vmatprep.subr.mxu0 0.0
    %4459 = vmatpush2.xpose.msra.mxu0 0.0
    %4460 = vmatprep.subr.mxu0 0.0
    %4461 = vmatpush2.xpose.msra.mxu0 0.0
    %4462 = vmatprep.subr.mxu0 0.0
    %4463 = vmatpush2.xpose.msra.mxu0 0.0
    %4464 = vmatprep.subr.mxu0 0.0
    %4465 = vmatpush2.xpose.msra.mxu0 0.0
    %4466 = vmatprep.subr.mxu0 0.0
    %4467 = vmatpush2.xpose.msra.mxu0 0.0
    %4468 = vmatprep.subr.mxu0 0.0
    %4469 = vmatpush2.xpose.msra.mxu0 0.0
    %4470 = vmatprep.subr.mxu0 0.0
    %4471 = vmatpush2.xpose.msra.mxu0 0.0
    %4472 = vmatprep.subr.mxu0 0.0
    %4473 = vmatpush2.xpose.msra.mxu0 0.0
    %4474 = vmatprep.subr.mxu0 0.0
    %4475 = vmatpush2.xpose.msra.mxu0 0.0
    %4476 = vmatprep.subr.mxu0 0.0
    %4477 = vmatpush2.xpose.msra.mxu0 0.0
    %4478 = vmatprep.mubr.f32.mxu0 0.0
    %4479 = vmatmul.mubr.f32.gmra.mxu0 %v4257
    %v4480 = vpop.f32.mrf.mxu0
    %v4481 = vadd.f32 0.0, %v4480
    %v4482 = vpop.f32.mrf.mxu0
    %4483 = vmatprep.mubr.f32.mxu0 0.0
    %4484 = vmatmul.mubr.f32.gmra.mxu0 %v4330
    %v4485 = vpop.f32.mrf.mxu0
    %v4486 = vadd.f32 0.0, %v4485
    %v4487 = vpop.f32.mrf.mxu0
    %4488 = vdwg.mxu0
    %4489 = vxpose.xlu0.b32.start [1/16] %v4481, 128
    %4490 = vxpose.xlu0.b32.cont [2/16] 0.0, 128
    %4491 = vxpose.xlu0.b32.cont [3/16] 0.0, 128
    %4492 = vxpose.xlu0.b32.cont [4/16] 0.0, 128
    %4493 = vxpose.xlu0.b32.cont [5/16] 0.0, 128
    %4494 = vxpose.xlu0.b32.cont [6/16] 0.0, 128
    %4495 = vxpose.xlu0.b32.cont [7/16] 0.0, 128
    %4496 = vxpose.xlu0.b32.cont [8/16] 0.0, 128
    %4497 = vxpose.xlu0.b32.cont [9/16] 0.0, 128
    %4498 = vxpose.xlu0.b32.cont [10/16] 0.0, 128
    %4499 = vxpose.xlu0.b32.cont [11/16] 0.0, 128
    %4500 = vxpose.xlu0.b32.cont [12/16] 0.0, 128
    %4501 = vxpose.xlu0.b32.cont [13/16] 0.0, 128
    %4502 = vxpose.xlu0.b32.cont [14/16] 0.0, 128
    %4503 = vxpose.xlu0.b32.cont [15/16] 0.0, 128
    %4504 = vxpose.xlu0.b32.end [16/16] 0.0, 128
    %v4505 = vpop.trf.xlu0
    %v4506 = vpop.trf.xlu0
    %v4507 = vpop.trf.xlu0
    %v4508 = vpop.trf.xlu0
    %v4509 = vpop.trf.xlu0
    %v4510 = vpop.trf.xlu0
    %v4511 = vpop.trf.xlu0
    %v4512 = vpop.trf.xlu0
    %v4513 = vpop.trf.xlu0
    %v4514 = vpop.trf.xlu0
    %v4515 = vpop.trf.xlu0
    %v4516 = vpop.trf.xlu0
    %v4517 = vpop.trf.xlu0
    %v4518 = vpop.trf.xlu0
    %v4519 = vpop.trf.xlu0
    %v4520 = vpop.trf.xlu0
    %4521 = vxpose.xlu0.b32.start [1/16] %v4486, 128
    %4522 = vxpose.xlu0.b32.cont [2/16] 0.0, 128
    %4523 = vxpose.xlu0.b32.cont [3/16] 0.0, 128
    %4524 = vxpose.xlu0.b32.cont [4/16] 0.0, 128
    %4525 = vxpose.xlu0.b32.cont [5/16] 0.0, 128
    %4526 = vxpose.xlu0.b32.cont [6/16] 0.0, 128
    %4527 = vxpose.xlu0.b32.cont [7/16] 0.0, 128
    %4528 = vxpose.xlu0.b32.cont [8/16] 0.0, 128
    %4529 = vxpose.xlu0.b32.cont [9/16] 0.0, 128
    %4530 = vxpose.xlu0.b32.cont [10/16] 0.0, 128
    %4531 = vxpose.xlu0.b32.cont [11/16] 0.0, 128
    %4532 = vxpose.xlu0.b32.cont [12/16] 0.0, 128
    %4533 = vxpose.xlu0.b32.cont [13/16] 0.0, 128
    %4534 = vxpose.xlu0.b32.cont [14/16] 0.0, 128
    %4535 = vxpose.xlu0.b32.cont [15/16] 0.0, 128
    %4536 = vxpose.xlu0.b32.end [16/16] 0.0, 128
    %v4537 = vpop.trf.xlu0
    %v4538 = vpop.trf.xlu0
    %v4539 = vpop.trf.xlu0
    %v4540 = vpop.trf.xlu0
    %v4541 = vpop.trf.xlu0
    %v4542 = vpop.trf.xlu0
    %v4543 = vpop.trf.xlu0
    %v4544 = vpop.trf.xlu0
    %v4545 = vpop.trf.xlu0
    %v4546 = vpop.trf.xlu0
    %v4547 = vpop.trf.xlu0
    %v4548 = vpop.trf.xlu0
    %v4549 = vpop.trf.xlu0
    %v4550 = vpop.trf.xlu0
    %v4551 = vpop.trf.xlu0
    %v4552 = vpop.trf.xlu0
    %v4553 = vmul.f32 %v4326, 400.0
    %v4554 = vmul.f32 %v4399, 400.0
    %v4555 = vadd.f32 %v4553, %v155
    %v4556 = vadd.f32 %v4554, %v155
    %v4558 = vsel %vm503, %v4505, 0
    %4560 = vmatprep.subr.mxu0 0.0
    %4561 = vmatpush1.xpose.msra.mxu0 0.0
    %4562 = vmatprep.subr.mxu0 0.0
    %4563 = vmatpush1.xpose.msra.mxu0 0.0
    %4564 = vmatprep.subr.mxu0 0.0
    %4565 = vmatpush1.xpose.msra.mxu0 0.0
    %4566 = vmatprep.subr.mxu0 0.0
    %4567 = vmatpush1.xpose.msra.mxu0 0.0
    %4568 = vmatprep.subr.mxu0 0.0
    %4569 = vmatpush1.xpose.msra.mxu0 0.0
    %4570 = vmatprep.subr.mxu0 0.0
    %4571 = vmatpush1.xpose.msra.mxu0 0.0
    %4572 = vmatprep.subr.mxu0 0.0
    %4573 = vmatpush1.xpose.msra.mxu0 0.0
    %4574 = vmatprep.subr.mxu0 0.0
    %4575 = vmatpush1.xpose.msra.mxu0 0.0
    %4576 = vmatprep.subr.mxu0 0.0
    %4577 = vmatpush1.xpose.msra.mxu0 0.0
    %4578 = vmatprep.subr.mxu0 0.0
    %4579 = vmatpush1.xpose.msra.mxu0 0.0
    %4580 = vmatprep.subr.mxu0 0.0
    %4581 = vmatpush1.xpose.msra.mxu0 0.0
    %4582 = vmatprep.subr.mxu0 0.0
    %4583 = vmatpush1.xpose.msra.mxu0 0.0
    %4584 = vmatprep.subr.mxu0 0.0
    %4585 = vmatpush1.xpose.msra.mxu0 0.0
    %4586 = vmatprep.subr.mxu0 0.0
    %4587 = vmatpush1.xpose.msra.mxu0 0.0
    %4588 = vmatprep.subr.mxu0 0.0
    %4589 = vmatpush1.xpose.msra.mxu0 0.0
    %4590 = vmatprep.subr.mxu0 0.0
    %4591 = vmatpush1.xpose.msra.mxu0 %v4558
    %4592 = vmatprep.subr.mxu0 0.0
    %4593 = vmatpush2.xpose.msra.mxu0 0.0
    %4594 = vmatprep.subr.mxu0 0.0
    %4595 = vmatpush2.xpose.msra.mxu0 0.0
    %4596 = vmatprep.subr.mxu0 0.0
    %4597 = vmatpush2.xpose.msra.mxu0 0.0
    %4598 = vmatprep.subr.mxu0 0.0
    %4599 = vmatpush2.xpose.msra.mxu0 0.0
    %4600 = vmatprep.subr.mxu0 0.0
    %4601 = vmatpush2.xpose.msra.mxu0 0.0
    %4602 = vmatprep.subr.mxu0 0.0
    %4603 = vmatpush2.xpose.msra.mxu0 0.0
    %4604 = vmatprep.subr.mxu0 0.0
    %4605 = vmatpush2.xpose.msra.mxu0 0.0
    %4606 = vmatprep.subr.mxu0 0.0
    %4607 = vmatpush2.xpose.msra.mxu0 0.0
    %4608 = vmatprep.subr.mxu0 0.0
    %4609 = vmatpush2.xpose.msra.mxu0 0.0
    %4610 = vmatprep.subr.mxu0 0.0
    %4611 = vmatpush2.xpose.msra.mxu0 0.0
    %4612 = vmatprep.subr.mxu0 0.0
    %4613 = vmatpush2.xpose.msra.mxu0 0.0
    %4614 = vmatprep.subr.mxu0 0.0
    %4615 = vmatpush2.xpose.msra.mxu0 0.0
    %4616 = vmatprep.subr.mxu0 0.0
    %4617 = vmatpush2.xpose.msra.mxu0 0.0
    %4618 = vmatprep.subr.mxu0 0.0
    %4619 = vmatpush2.xpose.msra.mxu0 0.0
    %4620 = vmatprep.subr.mxu0 0.0
    %4621 = vmatpush2.xpose.msra.mxu0 0.0
    %4622 = vmatprep.subr.mxu0 0.0
    %4623 = vmatpush2.xpose.msra.mxu0 0.0
    %4624 = vmatprep.mubr.f32.mxu0 0.0
    %4625 = vmatmul.mubr.f32.gmra.mxu0 %v4558
    %v4626 = vpop.f32.mrf.mxu0
    %v4627 = vadd.f32 0.0, %v4626
    %v4628 = vpop.f32.mrf.mxu0
    %4629 = vdwg.mxu0
    %v4631 = vsel %vm503, %v4537, 0
    %4633 = vmatprep.subr.mxu0 0.0
    %4634 = vmatpush1.xpose.msra.mxu0 0.0
    %4635 = vmatprep.subr.mxu0 0.0
    %4636 = vmatpush1.xpose.msra.mxu0 0.0
    %4637 = vmatprep.subr.mxu0 0.0
    %4638 = vmatpush1.xpose.msra.mxu0 0.0
    %4639 = vmatprep.subr.mxu0 0.0
    %4640 = vmatpush1.xpose.msra.mxu0 0.0
    %4641 = vmatprep.subr.mxu0 0.0
    %4642 = vmatpush1.xpose.msra.mxu0 0.0
    %4643 = vmatprep.subr.mxu0 0.0
    %4644 = vmatpush1.xpose.msra.mxu0 0.0
    %4645 = vmatprep.subr.mxu0 0.0
    %4646 = vmatpush1.xpose.msra.mxu0 0.0
    %4647 = vmatprep.subr.mxu0 0.0
    %4648 = vmatpush1.xpose.msra.mxu0 0.0
    %4649 = vmatprep.subr.mxu0 0.0
    %4650 = vmatpush1.xpose.msra.mxu0 0.0
    %4651 = vmatprep.subr.mxu0 0.0
    %4652 = vmatpush1.xpose.msra.mxu0 0.0
    %4653 = vmatprep.subr.mxu0 0.0
    %4654 = vmatpush1.xpose.msra.mxu0 0.0
    %4655 = vmatprep.subr.mxu0 0.0
    %4656 = vmatpush1.xpose.msra.mxu0 0.0
    %4657 = vmatprep.subr.mxu0 0.0
    %4658 = vmatpush1.xpose.msra.mxu0 0.0
    %4659 = vmatprep.subr.mxu0 0.0
    %4660 = vmatpush1.xpose.msra.mxu0 0.0
    %4661 = vmatprep.subr.mxu0 0.0
    %4662 = vmatpush1.xpose.msra.mxu0 0.0
    %4663 = vmatprep.subr.mxu0 0.0
    %4664 = vmatpush1.xpose.msra.mxu0 %v4631
    %4665 = vmatprep.subr.mxu0 0.0
    %4666 = vmatpush2.xpose.msra.mxu0 0.0
    %4667 = vmatprep.subr.mxu0 0.0
    %4668 = vmatpush2.xpose.msra.mxu0 0.0
    %4669 = vmatprep.subr.mxu0 0.0
    %4670 = vmatpush2.xpose.msra.mxu0 0.0
    %4671 = vmatprep.subr.mxu0 0.0
    %4672 = vmatpush2.xpose.msra.mxu0 0.0
    %4673 = vmatprep.subr.mxu0 0.0
    %4674 = vmatpush2.xpose.msra.mxu0 0.0
    %4675 = vmatprep.subr.mxu0 0.0
    %4676 = vmatpush2.xpose.msra.mxu0 0.0
    %4677 = vmatprep.subr.mxu0 0.0
    %4678 = vmatpush2.xpose.msra.mxu0 0.0
    %4679 = vmatprep.subr.mxu0 0.0
    %4680 = vmatpush2.xpose.msra.mxu0 0.0
    %4681 = vmatprep.subr.mxu0 0.0
    %4682 = vmatpush2.xpose.msra.mxu0 0.0
    %4683 = vmatprep.subr.mxu0 0.0
    %4684 = vmatpush2.xpose.msra.mxu0 0.0
    %4685 = vmatprep.subr.mxu0 0.0
    %4686 = vmatpush2.xpose.msra.mxu0 0.0
    %4687 = vmatprep.subr.mxu0 0.0
    %4688 = vmatpush2.xpose.msra.mxu0 0.0
    %4689 = vmatprep.subr.mxu0 0.0
    %4690 = vmatpush2.xpose.msra.mxu0 0.0
    %4691 = vmatprep.subr.mxu0 0.0
    %4692 = vmatpush2.xpose.msra.mxu0 0.0
    %4693 = vmatprep.subr.mxu0 0.0
    %4694 = vmatpush2.xpose.msra.mxu0 0.0
    %4695 = vmatprep.subr.mxu0 0.0
    %4696 = vmatpush2.xpose.msra.mxu0 0.0
    %4697 = vmatprep.mubr.f32.mxu0 0.0
    %4698 = vmatmul.mubr.f32.gmra.mxu0 %v4631
    %v4699 = vpop.f32.mrf.mxu0
    %v4700 = vadd.f32 0.0, %v4699
    %v4701 = vpop.f32.mrf.mxu0
    %4702 = vdwg.mxu0
    %v4703 = vmul.f32 %v4627, 100.0
    %v4704 = vmul.f32 %v4700, 100.0
    %v4705 = vadd.f32 %v4703, %v155
    %v4706 = vadd.f32 %v4704, %v155
    %v4708 = vsel %vm503, %v4506, 0
    %4710 = vmatprep.subr.mxu0 0.0
    %4711 = vmatpush1.xpose.msra.mxu0 0.0
    %4712 = vmatprep.subr.mxu0 0.0
    %4713 = vmatpush1.xpose.msra.mxu0 0.0
    %4714 = vmatprep.subr.mxu0 0.0
    %4715 = vmatpush1.xpose.msra.mxu0 0.0
    %4716 = vmatprep.subr.mxu0 0.0
    %4717 = vmatpush1.xpose.msra.mxu0 0.0
    %4718 = vmatprep.subr.mxu0 0.0
    %4719 = vmatpush1.xpose.msra.mxu0 0.0
    %4720 = vmatprep.subr.mxu0 0.0
    %4721 = vmatpush1.xpose.msra.mxu0 0.0
    %4722 = vmatprep.subr.mxu0 0.0
    %4723 = vmatpush1.xpose.msra.mxu0 0.0
    %4724 = vmatprep.subr.mxu0 0.0
    %4725 = vmatpush1.xpose.msra.mxu0 0.0
    %4726 = vmatprep.subr.mxu0 0.0
    %4727 = vmatpush1.xpose.msra.mxu0 0.0
    %4728 = vmatprep.subr.mxu0 0.0
    %4729 = vmatpush1.xpose.msra.mxu0 0.0
    %4730 = vmatprep.subr.mxu0 0.0
    %4731 = vmatpush1.xpose.msra.mxu0 0.0
    %4732 = vmatprep.subr.mxu0 0.0
    %4733 = vmatpush1.xpose.msra.mxu0 0.0
    %4734 = vmatprep.subr.mxu0 0.0
    %4735 = vmatpush1.xpose.msra.mxu0 0.0
    %4736 = vmatprep.subr.mxu0 0.0
    %4737 = vmatpush1.xpose.msra.mxu0 0.0
    %4738 = vmatprep.subr.mxu0 0.0
    %4739 = vmatpush1.xpose.msra.mxu0 0.0
    %4740 = vmatprep.subr.mxu0 0.0
    %4741 = vmatpush1.xpose.msra.mxu0 %v4708
    %4742 = vmatprep.subr.mxu0 0.0
    %4743 = vmatpush2.xpose.msra.mxu0 0.0
    %4744 = vmatprep.subr.mxu0 0.0
    %4745 = vmatpush2.xpose.msra.mxu0 0.0
    %4746 = vmatprep.subr.mxu0 0.0
    %4747 = vmatpush2.xpose.msra.mxu0 0.0
    %4748 = vmatprep.subr.mxu0 0.0
    %4749 = vmatpush2.xpose.msra.mxu0 0.0
    %4750 = vmatprep.subr.mxu0 0.0
    %4751 = vmatpush2.xpose.msra.mxu0 0.0
    %4752 = vmatprep.subr.mxu0 0.0
    %4753 = vmatpush2.xpose.msra.mxu0 0.0
    %4754 = vmatprep.subr.mxu0 0.0
    %4755 = vmatpush2.xpose.msra.mxu0 0.0
    %4756 = vmatprep.subr.mxu0 0.0
    %4757 = vmatpush2.xpose.msra.mxu0 0.0
    %4758 = vmatprep.subr.mxu0 0.0
    %4759 = vmatpush2.xpose.msra.mxu0 0.0
    %4760 = vmatprep.subr.mxu0 0.0
    %4761 = vmatpush2.xpose.msra.mxu0 0.0
    %4762 = vmatprep.subr.mxu0 0.0
    %4763 = vmatpush2.xpose.msra.mxu0 0.0
    %4764 = vmatprep.subr.mxu0 0.0
    %4765 = vmatpush2.xpose.msra.mxu0 0.0
    %4766 = vmatprep.subr.mxu0 0.0
    %4767 = vmatpush2.xpose.msra.mxu0 0.0
    %4768 = vmatprep.subr.mxu0 0.0
    %4769 = vmatpush2.xpose.msra.mxu0 0.0
    %4770 = vmatprep.subr.mxu0 0.0
    %4771 = vmatpush2.xpose.msra.mxu0 0.0
    %4772 = vmatprep.subr.mxu0 0.0
    %4773 = vmatpush2.xpose.msra.mxu0 0.0
    %4774 = vmatprep.mubr.f32.mxu0 0.0
    %4775 = vmatmul.mubr.f32.gmra.mxu0 %v4708
    %v4776 = vpop.f32.mrf.mxu0
    %v4777 = vadd.f32 0.0, %v4776
    %v4778 = vpop.f32.mrf.mxu0
    %4779 = vdwg.mxu0
    %v4781 = vsel %vm503, %v4538, 0
    %4783 = vmatprep.subr.mxu0 0.0
    %4784 = vmatpush1.xpose.msra.mxu0 0.0
    %4785 = vmatprep.subr.mxu0 0.0
    %4786 = vmatpush1.xpose.msra.mxu0 0.0
    %4787 = vmatprep.subr.mxu0 0.0
    %4788 = vmatpush1.xpose.msra.mxu0 0.0
    %4789 = vmatprep.subr.mxu0 0.0
    %4790 = vmatpush1.xpose.msra.mxu0 0.0
    %4791 = vmatprep.subr.mxu0 0.0
    %4792 = vmatpush1.xpose.msra.mxu0 0.0
    %4793 = vmatprep.subr.mxu0 0.0
    %4794 = vmatpush1.xpose.msra.mxu0 0.0
    %4795 = vmatprep.subr.mxu0 0.0
    %4796 = vmatpush1.xpose.msra.mxu0 0.0
    %4797 = vmatprep.subr.mxu0 0.0
    %4798 = vmatpush1.xpose.msra.mxu0 0.0
    %4799 = vmatprep.subr.mxu0 0.0
    %4800 = vmatpush1.xpose.msra.mxu0 0.0
    %4801 = vmatprep.subr.mxu0 0.0
    %4802 = vmatpush1.xpose.msra.mxu0 0.0
    %4803 = vmatprep.subr.mxu0 0.0
    %4804 = vmatpush1.xpose.msra.mxu0 0.0
    %4805 = vmatprep.subr.mxu0 0.0
    %4806 = vmatpush1.xpose.msra.mxu0 0.0
    %4807 = vmatprep.subr.mxu0 0.0
    %4808 = vmatpush1.xpose.msra.mxu0 0.0
    %4809 = vmatprep.subr.mxu0 0.0
    %4810 = vmatpush1.xpose.msra.mxu0 0.0
    %4811 = vmatprep.subr.mxu0 0.0
    %4812 = vmatpush1.xpose.msra.mxu0 0.0
    %4813 = vmatprep.subr.mxu0 0.0
    %4814 = vmatpush1.xpose.msra.mxu0 %v4781
    %4815 = vmatprep.subr.mxu0 0.0
    %4816 = vmatpush2.xpose.msra.mxu0 0.0
    %4817 = vmatprep.subr.mxu0 0.0
    %4818 = vmatpush2.xpose.msra.mxu0 0.0
    %4819 = vmatprep.subr.mxu0 0.0
    %4820 = vmatpush2.xpose.msra.mxu0 0.0
    %4821 = vmatprep.subr.mxu0 0.0
    %4822 = vmatpush2.xpose.msra.mxu0 0.0
    %4823 = vmatprep.subr.mxu0 0.0
    %4824 = vmatpush2.xpose.msra.mxu0 0.0
    %4825 = vmatprep.subr.mxu0 0.0
    %4826 = vmatpush2.xpose.msra.mxu0 0.0
    %4827 = vmatprep.subr.mxu0 0.0
    %4828 = vmatpush2.xpose.msra.mxu0 0.0
    %4829 = vmatprep.subr.mxu0 0.0
    %4830 = vmatpush2.xpose.msra.mxu0 0.0
    %4831 = vmatprep.subr.mxu0 0.0
    %4832 = vmatpush2.xpose.msra.mxu0 0.0
    %4833 = vmatprep.subr.mxu0 0.0
    %4834 = vmatpush2.xpose.msra.mxu0 0.0
    %4835 = vmatprep.subr.mxu0 0.0
    %4836 = vmatpush2.xpose.msra.mxu0 0.0
    %4837 = vmatprep.subr.mxu0 0.0
    %4838 = vmatpush2.xpose.msra.mxu0 0.0
    %4839 = vmatprep.subr.mxu0 0.0
    %4840 = vmatpush2.xpose.msra.mxu0 0.0
    %4841 = vmatprep.subr.mxu0 0.0
    %4842 = vmatpush2.xpose.msra.mxu0 0.0
    %4843 = vmatprep.subr.mxu0 0.0
    %4844 = vmatpush2.xpose.msra.mxu0 0.0
    %4845 = vmatprep.subr.mxu0 0.0
    %4846 = vmatpush2.xpose.msra.mxu0 0.0
    %4847 = vmatprep.mubr.f32.mxu0 0.0
    %4848 = vmatmul.mubr.f32.gmra.mxu0 %v4781
    %v4849 = vpop.f32.mrf.mxu0
    %v4850 = vadd.f32 0.0, %v4849
    %v4851 = vpop.f32.mrf.mxu0
    %4852 = vdwg.mxu0
    %v4853 = vmul.f32 %v4777, 100.0
    %v4854 = vmul.f32 %v4850, 100.0
    %v4855 = vadd.f32 %v4853, %v155
    %v4856 = vadd.f32 %v4854, %v155
    %v4858 = vsel %vm503, %v4507, 0
    %4860 = vmatprep.subr.mxu0 0.0
    %4861 = vmatpush1.xpose.msra.mxu0 0.0
    %4862 = vmatprep.subr.mxu0 0.0
    %4863 = vmatpush1.xpose.msra.mxu0 0.0
    %4864 = vmatprep.subr.mxu0 0.0
    %4865 = vmatpush1.xpose.msra.mxu0 0.0
    %4866 = vmatprep.subr.mxu0 0.0
    %4867 = vmatpush1.xpose.msra.mxu0 0.0
    %4868 = vmatprep.subr.mxu0 0.0
    %4869 = vmatpush1.xpose.msra.mxu0 0.0
    %4870 = vmatprep.subr.mxu0 0.0
    %4871 = vmatpush1.xpose.msra.mxu0 0.0
    %4872 = vmatprep.subr.mxu0 0.0
    %4873 = vmatpush1.xpose.msra.mxu0 0.0
    %4874 = vmatprep.subr.mxu0 0.0
    %4875 = vmatpush1.xpose.msra.mxu0 0.0
    %4876 = vmatprep.subr.mxu0 0.0
    %4877 = vmatpush1.xpose.msra.mxu0 0.0
    %4878 = vmatprep.subr.mxu0 0.0
    %4879 = vmatpush1.xpose.msra.mxu0 0.0
    %4880 = vmatprep.subr.mxu0 0.0
    %4881 = vmatpush1.xpose.msra.mxu0 0.0
    %4882 = vmatprep.subr.mxu0 0.0
    %4883 = vmatpush1.xpose.msra.mxu0 0.0
    %4884 = vmatprep.subr.mxu0 0.0
    %4885 = vmatpush1.xpose.msra.mxu0 0.0
    %4886 = vmatprep.subr.mxu0 0.0
    %4887 = vmatpush1.xpose.msra.mxu0 0.0
    %4888 = vmatprep.subr.mxu0 0.0
    %4889 = vmatpush1.xpose.msra.mxu0 0.0
    %4890 = vmatprep.subr.mxu0 0.0
    %4891 = vmatpush1.xpose.msra.mxu0 %v4858
    %4892 = vmatprep.subr.mxu0 0.0
    %4893 = vmatpush2.xpose.msra.mxu0 0.0
    %4894 = vmatprep.subr.mxu0 0.0
    %4895 = vmatpush2.xpose.msra.mxu0 0.0
    %4896 = vmatprep.subr.mxu0 0.0
    %4897 = vmatpush2.xpose.msra.mxu0 0.0
    %4898 = vmatprep.subr.mxu0 0.0
    %4899 = vmatpush2.xpose.msra.mxu0 0.0
    %4900 = vmatprep.subr.mxu0 0.0
    %4901 = vmatpush2.xpose.msra.mxu0 0.0
    %4902 = vmatprep.subr.mxu0 0.0
    %4903 = vmatpush2.xpose.msra.mxu0 0.0
    %4904 = vmatprep.subr.mxu0 0.0
    %4905 = vmatpush2.xpose.msra.mxu0 0.0
    %4906 = vmatprep.subr.mxu0 0.0
    %4907 = vmatpush2.xpose.msra.mxu0 0.0
    %4908 = vmatprep.subr.mxu0 0.0
    %4909 = vmatpush2.xpose.msra.mxu0 0.0
    %4910 = vmatprep.subr.mxu0 0.0
    %4911 = vmatpush2.xpose.msra.mxu0 0.0
    %4912 = vmatprep.subr.mxu0 0.0
    %4913 = vmatpush2.xpose.msra.mxu0 0.0
    %4914 = vmatprep.subr.mxu0 0.0
    %4915 = vmatpush2.xpose.msra.mxu0 0.0
    %4916 = vmatprep.subr.mxu0 0.0
    %4917 = vmatpush2.xpose.msra.mxu0 0.0
    %4918 = vmatprep.subr.mxu0 0.0
    %4919 = vmatpush2.xpose.msra.mxu0 0.0
    %4920 = vmatprep.subr.mxu0 0.0
    %4921 = vmatpush2.xpose.msra.mxu0 0.0
    %4922 = vmatprep.subr.mxu0 0.0
    %4923 = vmatpush2.xpose.msra.mxu0 0.0
    %4924 = vmatprep.mubr.f32.mxu0 0.0
    %4925 = vmatmul.mubr.f32.gmra.mxu0 %v4858
    %v4926 = vpop.f32.mrf.mxu0
    %v4927 = vadd.f32 0.0, %v4926
    %v4928 = vpop.f32.mrf.mxu0
    %4929 = vdwg.mxu0
    %v4931 = vsel %vm503, %v4539, 0
    %4933 = vmatprep.subr.mxu0 0.0
    %4934 = vmatpush1.xpose.msra.mxu0 0.0
    %4935 = vmatprep.subr.mxu0 0.0
    %4936 = vmatpush1.xpose.msra.mxu0 0.0
    %4937 = vmatprep.subr.mxu0 0.0
    %4938 = vmatpush1.xpose.msra.mxu0 0.0
    %4939 = vmatprep.subr.mxu0 0.0
    %4940 = vmatpush1.xpose.msra.mxu0 0.0
    %4941 = vmatprep.subr.mxu0 0.0
    %4942 = vmatpush1.xpose.msra.mxu0 0.0
    %4943 = vmatprep.subr.mxu0 0.0
    %4944 = vmatpush1.xpose.msra.mxu0 0.0
    %4945 = vmatprep.subr.mxu0 0.0
    %4946 = vmatpush1.xpose.msra.mxu0 0.0
    %4947 = vmatprep.subr.mxu0 0.0
    %4948 = vmatpush1.xpose.msra.mxu0 0.0
    %4949 = vmatprep.subr.mxu0 0.0
    %4950 = vmatpush1.xpose.msra.mxu0 0.0
    %4951 = vmatprep.subr.mxu0 0.0
    %4952 = vmatpush1.xpose.msra.mxu0 0.0
    %4953 = vmatprep.subr.mxu0 0.0
    %4954 = vmatpush1.xpose.msra.mxu0 0.0
    %4955 = vmatprep.subr.mxu0 0.0
    %4956 = vmatpush1.xpose.msra.mxu0 0.0
    %4957 = vmatprep.subr.mxu0 0.0
    %4958 = vmatpush1.xpose.msra.mxu0 0.0
    %4959 = vmatprep.subr.mxu0 0.0
    %4960 = vmatpush1.xpose.msra.mxu0 0.0
    %4961 = vmatprep.subr.mxu0 0.0
    %4962 = vmatpush1.xpose.msra.mxu0 0.0
    %4963 = vmatprep.subr.mxu0 0.0
    %4964 = vmatpush1.xpose.msra.mxu0 %v4931
    %4965 = vmatprep.subr.mxu0 0.0
    %4966 = vmatpush2.xpose.msra.mxu0 0.0
    %4967 = vmatprep.subr.mxu0 0.0
    %4968 = vmatpush2.xpose.msra.mxu0 0.0
    %4969 = vmatprep.subr.mxu0 0.0
    %4970 = vmatpush2.xpose.msra.mxu0 0.0
    %4971 = vmatprep.subr.mxu0 0.0
    %4972 = vmatpush2.xpose.msra.mxu0 0.0
    %4973 = vmatprep.subr.mxu0 0.0
    %4974 = vmatpush2.xpose.msra.mxu0 0.0
    %4975 = vmatprep.subr.mxu0 0.0
    %4976 = vmatpush2.xpose.msra.mxu0 0.0
    %4977 = vmatprep.subr.mxu0 0.0
    %4978 = vmatpush2.xpose.msra.mxu0 0.0
    %4979 = vmatprep.subr.mxu0 0.0
    %4980 = vmatpush2.xpose.msra.mxu0 0.0
    %4981 = vmatprep.subr.mxu0 0.0
    %4982 = vmatpush2.xpose.msra.mxu0 0.0
    %4983 = vmatprep.subr.mxu0 0.0
    %4984 = vmatpush2.xpose.msra.mxu0 0.0
    %4985 = vmatprep.subr.mxu0 0.0
    %4986 = vmatpush2.xpose.msra.mxu0 0.0
    %4987 = vmatprep.subr.mxu0 0.0
    %4988 = vmatpush2.xpose.msra.mxu0 0.0
    %4989 = vmatprep.subr.mxu0 0.0
    %4990 = vmatpush2.xpose.msra.mxu0 0.0
    %4991 = vmatprep.subr.mxu0 0.0
    %4992 = vmatpush2.xpose.msra.mxu0 0.0
    %4993 = vmatprep.subr.mxu0 0.0
    %4994 = vmatpush2.xpose.msra.mxu0 0.0
    %4995 = vmatprep.subr.mxu0 0.0
    %4996 = vmatpush2.xpose.msra.mxu0 0.0
    %4997 = vmatprep.mubr.f32.mxu0 0.0
    %4998 = vmatmul.mubr.f32.gmra.mxu0 %v4931
    %v4999 = vpop.f32.mrf.mxu0
    %v5000 = vadd.f32 0.0, %v4999
    %v5001 = vpop.f32.mrf.mxu0
    %5002 = vdwg.mxu0
    %v5003 = vmul.f32 %v4927, 100.0
    %v5004 = vmul.f32 %v5000, 100.0
    %v5005 = vadd.f32 %v5003, %v155
    %v5006 = vadd.f32 %v5004, %v155
    %v5008 = vsel %vm503, %v4508, 0
    %5010 = vmatprep.subr.mxu0 0.0
    %5011 = vmatpush1.xpose.msra.mxu0 0.0
    %5012 = vmatprep.subr.mxu0 0.0
    %5013 = vmatpush1.xpose.msra.mxu0 0.0
    %5014 = vmatprep.subr.mxu0 0.0
    %5015 = vmatpush1.xpose.msra.mxu0 0.0
    %5016 = vmatprep.subr.mxu0 0.0
    %5017 = vmatpush1.xpose.msra.mxu0 0.0
    %5018 = vmatprep.subr.mxu0 0.0
    %5019 = vmatpush1.xpose.msra.mxu0 0.0
    %5020 = vmatprep.subr.mxu0 0.0
    %5021 = vmatpush1.xpose.msra.mxu0 0.0
    %5022 = vmatprep.subr.mxu0 0.0
    %5023 = vmatpush1.xpose.msra.mxu0 0.0
    %5024 = vmatprep.subr.mxu0 0.0
    %5025 = vmatpush1.xpose.msra.mxu0 0.0
    %5026 = vmatprep.subr.mxu0 0.0
    %5027 = vmatpush1.xpose.msra.mxu0 0.0
    %5028 = vmatprep.subr.mxu0 0.0
    %5029 = vmatpush1.xpose.msra.mxu0 0.0
    %5030 = vmatprep.subr.mxu0 0.0
    %5031 = vmatpush1.xpose.msra.mxu0 0.0
    %5032 = vmatprep.subr.mxu0 0.0
    %5033 = vmatpush1.xpose.msra.mxu0 0.0
    %5034 = vmatprep.subr.mxu0 0.0
    %5035 = vmatpush1.xpose.msra.mxu0 0.0
    %5036 = vmatprep.subr.mxu0 0.0
    %5037 = vmatpush1.xpose.msra.mxu0 0.0
    %5038 = vmatprep.subr.mxu0 0.0
    %5039 = vmatpush1.xpose.msra.mxu0 0.0
    %5040 = vmatprep.subr.mxu0 0.0
    %5041 = vmatpush1.xpose.msra.mxu0 %v5008
    %5042 = vmatprep.subr.mxu0 0.0
    %5043 = vmatpush2.xpose.msra.mxu0 0.0
    %5044 = vmatprep.subr.mxu0 0.0
    %5045 = vmatpush2.xpose.msra.mxu0 0.0
    %5046 = vmatprep.subr.mxu0 0.0
    %5047 = vmatpush2.xpose.msra.mxu0 0.0
    %5048 = vmatprep.subr.mxu0 0.0
    %5049 = vmatpush2.xpose.msra.mxu0 0.0
    %5050 = vmatprep.subr.mxu0 0.0
    %5051 = vmatpush2.xpose.msra.mxu0 0.0
    %5052 = vmatprep.subr.mxu0 0.0
    %5053 = vmatpush2.xpose.msra.mxu0 0.0
    %5054 = vmatprep.subr.mxu0 0.0
    %5055 = vmatpush2.xpose.msra.mxu0 0.0
    %5056 = vmatprep.subr.mxu0 0.0
    %5057 = vmatpush2.xpose.msra.mxu0 0.0
    %5058 = vmatprep.subr.mxu0 0.0
    %5059 = vmatpush2.xpose.msra.mxu0 0.0
    %5060 = vmatprep.subr.mxu0 0.0
    %5061 = vmatpush2.xpose.msra.mxu0 0.0
    %5062 = vmatprep.subr.mxu0 0.0
    %5063 = vmatpush2.xpose.msra.mxu0 0.0
    %5064 = vmatprep.subr.mxu0 0.0
    %5065 = vmatpush2.xpose.msra.mxu0 0.0
    %5066 = vmatprep.subr.mxu0 0.0
    %5067 = vmatpush2.xpose.msra.mxu0 0.0
    %5068 = vmatprep.subr.mxu0 0.0
    %5069 = vmatpush2.xpose.msra.mxu0 0.0
    %5070 = vmatprep.subr.mxu0 0.0
    %5071 = vmatpush2.xpose.msra.mxu0 0.0
    %5072 = vmatprep.subr.mxu0 0.0
    %5073 = vmatpush2.xpose.msra.mxu0 0.0
    %5074 = vmatprep.mubr.f32.mxu0 0.0
    %5075 = vmatmul.mubr.f32.gmra.mxu0 %v5008
    %v5076 = vpop.f32.mrf.mxu0
    %v5077 = vadd.f32 0.0, %v5076
    %v5078 = vpop.f32.mrf.mxu0
    %5079 = vdwg.mxu0
    %v5081 = vsel %vm503, %v4540, 0
    %5083 = vmatprep.subr.mxu0 0.0
    %5084 = vmatpush1.xpose.msra.mxu0 0.0
    %5085 = vmatprep.subr.mxu0 0.0
    %5086 = vmatpush1.xpose.msra.mxu0 0.0
    %5087 = vmatprep.subr.mxu0 0.0
    %5088 = vmatpush1.xpose.msra.mxu0 0.0
    %5089 = vmatprep.subr.mxu0 0.0
    %5090 = vmatpush1.xpose.msra.mxu0 0.0
    %5091 = vmatprep.subr.mxu0 0.0
    %5092 = vmatpush1.xpose.msra.mxu0 0.0
    %5093 = vmatprep.subr.mxu0 0.0
    %5094 = vmatpush1.xpose.msra.mxu0 0.0
    %5095 = vmatprep.subr.mxu0 0.0
    %5096 = vmatpush1.xpose.msra.mxu0 0.0
    %5097 = vmatprep.subr.mxu0 0.0
    %5098 = vmatpush1.xpose.msra.mxu0 0.0
    %5099 = vmatprep.subr.mxu0 0.0
    %5100 = vmatpush1.xpose.msra.mxu0 0.0
    %5101 = vmatprep.subr.mxu0 0.0
    %5102 = vmatpush1.xpose.msra.mxu0 0.0
    %5103 = vmatprep.subr.mxu0 0.0
    %5104 = vmatpush1.xpose.msra.mxu0 0.0
    %5105 = vmatprep.subr.mxu0 0.0
    %5106 = vmatpush1.xpose.msra.mxu0 0.0
    %5107 = vmatprep.subr.mxu0 0.0
    %5108 = vmatpush1.xpose.msra.mxu0 0.0
    %5109 = vmatprep.subr.mxu0 0.0
    %5110 = vmatpush1.xpose.msra.mxu0 0.0
    %5111 = vmatprep.subr.mxu0 0.0
    %5112 = vmatpush1.xpose.msra.mxu0 0.0
    %5113 = vmatprep.subr.mxu0 0.0
    %5114 = vmatpush1.xpose.msra.mxu0 %v5081
    %5115 = vmatprep.subr.mxu0 0.0
    %5116 = vmatpush2.xpose.msra.mxu0 0.0
    %5117 = vmatprep.subr.mxu0 0.0
    %5118 = vmatpush2.xpose.msra.mxu0 0.0
    %5119 = vmatprep.subr.mxu0 0.0
    %5120 = vmatpush2.xpose.msra.mxu0 0.0
    %5121 = vmatprep.subr.mxu0 0.0
    %5122 = vmatpush2.xpose.msra.mxu0 0.0
    %5123 = vmatprep.subr.mxu0 0.0
    %5124 = vmatpush2.xpose.msra.mxu0 0.0
    %5125 = vmatprep.subr.mxu0 0.0
    %5126 = vmatpush2.xpose.msra.mxu0 0.0
    %5127 = vmatprep.subr.mxu0 0.0
    %5128 = vmatpush2.xpose.msra.mxu0 0.0
    %5129 = vmatprep.subr.mxu0 0.0
    %5130 = vmatpush2.xpose.msra.mxu0 0.0
    %5131 = vmatprep.subr.mxu0 0.0
    %5132 = vmatpush2.xpose.msra.mxu0 0.0
    %5133 = vmatprep.subr.mxu0 0.0
    %5134 = vmatpush2.xpose.msra.mxu0 0.0
    %5135 = vmatprep.subr.mxu0 0.0
    %5136 = vmatpush2.xpose.msra.mxu0 0.0
    %5137 = vmatprep.subr.mxu0 0.0
    %5138 = vmatpush2.xpose.msra.mxu0 0.0
    %5139 = vmatprep.subr.mxu0 0.0
    %5140 = vmatpush2.xpose.msra.mxu0 0.0
    %5141 = vmatprep.subr.mxu0 0.0
    %5142 = vmatpush2.xpose.msra.mxu0 0.0
    %5143 = vmatprep.subr.mxu0 0.0
    %5144 = vmatpush2.xpose.msra.mxu0 0.0
    %5145 = vmatprep.subr.mxu0 0.0
    %5146 = vmatpush2.xpose.msra.mxu0 0.0
    %5147 = vmatprep.mubr.f32.mxu0 0.0
    %5148 = vmatmul.mubr.f32.gmra.mxu0 %v5081
    %v5149 = vpop.f32.mrf.mxu0
    %v5150 = vadd.f32 0.0, %v5149
    %v5151 = vpop.f32.mrf.mxu0
    %5152 = vdwg.mxu0
    %v5153 = vmul.f32 %v5077, 100.0
    %v5154 = vmul.f32 %v5150, 100.0
    %v5155 = vadd.f32 %v5153, %v155
    %v5156 = vadd.f32 %v5154, %v155
    %v5157 = vrcp.pop %v4555
    %v5158 = vrcp.pop %v4556
    %v5159 = vrcp.pop %v4705
    %v5160 = vrcp.pop %v4706
    %v5161 = vrcp.pop %v4855
    %v5162 = vrcp.pop %v4856
    %v5163 = vrcp.pop %v5005
    %v5164 = vrcp.pop %v5006
    %v5165 = vrcp.pop %v5155
    %v5166 = vrcp.pop %v5156
    %v5167 = vmul.f32 %v4555, %v5157
    %v5168 = vmul.f32 %v4556, %v5158
    %v5169 = vmul.f32 %v4705, %v5159
    %v5170 = vmul.f32 %v4706, %v5160
    %v5171 = vmul.f32 %v4855, %v5161
    %v5172 = vmul.f32 %v4856, %v5162
    %v5173 = vmul.f32 %v5005, %v5163
    %v5174 = vmul.f32 %v5006, %v5164
    %v5175 = vmul.f32 %v5155, %v5165
    %v5176 = vmul.f32 %v5156, %v5166
    %v5177 = vsub.f32 2.0, %v5167
    %v5178 = vsub.f32 2.0, %v5168
    %v5179 = vsub.f32 2.0, %v5169
    %v5180 = vsub.f32 2.0, %v5170
    %v5181 = vsub.f32 2.0, %v5171
    %v5182 = vsub.f32 2.0, %v5172
    %v5183 = vsub.f32 2.0, %v5173
    %v5184 = vsub.f32 2.0, %v5174
    %v5185 = vsub.f32 2.0, %v5175
    %v5186 = vsub.f32 2.0, %v5176
    %v5187 = vmul.f32 %v5157, %v5177
    %v5188 = vmul.f32 %v5158, %v5178
    %v5189 = vmul.f32 %v5159, %v5179
    %v5190 = vmul.f32 %v5160, %v5180
    %v5191 = vmul.f32 %v5161, %v5181
    %v5192 = vmul.f32 %v5162, %v5182
    %v5193 = vmul.f32 %v5163, %v5183
    %v5194 = vmul.f32 %v5164, %v5184
    %v5195 = vmul.f32 %v5165, %v5185
    %v5196 = vmul.f32 %v5166, %v5186
    %5198 = vset.pattern.permute.xlu0 0
    %5199 = vperm.xlu0 %5198, %v5187
    %v5200 = vpop.permute.xlu0 %5199
    %5203 = vset.pattern.permute.xlu0 0
    %5204 = vperm.xlu0 %5203, %v5188
    %v5205 = vpop.permute.xlu0 %5204
    %5208 = vset.pattern.permute.xlu0 0
    %5209 = vperm.xlu0 %5208, %v5189
    %v5210 = vpop.permute.xlu0 %5209
    %5213 = vset.pattern.permute.xlu0 0
    %5214 = vperm.xlu0 %5213, %v5190
    %v5215 = vpop.permute.xlu0 %5214
    %5218 = vset.pattern.permute.xlu0 0
    %5219 = vperm.xlu0 %5218, %v5191
    %v5220 = vpop.permute.xlu0 %5219
    %5223 = vset.pattern.permute.xlu0 0
    %5224 = vperm.xlu0 %5223, %v5192
    %v5225 = vpop.permute.xlu0 %5224
    %5228 = vset.pattern.permute.xlu0 0
    %5229 = vperm.xlu0 %5228, %v5193
    %v5230 = vpop.permute.xlu0 %5229
    %5233 = vset.pattern.permute.xlu0 0
    %5234 = vperm.xlu0 %5233, %v5194
    %v5235 = vpop.permute.xlu0 %5234
    %5238 = vset.pattern.permute.xlu0 0
    %5239 = vperm.xlu0 %5238, %v5195
    %v5240 = vpop.permute.xlu0 %5239
    %5243 = vset.pattern.permute.xlu0 0
    %5244 = vperm.xlu0 %5243, %v5196
    %v5245 = vpop.permute.xlu0 %5244
    %v5247 = vmul.f32 %v4555, %v5200
    %v5248 = vmul.f32 %v4556, %v5205
    %v5249 = vmul.f32 %v4705, %v5210
    %v5250 = vmul.f32 %v4706, %v5215
    %v5251 = vmul.f32 %v4855, %v5220
    %v5252 = vmul.f32 %v4856, %v5225
    %v5253 = vmul.f32 %v5005, %v5230
    %v5254 = vmul.f32 %v5006, %v5235
    %v5255 = vmul.f32 %v5155, %v5240
    %v5256 = vmul.f32 %v5156, %v5245
    %v5257 = vmul.f32 %v155, %v5200
    %v5258 = vmul.f32 %v155, %v5205
    %v5259 = vmul.f32 %v155, %v5210
    %v5260 = vmul.f32 %v155, %v5215
    %v5261 = vmul.f32 %v155, %v5220
    %v5262 = vmul.f32 %v155, %v5225
    %v5263 = vmul.f32 %v155, %v5230
    %v5264 = vmul.f32 %v155, %v5235
    %v5265 = vmul.f32 %v155, %v5240
    %v5266 = vmul.f32 %v155, %v5245
    %v5267 = vsub.f32 %v4555, %v155
    %v5268 = vsub.f32 %v4556, %v155
    %v5269 = vsub.f32 %v4705, %v155
    %v5270 = vsub.f32 %v4706, %v155
    %v5271 = vsub.f32 %v4855, %v155
    %v5272 = vsub.f32 %v4856, %v155
    %v5273 = vsub.f32 %v5005, %v155
    %v5274 = vsub.f32 %v5006, %v155
    %v5275 = vsub.f32 %v5155, %v155
    %v5276 = vsub.f32 %v5156, %v155
    %5278 = vset.pattern.permute.xlu0 0
    %5279 = vperm.xlu0 %5278, %v5267
    %v5280 = vpop.permute.xlu0 %5279
    %5283 = vset.pattern.permute.xlu0 0
    %5284 = vperm.xlu0 %5283, %v5268
    %v5285 = vpop.permute.xlu0 %5284
    %5288 = vset.pattern.permute.xlu0 0
    %5289 = vperm.xlu0 %5288, %v5269
    %v5290 = vpop.permute.xlu0 %5289
    %5293 = vset.pattern.permute.xlu0 0
    %5294 = vperm.xlu0 %5293, %v5270
    %v5295 = vpop.permute.xlu0 %5294
    %5298 = vset.pattern.permute.xlu0 0
    %5299 = vperm.xlu0 %5298, %v5271
    %v5300 = vpop.permute.xlu0 %5299
    %5303 = vset.pattern.permute.xlu0 0
    %5304 = vperm.xlu0 %5303, %v5272
    %v5305 = vpop.permute.xlu0 %5304
    %5308 = vset.pattern.permute.xlu0 0
    %5309 = vperm.xlu0 %5308, %v5273
    %v5310 = vpop.permute.xlu0 %5309
    %5313 = vset.pattern.permute.xlu0 0
    %5314 = vperm.xlu0 %5313, %v5274
    %v5315 = vpop.permute.xlu0 %5314
    %5318 = vset.pattern.permute.xlu0 0
    %5319 = vperm.xlu0 %5318, %v5275
    %v5320 = vpop.permute.xlu0 %5319
    %5323 = vset.pattern.permute.xlu0 0
    %5324 = vperm.xlu0 %5323, %v5276
    %v5325 = vpop.permute.xlu0 %5324
    %v5327 = vlaneseq
    %v5328 = vshrl.u32 %v5327, 7
    %v5329 = vsub.s32 0, %v5328
    %v5330 = vrot.slane %v5257, %v5329
    %v5331 = vlaneseq
    %v5332 = vshrl.u32 %v5331, 7
    %v5333 = vsub.s32 0, %v5332
    %v5334 = vrot.slane %v5258, %v5333
    %v5335 = vlaneseq
    %v5336 = vshrl.u32 %v5335, 7
    %v5337 = vsub.s32 0, %v5336
    %v5338 = vrot.slane %v5259, %v5337
    %v5339 = vlaneseq
    %v5340 = vshrl.u32 %v5339, 7
    %v5341 = vsub.s32 0, %v5340
    %v5342 = vrot.slane %v5260, %v5341
    %v5343 = vlaneseq
    %v5344 = vshrl.u32 %v5343, 7
    %v5345 = vsub.s32 0, %v5344
    %v5346 = vrot.slane %v5261, %v5345
    %v5347 = vlaneseq
    %v5348 = vshrl.u32 %v5347, 7
    %v5349 = vsub.s32 0, %v5348
    %v5350 = vrot.slane %v5262, %v5349
    %v5351 = vlaneseq
    %v5352 = vshrl.u32 %v5351, 7
    %v5353 = vsub.s32 0, %v5352
    %v5354 = vrot.slane %v5263, %v5353
    %v5355 = vlaneseq
    %v5356 = vshrl.u32 %v5355, 7
    %v5357 = vsub.s32 0, %v5356
    %v5358 = vrot.slane %v5264, %v5357
    %v5359 = vlaneseq
    %v5360 = vshrl.u32 %v5359, 7
    %v5361 = vsub.s32 0, %v5360
    %v5362 = vrot.slane %v5265, %v5361
    %v5363 = vlaneseq
    %v5364 = vshrl.u32 %v5363, 7
    %v5365 = vsub.s32 0, %v5364
    %v5366 = vrot.slane %v5266, %v5365
    %v5367 = vmul.f32 %v5280, %v5330
    %v5368 = vmul.f32 %v5285, %v5334
    %v5369 = vmul.f32 %v5290, %v5338
    %v5370 = vmul.f32 %v5295, %v5342
    %v5371 = vmul.f32 %v5300, %v5346
    %v5372 = vmul.f32 %v5305, %v5350
    %v5373 = vmul.f32 %v5310, %v5354
    %v5374 = vmul.f32 %v5315, %v5358
    %v5375 = vmul.f32 %v5320, %v5362
    %v5376 = vmul.f32 %v5325, %v5366
    %v5377 = vsub.f32 %v155, %v5367
    %v5378 = vsub.f32 %v155, %v5368
    %v5379 = vsub.f32 %v155, %v5369
    %v5380 = vsub.f32 %v155, %v5370
    %v5381 = vsub.f32 %v155, %v5371
    %v5382 = vsub.f32 %v155, %v5372
    %v5383 = vsub.f32 %v155, %v5373
    %v5384 = vsub.f32 %v155, %v5374
    %v5385 = vsub.f32 %v155, %v5375
    %v5386 = vsub.f32 %v155, %v5376
    %v5387 = vlaneseq
    %v5388 = vshrl.u32 %v5387, 7
    %v5389 = vsub.s32 0, %v5388
    %v5390 = vrot.slane %v5247, %v5389
    %v5391 = vlaneseq
    %v5392 = vshrl.u32 %v5391, 7
    %v5393 = vsub.s32 0, %v5392
    %v5394 = vrot.slane %v5248, %v5393
    %v5395 = vlaneseq
    %v5396 = vshrl.u32 %v5395, 7
    %v5397 = vsub.s32 0, %v5396
    %v5398 = vrot.slane %v5249, %v5397
    %v5399 = vlaneseq
    %v5400 = vshrl.u32 %v5399, 7
    %v5401 = vsub.s32 0, %v5400
    %v5402 = vrot.slane %v5250, %v5401
    %v5403 = vlaneseq
    %v5404 = vshrl.u32 %v5403, 7
    %v5405 = vsub.s32 0, %v5404
    %v5406 = vrot.slane %v5251, %v5405
    %v5407 = vlaneseq
    %v5408 = vshrl.u32 %v5407, 7
    %v5409 = vsub.s32 0, %v5408
    %v5410 = vrot.slane %v5252, %v5409
    %v5411 = vlaneseq
    %v5412 = vshrl.u32 %v5411, 7
    %v5413 = vsub.s32 0, %v5412
    %v5414 = vrot.slane %v5253, %v5413
    %v5415 = vlaneseq
    %v5416 = vshrl.u32 %v5415, 7
    %v5417 = vsub.s32 0, %v5416
    %v5418 = vrot.slane %v5254, %v5417
    %v5419 = vlaneseq
    %v5420 = vshrl.u32 %v5419, 7
    %v5421 = vsub.s32 0, %v5420
    %v5422 = vrot.slane %v5255, %v5421
    %v5423 = vlaneseq
    %v5424 = vshrl.u32 %v5423, 7
    %v5425 = vsub.s32 0, %v5424
    %v5426 = vrot.slane %v5256, %v5425
    %v5427 = vmul.f32 %v5280, %v5390
    %v5428 = vmul.f32 %v5285, %v5394
    %v5429 = vmul.f32 %v5290, %v5398
    %v5430 = vmul.f32 %v5295, %v5402
    %v5431 = vmul.f32 %v5300, %v5406
    %v5432 = vmul.f32 %v5305, %v5410
    %v5433 = vmul.f32 %v5310, %v5414
    %v5434 = vmul.f32 %v5315, %v5418
    %v5435 = vmul.f32 %v5320, %v5422
    %v5436 = vmul.f32 %v5325, %v5426
    %v5437 = vsub.f32 %v4555, %v5427
    %v5438 = vsub.f32 %v4556, %v5428
    %v5439 = vsub.f32 %v4705, %v5429
    %v5440 = vsub.f32 %v4706, %v5430
    %v5441 = vsub.f32 %v4855, %v5431
    %v5442 = vsub.f32 %v4856, %v5432
    %v5443 = vsub.f32 %v5005, %v5433
    %v5444 = vsub.f32 %v5006, %v5434
    %v5445 = vsub.f32 %v5155, %v5435
    %v5446 = vsub.f32 %v5156, %v5436
    %v5447 = vrcp.pop %v5437
    %v5448 = vrcp.pop %v5438
    %v5449 = vrcp.pop %v5439
    %v5450 = vrcp.pop %v5440
    %v5451 = vrcp.pop %v5441
    %v5452 = vrcp.pop %v5442
    %v5453 = vrcp.pop %v5443
    %v5454 = vrcp.pop %v5444
    %v5455 = vrcp.pop %v5445
    %v5456 = vrcp.pop %v5446
    %v5457 = vmul.f32 %v5437, %v5447
    %v5458 = vmul.f32 %v5438, %v5448
    %v5459 = vmul.f32 %v5439, %v5449
    %v5460 = vmul.f32 %v5440, %v5450
    %v5461 = vmul.f32 %v5441, %v5451
    %v5462 = vmul.f32 %v5442, %v5452
    %v5463 = vmul.f32 %v5443, %v5453
    %v5464 = vmul.f32 %v5444, %v5454
    %v5465 = vmul.f32 %v5445, %v5455
    %v5466 = vmul.f32 %v5446, %v5456
    %v5467 = vsub.f32 2.0, %v5457
    %v5468 = vsub.f32 2.0, %v5458
    %v5469 = vsub.f32 2.0, %v5459
    %v5470 = vsub.f32 2.0, %v5460
    %v5471 = vsub.f32 2.0, %v5461
    %v5472 = vsub.f32 2.0, %v5462
    %v5473 = vsub.f32 2.0, %v5463
    %v5474 = vsub.f32 2.0, %v5464
    %v5475 = vsub.f32 2.0, %v5465
    %v5476 = vsub.f32 2.0, %v5466
    %v5477 = vmul.f32 %v5447, %v5467
    %v5478 = vmul.f32 %v5448, %v5468
    %v5479 = vmul.f32 %v5449, %v5469
    %v5480 = vmul.f32 %v5450, %v5470
    %v5481 = vmul.f32 %v5451, %v5471
    %v5482 = vmul.f32 %v5452, %v5472
    %v5483 = vmul.f32 %v5453, %v5473
    %v5484 = vmul.f32 %v5454, %v5474
    %v5485 = vmul.f32 %v5455, %v5475
    %v5486 = vmul.f32 %v5456, %v5476
    %5488 = vset.pattern.permute.xlu0 1
    %5489 = vperm.xlu0 %5488, %v5477
    %v5490 = vpop.permute.xlu0 %5489
    %5493 = vset.pattern.permute.xlu0 1
    %5494 = vperm.xlu0 %5493, %v5478
    %v5495 = vpop.permute.xlu0 %5494
    %5498 = vset.pattern.permute.xlu0 1
    %5499 = vperm.xlu0 %5498, %v5479
    %v5500 = vpop.permute.xlu0 %5499
    %5503 = vset.pattern.permute.xlu0 1
    %5504 = vperm.xlu0 %5503, %v5480
    %v5505 = vpop.permute.xlu0 %5504
    %5508 = vset.pattern.permute.xlu0 1
    %5509 = vperm.xlu0 %5508, %v5481
    %v5510 = vpop.permute.xlu0 %5509
    %5513 = vset.pattern.permute.xlu0 1
    %5514 = vperm.xlu0 %5513, %v5482
    %v5515 = vpop.permute.xlu0 %5514
    %5518 = vset.pattern.permute.xlu0 1
    %5519 = vperm.xlu0 %5518, %v5483
    %v5520 = vpop.permute.xlu0 %5519
    %5523 = vset.pattern.permute.xlu0 1
    %5524 = vperm.xlu0 %5523, %v5484
    %v5525 = vpop.permute.xlu0 %5524
    %5528 = vset.pattern.permute.xlu0 1
    %5529 = vperm.xlu0 %5528, %v5485
    %v5530 = vpop.permute.xlu0 %5529
    %5533 = vset.pattern.permute.xlu0 1
    %5534 = vperm.xlu0 %5533, %v5486
    %v5535 = vpop.permute.xlu0 %5534
    %v5537 = vmul.f32 %v5437, %v5490
    %v5538 = vmul.f32 %v5438, %v5495
    %v5539 = vmul.f32 %v5439, %v5500
    %v5540 = vmul.f32 %v5440, %v5505
    %v5541 = vmul.f32 %v5441, %v5510
    %v5542 = vmul.f32 %v5442, %v5515
    %v5543 = vmul.f32 %v5443, %v5520
    %v5544 = vmul.f32 %v5444, %v5525
    %v5545 = vmul.f32 %v5445, %v5530
    %v5546 = vmul.f32 %v5446, %v5535
    %v5547 = vmul.f32 %v5377, %v5490
    %v5548 = vmul.f32 %v5378, %v5495
    %v5549 = vmul.f32 %v5379, %v5500
    %v5550 = vmul.f32 %v5380, %v5505
    %v5551 = vmul.f32 %v5381, %v5510
    %v5552 = vmul.f32 %v5382, %v5515
    %v5553 = vmul.f32 %v5383, %v5520
    %v5554 = vmul.f32 %v5384, %v5525
    %v5555 = vmul.f32 %v5385, %v5530
    %v5556 = vmul.f32 %v5386, %v5535
    %v5557 = vsub.f32 %v5437, %v155
    %v5558 = vsub.f32 %v5438, %v155
    %v5559 = vsub.f32 %v5439, %v155
    %v5560 = vsub.f32 %v5440, %v155
    %v5561 = vsub.f32 %v5441, %v155
    %v5562 = vsub.f32 %v5442, %v155
    %v5563 = vsub.f32 %v5443, %v155
    %v5564 = vsub.f32 %v5444, %v155
    %v5565 = vsub.f32 %v5445, %v155
    %v5566 = vsub.f32 %v5446, %v155
    %5568 = vset.pattern.permute.xlu0 1
    %5569 = vperm.xlu0 %5568, %v5557
    %v5570 = vpop.permute.xlu0 %5569
    %5573 = vset.pattern.permute.xlu0 1
    %5574 = vperm.xlu0 %5573, %v5558
    %v5575 = vpop.permute.xlu0 %5574
    %5578 = vset.pattern.permute.xlu0 1
    %5579 = vperm.xlu0 %5578, %v5559
    %v5580 = vpop.permute.xlu0 %5579
    %5583 = vset.pattern.permute.xlu0 1
    %5584 = vperm.xlu0 %5583, %v5560
    %v5585 = vpop.permute.xlu0 %5584
    %5588 = vset.pattern.permute.xlu0 1
    %5589 = vperm.xlu0 %5588, %v5561
    %v5590 = vpop.permute.xlu0 %5589
    %5593 = vset.pattern.permute.xlu0 1
    %5594 = vperm.xlu0 %5593, %v5562
    %v5595 = vpop.permute.xlu0 %5594
    %5598 = vset.pattern.permute.xlu0 1
    %5599 = vperm.xlu0 %5598, %v5563
    %v5600 = vpop.permute.xlu0 %5599
    %5603 = vset.pattern.permute.xlu0 1
    %5604 = vperm.xlu0 %5603, %v5564
    %v5605 = vpop.permute.xlu0 %5604
    %5608 = vset.pattern.permute.xlu0 1
    %5609 = vperm.xlu0 %5608, %v5565
    %v5610 = vpop.permute.xlu0 %5609
    %5613 = vset.pattern.permute.xlu0 1
    %5614 = vperm.xlu0 %5613, %v5566
    %v5615 = vpop.permute.xlu0 %5614
    %v5617 = vlaneseq
    %v5618 = vshrl.u32 %v5617, 7
    %v5619 = vsub.s32 1, %v5618
    %v5620 = vrot.slane %v5547, %v5619
    %v5621 = vlaneseq
    %v5622 = vshrl.u32 %v5621, 7
    %v5623 = vsub.s32 1, %v5622
    %v5624 = vrot.slane %v5548, %v5623
    %v5625 = vlaneseq
    %v5626 = vshrl.u32 %v5625, 7
    %v5627 = vsub.s32 1, %v5626
    %v5628 = vrot.slane %v5549, %v5627
    %v5629 = vlaneseq
    %v5630 = vshrl.u32 %v5629, 7
    %v5631 = vsub.s32 1, %v5630
    %v5632 = vrot.slane %v5550, %v5631
    %v5633 = vlaneseq
    %v5634 = vshrl.u32 %v5633, 7
    %v5635 = vsub.s32 1, %v5634
    %v5636 = vrot.slane %v5551, %v5635
    %v5637 = vlaneseq
    %v5638 = vshrl.u32 %v5637, 7
    %v5639 = vsub.s32 1, %v5638
    %v5640 = vrot.slane %v5552, %v5639
    %v5641 = vlaneseq
    %v5642 = vshrl.u32 %v5641, 7
    %v5643 = vsub.s32 1, %v5642
    %v5644 = vrot.slane %v5553, %v5643
    %v5645 = vlaneseq
    %v5646 = vshrl.u32 %v5645, 7
    %v5647 = vsub.s32 1, %v5646
    %v5648 = vrot.slane %v5554, %v5647
    %v5649 = vlaneseq
    %v5650 = vshrl.u32 %v5649, 7
    %v5651 = vsub.s32 1, %v5650
    %v5652 = vrot.slane %v5555, %v5651
    %v5653 = vlaneseq
    %v5654 = vshrl.u32 %v5653, 7
    %v5655 = vsub.s32 1, %v5654
    %v5656 = vrot.slane %v5556, %v5655
    %v5657 = vmul.f32 %v5570, %v5620
    %v5658 = vmul.f32 %v5575, %v5624
    %v5659 = vmul.f32 %v5580, %v5628
    %v5660 = vmul.f32 %v5585, %v5632
    %v5661 = vmul.f32 %v5590, %v5636
    %v5662 = vmul.f32 %v5595, %v5640
    %v5663 = vmul.f32 %v5600, %v5644
    %v5664 = vmul.f32 %v5605, %v5648
    %v5665 = vmul.f32 %v5610, %v5652
    %v5666 = vmul.f32 %v5615, %v5656
    %v5667 = vsub.f32 %v5377, %v5657
    %v5668 = vsub.f32 %v5378, %v5658
    %v5669 = vsub.f32 %v5379, %v5659
    %v5670 = vsub.f32 %v5380, %v5660
    %v5671 = vsub.f32 %v5381, %v5661
    %v5672 = vsub.f32 %v5382, %v5662
    %v5673 = vsub.f32 %v5383, %v5663
    %v5674 = vsub.f32 %v5384, %v5664
    %v5675 = vsub.f32 %v5385, %v5665
    %v5676 = vsub.f32 %v5386, %v5666
    %v5677 = vlaneseq
    %v5678 = vshrl.u32 %v5677, 7
    %v5679 = vsub.s32 1, %v5678
    %v5680 = vrot.slane %v5537, %v5679
    %v5681 = vlaneseq
    %v5682 = vshrl.u32 %v5681, 7
    %v5683 = vsub.s32 1, %v5682
    %v5684 = vrot.slane %v5538, %v5683
    %v5685 = vlaneseq
    %v5686 = vshrl.u32 %v5685, 7
    %v5687 = vsub.s32 1, %v5686
    %v5688 = vrot.slane %v5539, %v5687
    %v5689 = vlaneseq
    %v5690 = vshrl.u32 %v5689, 7
    %v5691 = vsub.s32 1, %v5690
    %v5692 = vrot.slane %v5540, %v5691
    %v5693 = vlaneseq
    %v5694 = vshrl.u32 %v5693, 7
    %v5695 = vsub.s32 1, %v5694
    %v5696 = vrot.slane %v5541, %v5695
    %v5697 = vlaneseq
    %v5698 = vshrl.u32 %v5697, 7
    %v5699 = vsub.s32 1, %v5698
    %v5700 = vrot.slane %v5542, %v5699
    %v5701 = vlaneseq
    %v5702 = vshrl.u32 %v5701, 7
    %v5703 = vsub.s32 1, %v5702
    %v5704 = vrot.slane %v5543, %v5703
    %v5705 = vlaneseq
    %v5706 = vshrl.u32 %v5705, 7
    %v5707 = vsub.s32 1, %v5706
    %v5708 = vrot.slane %v5544, %v5707
    %v5709 = vlaneseq
    %v5710 = vshrl.u32 %v5709, 7
    %v5711 = vsub.s32 1, %v5710
    %v5712 = vrot.slane %v5545, %v5711
    %v5713 = vlaneseq
    %v5714 = vshrl.u32 %v5713, 7
    %v5715 = vsub.s32 1, %v5714
    %v5716 = vrot.slane %v5546, %v5715
    %v5717 = vmul.f32 %v5570, %v5680
    %v5718 = vmul.f32 %v5575, %v5684
    %v5719 = vmul.f32 %v5580, %v5688
    %v5720 = vmul.f32 %v5585, %v5692
    %v5721 = vmul.f32 %v5590, %v5696
    %v5722 = vmul.f32 %v5595, %v5700
    %v5723 = vmul.f32 %v5600, %v5704
    %v5724 = vmul.f32 %v5605, %v5708
    %v5725 = vmul.f32 %v5610, %v5712
    %v5726 = vmul.f32 %v5615, %v5716
    %v5727 = vsub.f32 %v5437, %v5717
    %v5728 = vsub.f32 %v5438, %v5718
    %v5729 = vsub.f32 %v5439, %v5719
    %v5730 = vsub.f32 %v5440, %v5720
    %v5731 = vsub.f32 %v5441, %v5721
    %v5732 = vsub.f32 %v5442, %v5722
    %v5733 = vsub.f32 %v5443, %v5723
    %v5734 = vsub.f32 %v5444, %v5724
    %v5735 = vsub.f32 %v5445, %v5725
    %v5736 = vsub.f32 %v5446, %v5726
    %v5737 = vrcp.pop %v5727
    %v5738 = vrcp.pop %v5728
    %v5739 = vrcp.pop %v5729
    %v5740 = vrcp.pop %v5730
    %v5741 = vrcp.pop %v5731
    %v5742 = vrcp.pop %v5732
    %v5743 = vrcp.pop %v5733
    %v5744 = vrcp.pop %v5734
    %v5745 = vrcp.pop %v5735
    %v5746 = vrcp.pop %v5736
    %v5747 = vmul.f32 %v5727, %v5737
    %v5748 = vmul.f32 %v5728, %v5738
    %v5749 = vmul.f32 %v5729, %v5739
    %v5750 = vmul.f32 %v5730, %v5740
    %v5751 = vmul.f32 %v5731, %v5741
    %v5752 = vmul.f32 %v5732, %v5742
    %v5753 = vmul.f32 %v5733, %v5743
    %v5754 = vmul.f32 %v5734, %v5744
    %v5755 = vmul.f32 %v5735, %v5745
    %v5756 = vmul.f32 %v5736, %v5746
    %v5757 = vsub.f32 2.0, %v5747
    %v5758 = vsub.f32 2.0, %v5748
    %v5759 = vsub.f32 2.0, %v5749
    %v5760 = vsub.f32 2.0, %v5750
    %v5761 = vsub.f32 2.0, %v5751
    %v5762 = vsub.f32 2.0, %v5752
    %v5763 = vsub.f32 2.0, %v5753
    %v5764 = vsub.f32 2.0, %v5754
    %v5765 = vsub.f32 2.0, %v5755
    %v5766 = vsub.f32 2.0, %v5756
    %v5767 = vmul.f32 %v5737, %v5757
    %v5768 = vmul.f32 %v5738, %v5758
    %v5769 = vmul.f32 %v5739, %v5759
    %v5770 = vmul.f32 %v5740, %v5760
    %v5771 = vmul.f32 %v5741, %v5761
    %v5772 = vmul.f32 %v5742, %v5762
    %v5773 = vmul.f32 %v5743, %v5763
    %v5774 = vmul.f32 %v5744, %v5764
    %v5775 = vmul.f32 %v5745, %v5765
    %v5776 = vmul.f32 %v5746, %v5766
    %5778 = vset.pattern.permute.xlu0 2
    %5779 = vperm.xlu0 %5778, %v5767
    %v5780 = vpop.permute.xlu0 %5779
    %5783 = vset.pattern.permute.xlu0 2
    %5784 = vperm.xlu0 %5783, %v5768
    %v5785 = vpop.permute.xlu0 %5784
    %5788 = vset.pattern.permute.xlu0 2
    %5789 = vperm.xlu0 %5788, %v5769
    %v5790 = vpop.permute.xlu0 %5789
    %5793 = vset.pattern.permute.xlu0 2
    %5794 = vperm.xlu0 %5793, %v5770
    %v5795 = vpop.permute.xlu0 %5794
    %5798 = vset.pattern.permute.xlu0 2
    %5799 = vperm.xlu0 %5798, %v5771
    %v5800 = vpop.permute.xlu0 %5799
    %5803 = vset.pattern.permute.xlu0 2
    %5804 = vperm.xlu0 %5803, %v5772
    %v5805 = vpop.permute.xlu0 %5804
    %5808 = vset.pattern.permute.xlu0 2
    %5809 = vperm.xlu0 %5808, %v5773
    %v5810 = vpop.permute.xlu0 %5809
    %5813 = vset.pattern.permute.xlu0 2
    %5814 = vperm.xlu0 %5813, %v5774
    %v5815 = vpop.permute.xlu0 %5814
    %5818 = vset.pattern.permute.xlu0 2
    %5819 = vperm.xlu0 %5818, %v5775
    %v5820 = vpop.permute.xlu0 %5819
    %5823 = vset.pattern.permute.xlu0 2
    %5824 = vperm.xlu0 %5823, %v5776
    %v5825 = vpop.permute.xlu0 %5824
    %v5827 = vmul.f32 %v5727, %v5780
    %v5828 = vmul.f32 %v5728, %v5785
    %v5829 = vmul.f32 %v5729, %v5790
    %v5830 = vmul.f32 %v5730, %v5795
    %v5831 = vmul.f32 %v5731, %v5800
    %v5832 = vmul.f32 %v5732, %v5805
    %v5833 = vmul.f32 %v5733, %v5810
    %v5834 = vmul.f32 %v5734, %v5815
    %v5835 = vmul.f32 %v5735, %v5820
    %v5836 = vmul.f32 %v5736, %v5825
    %v5837 = vmul.f32 %v5667, %v5780
    %v5838 = vmul.f32 %v5668, %v5785
    %v5839 = vmul.f32 %v5669, %v5790
    %v5840 = vmul.f32 %v5670, %v5795
    %v5841 = vmul.f32 %v5671, %v5800
    %v5842 = vmul.f32 %v5672, %v5805
    %v5843 = vmul.f32 %v5673, %v5810
    %v5844 = vmul.f32 %v5674, %v5815
    %v5845 = vmul.f32 %v5675, %v5820
    %v5846 = vmul.f32 %v5676, %v5825
    %v5847 = vsub.f32 %v5727, %v155
    %v5848 = vsub.f32 %v5728, %v155
    %v5849 = vsub.f32 %v5729, %v155
    %v5850 = vsub.f32 %v5730, %v155
    %v5851 = vsub.f32 %v5731, %v155
    %v5852 = vsub.f32 %v5732, %v155
    %v5853 = vsub.f32 %v5733, %v155
    %v5854 = vsub.f32 %v5734, %v155
    %v5855 = vsub.f32 %v5735, %v155
    %v5856 = vsub.f32 %v5736, %v155
    %5858 = vset.pattern.permute.xlu0 2
    %5859 = vperm.xlu0 %5858, %v5847
    %v5860 = vpop.permute.xlu0 %5859
    %5863 = vset.pattern.permute.xlu0 2
    %5864 = vperm.xlu0 %5863, %v5848
    %v5865 = vpop.permute.xlu0 %5864
    %5868 = vset.pattern.permute.xlu0 2
    %5869 = vperm.xlu0 %5868, %v5849
    %v5870 = vpop.permute.xlu0 %5869
    %5873 = vset.pattern.permute.xlu0 2
    %5874 = vperm.xlu0 %5873, %v5850
    %v5875 = vpop.permute.xlu0 %5874
    %5878 = vset.pattern.permute.xlu0 2
    %5879 = vperm.xlu0 %5878, %v5851
    %v5880 = vpop.permute.xlu0 %5879
    %5883 = vset.pattern.permute.xlu0 2
    %5884 = vperm.xlu0 %5883, %v5852
    %v5885 = vpop.permute.xlu0 %5884
    %5888 = vset.pattern.permute.xlu0 2
    %5889 = vperm.xlu0 %5888, %v5853
    %v5890 = vpop.permute.xlu0 %5889
    %5893 = vset.pattern.permute.xlu0 2
    %5894 = vperm.xlu0 %5893, %v5854
    %v5895 = vpop.permute.xlu0 %5894
    %5898 = vset.pattern.permute.xlu0 2
    %5899 = vperm.xlu0 %5898, %v5855
    %v5900 = vpop.permute.xlu0 %5899
    %5903 = vset.pattern.permute.xlu0 2
    %5904 = vperm.xlu0 %5903, %v5856
    %v5905 = vpop.permute.xlu0 %5904
    %v5907 = vlaneseq
    %v5908 = vshrl.u32 %v5907, 7
    %v5909 = vsub.s32 2, %v5908
    %v5910 = vrot.slane %v5837, %v5909
    %v5911 = vlaneseq
    %v5912 = vshrl.u32 %v5911, 7
    %v5913 = vsub.s32 2, %v5912
    %v5914 = vrot.slane %v5838, %v5913
    %v5915 = vlaneseq
    %v5916 = vshrl.u32 %v5915, 7
    %v5917 = vsub.s32 2, %v5916
    %v5918 = vrot.slane %v5839, %v5917
    %v5919 = vlaneseq
    %v5920 = vshrl.u32 %v5919, 7
    %v5921 = vsub.s32 2, %v5920
    %v5922 = vrot.slane %v5840, %v5921
    %v5923 = vlaneseq
    %v5924 = vshrl.u32 %v5923, 7
    %v5925 = vsub.s32 2, %v5924
    %v5926 = vrot.slane %v5841, %v5925
    %v5927 = vlaneseq
    %v5928 = vshrl.u32 %v5927, 7
    %v5929 = vsub.s32 2, %v5928
    %v5930 = vrot.slane %v5842, %v5929
    %v5931 = vlaneseq
    %v5932 = vshrl.u32 %v5931, 7
    %v5933 = vsub.s32 2, %v5932
    %v5934 = vrot.slane %v5843, %v5933
    %v5935 = vlaneseq
    %v5936 = vshrl.u32 %v5935, 7
    %v5937 = vsub.s32 2, %v5936
    %v5938 = vrot.slane %v5844, %v5937
    %v5939 = vlaneseq
    %v5940 = vshrl.u32 %v5939, 7
    %v5941 = vsub.s32 2, %v5940
    %v5942 = vrot.slane %v5845, %v5941
    %v5943 = vlaneseq
    %v5944 = vshrl.u32 %v5943, 7
    %v5945 = vsub.s32 2, %v5944
    %v5946 = vrot.slane %v5846, %v5945
    %v5947 = vmul.f32 %v5860, %v5910
    %v5948 = vmul.f32 %v5865, %v5914
    %v5949 = vmul.f32 %v5870, %v5918
    %v5950 = vmul.f32 %v5875, %v5922
    %v5951 = vmul.f32 %v5880, %v5926
    %v5952 = vmul.f32 %v5885, %v5930
    %v5953 = vmul.f32 %v5890, %v5934
    %v5954 = vmul.f32 %v5895, %v5938
    %v5955 = vmul.f32 %v5900, %v5942
    %v5956 = vmul.f32 %v5905, %v5946
    %v5957 = vsub.f32 %v5667, %v5947
    %v5958 = vsub.f32 %v5668, %v5948
    %v5959 = vsub.f32 %v5669, %v5949
    %v5960 = vsub.f32 %v5670, %v5950
    %v5961 = vsub.f32 %v5671, %v5951
    %v5962 = vsub.f32 %v5672, %v5952
    %v5963 = vsub.f32 %v5673, %v5953
    %v5964 = vsub.f32 %v5674, %v5954
    %v5965 = vsub.f32 %v5675, %v5955
    %v5966 = vsub.f32 %v5676, %v5956
    %v5967 = vlaneseq
    %v5968 = vshrl.u32 %v5967, 7
    %v5969 = vsub.s32 2, %v5968
    %v5970 = vrot.slane %v5827, %v5969
    %v5971 = vlaneseq
    %v5972 = vshrl.u32 %v5971, 7
    %v5973 = vsub.s32 2, %v5972
    %v5974 = vrot.slane %v5828, %v5973
    %v5975 = vlaneseq
    %v5976 = vshrl.u32 %v5975, 7
    %v5977 = vsub.s32 2, %v5976
    %v5978 = vrot.slane %v5829, %v5977
    %v5979 = vlaneseq
    %v5980 = vshrl.u32 %v5979, 7
    %v5981 = vsub.s32 2, %v5980
    %v5982 = vrot.slane %v5830, %v5981
    %v5983 = vlaneseq
    %v5984 = vshrl.u32 %v5983, 7
    %v5985 = vsub.s32 2, %v5984
    %v5986 = vrot.slane %v5831, %v5985
    %v5987 = vlaneseq
    %v5988 = vshrl.u32 %v5987, 7
    %v5989 = vsub.s32 2, %v5988
    %v5990 = vrot.slane %v5832, %v5989
    %v5991 = vlaneseq
    %v5992 = vshrl.u32 %v5991, 7
    %v5993 = vsub.s32 2, %v5992
    %v5994 = vrot.slane %v5833, %v5993
    %v5995 = vlaneseq
    %v5996 = vshrl.u32 %v5995, 7
    %v5997 = vsub.s32 2, %v5996
    %v5998 = vrot.slane %v5834, %v5997
    %v5999 = vlaneseq
    %v6000 = vshrl.u32 %v5999, 7
    %v6001 = vsub.s32 2, %v6000
    %v6002 = vrot.slane %v5835, %v6001
    %v6003 = vlaneseq
    %v6004 = vshrl.u32 %v6003, 7
    %v6005 = vsub.s32 2, %v6004
    %v6006 = vrot.slane %v5836, %v6005
    %v6007 = vmul.f32 %v5860, %v5970
    %v6008 = vmul.f32 %v5865, %v5974
    %v6009 = vmul.f32 %v5870, %v5978
    %v6010 = vmul.f32 %v5875, %v5982
    %v6011 = vmul.f32 %v5880, %v5986
    %v6012 = vmul.f32 %v5885, %v5990
    %v6013 = vmul.f32 %v5890, %v5994
    %v6014 = vmul.f32 %v5895, %v5998
    %v6015 = vmul.f32 %v5900, %v6002
    %v6016 = vmul.f32 %v5905, %v6006
    %v6017 = vsub.f32 %v5727, %v6007
    %v6018 = vsub.f32 %v5728, %v6008
    %v6019 = vsub.f32 %v5729, %v6009
    %v6020 = vsub.f32 %v5730, %v6010
    %v6021 = vsub.f32 %v5731, %v6011
    %v6022 = vsub.f32 %v5732, %v6012
    %v6023 = vsub.f32 %v5733, %v6013
    %v6024 = vsub.f32 %v5734, %v6014
    %v6025 = vsub.f32 %v5735, %v6015
    %v6026 = vsub.f32 %v5736, %v6016
    %v6027 = vrcp.pop %v6017
    %v6028 = vrcp.pop %v6018
    %v6029 = vrcp.pop %v6019
    %v6030 = vrcp.pop %v6020
    %v6031 = vrcp.pop %v6021
    %v6032 = vrcp.pop %v6022
    %v6033 = vrcp.pop %v6023
    %v6034 = vrcp.pop %v6024
    %v6035 = vrcp.pop %v6025
    %v6036 = vrcp.pop %v6026
    %v6037 = vmul.f32 %v6017, %v6027
    %v6038 = vmul.f32 %v6018, %v6028
    %v6039 = vmul.f32 %v6019, %v6029
    %v6040 = vmul.f32 %v6020, %v6030
    %v6041 = vmul.f32 %v6021, %v6031
    %v6042 = vmul.f32 %v6022, %v6032
    %v6043 = vmul.f32 %v6023, %v6033
    %v6044 = vmul.f32 %v6024, %v6034
    %v6045 = vmul.f32 %v6025, %v6035
    %v6046 = vmul.f32 %v6026, %v6036
    %v6047 = vsub.f32 2.0, %v6037
    %v6048 = vsub.f32 2.0, %v6038
    %v6049 = vsub.f32 2.0, %v6039
    %v6050 = vsub.f32 2.0, %v6040
    %v6051 = vsub.f32 2.0, %v6041
    %v6052 = vsub.f32 2.0, %v6042
    %v6053 = vsub.f32 2.0, %v6043
    %v6054 = vsub.f32 2.0, %v6044
    %v6055 = vsub.f32 2.0, %v6045
    %v6056 = vsub.f32 2.0, %v6046
    %v6057 = vmul.f32 %v6027, %v6047
    %v6058 = vmul.f32 %v6028, %v6048
    %v6059 = vmul.f32 %v6029, %v6049
    %v6060 = vmul.f32 %v6030, %v6050
    %v6061 = vmul.f32 %v6031, %v6051
    %v6062 = vmul.f32 %v6032, %v6052
    %v6063 = vmul.f32 %v6033, %v6053
    %v6064 = vmul.f32 %v6034, %v6054
    %v6065 = vmul.f32 %v6035, %v6055
    %v6066 = vmul.f32 %v6036, %v6056
    %6068 = vset.pattern.permute.xlu0 3
    %6069 = vperm.xlu0 %6068, %v6057
    %v6070 = vpop.permute.xlu0 %6069
    %6073 = vset.pattern.permute.xlu0 3
    %6074 = vperm.xlu0 %6073, %v6058
    %v6075 = vpop.permute.xlu0 %6074
    %6078 = vset.pattern.permute.xlu0 3
    %6079 = vperm.xlu0 %6078, %v6059
    %v6080 = vpop.permute.xlu0 %6079
    %6083 = vset.pattern.permute.xlu0 3
    %6084 = vperm.xlu0 %6083, %v6060
    %v6085 = vpop.permute.xlu0 %6084
    %6088 = vset.pattern.permute.xlu0 3
    %6089 = vperm.xlu0 %6088, %v6061
    %v6090 = vpop.permute.xlu0 %6089
    %6093 = vset.pattern.permute.xlu0 3
    %6094 = vperm.xlu0 %6093, %v6062
    %v6095 = vpop.permute.xlu0 %6094
    %6098 = vset.pattern.permute.xlu0 3
    %6099 = vperm.xlu0 %6098, %v6063
    %v6100 = vpop.permute.xlu0 %6099
    %6103 = vset.pattern.permute.xlu0 3
    %6104 = vperm.xlu0 %6103, %v6064
    %v6105 = vpop.permute.xlu0 %6104
    %6108 = vset.pattern.permute.xlu0 3
    %6109 = vperm.xlu0 %6108, %v6065
    %v6110 = vpop.permute.xlu0 %6109
    %6113 = vset.pattern.permute.xlu0 3
    %6114 = vperm.xlu0 %6113, %v6066
    %v6115 = vpop.permute.xlu0 %6114
    %v6117 = vmul.f32 %v6017, %v6070
    %v6118 = vmul.f32 %v6018, %v6075
    %v6119 = vmul.f32 %v6019, %v6080
    %v6120 = vmul.f32 %v6020, %v6085
    %v6121 = vmul.f32 %v6021, %v6090
    %v6122 = vmul.f32 %v6022, %v6095
    %v6123 = vmul.f32 %v6023, %v6100
    %v6124 = vmul.f32 %v6024, %v6105
    %v6125 = vmul.f32 %v6025, %v6110
    %v6126 = vmul.f32 %v6026, %v6115
    %v6127 = vmul.f32 %v5957, %v6070
    %v6128 = vmul.f32 %v5958, %v6075
    %v6129 = vmul.f32 %v5959, %v6080
    %v6130 = vmul.f32 %v5960, %v6085
    %v6131 = vmul.f32 %v5961, %v6090
    %v6132 = vmul.f32 %v5962, %v6095
    %v6133 = vmul.f32 %v5963, %v6100
    %v6134 = vmul.f32 %v5964, %v6105
    %v6135 = vmul.f32 %v5965, %v6110
    %v6136 = vmul.f32 %v5966, %v6115
    %v6137 = vsub.f32 %v6017, %v155
    %v6138 = vsub.f32 %v6018, %v155
    %v6139 = vsub.f32 %v6019, %v155
    %v6140 = vsub.f32 %v6020, %v155
    %v6141 = vsub.f32 %v6021, %v155
    %v6142 = vsub.f32 %v6022, %v155
    %v6143 = vsub.f32 %v6023, %v155
    %v6144 = vsub.f32 %v6024, %v155
    %v6145 = vsub.f32 %v6025, %v155
    %v6146 = vsub.f32 %v6026, %v155
    %6148 = vset.pattern.permute.xlu0 3
    %6149 = vperm.xlu0 %6148, %v6137
    %v6150 = vpop.permute.xlu0 %6149
    %6153 = vset.pattern.permute.xlu0 3
    %6154 = vperm.xlu0 %6153, %v6138
    %v6155 = vpop.permute.xlu0 %6154
    %6158 = vset.pattern.permute.xlu0 3
    %6159 = vperm.xlu0 %6158, %v6139
    %v6160 = vpop.permute.xlu0 %6159
    %6163 = vset.pattern.permute.xlu0 3
    %6164 = vperm.xlu0 %6163, %v6140
    %v6165 = vpop.permute.xlu0 %6164
    %6168 = vset.pattern.permute.xlu0 3
    %6169 = vperm.xlu0 %6168, %v6141
    %v6170 = vpop.permute.xlu0 %6169
    %6173 = vset.pattern.permute.xlu0 3
    %6174 = vperm.xlu0 %6173, %v6142
    %v6175 = vpop.permute.xlu0 %6174
    %6178 = vset.pattern.permute.xlu0 3
    %6179 = vperm.xlu0 %6178, %v6143
    %v6180 = vpop.permute.xlu0 %6179
    %6183 = vset.pattern.permute.xlu0 3
    %6184 = vperm.xlu0 %6183, %v6144
    %v6185 = vpop.permute.xlu0 %6184
    %6188 = vset.pattern.permute.xlu0 3
    %6189 = vperm.xlu0 %6188, %v6145
    %v6190 = vpop.permute.xlu0 %6189
    %6193 = vset.pattern.permute.xlu0 3
    %6194 = vperm.xlu0 %6193, %v6146
    %v6195 = vpop.permute.xlu0 %6194
    %v6197 = vlaneseq
    %v6198 = vshrl.u32 %v6197, 7
    %v6199 = vsub.s32 3, %v6198
    %v6200 = vrot.slane %v6127, %v6199
    %v6201 = vlaneseq
    %v6202 = vshrl.u32 %v6201, 7
    %v6203 = vsub.s32 3, %v6202
    %v6204 = vrot.slane %v6128, %v6203
    %v6205 = vlaneseq
    %v6206 = vshrl.u32 %v6205, 7
    %v6207 = vsub.s32 3, %v6206
    %v6208 = vrot.slane %v6129, %v6207
    %v6209 = vlaneseq
    %v6210 = vshrl.u32 %v6209, 7
    %v6211 = vsub.s32 3, %v6210
    %v6212 = vrot.slane %v6130, %v6211
    %v6213 = vlaneseq
    %v6214 = vshrl.u32 %v6213, 7
    %v6215 = vsub.s32 3, %v6214
    %v6216 = vrot.slane %v6131, %v6215
    %v6217 = vlaneseq
    %v6218 = vshrl.u32 %v6217, 7
    %v6219 = vsub.s32 3, %v6218
    %v6220 = vrot.slane %v6132, %v6219
    %v6221 = vlaneseq
    %v6222 = vshrl.u32 %v6221, 7
    %v6223 = vsub.s32 3, %v6222
    %v6224 = vrot.slane %v6133, %v6223
    %v6225 = vlaneseq
    %v6226 = vshrl.u32 %v6225, 7
    %v6227 = vsub.s32 3, %v6226
    %v6228 = vrot.slane %v6134, %v6227
    %v6229 = vlaneseq
    %v6230 = vshrl.u32 %v6229, 7
    %v6231 = vsub.s32 3, %v6230
    %v6232 = vrot.slane %v6135, %v6231
    %v6233 = vlaneseq
    %v6234 = vshrl.u32 %v6233, 7
    %v6235 = vsub.s32 3, %v6234
    %v6236 = vrot.slane %v6136, %v6235
    %v6237 = vmul.f32 %v6150, %v6200
    %v6238 = vmul.f32 %v6155, %v6204
    %v6239 = vmul.f32 %v6160, %v6208
    %v6240 = vmul.f32 %v6165, %v6212
    %v6241 = vmul.f32 %v6170, %v6216
    %v6242 = vmul.f32 %v6175, %v6220
    %v6243 = vmul.f32 %v6180, %v6224
    %v6244 = vmul.f32 %v6185, %v6228
    %v6245 = vmul.f32 %v6190, %v6232
    %v6246 = vmul.f32 %v6195, %v6236
    %v6247 = vsub.f32 %v5957, %v6237
    %v6248 = vsub.f32 %v5958, %v6238
    %v6249 = vsub.f32 %v5959, %v6239
    %v6250 = vsub.f32 %v5960, %v6240
    %v6251 = vsub.f32 %v5961, %v6241
    %v6252 = vsub.f32 %v5962, %v6242
    %v6253 = vsub.f32 %v5963, %v6243
    %v6254 = vsub.f32 %v5964, %v6244
    %v6255 = vsub.f32 %v5965, %v6245
    %v6256 = vsub.f32 %v5966, %v6246
    %v6257 = vlaneseq
    %v6258 = vshrl.u32 %v6257, 7
    %v6259 = vsub.s32 3, %v6258
    %v6260 = vrot.slane %v6117, %v6259
    %v6261 = vlaneseq
    %v6262 = vshrl.u32 %v6261, 7
    %v6263 = vsub.s32 3, %v6262
    %v6264 = vrot.slane %v6118, %v6263
    %v6265 = vlaneseq
    %v6266 = vshrl.u32 %v6265, 7
    %v6267 = vsub.s32 3, %v6266
    %v6268 = vrot.slane %v6119, %v6267
    %v6269 = vlaneseq
    %v6270 = vshrl.u32 %v6269, 7
    %v6271 = vsub.s32 3, %v6270
    %v6272 = vrot.slane %v6120, %v6271
    %v6273 = vlaneseq
    %v6274 = vshrl.u32 %v6273, 7
    %v6275 = vsub.s32 3, %v6274
    %v6276 = vrot.slane %v6121, %v6275
    %v6277 = vlaneseq
    %v6278 = vshrl.u32 %v6277, 7
    %v6279 = vsub.s32 3, %v6278
    %v6280 = vrot.slane %v6122, %v6279
    %v6281 = vlaneseq
    %v6282 = vshrl.u32 %v6281, 7
    %v6283 = vsub.s32 3, %v6282
    %v6284 = vrot.slane %v6123, %v6283
    %v6285 = vlaneseq
    %v6286 = vshrl.u32 %v6285, 7
    %v6287 = vsub.s32 3, %v6286
    %v6288 = vrot.slane %v6124, %v6287
    %v6289 = vlaneseq
    %v6290 = vshrl.u32 %v6289, 7
    %v6291 = vsub.s32 3, %v6290
    %v6292 = vrot.slane %v6125, %v6291
    %v6293 = vlaneseq
    %v6294 = vshrl.u32 %v6293, 7
    %v6295 = vsub.s32 3, %v6294
    %v6296 = vrot.slane %v6126, %v6295
    %v6297 = vmul.f32 %v6150, %v6260
    %v6298 = vmul.f32 %v6155, %v6264
    %v6299 = vmul.f32 %v6160, %v6268
    %v6300 = vmul.f32 %v6165, %v6272
    %v6301 = vmul.f32 %v6170, %v6276
    %v6302 = vmul.f32 %v6175, %v6280
    %v6303 = vmul.f32 %v6180, %v6284
    %v6304 = vmul.f32 %v6185, %v6288
    %v6305 = vmul.f32 %v6190, %v6292
    %v6306 = vmul.f32 %v6195, %v6296
    %v6307 = vsub.f32 %v6017, %v6297
    %v6308 = vsub.f32 %v6018, %v6298
    %v6309 = vsub.f32 %v6019, %v6299
    %v6310 = vsub.f32 %v6020, %v6300
    %v6311 = vsub.f32 %v6021, %v6301
    %v6312 = vsub.f32 %v6022, %v6302
    %v6313 = vsub.f32 %v6023, %v6303
    %v6314 = vsub.f32 %v6024, %v6304
    %v6315 = vsub.f32 %v6025, %v6305
    %v6316 = vsub.f32 %v6026, %v6306
    %v6317 = vrcp.pop %v6307
    %v6318 = vrcp.pop %v6308
    %v6319 = vrcp.pop %v6309
    %v6320 = vrcp.pop %v6310
    %v6321 = vrcp.pop %v6311
    %v6322 = vrcp.pop %v6312
    %v6323 = vrcp.pop %v6313
    %v6324 = vrcp.pop %v6314
    %v6325 = vrcp.pop %v6315
    %v6326 = vrcp.pop %v6316
    %v6327 = vmul.f32 %v6307, %v6317
    %v6328 = vmul.f32 %v6308, %v6318
    %v6329 = vmul.f32 %v6309, %v6319
    %v6330 = vmul.f32 %v6310, %v6320
    %v6331 = vmul.f32 %v6311, %v6321
    %v6332 = vmul.f32 %v6312, %v6322
    %v6333 = vmul.f32 %v6313, %v6323
    %v6334 = vmul.f32 %v6314, %v6324
    %v6335 = vmul.f32 %v6315, %v6325
    %v6336 = vmul.f32 %v6316, %v6326
    %v6337 = vsub.f32 2.0, %v6327
    %v6338 = vsub.f32 2.0, %v6328
    %v6339 = vsub.f32 2.0, %v6329
    %v6340 = vsub.f32 2.0, %v6330
    %v6341 = vsub.f32 2.0, %v6331
    %v6342 = vsub.f32 2.0, %v6332
    %v6343 = vsub.f32 2.0, %v6333
    %v6344 = vsub.f32 2.0, %v6334
    %v6345 = vsub.f32 2.0, %v6335
    %v6346 = vsub.f32 2.0, %v6336
    %v6347 = vmul.f32 %v6317, %v6337
    %v6348 = vmul.f32 %v6318, %v6338
    %v6349 = vmul.f32 %v6319, %v6339
    %v6350 = vmul.f32 %v6320, %v6340
    %v6351 = vmul.f32 %v6321, %v6341
    %v6352 = vmul.f32 %v6322, %v6342
    %v6353 = vmul.f32 %v6323, %v6343
    %v6354 = vmul.f32 %v6324, %v6344
    %v6355 = vmul.f32 %v6325, %v6345
    %v6356 = vmul.f32 %v6326, %v6346
    %6358 = vset.pattern.permute.xlu0 4
    %6359 = vperm.xlu0 %6358, %v6347
    %v6360 = vpop.permute.xlu0 %6359
    %6363 = vset.pattern.permute.xlu0 4
    %6364 = vperm.xlu0 %6363, %v6348
    %v6365 = vpop.permute.xlu0 %6364
    %6368 = vset.pattern.permute.xlu0 4
    %6369 = vperm.xlu0 %6368, %v6349
    %v6370 = vpop.permute.xlu0 %6369
    %6373 = vset.pattern.permute.xlu0 4
    %6374 = vperm.xlu0 %6373, %v6350
    %v6375 = vpop.permute.xlu0 %6374
    %6378 = vset.pattern.permute.xlu0 4
    %6379 = vperm.xlu0 %6378, %v6351
    %v6380 = vpop.permute.xlu0 %6379
    %6383 = vset.pattern.permute.xlu0 4
    %6384 = vperm.xlu0 %6383, %v6352
    %v6385 = vpop.permute.xlu0 %6384
    %6388 = vset.pattern.permute.xlu0 4
    %6389 = vperm.xlu0 %6388, %v6353
    %v6390 = vpop.permute.xlu0 %6389
    %6393 = vset.pattern.permute.xlu0 4
    %6394 = vperm.xlu0 %6393, %v6354
    %v6395 = vpop.permute.xlu0 %6394
    %6398 = vset.pattern.permute.xlu0 4
    %6399 = vperm.xlu0 %6398, %v6355
    %v6400 = vpop.permute.xlu0 %6399
    %6403 = vset.pattern.permute.xlu0 4
    %6404 = vperm.xlu0 %6403, %v6356
    %v6405 = vpop.permute.xlu0 %6404
    %v6407 = vmul.f32 %v6307, %v6360
    %v6408 = vmul.f32 %v6308, %v6365
    %v6409 = vmul.f32 %v6309, %v6370
    %v6410 = vmul.f32 %v6310, %v6375
    %v6411 = vmul.f32 %v6311, %v6380
    %v6412 = vmul.f32 %v6312, %v6385
    %v6413 = vmul.f32 %v6313, %v6390
    %v6414 = vmul.f32 %v6314, %v6395
    %v6415 = vmul.f32 %v6315, %v6400
    %v6416 = vmul.f32 %v6316, %v6405
    %v6417 = vmul.f32 %v6247, %v6360
    %v6418 = vmul.f32 %v6248, %v6365
    %v6419 = vmul.f32 %v6249, %v6370
    %v6420 = vmul.f32 %v6250, %v6375
    %v6421 = vmul.f32 %v6251, %v6380
    %v6422 = vmul.f32 %v6252, %v6385
    %v6423 = vmul.f32 %v6253, %v6390
    %v6424 = vmul.f32 %v6254, %v6395
    %v6425 = vmul.f32 %v6255, %v6400
    %v6426 = vmul.f32 %v6256, %v6405
    %v6427 = vsub.f32 %v6307, %v155
    %v6428 = vsub.f32 %v6308, %v155
    %v6429 = vsub.f32 %v6309, %v155
    %v6430 = vsub.f32 %v6310, %v155
    %v6431 = vsub.f32 %v6311, %v155
    %v6432 = vsub.f32 %v6312, %v155
    %v6433 = vsub.f32 %v6313, %v155
    %v6434 = vsub.f32 %v6314, %v155
    %v6435 = vsub.f32 %v6315, %v155
    %v6436 = vsub.f32 %v6316, %v155
    %6438 = vset.pattern.permute.xlu0 4
    %6439 = vperm.xlu0 %6438, %v6427
    %v6440 = vpop.permute.xlu0 %6439
    %6443 = vset.pattern.permute.xlu0 4
    %6444 = vperm.xlu0 %6443, %v6428
    %v6445 = vpop.permute.xlu0 %6444
    %6448 = vset.pattern.permute.xlu0 4
    %6449 = vperm.xlu0 %6448, %v6429
    %v6450 = vpop.permute.xlu0 %6449
    %6453 = vset.pattern.permute.xlu0 4
    %6454 = vperm.xlu0 %6453, %v6430
    %v6455 = vpop.permute.xlu0 %6454
    %6458 = vset.pattern.permute.xlu0 4
    %6459 = vperm.xlu0 %6458, %v6431
    %v6460 = vpop.permute.xlu0 %6459
    %6463 = vset.pattern.permute.xlu0 4
    %6464 = vperm.xlu0 %6463, %v6432
    %v6465 = vpop.permute.xlu0 %6464
    %6468 = vset.pattern.permute.xlu0 4
    %6469 = vperm.xlu0 %6468, %v6433
    %v6470 = vpop.permute.xlu0 %6469
    %6473 = vset.pattern.permute.xlu0 4
    %6474 = vperm.xlu0 %6473, %v6434
    %v6475 = vpop.permute.xlu0 %6474
    %6478 = vset.pattern.permute.xlu0 4
    %6479 = vperm.xlu0 %6478, %v6435
    %v6480 = vpop.permute.xlu0 %6479
    %6483 = vset.pattern.permute.xlu0 4
    %6484 = vperm.xlu0 %6483, %v6436
    %v6485 = vpop.permute.xlu0 %6484
    %v6487 = vlaneseq
    %v6488 = vshrl.u32 %v6487, 7
    %v6489 = vsub.s32 4, %v6488
    %v6490 = vrot.slane %v6417, %v6489
    %v6491 = vlaneseq
    %v6492 = vshrl.u32 %v6491, 7
    %v6493 = vsub.s32 4, %v6492
    %v6494 = vrot.slane %v6418, %v6493
    %v6495 = vlaneseq
    %v6496 = vshrl.u32 %v6495, 7
    %v6497 = vsub.s32 4, %v6496
    %v6498 = vrot.slane %v6419, %v6497
    %v6499 = vlaneseq
    %v6500 = vshrl.u32 %v6499, 7
    %v6501 = vsub.s32 4, %v6500
    %v6502 = vrot.slane %v6420, %v6501
    %v6503 = vlaneseq
    %v6504 = vshrl.u32 %v6503, 7
    %v6505 = vsub.s32 4, %v6504
    %v6506 = vrot.slane %v6421, %v6505
    %v6507 = vlaneseq
    %v6508 = vshrl.u32 %v6507, 7
    %v6509 = vsub.s32 4, %v6508
    %v6510 = vrot.slane %v6422, %v6509
    %v6511 = vlaneseq
    %v6512 = vshrl.u32 %v6511, 7
    %v6513 = vsub.s32 4, %v6512
    %v6514 = vrot.slane %v6423, %v6513
    %v6515 = vlaneseq
    %v6516 = vshrl.u32 %v6515, 7
    %v6517 = vsub.s32 4, %v6516
    %v6518 = vrot.slane %v6424, %v6517
    %v6519 = vlaneseq
    %v6520 = vshrl.u32 %v6519, 7
    %v6521 = vsub.s32 4, %v6520
    %v6522 = vrot.slane %v6425, %v6521
    %v6523 = vlaneseq
    %v6524 = vshrl.u32 %v6523, 7
    %v6525 = vsub.s32 4, %v6524
    %v6526 = vrot.slane %v6426, %v6525
    %v6527 = vmul.f32 %v6440, %v6490
    %v6528 = vmul.f32 %v6445, %v6494
    %v6529 = vmul.f32 %v6450, %v6498
    %v6530 = vmul.f32 %v6455, %v6502
    %v6531 = vmul.f32 %v6460, %v6506
    %v6532 = vmul.f32 %v6465, %v6510
    %v6533 = vmul.f32 %v6470, %v6514
    %v6534 = vmul.f32 %v6475, %v6518
    %v6535 = vmul.f32 %v6480, %v6522
    %v6536 = vmul.f32 %v6485, %v6526
    %v6537 = vsub.f32 %v6247, %v6527
    %v6538 = vsub.f32 %v6248, %v6528
    %v6539 = vsub.f32 %v6249, %v6529
    %v6540 = vsub.f32 %v6250, %v6530
    %v6541 = vsub.f32 %v6251, %v6531
    %v6542 = vsub.f32 %v6252, %v6532
    %v6543 = vsub.f32 %v6253, %v6533
    %v6544 = vsub.f32 %v6254, %v6534
    %v6545 = vsub.f32 %v6255, %v6535
    %v6546 = vsub.f32 %v6256, %v6536
    %v6547 = vlaneseq
    %v6548 = vshrl.u32 %v6547, 7
    %v6549 = vsub.s32 4, %v6548
    %v6550 = vrot.slane %v6407, %v6549
    %v6551 = vlaneseq
    %v6552 = vshrl.u32 %v6551, 7
    %v6553 = vsub.s32 4, %v6552
    %v6554 = vrot.slane %v6408, %v6553
    %v6555 = vlaneseq
    %v6556 = vshrl.u32 %v6555, 7
    %v6557 = vsub.s32 4, %v6556
    %v6558 = vrot.slane %v6409, %v6557
    %v6559 = vlaneseq
    %v6560 = vshrl.u32 %v6559, 7
    %v6561 = vsub.s32 4, %v6560
    %v6562 = vrot.slane %v6410, %v6561
    %v6563 = vlaneseq
    %v6564 = vshrl.u32 %v6563, 7
    %v6565 = vsub.s32 4, %v6564
    %v6566 = vrot.slane %v6411, %v6565
    %v6567 = vlaneseq
    %v6568 = vshrl.u32 %v6567, 7
    %v6569 = vsub.s32 4, %v6568
    %v6570 = vrot.slane %v6412, %v6569
    %v6571 = vlaneseq
    %v6572 = vshrl.u32 %v6571, 7
    %v6573 = vsub.s32 4, %v6572
    %v6574 = vrot.slane %v6413, %v6573
    %v6575 = vlaneseq
    %v6576 = vshrl.u32 %v6575, 7
    %v6577 = vsub.s32 4, %v6576
    %v6578 = vrot.slane %v6414, %v6577
    %v6579 = vlaneseq
    %v6580 = vshrl.u32 %v6579, 7
    %v6581 = vsub.s32 4, %v6580
    %v6582 = vrot.slane %v6415, %v6581
    %v6583 = vlaneseq
    %v6584 = vshrl.u32 %v6583, 7
    %v6585 = vsub.s32 4, %v6584
    %v6586 = vrot.slane %v6416, %v6585
    %v6587 = vmul.f32 %v6440, %v6550
    %v6588 = vmul.f32 %v6445, %v6554
    %v6589 = vmul.f32 %v6450, %v6558
    %v6590 = vmul.f32 %v6455, %v6562
    %v6591 = vmul.f32 %v6460, %v6566
    %v6592 = vmul.f32 %v6465, %v6570
    %v6593 = vmul.f32 %v6470, %v6574
    %v6594 = vmul.f32 %v6475, %v6578
    %v6595 = vmul.f32 %v6480, %v6582
    %v6596 = vmul.f32 %v6485, %v6586
    %v6597 = vsub.f32 %v6307, %v6587
    %v6598 = vsub.f32 %v6308, %v6588
    %v6599 = vsub.f32 %v6309, %v6589
    %v6600 = vsub.f32 %v6310, %v6590
    %v6601 = vsub.f32 %v6311, %v6591
    %v6602 = vsub.f32 %v6312, %v6592
    %v6603 = vsub.f32 %v6313, %v6593
    %v6604 = vsub.f32 %v6314, %v6594
    %v6605 = vsub.f32 %v6315, %v6595
    %v6606 = vsub.f32 %v6316, %v6596
    %v6607 = vrcp.pop %v6597
    %v6608 = vrcp.pop %v6598
    %v6609 = vrcp.pop %v6599
    %v6610 = vrcp.pop %v6600
    %v6611 = vrcp.pop %v6601
    %v6612 = vrcp.pop %v6602
    %v6613 = vrcp.pop %v6603
    %v6614 = vrcp.pop %v6604
    %v6615 = vrcp.pop %v6605
    %v6616 = vrcp.pop %v6606
    %v6617 = vmul.f32 %v6597, %v6607
    %v6618 = vmul.f32 %v6598, %v6608
    %v6619 = vmul.f32 %v6599, %v6609
    %v6620 = vmul.f32 %v6600, %v6610
    %v6621 = vmul.f32 %v6601, %v6611
    %v6622 = vmul.f32 %v6602, %v6612
    %v6623 = vmul.f32 %v6603, %v6613
    %v6624 = vmul.f32 %v6604, %v6614
    %v6625 = vmul.f32 %v6605, %v6615
    %v6626 = vmul.f32 %v6606, %v6616
    %v6627 = vsub.f32 2.0, %v6617
    %v6628 = vsub.f32 2.0, %v6618
    %v6629 = vsub.f32 2.0, %v6619
    %v6630 = vsub.f32 2.0, %v6620
    %v6631 = vsub.f32 2.0, %v6621
    %v6632 = vsub.f32 2.0, %v6622
    %v6633 = vsub.f32 2.0, %v6623
    %v6634 = vsub.f32 2.0, %v6624
    %v6635 = vsub.f32 2.0, %v6625
    %v6636 = vsub.f32 2.0, %v6626
    %v6637 = vmul.f32 %v6607, %v6627
    %v6638 = vmul.f32 %v6608, %v6628
    %v6639 = vmul.f32 %v6609, %v6629
    %v6640 = vmul.f32 %v6610, %v6630
    %v6641 = vmul.f32 %v6611, %v6631
    %v6642 = vmul.f32 %v6612, %v6632
    %v6643 = vmul.f32 %v6613, %v6633
    %v6644 = vmul.f32 %v6614, %v6634
    %v6645 = vmul.f32 %v6615, %v6635
    %v6646 = vmul.f32 %v6616, %v6636
    %6648 = vset.pattern.permute.xlu0 5
    %6649 = vperm.xlu0 %6648, %v6637
    %v6650 = vpop.permute.xlu0 %6649
    %6653 = vset.pattern.permute.xlu0 5
    %6654 = vperm.xlu0 %6653, %v6638
    %v6655 = vpop.permute.xlu0 %6654
    %6658 = vset.pattern.permute.xlu0 5
    %6659 = vperm.xlu0 %6658, %v6639
    %v6660 = vpop.permute.xlu0 %6659
    %6663 = vset.pattern.permute.xlu0 5
    %6664 = vperm.xlu0 %6663, %v6640
    %v6665 = vpop.permute.xlu0 %6664
    %6668 = vset.pattern.permute.xlu0 5
    %6669 = vperm.xlu0 %6668, %v6641
    %v6670 = vpop.permute.xlu0 %6669
    %6673 = vset.pattern.permute.xlu0 5
    %6674 = vperm.xlu0 %6673, %v6642
    %v6675 = vpop.permute.xlu0 %6674
    %6678 = vset.pattern.permute.xlu0 5
    %6679 = vperm.xlu0 %6678, %v6643
    %v6680 = vpop.permute.xlu0 %6679
    %6683 = vset.pattern.permute.xlu0 5
    %6684 = vperm.xlu0 %6683, %v6644
    %v6685 = vpop.permute.xlu0 %6684
    %6688 = vset.pattern.permute.xlu0 5
    %6689 = vperm.xlu0 %6688, %v6645
    %v6690 = vpop.permute.xlu0 %6689
    %6693 = vset.pattern.permute.xlu0 5
    %6694 = vperm.xlu0 %6693, %v6646
    %v6695 = vpop.permute.xlu0 %6694
    %v6697 = vmul.f32 %v6597, %v6650
    %v6698 = vmul.f32 %v6598, %v6655
    %v6699 = vmul.f32 %v6599, %v6660
    %v6700 = vmul.f32 %v6600, %v6665
    %v6701 = vmul.f32 %v6601, %v6670
    %v6702 = vmul.f32 %v6602, %v6675
    %v6703 = vmul.f32 %v6603, %v6680
    %v6704 = vmul.f32 %v6604, %v6685
    %v6705 = vmul.f32 %v6605, %v6690
    %v6706 = vmul.f32 %v6606, %v6695
    %v6707 = vmul.f32 %v6537, %v6650
    %v6708 = vmul.f32 %v6538, %v6655
    %v6709 = vmul.f32 %v6539, %v6660
    %v6710 = vmul.f32 %v6540, %v6665
    %v6711 = vmul.f32 %v6541, %v6670
    %v6712 = vmul.f32 %v6542, %v6675
    %v6713 = vmul.f32 %v6543, %v6680
    %v6714 = vmul.f32 %v6544, %v6685
    %v6715 = vmul.f32 %v6545, %v6690
    %v6716 = vmul.f32 %v6546, %v6695
    %v6717 = vsub.f32 %v6597, %v155
    %v6718 = vsub.f32 %v6598, %v155
    %v6719 = vsub.f32 %v6599, %v155
    %v6720 = vsub.f32 %v6600, %v155
    %v6721 = vsub.f32 %v6601, %v155
    %v6722 = vsub.f32 %v6602, %v155
    %v6723 = vsub.f32 %v6603, %v155
    %v6724 = vsub.f32 %v6604, %v155
    %v6725 = vsub.f32 %v6605, %v155
    %v6726 = vsub.f32 %v6606, %v155
    %6728 = vset.pattern.permute.xlu0 5
    %6729 = vperm.xlu0 %6728, %v6717
    %v6730 = vpop.permute.xlu0 %6729
    %6733 = vset.pattern.permute.xlu0 5
    %6734 = vperm.xlu0 %6733, %v6718
    %v6735 = vpop.permute.xlu0 %6734
    %6738 = vset.pattern.permute.xlu0 5
    %6739 = vperm.xlu0 %6738, %v6719
    %v6740 = vpop.permute.xlu0 %6739
    %6743 = vset.pattern.permute.xlu0 5
    %6744 = vperm.xlu0 %6743, %v6720
    %v6745 = vpop.permute.xlu0 %6744
    %6748 = vset.pattern.permute.xlu0 5
    %6749 = vperm.xlu0 %6748, %v6721
    %v6750 = vpop.permute.xlu0 %6749
    %6753 = vset.pattern.permute.xlu0 5
    %6754 = vperm.xlu0 %6753, %v6722
    %v6755 = vpop.permute.xlu0 %6754
    %6758 = vset.pattern.permute.xlu0 5
    %6759 = vperm.xlu0 %6758, %v6723
    %v6760 = vpop.permute.xlu0 %6759
    %6763 = vset.pattern.permute.xlu0 5
    %6764 = vperm.xlu0 %6763, %v6724
    %v6765 = vpop.permute.xlu0 %6764
    %6768 = vset.pattern.permute.xlu0 5
    %6769 = vperm.xlu0 %6768, %v6725
    %v6770 = vpop.permute.xlu0 %6769
    %6773 = vset.pattern.permute.xlu0 5
    %6774 = vperm.xlu0 %6773, %v6726
    %v6775 = vpop.permute.xlu0 %6774
    %v6777 = vlaneseq
    %v6778 = vshrl.u32 %v6777, 7
    %v6779 = vsub.s32 5, %v6778
    %v6780 = vrot.slane %v6707, %v6779
    %v6781 = vlaneseq
    %v6782 = vshrl.u32 %v6781, 7
    %v6783 = vsub.s32 5, %v6782
    %v6784 = vrot.slane %v6708, %v6783
    %v6785 = vlaneseq
    %v6786 = vshrl.u32 %v6785, 7
    %v6787 = vsub.s32 5, %v6786
    %v6788 = vrot.slane %v6709, %v6787
    %v6789 = vlaneseq
    %v6790 = vshrl.u32 %v6789, 7
    %v6791 = vsub.s32 5, %v6790
    %v6792 = vrot.slane %v6710, %v6791
    %v6793 = vlaneseq
    %v6794 = vshrl.u32 %v6793, 7
    %v6795 = vsub.s32 5, %v6794
    %v6796 = vrot.slane %v6711, %v6795
    %v6797 = vlaneseq
    %v6798 = vshrl.u32 %v6797, 7
    %v6799 = vsub.s32 5, %v6798
    %v6800 = vrot.slane %v6712, %v6799
    %v6801 = vlaneseq
    %v6802 = vshrl.u32 %v6801, 7
    %v6803 = vsub.s32 5, %v6802
    %v6804 = vrot.slane %v6713, %v6803
    %v6805 = vlaneseq
    %v6806 = vshrl.u32 %v6805, 7
    %v6807 = vsub.s32 5, %v6806
    %v6808 = vrot.slane %v6714, %v6807
    %v6809 = vlaneseq
    %v6810 = vshrl.u32 %v6809, 7
    %v6811 = vsub.s32 5, %v6810
    %v6812 = vrot.slane %v6715, %v6811
    %v6813 = vlaneseq
    %v6814 = vshrl.u32 %v6813, 7
    %v6815 = vsub.s32 5, %v6814
    %v6816 = vrot.slane %v6716, %v6815
    %v6817 = vmul.f32 %v6730, %v6780
    %v6818 = vmul.f32 %v6735, %v6784
    %v6819 = vmul.f32 %v6740, %v6788
    %v6820 = vmul.f32 %v6745, %v6792
    %v6821 = vmul.f32 %v6750, %v6796
    %v6822 = vmul.f32 %v6755, %v6800
    %v6823 = vmul.f32 %v6760, %v6804
    %v6824 = vmul.f32 %v6765, %v6808
    %v6825 = vmul.f32 %v6770, %v6812
    %v6826 = vmul.f32 %v6775, %v6816
    %v6827 = vsub.f32 %v6537, %v6817
    %v6828 = vsub.f32 %v6538, %v6818
    %v6829 = vsub.f32 %v6539, %v6819
    %v6830 = vsub.f32 %v6540, %v6820
    %v6831 = vsub.f32 %v6541, %v6821
    %v6832 = vsub.f32 %v6542, %v6822
    %v6833 = vsub.f32 %v6543, %v6823
    %v6834 = vsub.f32 %v6544, %v6824
    %v6835 = vsub.f32 %v6545, %v6825
    %v6836 = vsub.f32 %v6546, %v6826
    %v6837 = vlaneseq
    %v6838 = vshrl.u32 %v6837, 7
    %v6839 = vsub.s32 5, %v6838
    %v6840 = vrot.slane %v6697, %v6839
    %v6841 = vlaneseq
    %v6842 = vshrl.u32 %v6841, 7
    %v6843 = vsub.s32 5, %v6842
    %v6844 = vrot.slane %v6698, %v6843
    %v6845 = vlaneseq
    %v6846 = vshrl.u32 %v6845, 7
    %v6847 = vsub.s32 5, %v6846
    %v6848 = vrot.slane %v6699, %v6847
    %v6849 = vlaneseq
    %v6850 = vshrl.u32 %v6849, 7
    %v6851 = vsub.s32 5, %v6850
    %v6852 = vrot.slane %v6700, %v6851
    %v6853 = vlaneseq
    %v6854 = vshrl.u32 %v6853, 7
    %v6855 = vsub.s32 5, %v6854
    %v6856 = vrot.slane %v6701, %v6855
    %v6857 = vlaneseq
    %v6858 = vshrl.u32 %v6857, 7
    %v6859 = vsub.s32 5, %v6858
    %v6860 = vrot.slane %v6702, %v6859
    %v6861 = vlaneseq
    %v6862 = vshrl.u32 %v6861, 7
    %v6863 = vsub.s32 5, %v6862
    %v6864 = vrot.slane %v6703, %v6863
    %v6865 = vlaneseq
    %v6866 = vshrl.u32 %v6865, 7
    %v6867 = vsub.s32 5, %v6866
    %v6868 = vrot.slane %v6704, %v6867
    %v6869 = vlaneseq
    %v6870 = vshrl.u32 %v6869, 7
    %v6871 = vsub.s32 5, %v6870
    %v6872 = vrot.slane %v6705, %v6871
    %v6873 = vlaneseq
    %v6874 = vshrl.u32 %v6873, 7
    %v6875 = vsub.s32 5, %v6874
    %v6876 = vrot.slane %v6706, %v6875
    %v6877 = vmul.f32 %v6730, %v6840
    %v6878 = vmul.f32 %v6735, %v6844
    %v6879 = vmul.f32 %v6740, %v6848
    %v6880 = vmul.f32 %v6745, %v6852
    %v6881 = vmul.f32 %v6750, %v6856
    %v6882 = vmul.f32 %v6755, %v6860
    %v6883 = vmul.f32 %v6760, %v6864
    %v6884 = vmul.f32 %v6765, %v6868
    %v6885 = vmul.f32 %v6770, %v6872
    %v6886 = vmul.f32 %v6775, %v6876
    %v6887 = vsub.f32 %v6597, %v6877
    %v6888 = vsub.f32 %v6598, %v6878
    %v6889 = vsub.f32 %v6599, %v6879
    %v6890 = vsub.f32 %v6600, %v6880
    %v6891 = vsub.f32 %v6601, %v6881
    %v6892 = vsub.f32 %v6602, %v6882
    %v6893 = vsub.f32 %v6603, %v6883
    %v6894 = vsub.f32 %v6604, %v6884
    %v6895 = vsub.f32 %v6605, %v6885
    %v6896 = vsub.f32 %v6606, %v6886
    %v6897 = vrcp.pop %v6887
    %v6898 = vrcp.pop %v6888
    %v6899 = vrcp.pop %v6889
    %v6900 = vrcp.pop %v6890
    %v6901 = vrcp.pop %v6891
    %v6902 = vrcp.pop %v6892
    %v6903 = vrcp.pop %v6893
    %v6904 = vrcp.pop %v6894
    %v6905 = vrcp.pop %v6895
    %v6906 = vrcp.pop %v6896
    %v6907 = vmul.f32 %v6887, %v6897
    %v6908 = vmul.f32 %v6888, %v6898
    %v6909 = vmul.f32 %v6889, %v6899
    %v6910 = vmul.f32 %v6890, %v6900
    %v6911 = vmul.f32 %v6891, %v6901
    %v6912 = vmul.f32 %v6892, %v6902
    %v6913 = vmul.f32 %v6893, %v6903
    %v6914 = vmul.f32 %v6894, %v6904
    %v6915 = vmul.f32 %v6895, %v6905
    %v6916 = vmul.f32 %v6896, %v6906
    %v6917 = vsub.f32 2.0, %v6907
    %v6918 = vsub.f32 2.0, %v6908
    %v6919 = vsub.f32 2.0, %v6909
    %v6920 = vsub.f32 2.0, %v6910
    %v6921 = vsub.f32 2.0, %v6911
    %v6922 = vsub.f32 2.0, %v6912
    %v6923 = vsub.f32 2.0, %v6913
    %v6924 = vsub.f32 2.0, %v6914
    %v6925 = vsub.f32 2.0, %v6915
    %v6926 = vsub.f32 2.0, %v6916
    %v6927 = vmul.f32 %v6897, %v6917
    %v6928 = vmul.f32 %v6898, %v6918
    %v6929 = vmul.f32 %v6899, %v6919
    %v6930 = vmul.f32 %v6900, %v6920
    %v6931 = vmul.f32 %v6901, %v6921
    %v6932 = vmul.f32 %v6902, %v6922
    %v6933 = vmul.f32 %v6903, %v6923
    %v6934 = vmul.f32 %v6904, %v6924
    %v6935 = vmul.f32 %v6905, %v6925
    %v6936 = vmul.f32 %v6906, %v6926
    %6938 = vset.pattern.permute.xlu0 6
    %6939 = vperm.xlu0 %6938, %v6927
    %v6940 = vpop.permute.xlu0 %6939
    %6943 = vset.pattern.permute.xlu0 6
    %6944 = vperm.xlu0 %6943, %v6928
    %v6945 = vpop.permute.xlu0 %6944
    %6948 = vset.pattern.permute.xlu0 6
    %6949 = vperm.xlu0 %6948, %v6929
    %v6950 = vpop.permute.xlu0 %6949
    %6953 = vset.pattern.permute.xlu0 6
    %6954 = vperm.xlu0 %6953, %v6930
    %v6955 = vpop.permute.xlu0 %6954
    %6958 = vset.pattern.permute.xlu0 6
    %6959 = vperm.xlu0 %6958, %v6931
    %v6960 = vpop.permute.xlu0 %6959
    %6963 = vset.pattern.permute.xlu0 6
    %6964 = vperm.xlu0 %6963, %v6932
    %v6965 = vpop.permute.xlu0 %6964
    %6968 = vset.pattern.permute.xlu0 6
    %6969 = vperm.xlu0 %6968, %v6933
    %v6970 = vpop.permute.xlu0 %6969
    %6973 = vset.pattern.permute.xlu0 6
    %6974 = vperm.xlu0 %6973, %v6934
    %v6975 = vpop.permute.xlu0 %6974
    %6978 = vset.pattern.permute.xlu0 6
    %6979 = vperm.xlu0 %6978, %v6935
    %v6980 = vpop.permute.xlu0 %6979
    %6983 = vset.pattern.permute.xlu0 6
    %6984 = vperm.xlu0 %6983, %v6936
    %v6985 = vpop.permute.xlu0 %6984
    %v6987 = vmul.f32 %v6887, %v6940
    %v6988 = vmul.f32 %v6888, %v6945
    %v6989 = vmul.f32 %v6889, %v6950
    %v6990 = vmul.f32 %v6890, %v6955
    %v6991 = vmul.f32 %v6891, %v6960
    %v6992 = vmul.f32 %v6892, %v6965
    %v6993 = vmul.f32 %v6893, %v6970
    %v6994 = vmul.f32 %v6894, %v6975
    %v6995 = vmul.f32 %v6895, %v6980
    %v6996 = vmul.f32 %v6896, %v6985
    %v6997 = vmul.f32 %v6827, %v6940
    %v6998 = vmul.f32 %v6828, %v6945
    %v6999 = vmul.f32 %v6829, %v6950
    %v7000 = vmul.f32 %v6830, %v6955
    %v7001 = vmul.f32 %v6831, %v6960
    %v7002 = vmul.f32 %v6832, %v6965
    %v7003 = vmul.f32 %v6833, %v6970
    %v7004 = vmul.f32 %v6834, %v6975
    %v7005 = vmul.f32 %v6835, %v6980
    %v7006 = vmul.f32 %v6836, %v6985
    %v7007 = vsub.f32 %v6887, %v155
    %v7008 = vsub.f32 %v6888, %v155
    %v7009 = vsub.f32 %v6889, %v155
    %v7010 = vsub.f32 %v6890, %v155
    %v7011 = vsub.f32 %v6891, %v155
    %v7012 = vsub.f32 %v6892, %v155
    %v7013 = vsub.f32 %v6893, %v155
    %v7014 = vsub.f32 %v6894, %v155
    %v7015 = vsub.f32 %v6895, %v155
    %v7016 = vsub.f32 %v6896, %v155
    %7018 = vset.pattern.permute.xlu0 6
    %7019 = vperm.xlu0 %7018, %v7007
    %v7020 = vpop.permute.xlu0 %7019
    %7023 = vset.pattern.permute.xlu0 6
    %7024 = vperm.xlu0 %7023, %v7008
    %v7025 = vpop.permute.xlu0 %7024
    %7028 = vset.pattern.permute.xlu0 6
    %7029 = vperm.xlu0 %7028, %v7009
    %v7030 = vpop.permute.xlu0 %7029
    %7033 = vset.pattern.permute.xlu0 6
    %7034 = vperm.xlu0 %7033, %v7010
    %v7035 = vpop.permute.xlu0 %7034
    %7038 = vset.pattern.permute.xlu0 6
    %7039 = vperm.xlu0 %7038, %v7011
    %v7040 = vpop.permute.xlu0 %7039
    %7043 = vset.pattern.permute.xlu0 6
    %7044 = vperm.xlu0 %7043, %v7012
    %v7045 = vpop.permute.xlu0 %7044
    %7048 = vset.pattern.permute.xlu0 6
    %7049 = vperm.xlu0 %7048, %v7013
    %v7050 = vpop.permute.xlu0 %7049
    %7053 = vset.pattern.permute.xlu0 6
    %7054 = vperm.xlu0 %7053, %v7014
    %v7055 = vpop.permute.xlu0 %7054
    %7058 = vset.pattern.permute.xlu0 6
    %7059 = vperm.xlu0 %7058, %v7015
    %v7060 = vpop.permute.xlu0 %7059
    %7063 = vset.pattern.permute.xlu0 6
    %7064 = vperm.xlu0 %7063, %v7016
    %v7065 = vpop.permute.xlu0 %7064
    %v7067 = vlaneseq
    %v7068 = vshrl.u32 %v7067, 7
    %v7069 = vsub.s32 6, %v7068
    %v7070 = vrot.slane %v6997, %v7069
    %v7071 = vlaneseq
    %v7072 = vshrl.u32 %v7071, 7
    %v7073 = vsub.s32 6, %v7072
    %v7074 = vrot.slane %v6998, %v7073
    %v7075 = vlaneseq
    %v7076 = vshrl.u32 %v7075, 7
    %v7077 = vsub.s32 6, %v7076
    %v7078 = vrot.slane %v6999, %v7077
    %v7079 = vlaneseq
    %v7080 = vshrl.u32 %v7079, 7
    %v7081 = vsub.s32 6, %v7080
    %v7082 = vrot.slane %v7000, %v7081
    %v7083 = vlaneseq
    %v7084 = vshrl.u32 %v7083, 7
    %v7085 = vsub.s32 6, %v7084
    %v7086 = vrot.slane %v7001, %v7085
    %v7087 = vlaneseq
    %v7088 = vshrl.u32 %v7087, 7
    %v7089 = vsub.s32 6, %v7088
    %v7090 = vrot.slane %v7002, %v7089
    %v7091 = vlaneseq
    %v7092 = vshrl.u32 %v7091, 7
    %v7093 = vsub.s32 6, %v7092
    %v7094 = vrot.slane %v7003, %v7093
    %v7095 = vlaneseq
    %v7096 = vshrl.u32 %v7095, 7
    %v7097 = vsub.s32 6, %v7096
    %v7098 = vrot.slane %v7004, %v7097
    %v7099 = vlaneseq
    %v7100 = vshrl.u32 %v7099, 7
    %v7101 = vsub.s32 6, %v7100
    %v7102 = vrot.slane %v7005, %v7101
    %v7103 = vlaneseq
    %v7104 = vshrl.u32 %v7103, 7
    %v7105 = vsub.s32 6, %v7104
    %v7106 = vrot.slane %v7006, %v7105
    %v7107 = vmul.f32 %v7020, %v7070
    %v7108 = vmul.f32 %v7025, %v7074
    %v7109 = vmul.f32 %v7030, %v7078
    %v7110 = vmul.f32 %v7035, %v7082
    %v7111 = vmul.f32 %v7040, %v7086
    %v7112 = vmul.f32 %v7045, %v7090
    %v7113 = vmul.f32 %v7050, %v7094
    %v7114 = vmul.f32 %v7055, %v7098
    %v7115 = vmul.f32 %v7060, %v7102
    %v7116 = vmul.f32 %v7065, %v7106
    %v7117 = vsub.f32 %v6827, %v7107
    %v7118 = vsub.f32 %v6828, %v7108
    %v7119 = vsub.f32 %v6829, %v7109
    %v7120 = vsub.f32 %v6830, %v7110
    %v7121 = vsub.f32 %v6831, %v7111
    %v7122 = vsub.f32 %v6832, %v7112
    %v7123 = vsub.f32 %v6833, %v7113
    %v7124 = vsub.f32 %v6834, %v7114
    %v7125 = vsub.f32 %v6835, %v7115
    %v7126 = vsub.f32 %v6836, %v7116
    %v7127 = vlaneseq
    %v7128 = vshrl.u32 %v7127, 7
    %v7129 = vsub.s32 6, %v7128
    %v7130 = vrot.slane %v6987, %v7129
    %v7131 = vlaneseq
    %v7132 = vshrl.u32 %v7131, 7
    %v7133 = vsub.s32 6, %v7132
    %v7134 = vrot.slane %v6988, %v7133
    %v7135 = vlaneseq
    %v7136 = vshrl.u32 %v7135, 7
    %v7137 = vsub.s32 6, %v7136
    %v7138 = vrot.slane %v6989, %v7137
    %v7139 = vlaneseq
    %v7140 = vshrl.u32 %v7139, 7
    %v7141 = vsub.s32 6, %v7140
    %v7142 = vrot.slane %v6990, %v7141
    %v7143 = vlaneseq
    %v7144 = vshrl.u32 %v7143, 7
    %v7145 = vsub.s32 6, %v7144
    %v7146 = vrot.slane %v6991, %v7145
    %v7147 = vlaneseq
    %v7148 = vshrl.u32 %v7147, 7
    %v7149 = vsub.s32 6, %v7148
    %v7150 = vrot.slane %v6992, %v7149
    %v7151 = vlaneseq
    %v7152 = vshrl.u32 %v7151, 7
    %v7153 = vsub.s32 6, %v7152
    %v7154 = vrot.slane %v6993, %v7153
    %v7155 = vlaneseq
    %v7156 = vshrl.u32 %v7155, 7
    %v7157 = vsub.s32 6, %v7156
    %v7158 = vrot.slane %v6994, %v7157
    %v7159 = vlaneseq
    %v7160 = vshrl.u32 %v7159, 7
    %v7161 = vsub.s32 6, %v7160
    %v7162 = vrot.slane %v6995, %v7161
    %v7163 = vlaneseq
    %v7164 = vshrl.u32 %v7163, 7
    %v7165 = vsub.s32 6, %v7164
    %v7166 = vrot.slane %v6996, %v7165
    %v7167 = vmul.f32 %v7020, %v7130
    %v7168 = vmul.f32 %v7025, %v7134
    %v7169 = vmul.f32 %v7030, %v7138
    %v7170 = vmul.f32 %v7035, %v7142
    %v7171 = vmul.f32 %v7040, %v7146
    %v7172 = vmul.f32 %v7045, %v7150
    %v7173 = vmul.f32 %v7050, %v7154
    %v7174 = vmul.f32 %v7055, %v7158
    %v7175 = vmul.f32 %v7060, %v7162
    %v7176 = vmul.f32 %v7065, %v7166
    %v7177 = vsub.f32 %v6887, %v7167
    %v7178 = vsub.f32 %v6888, %v7168
    %v7179 = vsub.f32 %v6889, %v7169
    %v7180 = vsub.f32 %v6890, %v7170
    %v7181 = vsub.f32 %v6891, %v7171
    %v7182 = vsub.f32 %v6892, %v7172
    %v7183 = vsub.f32 %v6893, %v7173
    %v7184 = vsub.f32 %v6894, %v7174
    %v7185 = vsub.f32 %v6895, %v7175
    %v7186 = vsub.f32 %v6896, %v7176
    %v7187 = vrcp.pop %v7177
    %v7188 = vrcp.pop %v7178
    %v7189 = vrcp.pop %v7179
    %v7190 = vrcp.pop %v7180
    %v7191 = vrcp.pop %v7181
    %v7192 = vrcp.pop %v7182
    %v7193 = vrcp.pop %v7183
    %v7194 = vrcp.pop %v7184
    %v7195 = vrcp.pop %v7185
    %v7196 = vrcp.pop %v7186
    %v7197 = vmul.f32 %v7177, %v7187
    %v7198 = vmul.f32 %v7178, %v7188
    %v7199 = vmul.f32 %v7179, %v7189
    %v7200 = vmul.f32 %v7180, %v7190
    %v7201 = vmul.f32 %v7181, %v7191
    %v7202 = vmul.f32 %v7182, %v7192
    %v7203 = vmul.f32 %v7183, %v7193
    %v7204 = vmul.f32 %v7184, %v7194
    %v7205 = vmul.f32 %v7185, %v7195
    %v7206 = vmul.f32 %v7186, %v7196
    %v7207 = vsub.f32 2.0, %v7197
    %v7208 = vsub.f32 2.0, %v7198
    %v7209 = vsub.f32 2.0, %v7199
    %v7210 = vsub.f32 2.0, %v7200
    %v7211 = vsub.f32 2.0, %v7201
    %v7212 = vsub.f32 2.0, %v7202
    %v7213 = vsub.f32 2.0, %v7203
    %v7214 = vsub.f32 2.0, %v7204
    %v7215 = vsub.f32 2.0, %v7205
    %v7216 = vsub.f32 2.0, %v7206
    %v7217 = vmul.f32 %v7187, %v7207
    %v7218 = vmul.f32 %v7188, %v7208
    %v7219 = vmul.f32 %v7189, %v7209
    %v7220 = vmul.f32 %v7190, %v7210
    %v7221 = vmul.f32 %v7191, %v7211
    %v7222 = vmul.f32 %v7192, %v7212
    %v7223 = vmul.f32 %v7193, %v7213
    %v7224 = vmul.f32 %v7194, %v7214
    %v7225 = vmul.f32 %v7195, %v7215
    %v7226 = vmul.f32 %v7196, %v7216
    %7228 = vset.pattern.permute.xlu0 7
    %7229 = vperm.xlu0 %7228, %v7217
    %v7230 = vpop.permute.xlu0 %7229
    %7233 = vset.pattern.permute.xlu0 7
    %7234 = vperm.xlu0 %7233, %v7218
    %v7235 = vpop.permute.xlu0 %7234
    %7238 = vset.pattern.permute.xlu0 7
    %7239 = vperm.xlu0 %7238, %v7219
    %v7240 = vpop.permute.xlu0 %7239
    %7243 = vset.pattern.permute.xlu0 7
    %7244 = vperm.xlu0 %7243, %v7220
    %v7245 = vpop.permute.xlu0 %7244
    %7248 = vset.pattern.permute.xlu0 7
    %7249 = vperm.xlu0 %7248, %v7221
    %v7250 = vpop.permute.xlu0 %7249
    %7253 = vset.pattern.permute.xlu0 7
    %7254 = vperm.xlu0 %7253, %v7222
    %v7255 = vpop.permute.xlu0 %7254
    %7258 = vset.pattern.permute.xlu0 7
    %7259 = vperm.xlu0 %7258, %v7223
    %v7260 = vpop.permute.xlu0 %7259
    %7263 = vset.pattern.permute.xlu0 7
    %7264 = vperm.xlu0 %7263, %v7224
    %v7265 = vpop.permute.xlu0 %7264
    %7268 = vset.pattern.permute.xlu0 7
    %7269 = vperm.xlu0 %7268, %v7225
    %v7270 = vpop.permute.xlu0 %7269
    %7273 = vset.pattern.permute.xlu0 7
    %7274 = vperm.xlu0 %7273, %v7226
    %v7275 = vpop.permute.xlu0 %7274
    %v7277 = vmul.f32 %v7117, %v7230
    %v7278 = vmul.f32 %v7118, %v7235
    %v7279 = vmul.f32 %v7119, %v7240
    %v7280 = vmul.f32 %v7120, %v7245
    %v7281 = vmul.f32 %v7121, %v7250
    %v7282 = vmul.f32 %v7122, %v7255
    %v7283 = vmul.f32 %v7123, %v7260
    %v7284 = vmul.f32 %v7124, %v7265
    %v7285 = vmul.f32 %v7125, %v7270
    %v7286 = vmul.f32 %v7126, %v7275
    %v7287 = vsub.f32 %v7177, %v155
    %v7288 = vsub.f32 %v7178, %v155
    %v7289 = vsub.f32 %v7179, %v155
    %v7290 = vsub.f32 %v7180, %v155
    %v7291 = vsub.f32 %v7181, %v155
    %v7292 = vsub.f32 %v7182, %v155
    %v7293 = vsub.f32 %v7183, %v155
    %v7294 = vsub.f32 %v7184, %v155
    %v7295 = vsub.f32 %v7185, %v155
    %v7296 = vsub.f32 %v7186, %v155
    %7298 = vset.pattern.permute.xlu0 7
    %7299 = vperm.xlu0 %7298, %v7287
    %v7300 = vpop.permute.xlu0 %7299
    %7303 = vset.pattern.permute.xlu0 7
    %7304 = vperm.xlu0 %7303, %v7288
    %v7305 = vpop.permute.xlu0 %7304
    %7308 = vset.pattern.permute.xlu0 7
    %7309 = vperm.xlu0 %7308, %v7289
    %v7310 = vpop.permute.xlu0 %7309
    %7313 = vset.pattern.permute.xlu0 7
    %7314 = vperm.xlu0 %7313, %v7290
    %v7315 = vpop.permute.xlu0 %7314
    %7318 = vset.pattern.permute.xlu0 7
    %7319 = vperm.xlu0 %7318, %v7291
    %v7320 = vpop.permute.xlu0 %7319
    %7323 = vset.pattern.permute.xlu0 7
    %7324 = vperm.xlu0 %7323, %v7292
    %v7325 = vpop.permute.xlu0 %7324
    %7328 = vset.pattern.permute.xlu0 7
    %7329 = vperm.xlu0 %7328, %v7293
    %v7330 = vpop.permute.xlu0 %7329
    %7333 = vset.pattern.permute.xlu0 7
    %7334 = vperm.xlu0 %7333, %v7294
    %v7335 = vpop.permute.xlu0 %7334
    %7338 = vset.pattern.permute.xlu0 7
    %7339 = vperm.xlu0 %7338, %v7295
    %v7340 = vpop.permute.xlu0 %7339
    %7343 = vset.pattern.permute.xlu0 7
    %7344 = vperm.xlu0 %7343, %v7296
    %v7345 = vpop.permute.xlu0 %7344
    %v7347 = vlaneseq
    %v7348 = vshrl.u32 %v7347, 7
    %v7349 = vsub.s32 7, %v7348
    %v7350 = vrot.slane %v7277, %v7349
    %v7351 = vlaneseq
    %v7352 = vshrl.u32 %v7351, 7
    %v7353 = vsub.s32 7, %v7352
    %v7354 = vrot.slane %v7278, %v7353
    %v7355 = vlaneseq
    %v7356 = vshrl.u32 %v7355, 7
    %v7357 = vsub.s32 7, %v7356
    %v7358 = vrot.slane %v7279, %v7357
    %v7359 = vlaneseq
    %v7360 = vshrl.u32 %v7359, 7
    %v7361 = vsub.s32 7, %v7360
    %v7362 = vrot.slane %v7280, %v7361
    %v7363 = vlaneseq
    %v7364 = vshrl.u32 %v7363, 7
    %v7365 = vsub.s32 7, %v7364
    %v7366 = vrot.slane %v7281, %v7365
    %v7367 = vlaneseq
    %v7368 = vshrl.u32 %v7367, 7
    %v7369 = vsub.s32 7, %v7368
    %v7370 = vrot.slane %v7282, %v7369
    %v7371 = vlaneseq
    %v7372 = vshrl.u32 %v7371, 7
    %v7373 = vsub.s32 7, %v7372
    %v7374 = vrot.slane %v7283, %v7373
    %v7375 = vlaneseq
    %v7376 = vshrl.u32 %v7375, 7
    %v7377 = vsub.s32 7, %v7376
    %v7378 = vrot.slane %v7284, %v7377
    %v7379 = vlaneseq
    %v7380 = vshrl.u32 %v7379, 7
    %v7381 = vsub.s32 7, %v7380
    %v7382 = vrot.slane %v7285, %v7381
    %v7383 = vlaneseq
    %v7384 = vshrl.u32 %v7383, 7
    %v7385 = vsub.s32 7, %v7384
    %v7386 = vrot.slane %v7286, %v7385
    %v7387 = vmul.f32 %v7300, %v7350
    %v7388 = vmul.f32 %v7305, %v7354
    %v7389 = vmul.f32 %v7310, %v7358
    %v7390 = vmul.f32 %v7315, %v7362
    %v7391 = vmul.f32 %v7320, %v7366
    %v7392 = vmul.f32 %v7325, %v7370
    %v7393 = vmul.f32 %v7330, %v7374
    %v7394 = vmul.f32 %v7335, %v7378
    %v7395 = vmul.f32 %v7340, %v7382
    %v7396 = vmul.f32 %v7345, %v7386
    %v7397 = vsub.f32 %v7117, %v7387
    %v7398 = vsub.f32 %v7118, %v7388
    %v7399 = vsub.f32 %v7119, %v7389
    %v7400 = vsub.f32 %v7120, %v7390
    %v7401 = vsub.f32 %v7121, %v7391
    %v7402 = vsub.f32 %v7122, %v7392
    %v7403 = vsub.f32 %v7123, %v7393
    %v7404 = vsub.f32 %v7124, %v7394
    %v7405 = vsub.f32 %v7125, %v7395
    %v7406 = vsub.f32 %v7126, %v7396
    %v7408 = vsel %vm503, %v7397, 0
    %7410 = vmatprep.subr.mxu0 0.0
    %7411 = vmatpush1.msra.mxu0 0.0
    %7412 = vmatprep.subr.mxu0 0.0
    %7413 = vmatpush1.msra.mxu0 0.0
    %7414 = vmatprep.subr.mxu0 0.0
    %7415 = vmatpush1.msra.mxu0 0.0
    %7416 = vmatprep.subr.mxu0 0.0
    %7417 = vmatpush1.msra.mxu0 0.0
    %7418 = vmatprep.subr.mxu0 0.0
    %7419 = vmatpush1.msra.mxu0 0.0
    %7420 = vmatprep.subr.mxu0 0.0
    %7421 = vmatpush1.msra.mxu0 0.0
    %7422 = vmatprep.subr.mxu0 0.0
    %7423 = vmatpush1.msra.mxu0 0.0
    %7424 = vmatprep.subr.mxu0 0.0
    %7425 = vmatpush1.msra.mxu0 0.0
    %7426 = vmatprep.subr.mxu0 0.0
    %7427 = vmatpush1.msra.mxu0 0.0
    %7428 = vmatprep.subr.mxu0 0.0
    %7429 = vmatpush1.msra.mxu0 0.0
    %7430 = vmatprep.subr.mxu0 0.0
    %7431 = vmatpush1.msra.mxu0 0.0
    %7432 = vmatprep.subr.mxu0 0.0
    %7433 = vmatpush1.msra.mxu0 0.0
    %7434 = vmatprep.subr.mxu0 0.0
    %7435 = vmatpush1.msra.mxu0 0.0
    %7436 = vmatprep.subr.mxu0 0.0
    %7437 = vmatpush1.msra.mxu0 0.0
    %7438 = vmatprep.subr.mxu0 0.0
    %7439 = vmatpush1.msra.mxu0 0.0
    %7440 = vmatprep.subr.mxu0 0.0
    %7441 = vmatpush1.msra.mxu0 %v4254
    %7442 = vmatprep.subr.mxu0 0.0
    %7443 = vmatpush2.msra.mxu0 0.0
    %7444 = vmatprep.subr.mxu0 0.0
    %7445 = vmatpush2.msra.mxu0 0.0
    %7446 = vmatprep.subr.mxu0 0.0
    %7447 = vmatpush2.msra.mxu0 0.0
    %7448 = vmatprep.subr.mxu0 0.0
    %7449 = vmatpush2.msra.mxu0 0.0
    %7450 = vmatprep.subr.mxu0 0.0
    %7451 = vmatpush2.msra.mxu0 0.0
    %7452 = vmatprep.subr.mxu0 0.0
    %7453 = vmatpush2.msra.mxu0 0.0
    %7454 = vmatprep.subr.mxu0 0.0
    %7455 = vmatpush2.msra.mxu0 0.0
    %7456 = vmatprep.subr.mxu0 0.0
    %7457 = vmatpush2.msra.mxu0 0.0
    %7458 = vmatprep.subr.mxu0 0.0
    %7459 = vmatpush2.msra.mxu0 0.0
    %7460 = vmatprep.subr.mxu0 0.0
    %7461 = vmatpush2.msra.mxu0 0.0
    %7462 = vmatprep.subr.mxu0 0.0
    %7463 = vmatpush2.msra.mxu0 0.0
    %7464 = vmatprep.subr.mxu0 0.0
    %7465 = vmatpush2.msra.mxu0 0.0
    %7466 = vmatprep.subr.mxu0 0.0
    %7467 = vmatpush2.msra.mxu0 0.0
    %7468 = vmatprep.subr.mxu0 0.0
    %7469 = vmatpush2.msra.mxu0 0.0
    %7470 = vmatprep.subr.mxu0 0.0
    %7471 = vmatpush2.msra.mxu0 0.0
    %7472 = vmatprep.subr.mxu0 0.0
    %7473 = vmatpush2.msra.mxu0 0.0
    %7474 = vmatprep.mubr.f32.mxu0 0.0
    %7475 = vmatmul.mubr.f32.gmra.mxu0 %v7408
    %v7476 = vpop.f32.mrf.mxu0
    %v7477 = vadd.f32 0.0, %v7476
    %v7478 = vpop.f32.mrf.mxu0
    %7479 = vdwg.mxu0
    %v7481 = vsel %vm503, %v7398, 0
    %7483 = vmatprep.subr.mxu0 0.0
    %7484 = vmatpush1.msra.mxu0 0.0
    %7485 = vmatprep.subr.mxu0 0.0
    %7486 = vmatpush1.msra.mxu0 0.0
    %7487 = vmatprep.subr.mxu0 0.0
    %7488 = vmatpush1.msra.mxu0 0.0
    %7489 = vmatprep.subr.mxu0 0.0
    %7490 = vmatpush1.msra.mxu0 0.0
    %7491 = vmatprep.subr.mxu0 0.0
    %7492 = vmatpush1.msra.mxu0 0.0
    %7493 = vmatprep.subr.mxu0 0.0
    %7494 = vmatpush1.msra.mxu0 0.0
    %7495 = vmatprep.subr.mxu0 0.0
    %7496 = vmatpush1.msra.mxu0 0.0
    %7497 = vmatprep.subr.mxu0 0.0
    %7498 = vmatpush1.msra.mxu0 0.0
    %7499 = vmatprep.subr.mxu0 0.0
    %7500 = vmatpush1.msra.mxu0 0.0
    %7501 = vmatprep.subr.mxu0 0.0
    %7502 = vmatpush1.msra.mxu0 0.0
    %7503 = vmatprep.subr.mxu0 0.0
    %7504 = vmatpush1.msra.mxu0 0.0
    %7505 = vmatprep.subr.mxu0 0.0
    %7506 = vmatpush1.msra.mxu0 0.0
    %7507 = vmatprep.subr.mxu0 0.0
    %7508 = vmatpush1.msra.mxu0 0.0
    %7509 = vmatprep.subr.mxu0 0.0
    %7510 = vmatpush1.msra.mxu0 0.0
    %7511 = vmatprep.subr.mxu0 0.0
    %7512 = vmatpush1.msra.mxu0 0.0
    %7513 = vmatprep.subr.mxu0 0.0
    %7514 = vmatpush1.msra.mxu0 %v4255
    %7515 = vmatprep.subr.mxu0 0.0
    %7516 = vmatpush2.msra.mxu0 0.0
    %7517 = vmatprep.subr.mxu0 0.0
    %7518 = vmatpush2.msra.mxu0 0.0
    %7519 = vmatprep.subr.mxu0 0.0
    %7520 = vmatpush2.msra.mxu0 0.0
    %7521 = vmatprep.subr.mxu0 0.0
    %7522 = vmatpush2.msra.mxu0 0.0
    %7523 = vmatprep.subr.mxu0 0.0
    %7524 = vmatpush2.msra.mxu0 0.0
    %7525 = vmatprep.subr.mxu0 0.0
    %7526 = vmatpush2.msra.mxu0 0.0
    %7527 = vmatprep.subr.mxu0 0.0
    %7528 = vmatpush2.msra.mxu0 0.0
    %7529 = vmatprep.subr.mxu0 0.0
    %7530 = vmatpush2.msra.mxu0 0.0
    %7531 = vmatprep.subr.mxu0 0.0
    %7532 = vmatpush2.msra.mxu0 0.0
    %7533 = vmatprep.subr.mxu0 0.0
    %7534 = vmatpush2.msra.mxu0 0.0
    %7535 = vmatprep.subr.mxu0 0.0
    %7536 = vmatpush2.msra.mxu0 0.0
    %7537 = vmatprep.subr.mxu0 0.0
    %7538 = vmatpush2.msra.mxu0 0.0
    %7539 = vmatprep.subr.mxu0 0.0
    %7540 = vmatpush2.msra.mxu0 0.0
    %7541 = vmatprep.subr.mxu0 0.0
    %7542 = vmatpush2.msra.mxu0 0.0
    %7543 = vmatprep.subr.mxu0 0.0
    %7544 = vmatpush2.msra.mxu0 0.0
    %7545 = vmatprep.subr.mxu0 0.0
    %7546 = vmatpush2.msra.mxu0 0.0
    %7547 = vmatprep.mubr.f32.mxu0 0.0
    %7548 = vmatmul.mubr.f32.gmra.mxu0 %v7481
    %v7549 = vpop.f32.mrf.mxu0
    %v7550 = vadd.f32 0.0, %v7549
    %v7551 = vpop.f32.mrf.mxu0
    %7552 = vdwg.mxu0
    %v7554 = vsel %vm503, %v4481, 0
    %7556 = vmatprep.subr.mxu0 0.0
    %7557 = vmatpush1.msra.mxu0 0.0
    %7558 = vmatprep.subr.mxu0 0.0
    %7559 = vmatpush1.msra.mxu0 0.0
    %7560 = vmatprep.subr.mxu0 0.0
    %7561 = vmatpush1.msra.mxu0 0.0
    %7562 = vmatprep.subr.mxu0 0.0
    %7563 = vmatpush1.msra.mxu0 0.0
    %7564 = vmatprep.subr.mxu0 0.0
    %7565 = vmatpush1.msra.mxu0 0.0
    %7566 = vmatprep.subr.mxu0 0.0
    %7567 = vmatpush1.msra.mxu0 0.0
    %7568 = vmatprep.subr.mxu0 0.0
    %7569 = vmatpush1.msra.mxu0 0.0
    %7570 = vmatprep.subr.mxu0 0.0
    %7571 = vmatpush1.msra.mxu0 0.0
    %7572 = vmatprep.subr.mxu0 0.0
    %7573 = vmatpush1.msra.mxu0 0.0
    %7574 = vmatprep.subr.mxu0 0.0
    %7575 = vmatpush1.msra.mxu0 0.0
    %7576 = vmatprep.subr.mxu0 0.0
    %7577 = vmatpush1.msra.mxu0 0.0
    %7578 = vmatprep.subr.mxu0 0.0
    %7579 = vmatpush1.msra.mxu0 0.0
    %7580 = vmatprep.subr.mxu0 0.0
    %7581 = vmatpush1.msra.mxu0 0.0
    %7582 = vmatprep.subr.mxu0 0.0
    %7583 = vmatpush1.msra.mxu0 0.0
    %7584 = vmatprep.subr.mxu0 0.0
    %7585 = vmatpush1.msra.mxu0 0.0
    %7586 = vmatprep.subr.mxu0 0.0
    %7587 = vmatpush1.msra.mxu0 %v7399
    %7588 = vmatprep.subr.mxu0 0.0
    %7589 = vmatpush2.msra.mxu0 0.0
    %7590 = vmatprep.subr.mxu0 0.0
    %7591 = vmatpush2.msra.mxu0 0.0
    %7592 = vmatprep.subr.mxu0 0.0
    %7593 = vmatpush2.msra.mxu0 0.0
    %7594 = vmatprep.subr.mxu0 0.0
    %7595 = vmatpush2.msra.mxu0 0.0
    %7596 = vmatprep.subr.mxu0 0.0
    %7597 = vmatpush2.msra.mxu0 0.0
    %7598 = vmatprep.subr.mxu0 0.0
    %7599 = vmatpush2.msra.mxu0 0.0
    %7600 = vmatprep.subr.mxu0 0.0
    %7601 = vmatpush2.msra.mxu0 0.0
    %7602 = vmatprep.subr.mxu0 0.0
    %7603 = vmatpush2.msra.mxu0 0.0
    %7604 = vmatprep.subr.mxu0 0.0
    %7605 = vmatpush2.msra.mxu0 0.0
    %7606 = vmatprep.subr.mxu0 0.0
    %7607 = vmatpush2.msra.mxu0 0.0
    %7608 = vmatprep.subr.mxu0 0.0
    %7609 = vmatpush2.msra.mxu0 0.0
    %7610 = vmatprep.subr.mxu0 0.0
    %7611 = vmatpush2.msra.mxu0 0.0
    %7612 = vmatprep.subr.mxu0 0.0
    %7613 = vmatpush2.msra.mxu0 0.0
    %7614 = vmatprep.subr.mxu0 0.0
    %7615 = vmatpush2.msra.mxu0 0.0
    %7616 = vmatprep.subr.mxu0 0.0
    %7617 = vmatpush2.msra.mxu0 0.0
    %7618 = vmatprep.subr.mxu0 0.0
    %7619 = vmatpush2.msra.mxu0 0.0
    %7620 = vmatprep.mubr.f32.mxu0 0.0
    %7621 = vmatmul.mubr.f32.gmra.mxu0 %v7554
    %v7622 = vpop.f32.mrf.mxu0
    %v7623 = vadd.f32 0.0, %v7622
    %v7624 = vpop.f32.mrf.mxu0
    %7625 = vdwg.mxu0
    %v7627 = vsel %vm503, %v4486, 0
    %7629 = vmatprep.subr.mxu0 0.0
    %7630 = vmatpush1.msra.mxu0 0.0
    %7631 = vmatprep.subr.mxu0 0.0
    %7632 = vmatpush1.msra.mxu0 0.0
    %7633 = vmatprep.subr.mxu0 0.0
    %7634 = vmatpush1.msra.mxu0 0.0
    %7635 = vmatprep.subr.mxu0 0.0
    %7636 = vmatpush1.msra.mxu0 0.0
    %7637 = vmatprep.subr.mxu0 0.0
    %7638 = vmatpush1.msra.mxu0 0.0
    %7639 = vmatprep.subr.mxu0 0.0
    %7640 = vmatpush1.msra.mxu0 0.0
    %7641 = vmatprep.subr.mxu0 0.0
    %7642 = vmatpush1.msra.mxu0 0.0
    %7643 = vmatprep.subr.mxu0 0.0
    %7644 = vmatpush1.msra.mxu0 0.0
    %7645 = vmatprep.subr.mxu0 0.0
    %7646 = vmatpush1.msra.mxu0 0.0
    %7647 = vmatprep.subr.mxu0 0.0
    %7648 = vmatpush1.msra.mxu0 0.0
    %7649 = vmatprep.subr.mxu0 0.0
    %7650 = vmatpush1.msra.mxu0 0.0
    %7651 = vmatprep.subr.mxu0 0.0
    %7652 = vmatpush1.msra.mxu0 0.0
    %7653 = vmatprep.subr.mxu0 0.0
    %7654 = vmatpush1.msra.mxu0 0.0
    %7655 = vmatprep.subr.mxu0 0.0
    %7656 = vmatpush1.msra.mxu0 0.0
    %7657 = vmatprep.subr.mxu0 0.0
    %7658 = vmatpush1.msra.mxu0 0.0
    %7659 = vmatprep.subr.mxu0 0.0
    %7660 = vmatpush1.msra.mxu0 %v7400
    %7661 = vmatprep.subr.mxu0 0.0
    %7662 = vmatpush2.msra.mxu0 0.0
    %7663 = vmatprep.subr.mxu0 0.0
    %7664 = vmatpush2.msra.mxu0 0.0
    %7665 = vmatprep.subr.mxu0 0.0
    %7666 = vmatpush2.msra.mxu0 0.0
    %7667 = vmatprep.subr.mxu0 0.0
    %7668 = vmatpush2.msra.mxu0 0.0
    %7669 = vmatprep.subr.mxu0 0.0
    %7670 = vmatpush2.msra.mxu0 0.0
    %7671 = vmatprep.subr.mxu0 0.0
    %7672 = vmatpush2.msra.mxu0 0.0
    %7673 = vmatprep.subr.mxu0 0.0
    %7674 = vmatpush2.msra.mxu0 0.0
    %7675 = vmatprep.subr.mxu0 0.0
    %7676 = vmatpush2.msra.mxu0 0.0
    %7677 = vmatprep.subr.mxu0 0.0
    %7678 = vmatpush2.msra.mxu0 0.0
    %7679 = vmatprep.subr.mxu0 0.0
    %7680 = vmatpush2.msra.mxu0 0.0
    %7681 = vmatprep.subr.mxu0 0.0
    %7682 = vmatpush2.msra.mxu0 0.0
    %7683 = vmatprep.subr.mxu0 0.0
    %7684 = vmatpush2.msra.mxu0 0.0
    %7685 = vmatprep.subr.mxu0 0.0
    %7686 = vmatpush2.msra.mxu0 0.0
    %7687 = vmatprep.subr.mxu0 0.0
    %7688 = vmatpush2.msra.mxu0 0.0
    %7689 = vmatprep.subr.mxu0 0.0
    %7690 = vmatpush2.msra.mxu0 0.0
    %7691 = vmatprep.subr.mxu0 0.0
    %7692 = vmatpush2.msra.mxu0 0.0
    %7693 = vmatprep.mubr.f32.mxu0 0.0
    %7694 = vmatmul.mubr.f32.gmra.mxu0 %v7627
    %v7695 = vpop.f32.mrf.mxu0
    %v7696 = vadd.f32 0.0, %v7695
    %v7697 = vpop.f32.mrf.mxu0
    %7698 = vdwg.mxu0
    %7699 = vrot.lane.b32.xlu0 %v4481, 120
    %v7700 = vpop.permute.xlu0 %7699
    %v7701 = vsel %vm503, %v7700, 0
    %7703 = vmatprep.subr.mxu0 0.0
    %7704 = vmatpush1.msra.mxu0 0.0
    %7705 = vmatprep.subr.mxu0 0.0
    %7706 = vmatpush1.msra.mxu0 0.0
    %7707 = vmatprep.subr.mxu0 0.0
    %7708 = vmatpush1.msra.mxu0 0.0
    %7709 = vmatprep.subr.mxu0 0.0
    %7710 = vmatpush1.msra.mxu0 0.0
    %7711 = vmatprep.subr.mxu0 0.0
    %7712 = vmatpush1.msra.mxu0 0.0
    %7713 = vmatprep.subr.mxu0 0.0
    %7714 = vmatpush1.msra.mxu0 0.0
    %7715 = vmatprep.subr.mxu0 0.0
    %7716 = vmatpush1.msra.mxu0 0.0
    %7717 = vmatprep.subr.mxu0 0.0
    %7718 = vmatpush1.msra.mxu0 0.0
    %7719 = vmatprep.subr.mxu0 0.0
    %7720 = vmatpush1.msra.mxu0 0.0
    %7721 = vmatprep.subr.mxu0 0.0
    %7722 = vmatpush1.msra.mxu0 0.0
    %7723 = vmatprep.subr.mxu0 0.0
    %7724 = vmatpush1.msra.mxu0 0.0
    %7725 = vmatprep.subr.mxu0 0.0
    %7726 = vmatpush1.msra.mxu0 0.0
    %7727 = vmatprep.subr.mxu0 0.0
    %7728 = vmatpush1.msra.mxu0 0.0
    %7729 = vmatprep.subr.mxu0 0.0
    %7730 = vmatpush1.msra.mxu0 0.0
    %7731 = vmatprep.subr.mxu0 0.0
    %7732 = vmatpush1.msra.mxu0 0.0
    %7733 = vmatprep.subr.mxu0 0.0
    %7734 = vmatpush1.msra.mxu0 %v7401
    %7735 = vmatprep.subr.mxu0 0.0
    %7736 = vmatpush2.msra.mxu0 0.0
    %7737 = vmatprep.subr.mxu0 0.0
    %7738 = vmatpush2.msra.mxu0 0.0
    %7739 = vmatprep.subr.mxu0 0.0
    %7740 = vmatpush2.msra.mxu0 0.0
    %7741 = vmatprep.subr.mxu0 0.0
    %7742 = vmatpush2.msra.mxu0 0.0
    %7743 = vmatprep.subr.mxu0 0.0
    %7744 = vmatpush2.msra.mxu0 0.0
    %7745 = vmatprep.subr.mxu0 0.0
    %7746 = vmatpush2.msra.mxu0 0.0
    %7747 = vmatprep.subr.mxu0 0.0
    %7748 = vmatpush2.msra.mxu0 0.0
    %7749 = vmatprep.subr.mxu0 0.0
    %7750 = vmatpush2.msra.mxu0 0.0
    %7751 = vmatprep.subr.mxu0 0.0
    %7752 = vmatpush2.msra.mxu0 0.0
    %7753 = vmatprep.subr.mxu0 0.0
    %7754 = vmatpush2.msra.mxu0 0.0
    %7755 = vmatprep.subr.mxu0 0.0
    %7756 = vmatpush2.msra.mxu0 0.0
    %7757 = vmatprep.subr.mxu0 0.0
    %7758 = vmatpush2.msra.mxu0 0.0
    %7759 = vmatprep.subr.mxu0 0.0
    %7760 = vmatpush2.msra.mxu0 0.0
    %7761 = vmatprep.subr.mxu0 0.0
    %7762 = vmatpush2.msra.mxu0 0.0
    %7763 = vmatprep.subr.mxu0 0.0
    %7764 = vmatpush2.msra.mxu0 0.0
    %7765 = vmatprep.subr.mxu0 0.0
    %7766 = vmatpush2.msra.mxu0 0.0
    %7767 = vmatprep.mubr.f32.mxu0 0.0
    %7768 = vmatmul.mubr.f32.gmra.mxu0 %v7701
    %v7769 = vpop.f32.mrf.mxu0
    %v7770 = vadd.f32 0.0, %v7769
    %v7771 = vpop.f32.mrf.mxu0
    %7772 = vdwg.mxu0
    %7773 = vrot.lane.b32.xlu0 %v4486, 120
    %v7774 = vpop.permute.xlu0 %7773
    %v7775 = vsel %vm503, %v7774, 0
    %7777 = vmatprep.subr.mxu0 0.0
    %7778 = vmatpush1.msra.mxu0 0.0
    %7779 = vmatprep.subr.mxu0 0.0
    %7780 = vmatpush1.msra.mxu0 0.0
    %7781 = vmatprep.subr.mxu0 0.0
    %7782 = vmatpush1.msra.mxu0 0.0
    %7783 = vmatprep.subr.mxu0 0.0
    %7784 = vmatpush1.msra.mxu0 0.0
    %7785 = vmatprep.subr.mxu0 0.0
    %7786 = vmatpush1.msra.mxu0 0.0
    %7787 = vmatprep.subr.mxu0 0.0
    %7788 = vmatpush1.msra.mxu0 0.0
    %7789 = vmatprep.subr.mxu0 0.0
    %7790 = vmatpush1.msra.mxu0 0.0
    %7791 = vmatprep.subr.mxu0 0.0
    %7792 = vmatpush1.msra.mxu0 0.0
    %7793 = vmatprep.subr.mxu0 0.0
    %7794 = vmatpush1.msra.mxu0 0.0
    %7795 = vmatprep.subr.mxu0 0.0
    %7796 = vmatpush1.msra.mxu0 0.0
    %7797 = vmatprep.subr.mxu0 0.0
    %7798 = vmatpush1.msra.mxu0 0.0
    %7799 = vmatprep.subr.mxu0 0.0
    %7800 = vmatpush1.msra.mxu0 0.0
    %7801 = vmatprep.subr.mxu0 0.0
    %7802 = vmatpush1.msra.mxu0 0.0
    %7803 = vmatprep.subr.mxu0 0.0
    %7804 = vmatpush1.msra.mxu0 0.0
    %7805 = vmatprep.subr.mxu0 0.0
    %7806 = vmatpush1.msra.mxu0 0.0
    %7807 = vmatprep.subr.mxu0 0.0
    %7808 = vmatpush1.msra.mxu0 %v7402
    %7809 = vmatprep.subr.mxu0 0.0
    %7810 = vmatpush2.msra.mxu0 0.0
    %7811 = vmatprep.subr.mxu0 0.0
    %7812 = vmatpush2.msra.mxu0 0.0
    %7813 = vmatprep.subr.mxu0 0.0
    %7814 = vmatpush2.msra.mxu0 0.0
    %7815 = vmatprep.subr.mxu0 0.0
    %7816 = vmatpush2.msra.mxu0 0.0
    %7817 = vmatprep.subr.mxu0 0.0
    %7818 = vmatpush2.msra.mxu0 0.0
    %7819 = vmatprep.subr.mxu0 0.0
    %7820 = vmatpush2.msra.mxu0 0.0
    %7821 = vmatprep.subr.mxu0 0.0
    %7822 = vmatpush2.msra.mxu0 0.0
    %7823 = vmatprep.subr.mxu0 0.0
    %7824 = vmatpush2.msra.mxu0 0.0
    %7825 = vmatprep.subr.mxu0 0.0
    %7826 = vmatpush2.msra.mxu0 0.0
    %7827 = vmatprep.subr.mxu0 0.0
    %7828 = vmatpush2.msra.mxu0 0.0
    %7829 = vmatprep.subr.mxu0 0.0
    %7830 = vmatpush2.msra.mxu0 0.0
    %7831 = vmatprep.subr.mxu0 0.0
    %7832 = vmatpush2.msra.mxu0 0.0
    %7833 = vmatprep.subr.mxu0 0.0
    %7834 = vmatpush2.msra.mxu0 0.0
    %7835 = vmatprep.subr.mxu0 0.0
    %7836 = vmatpush2.msra.mxu0 0.0
    %7837 = vmatprep.subr.mxu0 0.0
    %7838 = vmatpush2.msra.mxu0 0.0
    %7839 = vmatprep.subr.mxu0 0.0
    %7840 = vmatpush2.msra.mxu0 0.0
    %7841 = vmatprep.mubr.f32.mxu0 0.0
    %7842 = vmatmul.mubr.f32.gmra.mxu0 %v7775
    %v7843 = vpop.f32.mrf.mxu0
    %v7844 = vadd.f32 0.0, %v7843
    %v7845 = vpop.f32.mrf.mxu0
    %7846 = vdwg.mxu0
    %7847 = vrot.lane.b32.xlu0 %v4481, 112
    %v7848 = vpop.permute.xlu0 %7847
    %v7849 = vsel %vm503, %v7848, 0
    %7851 = vmatprep.subr.mxu0 0.0
    %7852 = vmatpush1.msra.mxu0 0.0
    %7853 = vmatprep.subr.mxu0 0.0
    %7854 = vmatpush1.msra.mxu0 0.0
    %7855 = vmatprep.subr.mxu0 0.0
    %7856 = vmatpush1.msra.mxu0 0.0
    %7857 = vmatprep.subr.mxu0 0.0
    %7858 = vmatpush1.msra.mxu0 0.0
    %7859 = vmatprep.subr.mxu0 0.0
    %7860 = vmatpush1.msra.mxu0 0.0
    %7861 = vmatprep.subr.mxu0 0.0
    %7862 = vmatpush1.msra.mxu0 0.0
    %7863 = vmatprep.subr.mxu0 0.0
    %7864 = vmatpush1.msra.mxu0 0.0
    %7865 = vmatprep.subr.mxu0 0.0
    %7866 = vmatpush1.msra.mxu0 0.0
    %7867 = vmatprep.subr.mxu0 0.0
    %7868 = vmatpush1.msra.mxu0 0.0
    %7869 = vmatprep.subr.mxu0 0.0
    %7870 = vmatpush1.msra.mxu0 0.0
    %7871 = vmatprep.subr.mxu0 0.0
    %7872 = vmatpush1.msra.mxu0 0.0
    %7873 = vmatprep.subr.mxu0 0.0
    %7874 = vmatpush1.msra.mxu0 0.0
    %7875 = vmatprep.subr.mxu0 0.0
    %7876 = vmatpush1.msra.mxu0 0.0
    %7877 = vmatprep.subr.mxu0 0.0
    %7878 = vmatpush1.msra.mxu0 0.0
    %7879 = vmatprep.subr.mxu0 0.0
    %7880 = vmatpush1.msra.mxu0 0.0
    %7881 = vmatprep.subr.mxu0 0.0
    %7882 = vmatpush1.msra.mxu0 %v7403
    %7883 = vmatprep.subr.mxu0 0.0
    %7884 = vmatpush2.msra.mxu0 0.0
    %7885 = vmatprep.subr.mxu0 0.0
    %7886 = vmatpush2.msra.mxu0 0.0
    %7887 = vmatprep.subr.mxu0 0.0
    %7888 = vmatpush2.msra.mxu0 0.0
    %7889 = vmatprep.subr.mxu0 0.0
    %7890 = vmatpush2.msra.mxu0 0.0
    %7891 = vmatprep.subr.mxu0 0.0
    %7892 = vmatpush2.msra.mxu0 0.0
    %7893 = vmatprep.subr.mxu0 0.0
    %7894 = vmatpush2.msra.mxu0 0.0
    %7895 = vmatprep.subr.mxu0 0.0
    %7896 = vmatpush2.msra.mxu0 0.0
    %7897 = vmatprep.subr.mxu0 0.0
    %7898 = vmatpush2.msra.mxu0 0.0
    %7899 = vmatprep.subr.mxu0 0.0
    %7900 = vmatpush2.msra.mxu0 0.0
    %7901 = vmatprep.subr.mxu0 0.0
    %7902 = vmatpush2.msra.mxu0 0.0
    %7903 = vmatprep.subr.mxu0 0.0
    %7904 = vmatpush2.msra.mxu0 0.0
    %7905 = vmatprep.subr.mxu0 0.0
    %7906 = vmatpush2.msra.mxu0 0.0
    %7907 = vmatprep.subr.mxu0 0.0
    %7908 = vmatpush2.msra.mxu0 0.0
    %7909 = vmatprep.subr.mxu0 0.0
    %7910 = vmatpush2.msra.mxu0 0.0
    %7911 = vmatprep.subr.mxu0 0.0
    %7912 = vmatpush2.msra.mxu0 0.0
    %7913 = vmatprep.subr.mxu0 0.0
    %7914 = vmatpush2.msra.mxu0 0.0
    %7915 = vmatprep.mubr.f32.mxu0 0.0
    %7916 = vmatmul.mubr.f32.gmra.mxu0 %v7849
    %v7917 = vpop.f32.mrf.mxu0
    %v7918 = vadd.f32 0.0, %v7917
    %v7919 = vpop.f32.mrf.mxu0
    %7920 = vdwg.mxu0
    %7921 = vrot.lane.b32.xlu0 %v4486, 112
    %v7922 = vpop.permute.xlu0 %7921
    %v7923 = vsel %vm503, %v7922, 0
    %7925 = vmatprep.subr.mxu0 0.0
    %7926 = vmatpush1.msra.mxu0 0.0
    %7927 = vmatprep.subr.mxu0 0.0
    %7928 = vmatpush1.msra.mxu0 0.0
    %7929 = vmatprep.subr.mxu0 0.0
    %7930 = vmatpush1.msra.mxu0 0.0
    %7931 = vmatprep.subr.mxu0 0.0
    %7932 = vmatpush1.msra.mxu0 0.0
    %7933 = vmatprep.subr.mxu0 0.0
    %7934 = vmatpush1.msra.mxu0 0.0
    %7935 = vmatprep.subr.mxu0 0.0
    %7936 = vmatpush1.msra.mxu0 0.0
    %7937 = vmatprep.subr.mxu0 0.0
    %7938 = vmatpush1.msra.mxu0 0.0
    %7939 = vmatprep.subr.mxu0 0.0
    %7940 = vmatpush1.msra.mxu0 0.0
    %7941 = vmatprep.subr.mxu0 0.0
    %7942 = vmatpush1.msra.mxu0 0.0
    %7943 = vmatprep.subr.mxu0 0.0
    %7944 = vmatpush1.msra.mxu0 0.0
    %7945 = vmatprep.subr.mxu0 0.0
    %7946 = vmatpush1.msra.mxu0 0.0
    %7947 = vmatprep.subr.mxu0 0.0
    %7948 = vmatpush1.msra.mxu0 0.0
    %7949 = vmatprep.subr.mxu0 0.0
    %7950 = vmatpush1.msra.mxu0 0.0
    %7951 = vmatprep.subr.mxu0 0.0
    %7952 = vmatpush1.msra.mxu0 0.0
    %7953 = vmatprep.subr.mxu0 0.0
    %7954 = vmatpush1.msra.mxu0 0.0
    %7955 = vmatprep.subr.mxu0 0.0
    %7956 = vmatpush1.msra.mxu0 %v7404
    %7957 = vmatprep.subr.mxu0 0.0
    %7958 = vmatpush2.msra.mxu0 0.0
    %7959 = vmatprep.subr.mxu0 0.0
    %7960 = vmatpush2.msra.mxu0 0.0
    %7961 = vmatprep.subr.mxu0 0.0
    %7962 = vmatpush2.msra.mxu0 0.0
    %7963 = vmatprep.subr.mxu0 0.0
    %7964 = vmatpush2.msra.mxu0 0.0
    %7965 = vmatprep.subr.mxu0 0.0
    %7966 = vmatpush2.msra.mxu0 0.0
    %7967 = vmatprep.subr.mxu0 0.0
    %7968 = vmatpush2.msra.mxu0 0.0
    %7969 = vmatprep.subr.mxu0 0.0
    %7970 = vmatpush2.msra.mxu0 0.0
    %7971 = vmatprep.subr.mxu0 0.0
    %7972 = vmatpush2.msra.mxu0 0.0
    %7973 = vmatprep.subr.mxu0 0.0
    %7974 = vmatpush2.msra.mxu0 0.0
    %7975 = vmatprep.subr.mxu0 0.0
    %7976 = vmatpush2.msra.mxu0 0.0
    %7977 = vmatprep.subr.mxu0 0.0
    %7978 = vmatpush2.msra.mxu0 0.0
    %7979 = vmatprep.subr.mxu0 0.0
    %7980 = vmatpush2.msra.mxu0 0.0
    %7981 = vmatprep.subr.mxu0 0.0
    %7982 = vmatpush2.msra.mxu0 0.0
    %7983 = vmatprep.subr.mxu0 0.0
    %7984 = vmatpush2.msra.mxu0 0.0
    %7985 = vmatprep.subr.mxu0 0.0
    %7986 = vmatpush2.msra.mxu0 0.0
    %7987 = vmatprep.subr.mxu0 0.0
    %7988 = vmatpush2.msra.mxu0 0.0
    %7989 = vmatprep.mubr.f32.mxu0 0.0
    %7990 = vmatmul.mubr.f32.gmra.mxu0 %v7923
    %v7991 = vpop.f32.mrf.mxu0
    %v7992 = vadd.f32 0.0, %v7991
    %v7993 = vpop.f32.mrf.mxu0
    %7994 = vdwg.mxu0
    %7995 = vrot.lane.b32.xlu0 %v4481, 104
    %v7996 = vpop.permute.xlu0 %7995
    %v7997 = vsel %vm503, %v7996, 0
    %7999 = vmatprep.subr.mxu0 0.0
    %8000 = vmatpush1.msra.mxu0 0.0
    %8001 = vmatprep.subr.mxu0 0.0
    %8002 = vmatpush1.msra.mxu0 0.0
    %8003 = vmatprep.subr.mxu0 0.0
    %8004 = vmatpush1.msra.mxu0 0.0
    %8005 = vmatprep.subr.mxu0 0.0
    %8006 = vmatpush1.msra.mxu0 0.0
    %8007 = vmatprep.subr.mxu0 0.0
    %8008 = vmatpush1.msra.mxu0 0.0
    %8009 = vmatprep.subr.mxu0 0.0
    %8010 = vmatpush1.msra.mxu0 0.0
    %8011 = vmatprep.subr.mxu0 0.0
    %8012 = vmatpush1.msra.mxu0 0.0
    %8013 = vmatprep.subr.mxu0 0.0
    %8014 = vmatpush1.msra.mxu0 0.0
    %8015 = vmatprep.subr.mxu0 0.0
    %8016 = vmatpush1.msra.mxu0 0.0
    %8017 = vmatprep.subr.mxu0 0.0
    %8018 = vmatpush1.msra.mxu0 0.0
    %8019 = vmatprep.subr.mxu0 0.0
    %8020 = vmatpush1.msra.mxu0 0.0
    %8021 = vmatprep.subr.mxu0 0.0
    %8022 = vmatpush1.msra.mxu0 0.0
    %8023 = vmatprep.subr.mxu0 0.0
    %8024 = vmatpush1.msra.mxu0 0.0
    %8025 = vmatprep.subr.mxu0 0.0
    %8026 = vmatpush1.msra.mxu0 0.0
    %8027 = vmatprep.subr.mxu0 0.0
    %8028 = vmatpush1.msra.mxu0 0.0
    %8029 = vmatprep.subr.mxu0 0.0
    %8030 = vmatpush1.msra.mxu0 %v7405
    %8031 = vmatprep.subr.mxu0 0.0
    %8032 = vmatpush2.msra.mxu0 0.0
    %8033 = vmatprep.subr.mxu0 0.0
    %8034 = vmatpush2.msra.mxu0 0.0
    %8035 = vmatprep.subr.mxu0 0.0
    %8036 = vmatpush2.msra.mxu0 0.0
    %8037 = vmatprep.subr.mxu0 0.0
    %8038 = vmatpush2.msra.mxu0 0.0
    %8039 = vmatprep.subr.mxu0 0.0
    %8040 = vmatpush2.msra.mxu0 0.0
    %8041 = vmatprep.subr.mxu0 0.0
    %8042 = vmatpush2.msra.mxu0 0.0
    %8043 = vmatprep.subr.mxu0 0.0
    %8044 = vmatpush2.msra.mxu0 0.0
    %8045 = vmatprep.subr.mxu0 0.0
    %8046 = vmatpush2.msra.mxu0 0.0
    %8047 = vmatprep.subr.mxu0 0.0
    %8048 = vmatpush2.msra.mxu0 0.0
    %8049 = vmatprep.subr.mxu0 0.0
    %8050 = vmatpush2.msra.mxu0 0.0
    %8051 = vmatprep.subr.mxu0 0.0
    %8052 = vmatpush2.msra.mxu0 0.0
    %8053 = vmatprep.subr.mxu0 0.0
    %8054 = vmatpush2.msra.mxu0 0.0
    %8055 = vmatprep.subr.mxu0 0.0
    %8056 = vmatpush2.msra.mxu0 0.0
    %8057 = vmatprep.subr.mxu0 0.0
    %8058 = vmatpush2.msra.mxu0 0.0
    %8059 = vmatprep.subr.mxu0 0.0
    %8060 = vmatpush2.msra.mxu0 0.0
    %8061 = vmatprep.subr.mxu0 0.0
    %8062 = vmatpush2.msra.mxu0 0.0
    %8063 = vmatprep.mubr.f32.mxu0 0.0
    %8064 = vmatmul.mubr.f32.gmra.mxu0 %v7997
    %v8065 = vpop.f32.mrf.mxu0
    %v8066 = vadd.f32 0.0, %v8065
    %v8067 = vpop.f32.mrf.mxu0
    %8068 = vdwg.mxu0
    %8069 = vrot.lane.b32.xlu0 %v4486, 104
    %v8070 = vpop.permute.xlu0 %8069
    %v8071 = vsel %vm503, %v8070, 0
    %8073 = vmatprep.subr.mxu0 0.0
    %8074 = vmatpush1.msra.mxu0 0.0
    %8075 = vmatprep.subr.mxu0 0.0
    %8076 = vmatpush1.msra.mxu0 0.0
    %8077 = vmatprep.subr.mxu0 0.0
    %8078 = vmatpush1.msra.mxu0 0.0
    %8079 = vmatprep.subr.mxu0 0.0
    %8080 = vmatpush1.msra.mxu0 0.0
    %8081 = vmatprep.subr.mxu0 0.0
    %8082 = vmatpush1.msra.mxu0 0.0
    %8083 = vmatprep.subr.mxu0 0.0
    %8084 = vmatpush1.msra.mxu0 0.0
    %8085 = vmatprep.subr.mxu0 0.0
    %8086 = vmatpush1.msra.mxu0 0.0
    %8087 = vmatprep.subr.mxu0 0.0
    %8088 = vmatpush1.msra.mxu0 0.0
    %8089 = vmatprep.subr.mxu0 0.0
    %8090 = vmatpush1.msra.mxu0 0.0
    %8091 = vmatprep.subr.mxu0 0.0
    %8092 = vmatpush1.msra.mxu0 0.0
    %8093 = vmatprep.subr.mxu0 0.0
    %8094 = vmatpush1.msra.mxu0 0.0
    %8095 = vmatprep.subr.mxu0 0.0
    %8096 = vmatpush1.msra.mxu0 0.0
    %8097 = vmatprep.subr.mxu0 0.0
    %8098 = vmatpush1.msra.mxu0 0.0
    %8099 = vmatprep.subr.mxu0 0.0
    %8100 = vmatpush1.msra.mxu0 0.0
    %8101 = vmatprep.subr.mxu0 0.0
    %8102 = vmatpush1.msra.mxu0 0.0
    %8103 = vmatprep.subr.mxu0 0.0
    %8104 = vmatpush1.msra.mxu0 %v7406
    %8105 = vmatprep.subr.mxu0 0.0
    %8106 = vmatpush2.msra.mxu0 0.0
    %8107 = vmatprep.subr.mxu0 0.0
    %8108 = vmatpush2.msra.mxu0 0.0
    %8109 = vmatprep.subr.mxu0 0.0
    %8110 = vmatpush2.msra.mxu0 0.0
    %8111 = vmatprep.subr.mxu0 0.0
    %8112 = vmatpush2.msra.mxu0 0.0
    %8113 = vmatprep.subr.mxu0 0.0
    %8114 = vmatpush2.msra.mxu0 0.0
    %8115 = vmatprep.subr.mxu0 0.0
    %8116 = vmatpush2.msra.mxu0 0.0
    %8117 = vmatprep.subr.mxu0 0.0
    %8118 = vmatpush2.msra.mxu0 0.0
    %8119 = vmatprep.subr.mxu0 0.0
    %8120 = vmatpush2.msra.mxu0 0.0
    %8121 = vmatprep.subr.mxu0 0.0
    %8122 = vmatpush2.msra.mxu0 0.0
    %8123 = vmatprep.subr.mxu0 0.0
    %8124 = vmatpush2.msra.mxu0 0.0
    %8125 = vmatprep.subr.mxu0 0.0
    %8126 = vmatpush2.msra.mxu0 0.0
    %8127 = vmatprep.subr.mxu0 0.0
    %8128 = vmatpush2.msra.mxu0 0.0
    %8129 = vmatprep.subr.mxu0 0.0
    %8130 = vmatpush2.msra.mxu0 0.0
    %8131 = vmatprep.subr.mxu0 0.0
    %8132 = vmatpush2.msra.mxu0 0.0
    %8133 = vmatprep.subr.mxu0 0.0
    %8134 = vmatpush2.msra.mxu0 0.0
    %8135 = vmatprep.subr.mxu0 0.0
    %8136 = vmatpush2.msra.mxu0 0.0
    %8137 = vmatprep.mubr.f32.mxu0 0.0
    %8138 = vmatmul.mubr.f32.gmra.mxu0 %v8071
    %v8139 = vpop.f32.mrf.mxu0
    %v8140 = vadd.f32 0.0, %v8139
    %v8141 = vpop.f32.mrf.mxu0
    %8142 = vdwg.mxu0
    %8145 = vrot.lane.b32.xlu0 %v7770, 8
    %v8146 = vpop.permute.xlu0 %8145
    %8147 = vrot.lane.b32.xlu0 %v7844, 8
    %v8148 = vpop.permute.xlu0 %8147
    %8153 = vrot.lane.b32.xlu0 %v7918, 16
    %v8154 = vpop.permute.xlu0 %8153
    %8155 = vrot.lane.b32.xlu0 %v7992, 16
    %v8156 = vpop.permute.xlu0 %8155
    %8161 = vrot.lane.b32.xlu0 %v8066, 24
    %v8162 = vpop.permute.xlu0 %8161
    %8163 = vrot.lane.b32.xlu0 %v8140, 24
    %v8164 = vpop.permute.xlu0 %8163
    %v8167 = vsel %vm503, %v7623, %v8146
    %v8168 = vsel %vm503, %v7696, %v8148
    %v8169 = vsel %vm4116, %v8167, %v8154
    %v8170 = vsel %vm4116, %v8168, %v8156
    %v8171 = vsel %vm4119, %v8169, %v8162
    %v8172 = vsel %vm4119, %v8170, %v8164
    %v8174 = vsel %vm162, %v8171, 0
    %v8177 = vsel %vm162, %v8172, 0
    %8179 = vmatprep.subr.mxu0 0.0
    %8180 = vmatpush1.msra.mxu0 0.0
    %8181 = vmatprep.subr.mxu0 0.0
    %8182 = vmatpush1.msra.mxu0 0.0
    %8183 = vmatprep.subr.mxu0 0.0
    %8184 = vmatpush1.msra.mxu0 0.0
    %8185 = vmatprep.subr.mxu0 0.0
    %8186 = vmatpush1.msra.mxu0 0.0
    %8187 = vmatprep.subr.mxu0 0.0
    %8188 = vmatpush1.msra.mxu0 0.0
    %8189 = vmatprep.subr.mxu0 0.0
    %8190 = vmatpush1.msra.mxu0 0.0
    %8191 = vmatprep.subr.mxu0 0.0
    %8192 = vmatpush1.msra.mxu0 0.0
    %8193 = vmatprep.subr.mxu0 0.0
    %8194 = vmatpush1.msra.mxu0 0.0
    %8195 = vmatprep.subr.mxu0 0.0
    %8196 = vmatpush1.msra.mxu0 0.0
    %8197 = vmatprep.subr.mxu0 0.0
    %8198 = vmatpush1.msra.mxu0 0.0
    %8199 = vmatprep.subr.mxu0 0.0
    %8200 = vmatpush1.msra.mxu0 0.0
    %8201 = vmatprep.subr.mxu0 0.0
    %8202 = vmatpush1.msra.mxu0 0.0
    %8203 = vmatprep.subr.mxu0 0.0
    %8204 = vmatpush1.msra.mxu0 %v4217
    %8205 = vmatprep.subr.mxu0 0.0
    %8206 = vmatpush1.msra.mxu0 %v4216
    %8207 = vmatprep.subr.mxu0 0.0
    %8208 = vmatpush1.msra.mxu0 %v4215
    %8209 = vmatprep.subr.mxu0 0.0
    %8210 = vmatpush1.msra.mxu0 %v4214
    %8211 = vmatprep.subr.mxu0 0.0
    %8212 = vmatpush2.msra.mxu0 0.0
    %8213 = vmatprep.subr.mxu0 0.0
    %8214 = vmatpush2.msra.mxu0 0.0
    %8215 = vmatprep.subr.mxu0 0.0
    %8216 = vmatpush2.msra.mxu0 0.0
    %8217 = vmatprep.subr.mxu0 0.0
    %8218 = vmatpush2.msra.mxu0 0.0
    %8219 = vmatprep.subr.mxu0 0.0
    %8220 = vmatpush2.msra.mxu0 0.0
    %8221 = vmatprep.subr.mxu0 0.0
    %8222 = vmatpush2.msra.mxu0 0.0
    %8223 = vmatprep.subr.mxu0 0.0
    %8224 = vmatpush2.msra.mxu0 0.0
    %8225 = vmatprep.subr.mxu0 0.0
    %8226 = vmatpush2.msra.mxu0 0.0
    %8227 = vmatprep.subr.mxu0 0.0
    %8228 = vmatpush2.msra.mxu0 0.0
    %8229 = vmatprep.subr.mxu0 0.0
    %8230 = vmatpush2.msra.mxu0 0.0
    %8231 = vmatprep.subr.mxu0 0.0
    %8232 = vmatpush2.msra.mxu0 0.0
    %8233 = vmatprep.subr.mxu0 0.0
    %8234 = vmatpush2.msra.mxu0 0.0
    %8235 = vmatprep.subr.mxu0 0.0
    %8236 = vmatpush2.msra.mxu0 0.0
    %8237 = vmatprep.subr.mxu0 0.0
    %8238 = vmatpush2.msra.mxu0 0.0
    %8239 = vmatprep.subr.mxu0 0.0
    %8240 = vmatpush2.msra.mxu0 0.0
    %8241 = vmatprep.subr.mxu0 0.0
    %8242 = vmatpush2.msra.mxu0 0.0
    %8243 = vmatprep.mubr.f32.mxu0 0.0
    %8244 = vmatmul.mubr.f32.gmra.mxu0 %v8174
    %v8245 = vpop.f32.mrf.mxu0
    %v8246 = vadd.f32 0.0, %v8245
    %v8247 = vpop.f32.mrf.mxu0
    %8248 = vmatprep.mubr.f32.mxu0 0.0
    %8249 = vmatmul.mubr.f32.gmra.mxu0 %v8177
    %v8250 = vpop.f32.mrf.mxu0
    %v8251 = vadd.f32 0.0, %v8250
    %v8252 = vpop.f32.mrf.mxu0
    %8253 = vdwg.mxu0
    %v8254 = vmul.f32 %v7477, 1600.0
    %v8255 = vmul.f32 %v7550, 1600.0
    %v8256 = vadd.f32 %v4254, %v8254
    %v8257 = vadd.f32 %v4255, %v8255
    %v8258 = vmul.f32 %v8246, 160.0
    %v8259 = vmul.f32 %v8251, 160.0
    %v8260 = vsub.f32 %v8256, %v8258
    %v8261 = vsub.f32 %v8257, %v8259
    %v8264 = vrot.slane %v8261, 7
    %vm8265 = vcmask 1041409
    %v8266 = vsel %vm8265, %v8264, %v8260
    %vm8268 = vcmask 254976
    %v8269 = vsel %vm8268, %v8266, 0.0
    %8270 = vadd.xlane.f32.xlu0 %v8269
    %v8271 = vpop.xlane.xlu0 %8270
    %v8272 = vmul.f32 %v8271, %v169
    %v8274 = vrot.slane %v8272, 1
    %v8277 = vsub.f32 %v8260, %v8272
    %v8278 = vsub.f32 %v8261, %v8274
    %v8279 = vmul.f32 %v8277, %v8277
    %v8280 = vmul.f32 %v8278, %v8278
    %v8283 = vrot.slane %v8280, 7
    %v8284 = vsel %vm8265, %v8283, %v8279
    %v8286 = vsel %vm8268, %v8284, 0.0
    %8287 = vadd.xlane.f32.xlu0 %v8286
    %v8288 = vpop.xlane.xlu0 %8287
    %v8289 = vmul.f32 %v8288, %v169
    %v8290 = vadd.f32 %v8289, 1e-05
    %v8291 = vrsqrt.pop %v8290
    %v8293 = vrot.slane %v8291, 1
    %v8296 = vmul.f32 %v8277, %v8291
    %v8297 = vmul.f32 %v8278, %v8293
    %v8298 = vld [vmem:[%s6] sm:$0x1]
    %v8300 = vlaneseq
    %v8301 = vshrl.u32 %v8300, 7
    %v8302 = vsub.s32 0, %v8301
    %v8303 = vrot.slane %v8298, %v8302
    %v8305 = vmul.f32 %v8296, %v8303
    %v8306 = vmul.f32 %v8297, %v8303
    %v8307 = vld [vmem:[%s7] sm:$0x1]
    %v8309 = vlaneseq
    %v8310 = vshrl.u32 %v8309, 7
    %v8311 = vsub.s32 0, %v8310
    %v8312 = vrot.slane %v8307, %v8311
    %v8314 = vadd.f32 %v8305, %v8312
    %v8315 = vadd.f32 %v8306, %v8312
    %v8316 = vld [vmem:[%s8] sm:$0xff]
    %v8317 = vld [vmem:[%s8 + $0x8] sm:$0xff]
    %v8318 = vld [vmem:[%s8 + $0x10] sm:$0xff]
    %v8319 = vld [vmem:[%s8 + $0x18] sm:$0xff]
    %v8320 = vld [vmem:[%s9] sm:$0x1]
    %v8322 = vlaneseq
    %v8323 = vshrl.u32 %v8322, 7
    %v8324 = vsub.s32 0, %v8323
    %v8325 = vrot.slane %v8320, %v8324
    %v8329 = vrot.slane %v8315, 7
    %v8330 = vsel %vm8265, %v8329, %v8314
    %v8331 = vsel %vm162, %v8330, 0
    %8333 = vmatprep.subr.mxu0 0.0
    %8334 = vmatpush1.msra.mxu0 0.0
    %8335 = vmatprep.subr.mxu0 0.0
    %8336 = vmatpush1.msra.mxu0 0.0
    %8337 = vmatprep.subr.mxu0 0.0
    %8338 = vmatpush1.msra.mxu0 0.0
    %8339 = vmatprep.subr.mxu0 0.0
    %8340 = vmatpush1.msra.mxu0 0.0
    %8341 = vmatprep.subr.mxu0 0.0
    %8342 = vmatpush1.msra.mxu0 0.0
    %8343 = vmatprep.subr.mxu0 0.0
    %8344 = vmatpush1.msra.mxu0 0.0
    %8345 = vmatprep.subr.mxu0 0.0
    %8346 = vmatpush1.msra.mxu0 0.0
    %8347 = vmatprep.subr.mxu0 0.0
    %8348 = vmatpush1.msra.mxu0 0.0
    %8349 = vmatprep.subr.mxu0 0.0
    %8350 = vmatpush1.msra.mxu0 0.0
    %8351 = vmatprep.subr.mxu0 0.0
    %8352 = vmatpush1.msra.mxu0 0.0
    %8353 = vmatprep.subr.mxu0 0.0
    %8354 = vmatpush1.msra.mxu0 0.0
    %8355 = vmatprep.subr.mxu0 0.0
    %8356 = vmatpush1.msra.mxu0 0.0
    %8357 = vmatprep.subr.mxu0 0.0
    %8358 = vmatpush1.msra.mxu0 %v8319
    %8359 = vmatprep.subr.mxu0 0.0
    %8360 = vmatpush1.msra.mxu0 %v8318
    %8361 = vmatprep.subr.mxu0 0.0
    %8362 = vmatpush1.msra.mxu0 %v8317
    %8363 = vmatprep.subr.mxu0 0.0
    %8364 = vmatpush1.msra.mxu0 %v8316
    %8365 = vmatprep.subr.mxu0 0.0
    %8366 = vmatpush2.msra.mxu0 0.0
    %8367 = vmatprep.subr.mxu0 0.0
    %8368 = vmatpush2.msra.mxu0 0.0
    %8369 = vmatprep.subr.mxu0 0.0
    %8370 = vmatpush2.msra.mxu0 0.0
    %8371 = vmatprep.subr.mxu0 0.0
    %8372 = vmatpush2.msra.mxu0 0.0
    %8373 = vmatprep.subr.mxu0 0.0
    %8374 = vmatpush2.msra.mxu0 0.0
    %8375 = vmatprep.subr.mxu0 0.0
    %8376 = vmatpush2.msra.mxu0 0.0
    %8377 = vmatprep.subr.mxu0 0.0
    %8378 = vmatpush2.msra.mxu0 0.0
    %8379 = vmatprep.subr.mxu0 0.0
    %8380 = vmatpush2.msra.mxu0 0.0
    %8381 = vmatprep.subr.mxu0 0.0
    %8382 = vmatpush2.msra.mxu0 0.0
    %8383 = vmatprep.subr.mxu0 0.0
    %8384 = vmatpush2.msra.mxu0 0.0
    %8385 = vmatprep.subr.mxu0 0.0
    %8386 = vmatpush2.msra.mxu0 0.0
    %8387 = vmatprep.subr.mxu0 0.0
    %8388 = vmatpush2.msra.mxu0 0.0
    %8389 = vmatprep.subr.mxu0 0.0
    %8390 = vmatpush2.msra.mxu0 0.0
    %8391 = vmatprep.subr.mxu0 0.0
    %8392 = vmatpush2.msra.mxu0 0.0
    %8393 = vmatprep.subr.mxu0 0.0
    %8394 = vmatpush2.msra.mxu0 0.0
    %8395 = vmatprep.subr.mxu0 0.0
    %8396 = vmatpush2.msra.mxu0 0.0
    %8397 = vmatprep.mubr.f32.mxu0 0.0
    %8398 = vmatmul.mubr.f32.gmra.mxu0 %v8331
    %v8399 = vpop.f32.mrf.mxu0
    %v8400 = vadd.f32 %v8325, %v8399
    %v8401 = vpop.f32.mrf.mxu0
    %8402 = vdwg.mxu0
    %vm8403 = vcmask 74752
    %8404 = vst.msk [vmem:[#allocation2] sm:$0x3] %vm8403, %v8400
    // Predicated region
    $region42: #{_lambda_.1} parent=1 // pred_check
      _
    $region43: #{_lambda_.1} parent=1 // pred_check_branch
      %8406 = sbr.rel (0) target = $region45
    $region44: #{_lambda_.1} parent=1 // pred_region
      %s8408 = ssub.s32 32, 32
      %8409 = vsyncadd [#allocation3], %s8408
      %s8411 = sshll.u32 [#allocation2], 4
      %s8412 = int_to_ptr.vmem [resolvable:$true] %s8411
      %8414 = dma.vmem_to_hbm [thread:$0]  %s8412, 32, %s10, [#allocation3]
    $region45: #{_lambda_.1} parent=1 // pred_fallthru
      _
    // Predicated region
    $region46: #{_lambda_.1} parent=1 // pred_check
      _
    $region47: #{_lambda_.1} parent=1 // pred_check_branch
      %8416 = sbr.rel (0) target = $region49
    $region48: #{_lambda_.1} parent=1 // pred_region
      %8417 = dma.done [#allocation3], 32
    $region49: #{_lambda_.1} parent=1 // pred_fallthru
      _
    %8418 = vsyncpa [#allocation3], 1

</llo_original>
